<compile_context>
chip_gen: v6e
topology: v6e:2x2x1
jax: 0.10.0
libtpu: 0.0.40
codegen_flags: <defaults>
</compile_context>

<pallas_src>
import jax
import jax.numpy as jnp
from jax.experimental import pallas as pl
from jax.experimental.pallas import tpu as pltpu


# ----------------------------------------------------------------------------
# Static per-layer geometry
# ----------------------------------------------------------------------------
def _layer_plan(h, w, chans):
    """[(hin, win, cin, cout, stride, hout, wout), ...] for a 4-layer branch."""
    plan = []
    for idx, (cin, cout) in enumerate(chans):
        stride = 1 if idx == 0 else 2
        ho, wo = (h, w) if stride == 1 else (h // 2, w // 2)
        plan.append((h, w, cin, cout, stride, ho, wo))
        h, w = ho, wo
    return plan


# ----------------------------------------------------------------------------
# Fully-fused discriminator kernel (batch folded into the matmul M dimension)
# ----------------------------------------------------------------------------
def _make_disc_kernel(plan1, plan2, npp):
    n1, n2 = len(plan1), len(plan2)
    n_layers = n1 + n2  # 8

    def conv_bn_relu(buf, spec, prm):
        """3x3 conv (pad=1, stride fused) + folded BN + ReLU as ONE im2col matmul.
           buf: (npp, hin+2, win+2, cin) f32 padded input (VMEM scratch ref).
           Returns (npp*ho*wo, cout) f32."""
        hin, win, cin, cout, stride, ho, wo = spec
        w_ref, a_ref, c_ref = prm
        m = npp * ho * wo
        taps = []
        if stride == 1:
            for kh in range(3):
                for kw in range(3):
                    t = buf[:, kh:kh + ho, kw:kw + wo, :]
                    taps.append(t.reshape(m, cin))
        else:
            # One 4-way polyphase decomposition per layer (strided reads on the
            # non-minor spatial dims); each tap is a static slice of a component.
            comps = {(a, b): buf[:, pl.ds(a, ho + 1, stride=2),
                                 pl.ds(b, wo + 1, stride=2), :]
                     for a in (0, 1) for b in (0, 1)}
            for kh in range(3):
                for kw in range(3):
                    c0 = comps[(kh % 2, kw % 2)]
                    t = c0[:, kh // 2:kh // 2 + ho, kw // 2:kw // 2 + wo, :]
                    taps.append(t.reshape(m, cin))
        # im2col patch matrix (M, 9*cin); single bf16 cast per layer.
        pmat = jnp.concatenate(taps, axis=1).astype(jnp.bfloat16)
        y = jnp.dot(pmat, w_ref[...], preferred_element_type=jnp.float32)
        y = y * a_ref[...] + c_ref[...]          # folded BN (eval) + conv bias
        return jnp.maximum(y, 0.0)               # ReLU

    def kernel(x_ref, *rest):
        p_refs = rest[:3 * n_layers]             # (w, scale, shift) x 8, in order
        o_ref = rest[3 * n_layers]               # (npp, 1) output block
        pad_bufs = rest[3 * n_layers + 1:]       # 8 padded-input VMEM scratch refs
        params = [p_refs[3 * i: 3 * i + 3] for i in range(n_layers)]
        params1, params2 = params[:n1], params[n1:]
        bufs1, bufs2 = pad_bufs[:n1], pad_bufs[n1:]

        # Zero only the 1-pixel halo strips (interiors are fully rewritten below).
        for buf in pad_bufs:
            _, hp, wp, c = buf.shape
            buf[:, 0:1, :, :] = jnp.zeros((npp, 1, wp, c), jnp.float32)
            buf[:, hp - 1:hp, :, :] = jnp.zeros((npp, 1, wp, c), jnp.float32)
            buf[:, :, 0:1, :] = jnp.zeros((npp, hp, 1, c), jnp.float32)
            buf[:, :, wp - 1:wp, :] = jnp.zeros((npp, hp, 1, c), jnp.float32)

        def run_branch(x0, plan, bufs_b, params_b):
            h0, w0 = plan[0][0], plan[0][1]
            bufs_b[0][:, 1:h0 + 1, 1:w0 + 1, :] = x0   # interior of layer-1 buffer
            mean = None
            for li, (spec, buf, prm) in enumerate(zip(plan, bufs_b, params_b)):
                hin, win, cin, cout, stride, ho, wo = spec
                y = conv_bn_relu(buf, spec, prm)        # (npp*ho*wo, cout) f32
                if li + 1 < len(plan):
                    bufs_b[li + 1][:, 1:ho + 1, 1:wo + 1, :] = (
                        y.reshape(npp, ho, wo, cout))
                else:
                    # per-image global mean over (cout, ho, wo)
                    s1 = jnp.sum(y.reshape(npp, ho * wo, cout), axis=1)   # (npp, cout)
                    s2 = jnp.sum(s1, axis=1, keepdims=True)               # (npp, 1)
                    mean = s2 * (1.0 / float(cout * ho * wo))
            return mean

        # ---- branch 1: full resolution ----
        m1 = run_branch(x_ref[...], plan1, bufs1, params1)

        # ---- branch 2: AvgPool2d(2, 2) of x, computed straight from x_ref ----
        hp2, wp2 = plan2[0][0], plan2[0][1]
        pooled = 0.25 * (
            x_ref[:, pl.ds(0, hp2, stride=2), pl.ds(0, wp2, stride=2), :]
            + x_ref[:, pl.ds(0, hp2, stride=2), pl.ds(1, wp2, stride=2), :]
            + x_ref[:, pl.ds(1, hp2, stride=2), pl.ds(0, wp2, stride=2), :]
            + x_ref[:, pl.ds(1, hp2, stride=2), pl.ds(1, wp2, stride=2), :])
        m2 = run_branch(pooled, plan2, bufs2, params2)

        # ---- head: sum of the two per-image means, numerically-stable sigmoid ----
        s = m1 + m2                                   # (npp, 1)
        o_ref[...] = 0.5 * (jnp.tanh(0.5 * s) + 1.0)

    return kernel


# ----------------------------------------------------------------------------
# Wrapper: single pallas_call for the whole forward pass
# ----------------------------------------------------------------------------
def discriminator_forward(x_nchw, params, *, num_programs=1):
    """num_programs=1 folds the whole batch into one program (best on single-TC
       v5e/v6e); set num_programs=2 on v7x to occupy both TensorCores."""
    n, c_in, h, w = x_nchw.shape
    g = num_programs
    assert n % g == 0, "batch must divide num_programs"
    npp = n // g
    assert h % 16 == 0 and w % 16 == 0, "spatial dims must be divisible by 16"

    # channels-last so that all in-kernel spatial slicing stays off the lane dim
    x_nhwc = jnp.transpose(x_nchw, (0, 2, 3, 1)).astype(jnp.float32)

    chans1 = [(p[0].shape[2], p[0].shape[3]) for p in params["branch1"]]
    chans2 = [(p[0].shape[2], p[0].shape[3]) for p in params["branch2"]]
    plan1 = _layer_plan(h, w, chans1)
    plan2 = _layer_plan(h // 2, w // 2, chans2)

    flat_inputs = [x_nhwc]
    in_specs = [pl.BlockSpec((npp, h, w, c_in), lambda i: (i, 0, 0, 0))]
    for wgt, scale, shift in params["branch1"] + params["branch2"]:
        _, _, cin, cout = wgt.shape
        # im2col weight: (3,3,cin,cout) -> (9*cin, cout), bf16 MXU operand
        w_flat = wgt.reshape(9 * cin, cout).astype(jnp.bfloat16)
        flat_inputs += [w_flat,
                        scale.reshape(1, cout).astype(jnp.float32),
                        shift.reshape(1, cout).astype(jnp.float32)]
        in_specs += [pl.BlockSpec((9 * cin, cout), lambda i: (0, 0)),
                     pl.BlockSpec((1, cout), lambda i: (0, 0)),
                     pl.BlockSpec((1, cout), lambda i: (0, 0))]

    # One padded-input VMEM buffer per conv layer (all intermediates stay on-chip).
    scratch_shapes = [pltpu.VMEM((npp, hin + 2, win + 2, cin), jnp.float32)
                      for (hin, win, cin, *_rest) in plan1 + plan2]

    kernel = _make_disc_kernel(plan1, plan2, npp)
    out = pl.pallas_call(
        kernel,
        out_shape=jax.ShapeDtypeStruct((n, 1), jnp.float32),
        grid=(g,),
        in_specs=in_specs,
        out_specs=pl.BlockSpec((npp, 1), lambda i: (i, 0)),
        scratch_shapes=scratch_shapes,
        compiler_params=pltpu.CompilerParams(
            dimension_semantics=("parallel",),
            vmem_limit_bytes=32 * 1024 * 1024),
    )(*flat_inputs)
    return out.reshape(n)


# ----------------------------------------------------------------------------
# Parameter construction (deterministic, synthetic)
# ----------------------------------------------------------------------------
def make_layer_params(key, cin, cout):
    kw, kb, kg, kbe, km, kv = jax.random.split(key, 6)
    w = 0.1 * jax.random.normal(kw, (3, 3, cin, cout), jnp.float32)      # HWIO
    b = 0.1 * jax.random.normal(kb, (cout,), jnp.float32)                # conv bias
    gamma = 1.0 + 0.1 * jax.random.normal(kg, (cout,), jnp.float32)
    beta = 0.1 * jax.random.normal(kbe, (cout,), jnp.float32)
    run_mean = 0.1 * jax.random.normal(km, (cout,), jnp.float32)
    run_var = 1.0 + 0.1 * jnp.abs(jax.random.normal(kv, (cout,), jnp.float32))
    eps = 1e-5                                                           # BatchNorm2d default
    scale = gamma / jnp.sqrt(run_var + eps)
    shift = beta + (b - run_mean) * scale
    return w, scale, shift


if __name__ == "__main__":
    key = jax.random.PRNGKey(0)
    N, Cin, H, W = 2, 6, 16, 16               # small shapes consistent with the module
    base = 8                                  # small base_channels for the synthetic run
    kx, kp = jax.random.split(key)

    x = jax.random.normal(kx, (N, Cin, H, W), jnp.float32)   # PyTorch-style NCHW input

    chans = [(Cin, base), (base, 2 * base), (2 * base, 4 * base), (4 * base, 8 * base)]
    keys = jax.random.split(kp, 8)
    params = {
        "branch1": [make_layer_params(keys[i], ci, co) for i, (ci, co) in enumerate(chans)],
        "branch2": [make_layer_params(keys[4 + i], ci, co) for i, (ci, co) in enumerate(chans)],
    }

    out = discriminator_forward(x, params)    # num_programs=1 (single-TC default)
    out = jax.block_until_ready(out)
    assert out.shape == (N,)
    assert bool(jnp.all(jnp.isfinite(out)))
    assert bool(jnp.all((out >= 0.0) & (out <= 1.0)))        # sigmoid range
    print("KERNEL_OK")
</pallas_src>

<mosaic_0001>
module attributes {stable_mosaic.version = 11 : i64} {
  func.func @kernel(%arg0: i32, %arg1: memref<2x16x16x6xf32, #tpu.memory_space<vmem>>, %arg2: memref<54x8xbf16, #tpu.memory_space<vmem>>, %arg3: memref<1x8xf32, #tpu.memory_space<vmem>>, %arg4: memref<1x8xf32, #tpu.memory_space<vmem>>, %arg5: memref<72x16xbf16, #tpu.memory_space<vmem>>, %arg6: memref<1x16xf32, #tpu.memory_space<vmem>>, %arg7: memref<1x16xf32, #tpu.memory_space<vmem>>, %arg8: memref<144x32xbf16, #tpu.memory_space<vmem>>, %arg9: memref<1x32xf32, #tpu.memory_space<vmem>>, %arg10: memref<1x32xf32, #tpu.memory_space<vmem>>, %arg11: memref<288x64xbf16, #tpu.memory_space<vmem>>, %arg12: memref<1x64xf32, #tpu.memory_space<vmem>>, %arg13: memref<1x64xf32, #tpu.memory_space<vmem>>, %arg14: memref<54x8xbf16, #tpu.memory_space<vmem>>, %arg15: memref<1x8xf32, #tpu.memory_space<vmem>>, %arg16: memref<1x8xf32, #tpu.memory_space<vmem>>, %arg17: memref<72x16xbf16, #tpu.memory_space<vmem>>, %arg18: memref<1x16xf32, #tpu.memory_space<vmem>>, %arg19: memref<1x16xf32, #tpu.memory_space<vmem>>, %arg20: memref<144x32xbf16, #tpu.memory_space<vmem>>, %arg21: memref<1x32xf32, #tpu.memory_space<vmem>>, %arg22: memref<1x32xf32, #tpu.memory_space<vmem>>, %arg23: memref<288x64xbf16, #tpu.memory_space<vmem>>, %arg24: memref<1x64xf32, #tpu.memory_space<vmem>>, %arg25: memref<1x64xf32, #tpu.memory_space<vmem>>, %arg26: memref<2x1xf32, #tpu.memory_space<vmem>>, %arg27: memref<2x18x18x6xf32, #tpu.memory_space<vmem>>, %arg28: memref<2x18x18x8xf32, #tpu.memory_space<vmem>>, %arg29: memref<2x10x10x16xf32, #tpu.memory_space<vmem>>, %arg30: memref<2x6x6x32xf32, #tpu.memory_space<vmem>>, %arg31: memref<2x10x10x6xf32, #tpu.memory_space<vmem>>, %arg32: memref<2x10x10x8xf32, #tpu.memory_space<vmem>>, %arg33: memref<2x6x6x16xf32, #tpu.memory_space<vmem>>, %arg34: memref<2x4x4x32xf32, #tpu.memory_space<vmem>>) attributes {dimension_semantics = [#tpu.dimension_semantics<parallel>], iteration_bounds = array<i64: 1>, scalar_prefetch = 0 : i64, scratch_operands = 8 : i64, tpu.core_type = #tpu.core_type<tc>, window_params = [{transform_indices = @transform_0, window_bounds = array<i64: 2, 16, 16, 6>}, {pipeline_mode = #tpu.pipeline_mode<synchronous>, transform_indices = @transform_1, window_bounds = array<i64: 54, 8>}, {pipeline_mode = #tpu.pipeline_mode<synchronous>, transform_indices = @transform_2, window_bounds = array<i64: 1, 8>}, {pipeline_mode = #tpu.pipeline_mode<synchronous>, transform_indices = @transform_3, window_bounds = array<i64: 1, 8>}, {pipeline_mode = #tpu.pipeline_mode<synchronous>, transform_indices = @transform_4, window_bounds = array<i64: 72, 16>}, {pipeline_mode = #tpu.pipeline_mode<synchronous>, transform_indices = @transform_5, window_bounds = array<i64: 1, 16>}, {pipeline_mode = #tpu.pipeline_mode<synchronous>, transform_indices = @transform_6, window_bounds = array<i64: 1, 16>}, {pipeline_mode = #tpu.pipeline_mode<synchronous>, transform_indices = @transform_7, window_bounds = array<i64: 144, 32>}, {pipeline_mode = #tpu.pipeline_mode<synchronous>, transform_indices = @transform_8, window_bounds = array<i64: 1, 32>}, {pipeline_mode = #tpu.pipeline_mode<synchronous>, transform_indices = @transform_9, window_bounds = array<i64: 1, 32>}, {pipeline_mode = #tpu.pipeline_mode<synchronous>, transform_indices = @transform_10, window_bounds = array<i64: 288, 64>}, {pipeline_mode = #tpu.pipeline_mode<synchronous>, transform_indices = @transform_11, window_bounds = array<i64: 1, 64>}, {pipeline_mode = #tpu.pipeline_mode<synchronous>, transform_indices = @transform_12, window_bounds = array<i64: 1, 64>}, {pipeline_mode = #tpu.pipeline_mode<synchronous>, transform_indices = @transform_13, window_bounds = array<i64: 54, 8>}, {pipeline_mode = #tpu.pipeline_mode<synchronous>, transform_indices = @transform_14, window_bounds = array<i64: 1, 8>}, {pipeline_mode = #tpu.pipeline_mode<synchronous>, transform_indices = @transform_15, window_bounds = array<i64: 1, 8>}, {pipeline_mode = #tpu.pipeline_mode<synchronous>, transform_indices = @transform_16, window_bounds = array<i64: 72, 16>}, {pipeline_mode = #tpu.pipeline_mode<synchronous>, transform_indices = @transform_17, window_bounds = array<i64: 1, 16>}, {pipeline_mode = #tpu.pipeline_mode<synchronous>, transform_indices = @transform_18, window_bounds = array<i64: 1, 16>}, {pipeline_mode = #tpu.pipeline_mode<synchronous>, transform_indices = @transform_19, window_bounds = array<i64: 144, 32>}, {pipeline_mode = #tpu.pipeline_mode<synchronous>, transform_indices = @transform_20, window_bounds = array<i64: 1, 32>}, {pipeline_mode = #tpu.pipeline_mode<synchronous>, transform_indices = @transform_21, window_bounds = array<i64: 1, 32>}, {pipeline_mode = #tpu.pipeline_mode<synchronous>, transform_indices = @transform_22, window_bounds = array<i64: 288, 64>}, {pipeline_mode = #tpu.pipeline_mode<synchronous>, transform_indices = @transform_23, window_bounds = array<i64: 1, 64>}, {pipeline_mode = #tpu.pipeline_mode<synchronous>, transform_indices = @transform_24, window_bounds = array<i64: 1, 64>}, {transform_indices = @transform_25, window_bounds = array<i64: 2, 1>}]} {
    %cst = arith.constant 0.000000e+00 : f32
    %0 = vector.broadcast %cst : f32 to vector<2x1x18x6xf32>
    %c0 = arith.constant 0 : index
    %c0_0 = arith.constant 0 : index
    %c0_1 = arith.constant 0 : index
    %c0_2 = arith.constant 0 : index
    %1 = vector.load %arg27[%c0, %c0_0, %c0_1, %c0_2] : memref<2x18x18x6xf32, #tpu.memory_space<vmem>>, vector<2x1x18x6xf32>
    tpu.vector_store %arg27[%c0, %c0_0, %c0_1, %c0_2], %0 {strides = array<i32>} : memref<2x18x18x6xf32, #tpu.memory_space<vmem>>, vector<2x1x18x6xf32>,
    %cst_3 = arith.constant 0.000000e+00 : f32
    %2 = vector.broadcast %cst_3 : f32 to vector<2x1x18x6xf32>
    %c0_4 = arith.constant 0 : index
    %c17 = arith.constant 17 : index
    %c0_5 = arith.constant 0 : index
    %c0_6 = arith.constant 0 : index
    %3 = vector.load %arg27[%c0_4, %c17, %c0_5, %c0_6] : memref<2x18x18x6xf32, #tpu.memory_space<vmem>>, vector<2x1x18x6xf32>
    tpu.vector_store %arg27[%c0_4, %c17, %c0_5, %c0_6], %2 {strides = array<i32>} : memref<2x18x18x6xf32, #tpu.memory_space<vmem>>, vector<2x1x18x6xf32>,
    %cst_7 = arith.constant 0.000000e+00 : f32
    %4 = vector.broadcast %cst_7 : f32 to vector<2x18x1x6xf32>
    %c0_8 = arith.constant 0 : index
    %c0_9 = arith.constant 0 : index
    %c0_10 = arith.constant 0 : index
    %c0_11 = arith.constant 0 : index
    %5 = vector.load %arg27[%c0_8, %c0_9, %c0_10, %c0_11] : memref<2x18x18x6xf32, #tpu.memory_space<vmem>>, vector<2x18x1x6xf32>
    tpu.vector_store %arg27[%c0_8, %c0_9, %c0_10, %c0_11], %4 {strides = array<i32>} : memref<2x18x18x6xf32, #tpu.memory_space<vmem>>, vector<2x18x1x6xf32>,
    %cst_12 = arith.constant 0.000000e+00 : f32
    %6 = vector.broadcast %cst_12 : f32 to vector<2x18x1x6xf32>
    %c0_13 = arith.constant 0 : index
    %c0_14 = arith.constant 0 : index
    %c17_15 = arith.constant 17 : index
    %c0_16 = arith.constant 0 : index
    %7 = vector.load %arg27[%c0_13, %c0_14, %c17_15, %c0_16] : memref<2x18x18x6xf32, #tpu.memory_space<vmem>>, vector<2x18x1x6xf32>
    tpu.vector_store %arg27[%c0_13, %c0_14, %c17_15, %c0_16], %6 {strides = array<i32>} : memref<2x18x18x6xf32, #tpu.memory_space<vmem>>, vector<2x18x1x6xf32>,
    %cst_17 = arith.constant 0.000000e+00 : f32
    %8 = vector.broadcast %cst_17 : f32 to vector<2x1x18x8xf32>
    %c0_18 = arith.constant 0 : index
    %c0_19 = arith.constant 0 : index
    %c0_20 = arith.constant 0 : index
    %c0_21 = arith.constant 0 : index
    %9 = vector.load %arg28[%c0_18, %c0_19, %c0_20, %c0_21] : memref<2x18x18x8xf32, #tpu.memory_space<vmem>>, vector<2x1x18x8xf32>
    tpu.vector_store %arg28[%c0_18, %c0_19, %c0_20, %c0_21], %8 {strides = array<i32>} : memref<2x18x18x8xf32, #tpu.memory_space<vmem>>, vector<2x1x18x8xf32>,
    %cst_22 = arith.constant 0.000000e+00 : f32
    %10 = vector.broadcast %cst_22 : f32 to vector<2x1x18x8xf32>
    %c0_23 = arith.constant 0 : index
    %c17_24 = arith.constant 17 : index
    %c0_25 = arith.constant 0 : index
    %c0_26 = arith.constant 0 : index
    %11 = vector.load %arg28[%c0_23, %c17_24, %c0_25, %c0_26] : memref<2x18x18x8xf32, #tpu.memory_space<vmem>>, vector<2x1x18x8xf32>
    tpu.vector_store %arg28[%c0_23, %c17_24, %c0_25, %c0_26], %10 {strides = array<i32>} : memref<2x18x18x8xf32, #tpu.memory_space<vmem>>, vector<2x1x18x8xf32>,
    %cst_27 = arith.constant 0.000000e+00 : f32
    %12 = vector.broadcast %cst_27 : f32 to vector<2x18x1x8xf32>
    %c0_28 = arith.constant 0 : index
    %c0_29 = arith.constant 0 : index
    %c0_30 = arith.constant 0 : index
    %c0_31 = arith.constant 0 : index
    %13 = vector.load %arg28[%c0_28, %c0_29, %c0_30, %c0_31] : memref<2x18x18x8xf32, #tpu.memory_space<vmem>>, vector<2x18x1x8xf32>
    tpu.vector_store %arg28[%c0_28, %c0_29, %c0_30, %c0_31], %12 {strides = array<i32>} : memref<2x18x18x8xf32, #tpu.memory_space<vmem>>, vector<2x18x1x8xf32>,
    %cst_32 = arith.constant 0.000000e+00 : f32
    %14 = vector.broadcast %cst_32 : f32 to vector<2x18x1x8xf32>
    %c0_33 = arith.constant 0 : index
    %c0_34 = arith.constant 0 : index
    %c17_35 = arith.constant 17 : index
    %c0_36 = arith.constant 0 : index
    %15 = vector.load %arg28[%c0_33, %c0_34, %c17_35, %c0_36] : memref<2x18x18x8xf32, #tpu.memory_space<vmem>>, vector<2x18x1x8xf32>
    tpu.vector_store %arg28[%c0_33, %c0_34, %c17_35, %c0_36], %14 {strides = array<i32>} : memref<2x18x18x8xf32, #tpu.memory_space<vmem>>, vector<2x18x1x8xf32>,
    %cst_37 = arith.constant 0.000000e+00 : f32
    %16 = vector.broadcast %cst_37 : f32 to vector<2x1x10x16xf32>
    %c0_38 = arith.constant 0 : index
    %c0_39 = arith.constant 0 : index
    %c0_40 = arith.constant 0 : index
    %c0_41 = arith.constant 0 : index
    %17 = vector.load %arg29[%c0_38, %c0_39, %c0_40, %c0_41] : memref<2x10x10x16xf32, #tpu.memory_space<vmem>>, vector<2x1x10x16xf32>
    tpu.vector_store %arg29[%c0_38, %c0_39, %c0_40, %c0_41], %16 {strides = array<i32>} : memref<2x10x10x16xf32, #tpu.memory_space<vmem>>, vector<2x1x10x16xf32>,
    %cst_42 = arith.constant 0.000000e+00 : f32
    %18 = vector.broadcast %cst_42 : f32 to vector<2x1x10x16xf32>
    %c0_43 = arith.constant 0 : index
    %c9 = arith.constant 9 : index
    %c0_44 = arith.constant 0 : index
    %c0_45 = arith.constant 0 : index
    %19 = vector.load %arg29[%c0_43, %c9, %c0_44, %c0_45] : memref<2x10x10x16xf32, #tpu.memory_space<vmem>>, vector<2x1x10x16xf32>
    tpu.vector_store %arg29[%c0_43, %c9, %c0_44, %c0_45], %18 {strides = array<i32>} : memref<2x10x10x16xf32, #tpu.memory_space<vmem>>, vector<2x1x10x16xf32>,
    %cst_46 = arith.constant 0.000000e+00 : f32
    %20 = vector.broadcast %cst_46 : f32 to vector<2x10x1x16xf32>
    %c0_47 = arith.constant 0 : index
    %c0_48 = arith.constant 0 : index
    %c0_49 = arith.constant 0 : index
    %c0_50 = arith.constant 0 : index
    %21 = vector.load %arg29[%c0_47, %c0_48, %c0_49, %c0_50] : memref<2x10x10x16xf32, #tpu.memory_space<vmem>>, vector<2x10x1x16xf32>
    tpu.vector_store %arg29[%c0_47, %c0_48, %c0_49, %c0_50], %20 {strides = array<i32>} : memref<2x10x10x16xf32, #tpu.memory_space<vmem>>, vector<2x10x1x16xf32>,
    %cst_51 = arith.constant 0.000000e+00 : f32
    %22 = vector.broadcast %cst_51 : f32 to vector<2x10x1x16xf32>
    %c0_52 = arith.constant 0 : index
    %c0_53 = arith.constant 0 : index
    %c9_54 = arith.constant 9 : index
    %c0_55 = arith.constant 0 : index
    %23 = vector.load %arg29[%c0_52, %c0_53, %c9_54, %c0_55] : memref<2x10x10x16xf32, #tpu.memory_space<vmem>>, vector<2x10x1x16xf32>
    tpu.vector_store %arg29[%c0_52, %c0_53, %c9_54, %c0_55], %22 {strides = array<i32>} : memref<2x10x10x16xf32, #tpu.memory_space<vmem>>, vector<2x10x1x16xf32>,
    %cst_56 = arith.constant 0.000000e+00 : f32
    %24 = vector.broadcast %cst_56 : f32 to vector<2x1x6x32xf32>
    %c0_57 = arith.constant 0 : index
    %c0_58 = arith.constant 0 : index
    %c0_59 = arith.constant 0 : index
    %c0_60 = arith.constant 0 : index
    %25 = vector.load %arg30[%c0_57, %c0_58, %c0_59, %c0_60] : memref<2x6x6x32xf32, #tpu.memory_space<vmem>>, vector<2x1x6x32xf32>
    tpu.vector_store %arg30[%c0_57, %c0_58, %c0_59, %c0_60], %24 {strides = array<i32>} : memref<2x6x6x32xf32, #tpu.memory_space<vmem>>, vector<2x1x6x32xf32>,
    %cst_61 = arith.constant 0.000000e+00 : f32
    %26 = vector.broadcast %cst_61 : f32 to vector<2x1x6x32xf32>
    %c0_62 = arith.constant 0 : index
    %c5 = arith.constant 5 : index
    %c0_63 = arith.constant 0 : index
    %c0_64 = arith.constant 0 : index
    %27 = vector.load %arg30[%c0_62, %c5, %c0_63, %c0_64] : memref<2x6x6x32xf32, #tpu.memory_space<vmem>>, vector<2x1x6x32xf32>
    tpu.vector_store %arg30[%c0_62, %c5, %c0_63, %c0_64], %26 {strides = array<i32>} : memref<2x6x6x32xf32, #tpu.memory_space<vmem>>, vector<2x1x6x32xf32>,
    %cst_65 = arith.constant 0.000000e+00 : f32
    %28 = vector.broadcast %cst_65 : f32 to vector<2x6x1x32xf32>
    %c0_66 = arith.constant 0 : index
    %c0_67 = arith.constant 0 : index
    %c0_68 = arith.constant 0 : index
    %c0_69 = arith.constant 0 : index
    %29 = vector.load %arg30[%c0_66, %c0_67, %c0_68, %c0_69] : memref<2x6x6x32xf32, #tpu.memory_space<vmem>>, vector<2x6x1x32xf32>
    tpu.vector_store %arg30[%c0_66, %c0_67, %c0_68, %c0_69], %28 {strides = array<i32>} : memref<2x6x6x32xf32, #tpu.memory_space<vmem>>, vector<2x6x1x32xf32>,
    %cst_70 = arith.constant 0.000000e+00 : f32
    %30 = vector.broadcast %cst_70 : f32 to vector<2x6x1x32xf32>
    %c0_71 = arith.constant 0 : index
    %c0_72 = arith.constant 0 : index
    %c5_73 = arith.constant 5 : index
    %c0_74 = arith.constant 0 : index
    %31 = vector.load %arg30[%c0_71, %c0_72, %c5_73, %c0_74] : memref<2x6x6x32xf32, #tpu.memory_space<vmem>>, vector<2x6x1x32xf32>
    tpu.vector_store %arg30[%c0_71, %c0_72, %c5_73, %c0_74], %30 {strides = array<i32>} : memref<2x6x6x32xf32, #tpu.memory_space<vmem>>, vector<2x6x1x32xf32>,
    %cst_75 = arith.constant 0.000000e+00 : f32
    %32 = vector.broadcast %cst_75 : f32 to vector<2x1x10x6xf32>
    %c0_76 = arith.constant 0 : index
    %c0_77 = arith.constant 0 : index
    %c0_78 = arith.constant 0 : index
    %c0_79 = arith.constant 0 : index
    %33 = vector.load %arg31[%c0_76, %c0_77, %c0_78, %c0_79] : memref<2x10x10x6xf32, #tpu.memory_space<vmem>>, vector<2x1x10x6xf32>
    tpu.vector_store %arg31[%c0_76, %c0_77, %c0_78, %c0_79], %32 {strides = array<i32>} : memref<2x10x10x6xf32, #tpu.memory_space<vmem>>, vector<2x1x10x6xf32>,
    %cst_80 = arith.constant 0.000000e+00 : f32
    %34 = vector.broadcast %cst_80 : f32 to vector<2x1x10x6xf32>
    %c0_81 = arith.constant 0 : index
    %c9_82 = arith.constant 9 : index
    %c0_83 = arith.constant 0 : index
    %c0_84 = arith.constant 0 : index
    %35 = vector.load %arg31[%c0_81, %c9_82, %c0_83, %c0_84] : memref<2x10x10x6xf32, #tpu.memory_space<vmem>>, vector<2x1x10x6xf32>
    tpu.vector_store %arg31[%c0_81, %c9_82, %c0_83, %c0_84], %34 {strides = array<i32>} : memref<2x10x10x6xf32, #tpu.memory_space<vmem>>, vector<2x1x10x6xf32>,
    %cst_85 = arith.constant 0.000000e+00 : f32
    %36 = vector.broadcast %cst_85 : f32 to vector<2x10x1x6xf32>
    %c0_86 = arith.constant 0 : index
    %c0_87 = arith.constant 0 : index
    %c0_88 = arith.constant 0 : index
    %c0_89 = arith.constant 0 : index
    %37 = vector.load %arg31[%c0_86, %c0_87, %c0_88, %c0_89] : memref<2x10x10x6xf32, #tpu.memory_space<vmem>>, vector<2x10x1x6xf32>
    tpu.vector_store %arg31[%c0_86, %c0_87, %c0_88, %c0_89], %36 {strides = array<i32>} : memref<2x10x10x6xf32, #tpu.memory_space<vmem>>, vector<2x10x1x6xf32>,
    %cst_90 = arith.constant 0.000000e+00 : f32
    %38 = vector.broadcast %cst_90 : f32 to vector<2x10x1x6xf32>
    %c0_91 = arith.constant 0 : index
    %c0_92 = arith.constant 0 : index
    %c9_93 = arith.constant 9 : index
    %c0_94 = arith.constant 0 : index
    %39 = vector.load %arg31[%c0_91, %c0_92, %c9_93, %c0_94] : memref<2x10x10x6xf32, #tpu.memory_space<vmem>>, vector<2x10x1x6xf32>
    tpu.vector_store %arg31[%c0_91, %c0_92, %c9_93, %c0_94], %38 {strides = array<i32>} : memref<2x10x10x6xf32, #tpu.memory_space<vmem>>, vector<2x10x1x6xf32>,
    %cst_95 = arith.constant 0.000000e+00 : f32
    %40 = vector.broadcast %cst_95 : f32 to vector<2x1x10x8xf32>
    %c0_96 = arith.constant 0 : index
    %c0_97 = arith.constant 0 : index
    %c0_98 = arith.constant 0 : index
    %c0_99 = arith.constant 0 : index
    %41 = vector.load %arg32[%c0_96, %c0_97, %c0_98, %c0_99] : memref<2x10x10x8xf32, #tpu.memory_space<vmem>>, vector<2x1x10x8xf32>
    tpu.vector_store %arg32[%c0_96, %c0_97, %c0_98, %c0_99], %40 {strides = array<i32>} : memref<2x10x10x8xf32, #tpu.memory_space<vmem>>, vector<2x1x10x8xf32>,
    %cst_100 = arith.constant 0.000000e+00 : f32
    %42 = vector.broadcast %cst_100 : f32 to vector<2x1x10x8xf32>
    %c0_101 = arith.constant 0 : index
    %c9_102 = arith.constant 9 : index
    %c0_103 = arith.constant 0 : index
    %c0_104 = arith.constant 0 : index
    %43 = vector.load %arg32[%c0_101, %c9_102, %c0_103, %c0_104] : memref<2x10x10x8xf32, #tpu.memory_space<vmem>>, vector<2x1x10x8xf32>
    tpu.vector_store %arg32[%c0_101, %c9_102, %c0_103, %c0_104], %42 {strides = array<i32>} : memref<2x10x10x8xf32, #tpu.memory_space<vmem>>, vector<2x1x10x8xf32>,
    %cst_105 = arith.constant 0.000000e+00 : f32
    %44 = vector.broadcast %cst_105 : f32 to vector<2x10x1x8xf32>
    %c0_106 = arith.constant 0 : index
    %c0_107 = arith.constant 0 : index
    %c0_108 = arith.constant 0 : index
    %c0_109 = arith.constant 0 : index
    %45 = vector.load %arg32[%c0_106, %c0_107, %c0_108, %c0_109] : memref<2x10x10x8xf32, #tpu.memory_space<vmem>>, vector<2x10x1x8xf32>
    tpu.vector_store %arg32[%c0_106, %c0_107, %c0_108, %c0_109], %44 {strides = array<i32>} : memref<2x10x10x8xf32, #tpu.memory_space<vmem>>, vector<2x10x1x8xf32>,
    %cst_110 = arith.constant 0.000000e+00 : f32
    %46 = vector.broadcast %cst_110 : f32 to vector<2x10x1x8xf32>
    %c0_111 = arith.constant 0 : index
    %c0_112 = arith.constant 0 : index
    %c9_113 = arith.constant 9 : index
    %c0_114 = arith.constant 0 : index
    %47 = vector.load %arg32[%c0_111, %c0_112, %c9_113, %c0_114] : memref<2x10x10x8xf32, #tpu.memory_space<vmem>>, vector<2x10x1x8xf32>
    tpu.vector_store %arg32[%c0_111, %c0_112, %c9_113, %c0_114], %46 {strides = array<i32>} : memref<2x10x10x8xf32, #tpu.memory_space<vmem>>, vector<2x10x1x8xf32>,
    %cst_115 = arith.constant 0.000000e+00 : f32
    %48 = vector.broadcast %cst_115 : f32 to vector<2x1x6x16xf32>
    %c0_116 = arith.constant 0 : index
    %c0_117 = arith.constant 0 : index
    %c0_118 = arith.constant 0 : index
    %c0_119 = arith.constant 0 : index
    %49 = vector.load %arg33[%c0_116, %c0_117, %c0_118, %c0_119] : memref<2x6x6x16xf32, #tpu.memory_space<vmem>>, vector<2x1x6x16xf32>
    tpu.vector_store %arg33[%c0_116, %c0_117, %c0_118, %c0_119], %48 {strides = array<i32>} : memref<2x6x6x16xf32, #tpu.memory_space<vmem>>, vector<2x1x6x16xf32>,
    %cst_120 = arith.constant 0.000000e+00 : f32
    %50 = vector.broadcast %cst_120 : f32 to vector<2x1x6x16xf32>
    %c0_121 = arith.constant 0 : index
    %c5_122 = arith.constant 5 : index
    %c0_123 = arith.constant 0 : index
    %c0_124 = arith.constant 0 : index
    %51 = vector.load %arg33[%c0_121, %c5_122, %c0_123, %c0_124] : memref<2x6x6x16xf32, #tpu.memory_space<vmem>>, vector<2x1x6x16xf32>
    tpu.vector_store %arg33[%c0_121, %c5_122, %c0_123, %c0_124], %50 {strides = array<i32>} : memref<2x6x6x16xf32, #tpu.memory_space<vmem>>, vector<2x1x6x16xf32>,
    %cst_125 = arith.constant 0.000000e+00 : f32
    %52 = vector.broadcast %cst_125 : f32 to vector<2x6x1x16xf32>
    %c0_126 = arith.constant 0 : index
    %c0_127 = arith.constant 0 : index
    %c0_128 = arith.constant 0 : index
    %c0_129 = arith.constant 0 : index
    %53 = vector.load %arg33[%c0_126, %c0_127, %c0_128, %c0_129] : memref<2x6x6x16xf32, #tpu.memory_space<vmem>>, vector<2x6x1x16xf32>
    tpu.vector_store %arg33[%c0_126, %c0_127, %c0_128, %c0_129], %52 {strides = array<i32>} : memref<2x6x6x16xf32, #tpu.memory_space<vmem>>, vector<2x6x1x16xf32>,
    %cst_130 = arith.constant 0.000000e+00 : f32
    %54 = vector.broadcast %cst_130 : f32 to vector<2x6x1x16xf32>
    %c0_131 = arith.constant 0 : index
    %c0_132 = arith.constant 0 : index
    %c5_133 = arith.constant 5 : index
    %c0_134 = arith.constant 0 : index
    %55 = vector.load %arg33[%c0_131, %c0_132, %c5_133, %c0_134] : memref<2x6x6x16xf32, #tpu.memory_space<vmem>>, vector<2x6x1x16xf32>
    tpu.vector_store %arg33[%c0_131, %c0_132, %c5_133, %c0_134], %54 {strides = array<i32>} : memref<2x6x6x16xf32, #tpu.memory_space<vmem>>, vector<2x6x1x16xf32>,
    %cst_135 = arith.constant 0.000000e+00 : f32
    %56 = vector.broadcast %cst_135 : f32 to vector<2x1x4x32xf32>
    %c0_136 = arith.constant 0 : index
    %c0_137 = arith.constant 0 : index
    %c0_138 = arith.constant 0 : index
    %c0_139 = arith.constant 0 : index
    %57 = vector.load %arg34[%c0_136, %c0_137, %c0_138, %c0_139] : memref<2x4x4x32xf32, #tpu.memory_space<vmem>>, vector<2x1x4x32xf32>
    tpu.vector_store %arg34[%c0_136, %c0_137, %c0_138, %c0_139], %56 {strides = array<i32>} : memref<2x4x4x32xf32, #tpu.memory_space<vmem>>, vector<2x1x4x32xf32>,
    %cst_140 = arith.constant 0.000000e+00 : f32
    %58 = vector.broadcast %cst_140 : f32 to vector<2x1x4x32xf32>
    %c0_141 = arith.constant 0 : index
    %c3 = arith.constant 3 : index
    %c0_142 = arith.constant 0 : index
    %c0_143 = arith.constant 0 : index
    %59 = vector.load %arg34[%c0_141, %c3, %c0_142, %c0_143] : memref<2x4x4x32xf32, #tpu.memory_space<vmem>>, vector<2x1x4x32xf32>
    tpu.vector_store %arg34[%c0_141, %c3, %c0_142, %c0_143], %58 {strides = array<i32>} : memref<2x4x4x32xf32, #tpu.memory_space<vmem>>, vector<2x1x4x32xf32>,
    %cst_144 = arith.constant 0.000000e+00 : f32
    %60 = vector.broadcast %cst_144 : f32 to vector<2x4x1x32xf32>
    %c0_145 = arith.constant 0 : index
    %c0_146 = arith.constant 0 : index
    %c0_147 = arith.constant 0 : index
    %c0_148 = arith.constant 0 : index
    %61 = vector.load %arg34[%c0_145, %c0_146, %c0_147, %c0_148] : memref<2x4x4x32xf32, #tpu.memory_space<vmem>>, vector<2x4x1x32xf32>
    tpu.vector_store %arg34[%c0_145, %c0_146, %c0_147, %c0_148], %60 {strides = array<i32>} : memref<2x4x4x32xf32, #tpu.memory_space<vmem>>, vector<2x4x1x32xf32>,
    %cst_149 = arith.constant 0.000000e+00 : f32
    %62 = vector.broadcast %cst_149 : f32 to vector<2x4x1x32xf32>
    %c0_150 = arith.constant 0 : index
    %c0_151 = arith.constant 0 : index
    %c3_152 = arith.constant 3 : index
    %c0_153 = arith.constant 0 : index
    %63 = vector.load %arg34[%c0_150, %c0_151, %c3_152, %c0_153] : memref<2x4x4x32xf32, #tpu.memory_space<vmem>>, vector<2x4x1x32xf32>
    tpu.vector_store %arg34[%c0_150, %c0_151, %c3_152, %c0_153], %62 {strides = array<i32>} : memref<2x4x4x32xf32, #tpu.memory_space<vmem>>, vector<2x4x1x32xf32>,
    %c0_154 = arith.constant 0 : index
    %c0_155 = arith.constant 0 : index
    %c0_156 = arith.constant 0 : index
    %c0_157 = arith.constant 0 : index
    %64 = vector.load %arg1[%c0_154, %c0_155, %c0_156, %c0_157] : memref<2x16x16x6xf32, #tpu.memory_space<vmem>>, vector<2x16x16x6xf32>
    %c0_158 = arith.constant 0 : index
    %c1 = arith.constant 1 : index
    %c1_159 = arith.constant 1 : index
    %c0_160 = arith.constant 0 : index
    %65 = vector.load %arg27[%c0_158, %c1, %c1_159, %c0_160] : memref<2x18x18x6xf32, #tpu.memory_space<vmem>>, vector<2x16x16x6xf32>
    tpu.vector_store %arg27[%c0_158, %c1, %c1_159, %c0_160], %64 {strides = array<i32>} : memref<2x18x18x6xf32, #tpu.memory_space<vmem>>, vector<2x16x16x6xf32>,
    %c0_161 = arith.constant 0 : index
    %c0_162 = arith.constant 0 : index
    %c0_163 = arith.constant 0 : index
    %c0_164 = arith.constant 0 : index
    %66 = vector.load %arg27[%c0_161, %c0_162, %c0_163, %c0_164] : memref<2x18x18x6xf32, #tpu.memory_space<vmem>>, vector<2x16x16x6xf32>
    %67 = vector.shape_cast %66 : vector<2x16x16x6xf32> to vector<512x6xf32>
    %c0_165 = arith.constant 0 : index
    %c0_166 = arith.constant 0 : index
    %c1_167 = arith.constant 1 : index
    %c0_168 = arith.constant 0 : index
    %68 = vector.load %arg27[%c0_165, %c0_166, %c1_167, %c0_168] : memref<2x18x18x6xf32, #tpu.memory_space<vmem>>, vector<2x16x16x6xf32>
    %69 = vector.shape_cast %68 : vector<2x16x16x6xf32> to vector<512x6xf32>
    %c0_169 = arith.constant 0 : index
    %c0_170 = arith.constant 0 : index
    %c2 = arith.constant 2 : index
    %c0_171 = arith.constant 0 : index
    %70 = vector.load %arg27[%c0_169, %c0_170, %c2, %c0_171] : memref<2x18x18x6xf32, #tpu.memory_space<vmem>>, vector<2x16x16x6xf32>
    %71 = vector.shape_cast %70 : vector<2x16x16x6xf32> to vector<512x6xf32>
    %c0_172 = arith.constant 0 : index
    %c1_173 = arith.constant 1 : index
    %c0_174 = arith.constant 0 : index
    %c0_175 = arith.constant 0 : index
    %72 = vector.load %arg27[%c0_172, %c1_173, %c0_174, %c0_175] : memref<2x18x18x6xf32, #tpu.memory_space<vmem>>, vector<2x16x16x6xf32>
    %73 = vector.shape_cast %72 : vector<2x16x16x6xf32> to vector<512x6xf32>
    %c0_176 = arith.constant 0 : index
    %c1_177 = arith.constant 1 : index
    %c1_178 = arith.constant 1 : index
    %c0_179 = arith.constant 0 : index
    %74 = vector.load %arg27[%c0_176, %c1_177, %c1_178, %c0_179] : memref<2x18x18x6xf32, #tpu.memory_space<vmem>>, vector<2x16x16x6xf32>
    %75 = vector.shape_cast %74 : vector<2x16x16x6xf32> to vector<512x6xf32>
    %c0_180 = arith.constant 0 : index
    %c1_181 = arith.constant 1 : index
    %c2_182 = arith.constant 2 : index
    %c0_183 = arith.constant 0 : index
    %76 = vector.load %arg27[%c0_180, %c1_181, %c2_182, %c0_183] : memref<2x18x18x6xf32, #tpu.memory_space<vmem>>, vector<2x16x16x6xf32>
    %77 = vector.shape_cast %76 : vector<2x16x16x6xf32> to vector<512x6xf32>
    %c0_184 = arith.constant 0 : index
    %c2_185 = arith.constant 2 : index
    %c0_186 = arith.constant 0 : index
    %c0_187 = arith.constant 0 : index
    %78 = vector.load %arg27[%c0_184, %c2_185, %c0_186, %c0_187] : memref<2x18x18x6xf32, #tpu.memory_space<vmem>>, vector<2x16x16x6xf32>
    %79 = vector.shape_cast %78 : vector<2x16x16x6xf32> to vector<512x6xf32>
    %c0_188 = arith.constant 0 : index
    %c2_189 = arith.constant 2 : index
    %c1_190 = arith.constant 1 : index
    %c0_191 = arith.constant 0 : index
    %80 = vector.load %arg27[%c0_188, %c2_189, %c1_190, %c0_191] : memref<2x18x18x6xf32, #tpu.memory_space<vmem>>, vector<2x16x16x6xf32>
    %81 = vector.shape_cast %80 : vector<2x16x16x6xf32> to vector<512x6xf32>
    %c0_192 = arith.constant 0 : index
    %c2_193 = arith.constant 2 : index
    %c2_194 = arith.constant 2 : index
    %c0_195 = arith.constant 0 : index
    %82 = vector.load %arg27[%c0_192, %c2_193, %c2_194, %c0_195] : memref<2x18x18x6xf32, #tpu.memory_space<vmem>>, vector<2x16x16x6xf32>
    %83 = vector.shape_cast %82 : vector<2x16x16x6xf32> to vector<512x6xf32>
    %84 = tpu.concatenate %67, %69, %71, %73, %75, %77, %79, %81, %83 in 1 : vector<512x6xf32>, vector<512x6xf32>, vector<512x6xf32>, vector<512x6xf32>, vector<512x6xf32>, vector<512x6xf32>, vector<512x6xf32>, vector<512x6xf32>, vector<512x6xf32> -> vector<512x54xf32>
    %85 = arith.truncf %84 : vector<512x54xf32> to vector<512x54xbf16>
    %c0_196 = arith.constant 0 : index
    %c0_197 = arith.constant 0 : index
    %86 = vector.load %arg2[%c0_196, %c0_197] : memref<54x8xbf16, #tpu.memory_space<vmem>>, vector<54x8xbf16>
    %cst_198 = arith.constant dense<0.000000e+00> : vector<512x8xf32>
    %87 = tpu.matmul %85, %86, %cst_198 {dimension_numbers = #tpu.dot_dimension_numbers<[1], [0], [0], [1], [0, 0, 1, 1], [], []>} : vector<512x54xbf16>, vector<54x8xbf16>, vector<512x8xf32> -> vector<512x8xf32>
    %c0_199 = arith.constant 0 : index
    %c0_200 = arith.constant 0 : index
    %88 = vector.load %arg3[%c0_199, %c0_200] : memref<1x8xf32, #tpu.memory_space<vmem>>, vector<1x8xf32>
    %89 = vector.broadcast %88 : vector<1x8xf32> to vector<512x8xf32>
    %90 = arith.mulf %87, %89 : vector<512x8xf32>
    %c0_201 = arith.constant 0 : index
    %c0_202 = arith.constant 0 : index
    %91 = vector.load %arg4[%c0_201, %c0_202] : memref<1x8xf32, #tpu.memory_space<vmem>>, vector<1x8xf32>
    %92 = vector.broadcast %91 : vector<1x8xf32> to vector<512x8xf32>
    %93 = arith.addf %90, %92 : vector<512x8xf32>
    %cst_203 = arith.constant 0.000000e+00 : f32
    %94 = vector.broadcast %cst_203 : f32 to vector<512x8xf32>
    %95 = arith.maximumf %93, %94 : vector<512x8xf32>
    %96 = vector.shape_cast %95 : vector<512x8xf32> to vector<2x16x16x8xf32>
    %c0_204 = arith.constant 0 : index
    %c1_205 = arith.constant 1 : index
    %c1_206 = arith.constant 1 : index
    %c0_207 = arith.constant 0 : index
    %97 = vector.load %arg28[%c0_204, %c1_205, %c1_206, %c0_207] : memref<2x18x18x8xf32, #tpu.memory_space<vmem>>, vector<2x16x16x8xf32>
    tpu.vector_store %arg28[%c0_204, %c1_205, %c1_206, %c0_207], %96 {strides = array<i32>} : memref<2x18x18x8xf32, #tpu.memory_space<vmem>>, vector<2x16x16x8xf32>,
    %c0_208 = arith.constant 0 : index
    %c0_209 = arith.constant 0 : index
    %c0_210 = arith.constant 0 : index
    %c0_211 = arith.constant 0 : index
    %98 = tpu.strided_load %arg28[%c0_208, %c0_209, %c0_210, %c0_211] {strides = array<i32: 1, 2, 2, 1>} : memref<2x18x18x8xf32, #tpu.memory_space<vmem>>, vector<2x9x9x8xf32>
    %c0_212 = arith.constant 0 : index
    %c0_213 = arith.constant 0 : index
    %c1_214 = arith.constant 1 : index
    %c0_215 = arith.constant 0 : index
    %99 = tpu.strided_load %arg28[%c0_212, %c0_213, %c1_214, %c0_215] {strides = array<i32: 1, 2, 2, 1>} : memref<2x18x18x8xf32, #tpu.memory_space<vmem>>, vector<2x9x9x8xf32>
    %c0_216 = arith.constant 0 : index
    %c1_217 = arith.constant 1 : index
    %c0_218 = arith.constant 0 : index
    %c0_219 = arith.constant 0 : index
    %100 = tpu.strided_load %arg28[%c0_216, %c1_217, %c0_218, %c0_219] {strides = array<i32: 1, 2, 2, 1>} : memref<2x18x18x8xf32, #tpu.memory_space<vmem>>, vector<2x9x9x8xf32>
    %c0_220 = arith.constant 0 : index
    %c1_221 = arith.constant 1 : index
    %c1_222 = arith.constant 1 : index
    %c0_223 = arith.constant 0 : index
    %101 = tpu.strided_load %arg28[%c0_220, %c1_221, %c1_222, %c0_223] {strides = array<i32: 1, 2, 2, 1>} : memref<2x18x18x8xf32, #tpu.memory_space<vmem>>, vector<2x9x9x8xf32>
    %102 = vector.extract_strided_slice %98 {offsets = [0, 0, 0, 0], sizes = [2, 8, 8, 8], strides = [1, 1, 1, 1]} : vector<2x9x9x8xf32> to vector<2x8x8x8xf32>
    %103 = vector.shape_cast %102 : vector<2x8x8x8xf32> to vector<128x8xf32>
    %104 = vector.extract_strided_slice %99 {offsets = [0, 0, 0, 0], sizes = [2, 8, 8, 8], strides = [1, 1, 1, 1]} : vector<2x9x9x8xf32> to vector<2x8x8x8xf32>
    %105 = vector.shape_cast %104 : vector<2x8x8x8xf32> to vector<128x8xf32>
    %106 = vector.extract_strided_slice %98 {offsets = [0, 0, 1, 0], sizes = [2, 8, 8, 8], strides = [1, 1, 1, 1]} : vector<2x9x9x8xf32> to vector<2x8x8x8xf32>
    %107 = vector.shape_cast %106 : vector<2x8x8x8xf32> to vector<128x8xf32>
    %108 = vector.extract_strided_slice %100 {offsets = [0, 0, 0, 0], sizes = [2, 8, 8, 8], strides = [1, 1, 1, 1]} : vector<2x9x9x8xf32> to vector<2x8x8x8xf32>
    %109 = vector.shape_cast %108 : vector<2x8x8x8xf32> to vector<128x8xf32>
    %110 = vector.extract_strided_slice %101 {offsets = [0, 0, 0, 0], sizes = [2, 8, 8, 8], strides = [1, 1, 1, 1]} : vector<2x9x9x8xf32> to vector<2x8x8x8xf32>
    %111 = vector.shape_cast %110 : vector<2x8x8x8xf32> to vector<128x8xf32>
    %112 = vector.extract_strided_slice %100 {offsets = [0, 0, 1, 0], sizes = [2, 8, 8, 8], strides = [1, 1, 1, 1]} : vector<2x9x9x8xf32> to vector<2x8x8x8xf32>
    %113 = vector.shape_cast %112 : vector<2x8x8x8xf32> to vector<128x8xf32>
    %114 = vector.extract_strided_slice %98 {offsets = [0, 1, 0, 0], sizes = [2, 8, 8, 8], strides = [1, 1, 1, 1]} : vector<2x9x9x8xf32> to vector<2x8x8x8xf32>
    %115 = vector.shape_cast %114 : vector<2x8x8x8xf32> to vector<128x8xf32>
    %116 = vector.extract_strided_slice %99 {offsets = [0, 1, 0, 0], sizes = [2, 8, 8, 8], strides = [1, 1, 1, 1]} : vector<2x9x9x8xf32> to vector<2x8x8x8xf32>
    %117 = vector.shape_cast %116 : vector<2x8x8x8xf32> to vector<128x8xf32>
    %118 = vector.extract_strided_slice %98 {offsets = [0, 1, 1, 0], sizes = [2, 8, 8, 8], strides = [1, 1, 1, 1]} : vector<2x9x9x8xf32> to vector<2x8x8x8xf32>
    %119 = vector.shape_cast %118 : vector<2x8x8x8xf32> to vector<128x8xf32>
    %120 = tpu.concatenate %103, %105, %107, %109, %111, %113, %115, %117, %119 in 1 : vector<128x8xf32>, vector<128x8xf32>, vector<128x8xf32>, vector<128x8xf32>, vector<128x8xf32>, vector<128x8xf32>, vector<128x8xf32>, vector<128x8xf32>, vector<128x8xf32> -> vector<128x72xf32>
    %121 = arith.truncf %120 : vector<128x72xf32> to vector<128x72xbf16>
    %c0_224 = arith.constant 0 : index
    %c0_225 = arith.constant 0 : index
    %122 = vector.load %arg5[%c0_224, %c0_225] : memref<72x16xbf16, #tpu.memory_space<vmem>>, vector<72x16xbf16>
    %cst_226 = arith.constant dense<0.000000e+00> : vector<128x16xf32>
    %123 = tpu.matmul %121, %122, %cst_226 {dimension_numbers = #tpu.dot_dimension_numbers<[1], [0], [0], [1], [0, 0, 1, 1], [], []>} : vector<128x72xbf16>, vector<72x16xbf16>, vector<128x16xf32> -> vector<128x16xf32>
    %c0_227 = arith.constant 0 : index
    %c0_228 = arith.constant 0 : index
    %124 = vector.load %arg6[%c0_227, %c0_228] : memref<1x16xf32, #tpu.memory_space<vmem>>, vector<1x16xf32>
    %125 = vector.broadcast %124 : vector<1x16xf32> to vector<128x16xf32>
    %126 = arith.mulf %123, %125 : vector<128x16xf32>
    %c0_229 = arith.constant 0 : index
    %c0_230 = arith.constant 0 : index
    %127 = vector.load %arg7[%c0_229, %c0_230] : memref<1x16xf32, #tpu.memory_space<vmem>>, vector<1x16xf32>
    %128 = vector.broadcast %127 : vector<1x16xf32> to vector<128x16xf32>
    %129 = arith.addf %126, %128 : vector<128x16xf32>
    %cst_231 = arith.constant 0.000000e+00 : f32
    %130 = vector.broadcast %cst_231 : f32 to vector<128x16xf32>
    %131 = arith.maximumf %129, %130 : vector<128x16xf32>
    %132 = vector.shape_cast %131 : vector<128x16xf32> to vector<2x8x8x16xf32>
    %c0_232 = arith.constant 0 : index
    %c1_233 = arith.constant 1 : index
    %c1_234 = arith.constant 1 : index
    %c0_235 = arith.constant 0 : index
    %133 = vector.load %arg29[%c0_232, %c1_233, %c1_234, %c0_235] : memref<2x10x10x16xf32, #tpu.memory_space<vmem>>, vector<2x8x8x16xf32>
    tpu.vector_store %arg29[%c0_232, %c1_233, %c1_234, %c0_235], %132 {strides = array<i32>} : memref<2x10x10x16xf32, #tpu.memory_space<vmem>>, vector<2x8x8x16xf32>,
    %c0_236 = arith.constant 0 : index
    %c0_237 = arith.constant 0 : index
    %c0_238 = arith.constant 0 : index
    %c0_239 = arith.constant 0 : index
    %134 = tpu.strided_load %arg29[%c0_236, %c0_237, %c0_238, %c0_239] {strides = array<i32: 1, 2, 2, 1>} : memref<2x10x10x16xf32, #tpu.memory_space<vmem>>, vector<2x5x5x16xf32>
    %c0_240 = arith.constant 0 : index
    %c0_241 = arith.constant 0 : index
    %c1_242 = arith.constant 1 : index
    %c0_243 = arith.constant 0 : index
    %135 = tpu.strided_load %arg29[%c0_240, %c0_241, %c1_242, %c0_243] {strides = array<i32: 1, 2, 2, 1>} : memref<2x10x10x16xf32, #tpu.memory_space<vmem>>, vector<2x5x5x16xf32>
    %c0_244 = arith.constant 0 : index
    %c1_245 = arith.constant 1 : index
    %c0_246 = arith.constant 0 : index
    %c0_247 = arith.constant 0 : index
    %136 = tpu.strided_load %arg29[%c0_244, %c1_245, %c0_246, %c0_247] {strides = array<i32: 1, 2, 2, 1>} : memref<2x10x10x16xf32, #tpu.memory_space<vmem>>, vector<2x5x5x16xf32>
    %c0_248 = arith.constant 0 : index
    %c1_249 = arith.constant 1 : index
    %c1_250 = arith.constant 1 : index
    %c0_251 = arith.constant 0 : index
    %137 = tpu.strided_load %arg29[%c0_248, %c1_249, %c1_250, %c0_251] {strides = array<i32: 1, 2, 2, 1>} : memref<2x10x10x16xf32, #tpu.memory_space<vmem>>, vector<2x5x5x16xf32>
    %138 = vector.extract_strided_slice %134 {offsets = [0, 0, 0, 0], sizes = [2, 4, 4, 16], strides = [1, 1, 1, 1]} : vector<2x5x5x16xf32> to vector<2x4x4x16xf32>
    %139 = vector.shape_cast %138 : vector<2x4x4x16xf32> to vector<32x16xf32>
    %140 = vector.extract_strided_slice %135 {offsets = [0, 0, 0, 0], sizes = [2, 4, 4, 16], strides = [1, 1, 1, 1]} : vector<2x5x5x16xf32> to vector<2x4x4x16xf32>
    %141 = vector.shape_cast %140 : vector<2x4x4x16xf32> to vector<32x16xf32>
    %142 = vector.extract_strided_slice %134 {offsets = [0, 0, 1, 0], sizes = [2, 4, 4, 16], strides = [1, 1, 1, 1]} : vector<2x5x5x16xf32> to vector<2x4x4x16xf32>
    %143 = vector.shape_cast %142 : vector<2x4x4x16xf32> to vector<32x16xf32>
    %144 = vector.extract_strided_slice %136 {offsets = [0, 0, 0, 0], sizes = [2, 4, 4, 16], strides = [1, 1, 1, 1]} : vector<2x5x5x16xf32> to vector<2x4x4x16xf32>
    %145 = vector.shape_cast %144 : vector<2x4x4x16xf32> to vector<32x16xf32>
    %146 = vector.extract_strided_slice %137 {offsets = [0, 0, 0, 0], sizes = [2, 4, 4, 16], strides = [1, 1, 1, 1]} : vector<2x5x5x16xf32> to vector<2x4x4x16xf32>
    %147 = vector.shape_cast %146 : vector<2x4x4x16xf32> to vector<32x16xf32>
    %148 = vector.extract_strided_slice %136 {offsets = [0, 0, 1, 0], sizes = [2, 4, 4, 16], strides = [1, 1, 1, 1]} : vector<2x5x5x16xf32> to vector<2x4x4x16xf32>
    %149 = vector.shape_cast %148 : vector<2x4x4x16xf32> to vector<32x16xf32>
    %150 = vector.extract_strided_slice %134 {offsets = [0, 1, 0, 0], sizes = [2, 4, 4, 16], strides = [1, 1, 1, 1]} : vector<2x5x5x16xf32> to vector<2x4x4x16xf32>
    %151 = vector.shape_cast %150 : vector<2x4x4x16xf32> to vector<32x16xf32>
    %152 = vector.extract_strided_slice %135 {offsets = [0, 1, 0, 0], sizes = [2, 4, 4, 16], strides = [1, 1, 1, 1]} : vector<2x5x5x16xf32> to vector<2x4x4x16xf32>
    %153 = vector.shape_cast %152 : vector<2x4x4x16xf32> to vector<32x16xf32>
    %154 = vector.extract_strided_slice %134 {offsets = [0, 1, 1, 0], sizes = [2, 4, 4, 16], strides = [1, 1, 1, 1]} : vector<2x5x5x16xf32> to vector<2x4x4x16xf32>
    %155 = vector.shape_cast %154 : vector<2x4x4x16xf32> to vector<32x16xf32>
    %156 = tpu.concatenate %139, %141, %143, %145, %147, %149, %151, %153, %155 in 1 : vector<32x16xf32>, vector<32x16xf32>, vector<32x16xf32>, vector<32x16xf32>, vector<32x16xf32>, vector<32x16xf32>, vector<32x16xf32>, vector<32x16xf32>, vector<32x16xf32> -> vector<32x144xf32>
    %157 = arith.truncf %156 : vector<32x144xf32> to vector<32x144xbf16>
    %c0_252 = arith.constant 0 : index
    %c0_253 = arith.constant 0 : index
    %158 = vector.load %arg8[%c0_252, %c0_253] : memref<144x32xbf16, #tpu.memory_space<vmem>>, vector<144x32xbf16>
    %cst_254 = arith.constant dense<0.000000e+00> : vector<32x32xf32>
    %159 = tpu.matmul %157, %158, %cst_254 {dimension_numbers = #tpu.dot_dimension_numbers<[1], [0], [0], [1], [0, 0, 1, 1], [], []>} : vector<32x144xbf16>, vector<144x32xbf16>, vector<32x32xf32> -> vector<32x32xf32>
    %c0_255 = arith.constant 0 : index
    %c0_256 = arith.constant 0 : index
    %160 = vector.load %arg9[%c0_255, %c0_256] : memref<1x32xf32, #tpu.memory_space<vmem>>, vector<1x32xf32>
    %161 = vector.broadcast %160 : vector<1x32xf32> to vector<32x32xf32>
    %162 = arith.mulf %159, %161 : vector<32x32xf32>
    %c0_257 = arith.constant 0 : index
    %c0_258 = arith.constant 0 : index
    %163 = vector.load %arg10[%c0_257, %c0_258] : memref<1x32xf32, #tpu.memory_space<vmem>>, vector<1x32xf32>
    %164 = vector.broadcast %163 : vector<1x32xf32> to vector<32x32xf32>
    %165 = arith.addf %162, %164 : vector<32x32xf32>
    %cst_259 = arith.constant 0.000000e+00 : f32
    %166 = vector.broadcast %cst_259 : f32 to vector<32x32xf32>
    %167 = arith.maximumf %165, %166 : vector<32x32xf32>
    %168 = vector.shape_cast %167 : vector<32x32xf32> to vector<2x4x4x32xf32>
    %c0_260 = arith.constant 0 : index
    %c1_261 = arith.constant 1 : index
    %c1_262 = arith.constant 1 : index
    %c0_263 = arith.constant 0 : index
    %169 = vector.load %arg30[%c0_260, %c1_261, %c1_262, %c0_263] : memref<2x6x6x32xf32, #tpu.memory_space<vmem>>, vector<2x4x4x32xf32>
    tpu.vector_store %arg30[%c0_260, %c1_261, %c1_262, %c0_263], %168 {strides = array<i32>} : memref<2x6x6x32xf32, #tpu.memory_space<vmem>>, vector<2x4x4x32xf32>,
    %c0_264 = arith.constant 0 : index
    %c0_265 = arith.constant 0 : index
    %c0_266 = arith.constant 0 : index
    %c0_267 = arith.constant 0 : index
    %170 = tpu.strided_load %arg30[%c0_264, %c0_265, %c0_266, %c0_267] {strides = array<i32: 1, 2, 2, 1>} : memref<2x6x6x32xf32, #tpu.memory_space<vmem>>, vector<2x3x3x32xf32>
    %c0_268 = arith.constant 0 : index
    %c0_269 = arith.constant 0 : index
    %c1_270 = arith.constant 1 : index
    %c0_271 = arith.constant 0 : index
    %171 = tpu.strided_load %arg30[%c0_268, %c0_269, %c1_270, %c0_271] {strides = array<i32: 1, 2, 2, 1>} : memref<2x6x6x32xf32, #tpu.memory_space<vmem>>, vector<2x3x3x32xf32>
    %c0_272 = arith.constant 0 : index
    %c1_273 = arith.constant 1 : index
    %c0_274 = arith.constant 0 : index
    %c0_275 = arith.constant 0 : index
    %172 = tpu.strided_load %arg30[%c0_272, %c1_273, %c0_274, %c0_275] {strides = array<i32: 1, 2, 2, 1>} : memref<2x6x6x32xf32, #tpu.memory_space<vmem>>, vector<2x3x3x32xf32>
    %c0_276 = arith.constant 0 : index
    %c1_277 = arith.constant 1 : index
    %c1_278 = arith.constant 1 : index
    %c0_279 = arith.constant 0 : index
    %173 = tpu.strided_load %arg30[%c0_276, %c1_277, %c1_278, %c0_279] {strides = array<i32: 1, 2, 2, 1>} : memref<2x6x6x32xf32, #tpu.memory_space<vmem>>, vector<2x3x3x32xf32>
    %174 = vector.extract_strided_slice %170 {offsets = [0, 0, 0, 0], sizes = [2, 2, 2, 32], strides = [1, 1, 1, 1]} : vector<2x3x3x32xf32> to vector<2x2x2x32xf32>
    %175 = vector.shape_cast %174 : vector<2x2x2x32xf32> to vector<8x32xf32>
    %176 = vector.extract_strided_slice %171 {offsets = [0, 0, 0, 0], sizes = [2, 2, 2, 32], strides = [1, 1, 1, 1]} : vector<2x3x3x32xf32> to vector<2x2x2x32xf32>
    %177 = vector.shape_cast %176 : vector<2x2x2x32xf32> to vector<8x32xf32>
    %178 = vector.extract_strided_slice %170 {offsets = [0, 0, 1, 0], sizes = [2, 2, 2, 32], strides = [1, 1, 1, 1]} : vector<2x3x3x32xf32> to vector<2x2x2x32xf32>
    %179 = vector.shape_cast %178 : vector<2x2x2x32xf32> to vector<8x32xf32>
    %180 = vector.extract_strided_slice %172 {offsets = [0, 0, 0, 0], sizes = [2, 2, 2, 32], strides = [1, 1, 1, 1]} : vector<2x3x3x32xf32> to vector<2x2x2x32xf32>
    %181 = vector.shape_cast %180 : vector<2x2x2x32xf32> to vector<8x32xf32>
    %182 = vector.extract_strided_slice %173 {offsets = [0, 0, 0, 0], sizes = [2, 2, 2, 32], strides = [1, 1, 1, 1]} : vector<2x3x3x32xf32> to vector<2x2x2x32xf32>
    %183 = vector.shape_cast %182 : vector<2x2x2x32xf32> to vector<8x32xf32>
    %184 = vector.extract_strided_slice %172 {offsets = [0, 0, 1, 0], sizes = [2, 2, 2, 32], strides = [1, 1, 1, 1]} : vector<2x3x3x32xf32> to vector<2x2x2x32xf32>
    %185 = vector.shape_cast %184 : vector<2x2x2x32xf32> to vector<8x32xf32>
    %186 = vector.extract_strided_slice %170 {offsets = [0, 1, 0, 0], sizes = [2, 2, 2, 32], strides = [1, 1, 1, 1]} : vector<2x3x3x32xf32> to vector<2x2x2x32xf32>
    %187 = vector.shape_cast %186 : vector<2x2x2x32xf32> to vector<8x32xf32>
    %188 = vector.extract_strided_slice %171 {offsets = [0, 1, 0, 0], sizes = [2, 2, 2, 32], strides = [1, 1, 1, 1]} : vector<2x3x3x32xf32> to vector<2x2x2x32xf32>
    %189 = vector.shape_cast %188 : vector<2x2x2x32xf32> to vector<8x32xf32>
    %190 = vector.extract_strided_slice %170 {offsets = [0, 1, 1, 0], sizes = [2, 2, 2, 32], strides = [1, 1, 1, 1]} : vector<2x3x3x32xf32> to vector<2x2x2x32xf32>
    %191 = vector.shape_cast %190 : vector<2x2x2x32xf32> to vector<8x32xf32>
    %192 = tpu.concatenate %175, %177, %179, %181, %183, %185, %187, %189, %191 in 1 : vector<8x32xf32>, vector<8x32xf32>, vector<8x32xf32>, vector<8x32xf32>, vector<8x32xf32>, vector<8x32xf32>, vector<8x32xf32>, vector<8x32xf32>, vector<8x32xf32> -> vector<8x288xf32>
    %193 = arith.truncf %192 : vector<8x288xf32> to vector<8x288xbf16>
    %c0_280 = arith.constant 0 : index
    %c0_281 = arith.constant 0 : index
    %194 = vector.load %arg11[%c0_280, %c0_281] : memref<288x64xbf16, #tpu.memory_space<vmem>>, vector<288x64xbf16>
    %cst_282 = arith.constant dense<0.000000e+00> : vector<8x64xf32>
    %195 = tpu.matmul %193, %194, %cst_282 {dimension_numbers = #tpu.dot_dimension_numbers<[1], [0], [0], [1], [0, 0, 1, 1], [], []>} : vector<8x288xbf16>, vector<288x64xbf16>, vector<8x64xf32> -> vector<8x64xf32>
    %c0_283 = arith.constant 0 : index
    %c0_284 = arith.constant 0 : index
    %196 = vector.load %arg12[%c0_283, %c0_284] : memref<1x64xf32, #tpu.memory_space<vmem>>, vector<1x64xf32>
    %197 = vector.broadcast %196 : vector<1x64xf32> to vector<8x64xf32>
    %198 = arith.mulf %195, %197 : vector<8x64xf32>
    %c0_285 = arith.constant 0 : index
    %c0_286 = arith.constant 0 : index
    %199 = vector.load %arg13[%c0_285, %c0_286] : memref<1x64xf32, #tpu.memory_space<vmem>>, vector<1x64xf32>
    %200 = vector.broadcast %199 : vector<1x64xf32> to vector<8x64xf32>
    %201 = arith.addf %198, %200 : vector<8x64xf32>
    %cst_287 = arith.constant 0.000000e+00 : f32
    %202 = vector.broadcast %cst_287 : f32 to vector<8x64xf32>
    %203 = arith.maximumf %201, %202 : vector<8x64xf32>
    %204 = vector.shape_cast %203 : vector<8x64xf32> to vector<2x4x64xf32>
    %cst_288 = arith.constant dense<0.000000e+00> : vector<2x64xf32>
    %205 = vector.multi_reduction <add>, %204, %cst_288 [1] : vector<2x4x64xf32> to vector<2x64xf32>
    %cst_289 = arith.constant dense<0.000000e+00> : vector<2xf32>
    %206 = vector.multi_reduction <add>, %205, %cst_289 [1] : vector<2x64xf32> to vector<2xf32>
    %207 = vector.shape_cast %206 : vector<2xf32> to vector<2x1xf32>
    %cst_290 = arith.constant 3.906250e-03 : f32
    %208 = vector.broadcast %cst_290 : f32 to vector<2x1xf32>
    %209 = arith.mulf %207, %208 : vector<2x1xf32>
    %c0_291 = arith.constant 0 : index
    %c0_292 = arith.constant 0 : index
    %c0_293 = arith.constant 0 : index
    %c0_294 = arith.constant 0 : index
    %210 = tpu.strided_load %arg1[%c0_291, %c0_292, %c0_293, %c0_294] {strides = array<i32: 1, 2, 2, 1>} : memref<2x16x16x6xf32, #tpu.memory_space<vmem>>, vector<2x8x8x6xf32>
    %c0_295 = arith.constant 0 : index
    %c0_296 = arith.constant 0 : index
    %c1_297 = arith.constant 1 : index
    %c0_298 = arith.constant 0 : index
    %211 = tpu.strided_load %arg1[%c0_295, %c0_296, %c1_297, %c0_298] {strides = array<i32: 1, 2, 2, 1>} : memref<2x16x16x6xf32, #tpu.memory_space<vmem>>, vector<2x8x8x6xf32>
    %212 = arith.addf %210, %211 : vector<2x8x8x6xf32>
    %c0_299 = arith.constant 0 : index
    %c1_300 = arith.constant 1 : index
    %c0_301 = arith.constant 0 : index
    %c0_302 = arith.constant 0 : index
    %213 = tpu.strided_load %arg1[%c0_299, %c1_300, %c0_301, %c0_302] {strides = array<i32: 1, 2, 2, 1>} : memref<2x16x16x6xf32, #tpu.memory_space<vmem>>, vector<2x8x8x6xf32>
    %214 = arith.addf %212, %213 : vector<2x8x8x6xf32>
    %c0_303 = arith.constant 0 : index
    %c1_304 = arith.constant 1 : index
    %c1_305 = arith.constant 1 : index
    %c0_306 = arith.constant 0 : index
    %215 = tpu.strided_load %arg1[%c0_303, %c1_304, %c1_305, %c0_306] {strides = array<i32: 1, 2, 2, 1>} : memref<2x16x16x6xf32, #tpu.memory_space<vmem>>, vector<2x8x8x6xf32>
    %216 = arith.addf %214, %215 : vector<2x8x8x6xf32>
    %cst_307 = arith.constant 2.500000e-01 : f32
    %217 = vector.broadcast %cst_307 : f32 to vector<2x8x8x6xf32>
    %218 = arith.mulf %217, %216 : vector<2x8x8x6xf32>
    %c0_308 = arith.constant 0 : index
    %c1_309 = arith.constant 1 : index
    %c1_310 = arith.constant 1 : index
    %c0_311 = arith.constant 0 : index
    %219 = vector.load %arg31[%c0_308, %c1_309, %c1_310, %c0_311] : memref<2x10x10x6xf32, #tpu.memory_space<vmem>>, vector<2x8x8x6xf32>
    tpu.vector_store %arg31[%c0_308, %c1_309, %c1_310, %c0_311], %218 {strides = array<i32>} : memref<2x10x10x6xf32, #tpu.memory_space<vmem>>, vector<2x8x8x6xf32>,
    %c0_312 = arith.constant 0 : index
    %c0_313 = arith.constant 0 : index
    %c0_314 = arith.constant 0 : index
    %c0_315 = arith.constant 0 : index
    %220 = vector.load %arg31[%c0_312, %c0_313, %c0_314, %c0_315] : memref<2x10x10x6xf32, #tpu.memory_space<vmem>>, vector<2x8x8x6xf32>
    %221 = vector.shape_cast %220 : vector<2x8x8x6xf32> to vector<128x6xf32>
    %c0_316 = arith.constant 0 : index
    %c0_317 = arith.constant 0 : index
    %c1_318 = arith.constant 1 : index
    %c0_319 = arith.constant 0 : index
    %222 = vector.load %arg31[%c0_316, %c0_317, %c1_318, %c0_319] : memref<2x10x10x6xf32, #tpu.memory_space<vmem>>, vector<2x8x8x6xf32>
    %223 = vector.shape_cast %222 : vector<2x8x8x6xf32> to vector<128x6xf32>
    %c0_320 = arith.constant 0 : index
    %c0_321 = arith.constant 0 : index
    %c2_322 = arith.constant 2 : index
    %c0_323 = arith.constant 0 : index
    %224 = vector.load %arg31[%c0_320, %c0_321, %c2_322, %c0_323] : memref<2x10x10x6xf32, #tpu.memory_space<vmem>>, vector<2x8x8x6xf32>
    %225 = vector.shape_cast %224 : vector<2x8x8x6xf32> to vector<128x6xf32>
    %c0_324 = arith.constant 0 : index
    %c1_325 = arith.constant 1 : index
    %c0_326 = arith.constant 0 : index
    %c0_327 = arith.constant 0 : index
    %226 = vector.load %arg31[%c0_324, %c1_325, %c0_326, %c0_327] : memref<2x10x10x6xf32, #tpu.memory_space<vmem>>, vector<2x8x8x6xf32>
    %227 = vector.shape_cast %226 : vector<2x8x8x6xf32> to vector<128x6xf32>
    %c0_328 = arith.constant 0 : index
    %c1_329 = arith.constant 1 : index
    %c1_330 = arith.constant 1 : index
    %c0_331 = arith.constant 0 : index
    %228 = vector.load %arg31[%c0_328, %c1_329, %c1_330, %c0_331] : memref<2x10x10x6xf32, #tpu.memory_space<vmem>>, vector<2x8x8x6xf32>
    %229 = vector.shape_cast %228 : vector<2x8x8x6xf32> to vector<128x6xf32>
    %c0_332 = arith.constant 0 : index
    %c1_333 = arith.constant 1 : index
    %c2_334 = arith.constant 2 : index
    %c0_335 = arith.constant 0 : index
    %230 = vector.load %arg31[%c0_332, %c1_333, %c2_334, %c0_335] : memref<2x10x10x6xf32, #tpu.memory_space<vmem>>, vector<2x8x8x6xf32>
    %231 = vector.shape_cast %230 : vector<2x8x8x6xf32> to vector<128x6xf32>
    %c0_336 = arith.constant 0 : index
    %c2_337 = arith.constant 2 : index
    %c0_338 = arith.constant 0 : index
    %c0_339 = arith.constant 0 : index
    %232 = vector.load %arg31[%c0_336, %c2_337, %c0_338, %c0_339] : memref<2x10x10x6xf32, #tpu.memory_space<vmem>>, vector<2x8x8x6xf32>
    %233 = vector.shape_cast %232 : vector<2x8x8x6xf32> to vector<128x6xf32>
    %c0_340 = arith.constant 0 : index
    %c2_341 = arith.constant 2 : index
    %c1_342 = arith.constant 1 : index
    %c0_343 = arith.constant 0 : index
    %234 = vector.load %arg31[%c0_340, %c2_341, %c1_342, %c0_343] : memref<2x10x10x6xf32, #tpu.memory_space<vmem>>, vector<2x8x8x6xf32>
    %235 = vector.shape_cast %234 : vector<2x8x8x6xf32> to vector<128x6xf32>
    %c0_344 = arith.constant 0 : index
    %c2_345 = arith.constant 2 : index
    %c2_346 = arith.constant 2 : index
    %c0_347 = arith.constant 0 : index
    %236 = vector.load %arg31[%c0_344, %c2_345, %c2_346, %c0_347] : memref<2x10x10x6xf32, #tpu.memory_space<vmem>>, vector<2x8x8x6xf32>
    %237 = vector.shape_cast %236 : vector<2x8x8x6xf32> to vector<128x6xf32>
    %238 = tpu.concatenate %221, %223, %225, %227, %229, %231, %233, %235, %237 in 1 : vector<128x6xf32>, vector<128x6xf32>, vector<128x6xf32>, vector<128x6xf32>, vector<128x6xf32>, vector<128x6xf32>, vector<128x6xf32>, vector<128x6xf32>, vector<128x6xf32> -> vector<128x54xf32>
    %239 = arith.truncf %238 : vector<128x54xf32> to vector<128x54xbf16>
    %c0_348 = arith.constant 0 : index
    %c0_349 = arith.constant 0 : index
    %240 = vector.load %arg14[%c0_348, %c0_349] : memref<54x8xbf16, #tpu.memory_space<vmem>>, vector<54x8xbf16>
    %cst_350 = arith.constant dense<0.000000e+00> : vector<128x8xf32>
    %241 = tpu.matmul %239, %240, %cst_350 {dimension_numbers = #tpu.dot_dimension_numbers<[1], [0], [0], [1], [0, 0, 1, 1], [], []>} : vector<128x54xbf16>, vector<54x8xbf16>, vector<128x8xf32> -> vector<128x8xf32>
    %c0_351 = arith.constant 0 : index
    %c0_352 = arith.constant 0 : index
    %242 = vector.load %arg15[%c0_351, %c0_352] : memref<1x8xf32, #tpu.memory_space<vmem>>, vector<1x8xf32>
    %243 = vector.broadcast %242 : vector<1x8xf32> to vector<128x8xf32>
    %244 = arith.mulf %241, %243 : vector<128x8xf32>
    %c0_353 = arith.constant 0 : index
    %c0_354 = arith.constant 0 : index
    %245 = vector.load %arg16[%c0_353, %c0_354] : memref<1x8xf32, #tpu.memory_space<vmem>>, vector<1x8xf32>
    %246 = vector.broadcast %245 : vector<1x8xf32> to vector<128x8xf32>
    %247 = arith.addf %244, %246 : vector<128x8xf32>
    %cst_355 = arith.constant 0.000000e+00 : f32
    %248 = vector.broadcast %cst_355 : f32 to vector<128x8xf32>
    %249 = arith.maximumf %247, %248 : vector<128x8xf32>
    %250 = vector.shape_cast %249 : vector<128x8xf32> to vector<2x8x8x8xf32>
    %c0_356 = arith.constant 0 : index
    %c1_357 = arith.constant 1 : index
    %c1_358 = arith.constant 1 : index
    %c0_359 = arith.constant 0 : index
    %251 = vector.load %arg32[%c0_356, %c1_357, %c1_358, %c0_359] : memref<2x10x10x8xf32, #tpu.memory_space<vmem>>, vector<2x8x8x8xf32>
    tpu.vector_store %arg32[%c0_356, %c1_357, %c1_358, %c0_359], %250 {strides = array<i32>} : memref<2x10x10x8xf32, #tpu.memory_space<vmem>>, vector<2x8x8x8xf32>,
    %c0_360 = arith.constant 0 : index
    %c0_361 = arith.constant 0 : index
    %c0_362 = arith.constant 0 : index
    %c0_363 = arith.constant 0 : index
    %252 = tpu.strided_load %arg32[%c0_360, %c0_361, %c0_362, %c0_363] {strides = array<i32: 1, 2, 2, 1>} : memref<2x10x10x8xf32, #tpu.memory_space<vmem>>, vector<2x5x5x8xf32>
    %c0_364 = arith.constant 0 : index
    %c0_365 = arith.constant 0 : index
    %c1_366 = arith.constant 1 : index
    %c0_367 = arith.constant 0 : index
    %253 = tpu.strided_load %arg32[%c0_364, %c0_365, %c1_366, %c0_367] {strides = array<i32: 1, 2, 2, 1>} : memref<2x10x10x8xf32, #tpu.memory_space<vmem>>, vector<2x5x5x8xf32>
    %c0_368 = arith.constant 0 : index
    %c1_369 = arith.constant 1 : index
    %c0_370 = arith.constant 0 : index
    %c0_371 = arith.constant 0 : index
    %254 = tpu.strided_load %arg32[%c0_368, %c1_369, %c0_370, %c0_371] {strides = array<i32: 1, 2, 2, 1>} : memref<2x10x10x8xf32, #tpu.memory_space<vmem>>, vector<2x5x5x8xf32>
    %c0_372 = arith.constant 0 : index
    %c1_373 = arith.constant 1 : index
    %c1_374 = arith.constant 1 : index
    %c0_375 = arith.constant 0 : index
    %255 = tpu.strided_load %arg32[%c0_372, %c1_373, %c1_374, %c0_375] {strides = array<i32: 1, 2, 2, 1>} : memref<2x10x10x8xf32, #tpu.memory_space<vmem>>, vector<2x5x5x8xf32>
    %256 = vector.extract_strided_slice %252 {offsets = [0, 0, 0, 0], sizes = [2, 4, 4, 8], strides = [1, 1, 1, 1]} : vector<2x5x5x8xf32> to vector<2x4x4x8xf32>
    %257 = vector.shape_cast %256 : vector<2x4x4x8xf32> to vector<32x8xf32>
    %258 = vector.extract_strided_slice %253 {offsets = [0, 0, 0, 0], sizes = [2, 4, 4, 8], strides = [1, 1, 1, 1]} : vector<2x5x5x8xf32> to vector<2x4x4x8xf32>
    %259 = vector.shape_cast %258 : vector<2x4x4x8xf32> to vector<32x8xf32>
    %260 = vector.extract_strided_slice %252 {offsets = [0, 0, 1, 0], sizes = [2, 4, 4, 8], strides = [1, 1, 1, 1]} : vector<2x5x5x8xf32> to vector<2x4x4x8xf32>
    %261 = vector.shape_cast %260 : vector<2x4x4x8xf32> to vector<32x8xf32>
    %262 = vector.extract_strided_slice %254 {offsets = [0, 0, 0, 0], sizes = [2, 4, 4, 8], strides = [1, 1, 1, 1]} : vector<2x5x5x8xf32> to vector<2x4x4x8xf32>
    %263 = vector.shape_cast %262 : vector<2x4x4x8xf32> to vector<32x8xf32>
    %264 = vector.extract_strided_slice %255 {offsets = [0, 0, 0, 0], sizes = [2, 4, 4, 8], strides = [1, 1, 1, 1]} : vector<2x5x5x8xf32> to vector<2x4x4x8xf32>
    %265 = vector.shape_cast %264 : vector<2x4x4x8xf32> to vector<32x8xf32>
    %266 = vector.extract_strided_slice %254 {offsets = [0, 0, 1, 0], sizes = [2, 4, 4, 8], strides = [1, 1, 1, 1]} : vector<2x5x5x8xf32> to vector<2x4x4x8xf32>
    %267 = vector.shape_cast %266 : vector<2x4x4x8xf32> to vector<32x8xf32>
    %268 = vector.extract_strided_slice %252 {offsets = [0, 1, 0, 0], sizes = [2, 4, 4, 8], strides = [1, 1, 1, 1]} : vector<2x5x5x8xf32> to vector<2x4x4x8xf32>
    %269 = vector.shape_cast %268 : vector<2x4x4x8xf32> to vector<32x8xf32>
    %270 = vector.extract_strided_slice %253 {offsets = [0, 1, 0, 0], sizes = [2, 4, 4, 8], strides = [1, 1, 1, 1]} : vector<2x5x5x8xf32> to vector<2x4x4x8xf32>
    %271 = vector.shape_cast %270 : vector<2x4x4x8xf32> to vector<32x8xf32>
    %272 = vector.extract_strided_slice %252 {offsets = [0, 1, 1, 0], sizes = [2, 4, 4, 8], strides = [1, 1, 1, 1]} : vector<2x5x5x8xf32> to vector<2x4x4x8xf32>
    %273 = vector.shape_cast %272 : vector<2x4x4x8xf32> to vector<32x8xf32>
    %274 = tpu.concatenate %257, %259, %261, %263, %265, %267, %269, %271, %273 in 1 : vector<32x8xf32>, vector<32x8xf32>, vector<32x8xf32>, vector<32x8xf32>, vector<32x8xf32>, vector<32x8xf32>, vector<32x8xf32>, vector<32x8xf32>, vector<32x8xf32> -> vector<32x72xf32>
    %275 = arith.truncf %274 : vector<32x72xf32> to vector<32x72xbf16>
    %c0_376 = arith.constant 0 : index
    %c0_377 = arith.constant 0 : index
    %276 = vector.load %arg17[%c0_376, %c0_377] : memref<72x16xbf16, #tpu.memory_space<vmem>>, vector<72x16xbf16>
    %cst_378 = arith.constant dense<0.000000e+00> : vector<32x16xf32>
    %277 = tpu.matmul %275, %276, %cst_378 {dimension_numbers = #tpu.dot_dimension_numbers<[1], [0], [0], [1], [0, 0, 1, 1], [], []>} : vector<32x72xbf16>, vector<72x16xbf16>, vector<32x16xf32> -> vector<32x16xf32>
    %c0_379 = arith.constant 0 : index
    %c0_380 = arith.constant 0 : index
    %278 = vector.load %arg18[%c0_379, %c0_380] : memref<1x16xf32, #tpu.memory_space<vmem>>, vector<1x16xf32>
    %279 = vector.broadcast %278 : vector<1x16xf32> to vector<32x16xf32>
    %280 = arith.mulf %277, %279 : vector<32x16xf32>
    %c0_381 = arith.constant 0 : index
    %c0_382 = arith.constant 0 : index
    %281 = vector.load %arg19[%c0_381, %c0_382] : memref<1x16xf32, #tpu.memory_space<vmem>>, vector<1x16xf32>
    %282 = vector.broadcast %281 : vector<1x16xf32> to vector<32x16xf32>
    %283 = arith.addf %280, %282 : vector<32x16xf32>
    %cst_383 = arith.constant 0.000000e+00 : f32
    %284 = vector.broadcast %cst_383 : f32 to vector<32x16xf32>
    %285 = arith.maximumf %283, %284 : vector<32x16xf32>
    %286 = vector.shape_cast %285 : vector<32x16xf32> to vector<2x4x4x16xf32>
    %c0_384 = arith.constant 0 : index
    %c1_385 = arith.constant 1 : index
    %c1_386 = arith.constant 1 : index
    %c0_387 = arith.constant 0 : index
    %287 = vector.load %arg33[%c0_384, %c1_385, %c1_386, %c0_387] : memref<2x6x6x16xf32, #tpu.memory_space<vmem>>, vector<2x4x4x16xf32>
    tpu.vector_store %arg33[%c0_384, %c1_385, %c1_386, %c0_387], %286 {strides = array<i32>} : memref<2x6x6x16xf32, #tpu.memory_space<vmem>>, vector<2x4x4x16xf32>,
    %c0_388 = arith.constant 0 : index
    %c0_389 = arith.constant 0 : index
    %c0_390 = arith.constant 0 : index
    %c0_391 = arith.constant 0 : index
    %288 = tpu.strided_load %arg33[%c0_388, %c0_389, %c0_390, %c0_391] {strides = array<i32: 1, 2, 2, 1>} : memref<2x6x6x16xf32, #tpu.memory_space<vmem>>, vector<2x3x3x16xf32>
    %c0_392 = arith.constant 0 : index
    %c0_393 = arith.constant 0 : index
    %c1_394 = arith.constant 1 : index
    %c0_395 = arith.constant 0 : index
    %289 = tpu.strided_load %arg33[%c0_392, %c0_393, %c1_394, %c0_395] {strides = array<i32: 1, 2, 2, 1>} : memref<2x6x6x16xf32, #tpu.memory_space<vmem>>, vector<2x3x3x16xf32>
    %c0_396 = arith.constant 0 : index
    %c1_397 = arith.constant 1 : index
    %c0_398 = arith.constant 0 : index
    %c0_399 = arith.constant 0 : index
    %290 = tpu.strided_load %arg33[%c0_396, %c1_397, %c0_398, %c0_399] {strides = array<i32: 1, 2, 2, 1>} : memref<2x6x6x16xf32, #tpu.memory_space<vmem>>, vector<2x3x3x16xf32>
    %c0_400 = arith.constant 0 : index
    %c1_401 = arith.constant 1 : index
    %c1_402 = arith.constant 1 : index
    %c0_403 = arith.constant 0 : index
    %291 = tpu.strided_load %arg33[%c0_400, %c1_401, %c1_402, %c0_403] {strides = array<i32: 1, 2, 2, 1>} : memref<2x6x6x16xf32, #tpu.memory_space<vmem>>, vector<2x3x3x16xf32>
    %292 = vector.extract_strided_slice %288 {offsets = [0, 0, 0, 0], sizes = [2, 2, 2, 16], strides = [1, 1, 1, 1]} : vector<2x3x3x16xf32> to vector<2x2x2x16xf32>
    %293 = vector.shape_cast %292 : vector<2x2x2x16xf32> to vector<8x16xf32>
    %294 = vector.extract_strided_slice %289 {offsets = [0, 0, 0, 0], sizes = [2, 2, 2, 16], strides = [1, 1, 1, 1]} : vector<2x3x3x16xf32> to vector<2x2x2x16xf32>
    %295 = vector.shape_cast %294 : vector<2x2x2x16xf32> to vector<8x16xf32>
    %296 = vector.extract_strided_slice %288 {offsets = [0, 0, 1, 0], sizes = [2, 2, 2, 16], strides = [1, 1, 1, 1]} : vector<2x3x3x16xf32> to vector<2x2x2x16xf32>
    %297 = vector.shape_cast %296 : vector<2x2x2x16xf32> to vector<8x16xf32>
    %298 = vector.extract_strided_slice %290 {offsets = [0, 0, 0, 0], sizes = [2, 2, 2, 16], strides = [1, 1, 1, 1]} : vector<2x3x3x16xf32> to vector<2x2x2x16xf32>
    %299 = vector.shape_cast %298 : vector<2x2x2x16xf32> to vector<8x16xf32>
    %300 = vector.extract_strided_slice %291 {offsets = [0, 0, 0, 0], sizes = [2, 2, 2, 16], strides = [1, 1, 1, 1]} : vector<2x3x3x16xf32> to vector<2x2x2x16xf32>
    %301 = vector.shape_cast %300 : vector<2x2x2x16xf32> to vector<8x16xf32>
    %302 = vector.extract_strided_slice %290 {offsets = [0, 0, 1, 0], sizes = [2, 2, 2, 16], strides = [1, 1, 1, 1]} : vector<2x3x3x16xf32> to vector<2x2x2x16xf32>
    %303 = vector.shape_cast %302 : vector<2x2x2x16xf32> to vector<8x16xf32>
    %304 = vector.extract_strided_slice %288 {offsets = [0, 1, 0, 0], sizes = [2, 2, 2, 16], strides = [1, 1, 1, 1]} : vector<2x3x3x16xf32> to vector<2x2x2x16xf32>
    %305 = vector.shape_cast %304 : vector<2x2x2x16xf32> to vector<8x16xf32>
    %306 = vector.extract_strided_slice %289 {offsets = [0, 1, 0, 0], sizes = [2, 2, 2, 16], strides = [1, 1, 1, 1]} : vector<2x3x3x16xf32> to vector<2x2x2x16xf32>
    %307 = vector.shape_cast %306 : vector<2x2x2x16xf32> to vector<8x16xf32>
    %308 = vector.extract_strided_slice %288 {offsets = [0, 1, 1, 0], sizes = [2, 2, 2, 16], strides = [1, 1, 1, 1]} : vector<2x3x3x16xf32> to vector<2x2x2x16xf32>
    %309 = vector.shape_cast %308 : vector<2x2x2x16xf32> to vector<8x16xf32>
    %310 = tpu.concatenate %293, %295, %297, %299, %301, %303, %305, %307, %309 in 1 : vector<8x16xf32>, vector<8x16xf32>, vector<8x16xf32>, vector<8x16xf32>, vector<8x16xf32>, vector<8x16xf32>, vector<8x16xf32>, vector<8x16xf32>, vector<8x16xf32> -> vector<8x144xf32>
    %311 = arith.truncf %310 : vector<8x144xf32> to vector<8x144xbf16>
    %c0_404 = arith.constant 0 : index
    %c0_405 = arith.constant 0 : index
    %312 = vector.load %arg20[%c0_404, %c0_405] : memref<144x32xbf16, #tpu.memory_space<vmem>>, vector<144x32xbf16>
    %cst_406 = arith.constant dense<0.000000e+00> : vector<8x32xf32>
    %313 = tpu.matmul %311, %312, %cst_406 {dimension_numbers = #tpu.dot_dimension_numbers<[1], [0], [0], [1], [0, 0, 1, 1], [], []>} : vector<8x144xbf16>, vector<144x32xbf16>, vector<8x32xf32> -> vector<8x32xf32>
    %c0_407 = arith.constant 0 : index
    %c0_408 = arith.constant 0 : index
    %314 = vector.load %arg21[%c0_407, %c0_408] : memref<1x32xf32, #tpu.memory_space<vmem>>, vector<1x32xf32>
    %315 = vector.broadcast %314 : vector<1x32xf32> to vector<8x32xf32>
    %316 = arith.mulf %313, %315 : vector<8x32xf32>
    %c0_409 = arith.constant 0 : index
    %c0_410 = arith.constant 0 : index
    %317 = vector.load %arg22[%c0_409, %c0_410] : memref<1x32xf32, #tpu.memory_space<vmem>>, vector<1x32xf32>
    %318 = vector.broadcast %317 : vector<1x32xf32> to vector<8x32xf32>
    %319 = arith.addf %316, %318 : vector<8x32xf32>
    %cst_411 = arith.constant 0.000000e+00 : f32
    %320 = vector.broadcast %cst_411 : f32 to vector<8x32xf32>
    %321 = arith.maximumf %319, %320 : vector<8x32xf32>
    %322 = vector.shape_cast %321 : vector<8x32xf32> to vector<2x2x2x32xf32>
    %c0_412 = arith.constant 0 : index
    %c1_413 = arith.constant 1 : index
    %c1_414 = arith.constant 1 : index
    %c0_415 = arith.constant 0 : index
    %323 = vector.load %arg34[%c0_412, %c1_413, %c1_414, %c0_415] : memref<2x4x4x32xf32, #tpu.memory_space<vmem>>, vector<2x2x2x32xf32>
    tpu.vector_store %arg34[%c0_412, %c1_413, %c1_414, %c0_415], %322 {strides = array<i32>} : memref<2x4x4x32xf32, #tpu.memory_space<vmem>>, vector<2x2x2x32xf32>,
    %c0_416 = arith.constant 0 : index
    %c0_417 = arith.constant 0 : index
    %c0_418 = arith.constant 0 : index
    %c0_419 = arith.constant 0 : index
    %324 = tpu.strided_load %arg34[%c0_416, %c0_417, %c0_418, %c0_419] {strides = array<i32: 1, 2, 2, 1>} : memref<2x4x4x32xf32, #tpu.memory_space<vmem>>, vector<2x2x2x32xf32>
    %c0_420 = arith.constant 0 : index
    %c0_421 = arith.constant 0 : index
    %c1_422 = arith.constant 1 : index
    %c0_423 = arith.constant 0 : index
    %325 = tpu.strided_load %arg34[%c0_420, %c0_421, %c1_422, %c0_423] {strides = array<i32: 1, 2, 2, 1>} : memref<2x4x4x32xf32, #tpu.memory_space<vmem>>, vector<2x2x2x32xf32>
    %c0_424 = arith.constant 0 : index
    %c1_425 = arith.constant 1 : index
    %c0_426 = arith.constant 0 : index
    %c0_427 = arith.constant 0 : index
    %326 = tpu.strided_load %arg34[%c0_424, %c1_425, %c0_426, %c0_427] {strides = array<i32: 1, 2, 2, 1>} : memref<2x4x4x32xf32, #tpu.memory_space<vmem>>, vector<2x2x2x32xf32>
    %c0_428 = arith.constant 0 : index
    %c1_429 = arith.constant 1 : index
    %c1_430 = arith.constant 1 : index
    %c0_431 = arith.constant 0 : index
    %327 = tpu.strided_load %arg34[%c0_428, %c1_429, %c1_430, %c0_431] {strides = array<i32: 1, 2, 2, 1>} : memref<2x4x4x32xf32, #tpu.memory_space<vmem>>, vector<2x2x2x32xf32>
    %328 = vector.extract_strided_slice %324 {offsets = [0, 0, 0, 0], sizes = [2, 1, 1, 32], strides = [1, 1, 1, 1]} : vector<2x2x2x32xf32> to vector<2x1x1x32xf32>
    %329 = vector.shape_cast %328 : vector<2x1x1x32xf32> to vector<2x32xf32>
    %330 = vector.extract_strided_slice %325 {offsets = [0, 0, 0, 0], sizes = [2, 1, 1, 32], strides = [1, 1, 1, 1]} : vector<2x2x2x32xf32> to vector<2x1x1x32xf32>
    %331 = vector.shape_cast %330 : vector<2x1x1x32xf32> to vector<2x32xf32>
    %332 = vector.extract_strided_slice %324 {offsets = [0, 0, 1, 0], sizes = [2, 1, 1, 32], strides = [1, 1, 1, 1]} : vector<2x2x2x32xf32> to vector<2x1x1x32xf32>
    %333 = vector.shape_cast %332 : vector<2x1x1x32xf32> to vector<2x32xf32>
    %334 = vector.extract_strided_slice %326 {offsets = [0, 0, 0, 0], sizes = [2, 1, 1, 32], strides = [1, 1, 1, 1]} : vector<2x2x2x32xf32> to vector<2x1x1x32xf32>
    %335 = vector.shape_cast %334 : vector<2x1x1x32xf32> to vector<2x32xf32>
    %336 = vector.extract_strided_slice %327 {offsets = [0, 0, 0, 0], sizes = [2, 1, 1, 32], strides = [1, 1, 1, 1]} : vector<2x2x2x32xf32> to vector<2x1x1x32xf32>
    %337 = vector.shape_cast %336 : vector<2x1x1x32xf32> to vector<2x32xf32>
    %338 = vector.extract_strided_slice %326 {offsets = [0, 0, 1, 0], sizes = [2, 1, 1, 32], strides = [1, 1, 1, 1]} : vector<2x2x2x32xf32> to vector<2x1x1x32xf32>
    %339 = vector.shape_cast %338 : vector<2x1x1x32xf32> to vector<2x32xf32>
    %340 = vector.extract_strided_slice %324 {offsets = [0, 1, 0, 0], sizes = [2, 1, 1, 32], strides = [1, 1, 1, 1]} : vector<2x2x2x32xf32> to vector<2x1x1x32xf32>
    %341 = vector.shape_cast %340 : vector<2x1x1x32xf32> to vector<2x32xf32>
    %342 = vector.extract_strided_slice %325 {offsets = [0, 1, 0, 0], sizes = [2, 1, 1, 32], strides = [1, 1, 1, 1]} : vector<2x2x2x32xf32> to vector<2x1x1x32xf32>
    %343 = vector.shape_cast %342 : vector<2x1x1x32xf32> to vector<2x32xf32>
    %344 = vector.extract_strided_slice %324 {offsets = [0, 1, 1, 0], sizes = [2, 1, 1, 32], strides = [1, 1, 1, 1]} : vector<2x2x2x32xf32> to vector<2x1x1x32xf32>
    %345 = vector.shape_cast %344 : vector<2x1x1x32xf32> to vector<2x32xf32>
    %346 = tpu.concatenate %329, %331, %333, %335, %337, %339, %341, %343, %345 in 1 : vector<2x32xf32>, vector<2x32xf32>, vector<2x32xf32>, vector<2x32xf32>, vector<2x32xf32>, vector<2x32xf32>, vector<2x32xf32>, vector<2x32xf32>, vector<2x32xf32> -> vector<2x288xf32>
    %347 = arith.truncf %346 : vector<2x288xf32> to vector<2x288xbf16>
    %c0_432 = arith.constant 0 : index
    %c0_433 = arith.constant 0 : index
    %348 = vector.load %arg23[%c0_432, %c0_433] : memref<288x64xbf16, #tpu.memory_space<vmem>>, vector<288x64xbf16>
    %cst_434 = arith.constant dense<0.000000e+00> : vector<2x64xf32>
    %349 = tpu.matmul %347, %348, %cst_434 {dimension_numbers = #tpu.dot_dimension_numbers<[1], [0], [0], [1], [0, 0, 1, 1], [], []>} : vector<2x288xbf16>, vector<288x64xbf16>, vector<2x64xf32> -> vector<2x64xf32>
    %c0_435 = arith.constant 0 : index
    %c0_436 = arith.constant 0 : index
    %350 = vector.load %arg24[%c0_435, %c0_436] : memref<1x64xf32, #tpu.memory_space<vmem>>, vector<1x64xf32>
    %351 = vector.broadcast %350 : vector<1x64xf32> to vector<2x64xf32>
    %352 = arith.mulf %349, %351 : vector<2x64xf32>
    %c0_437 = arith.constant 0 : index
    %c0_438 = arith.constant 0 : index
    %353 = vector.load %arg25[%c0_437, %c0_438] : memref<1x64xf32, #tpu.memory_space<vmem>>, vector<1x64xf32>
    %354 = vector.broadcast %353 : vector<1x64xf32> to vector<2x64xf32>
    %355 = arith.addf %352, %354 : vector<2x64xf32>
    %cst_439 = arith.constant 0.000000e+00 : f32
    %356 = vector.broadcast %cst_439 : f32 to vector<2x64xf32>
    %357 = arith.maximumf %355, %356 : vector<2x64xf32>
    %358 = vector.shape_cast %357 : vector<2x64xf32> to vector<2x1x64xf32>
    %cst_440 = arith.constant dense<0.000000e+00> : vector<2x64xf32>
    %359 = vector.multi_reduction <add>, %358, %cst_440 [1] : vector<2x1x64xf32> to vector<2x64xf32>
    %cst_441 = arith.constant dense<0.000000e+00> : vector<2xf32>
    %360 = vector.multi_reduction <add>, %359, %cst_441 [1] : vector<2x64xf32> to vector<2xf32>
    %361 = vector.shape_cast %360 : vector<2xf32> to vector<2x1xf32>
    %cst_442 = arith.constant 1.562500e-02 : f32
    %362 = vector.broadcast %cst_442 : f32 to vector<2x1xf32>
    %363 = arith.mulf %361, %362 : vector<2x1xf32>
    %364 = arith.addf %209, %363 : vector<2x1xf32>
    %cst_443 = arith.constant 5.000000e-01 : f32
    %365 = vector.broadcast %cst_443 : f32 to vector<2x1xf32>
    %366 = arith.mulf %365, %364 : vector<2x1xf32>
    %367 = math.tanh %366 : vector<2x1xf32>
    %cst_444 = arith.constant 1.000000e+00 : f32
    %368 = vector.broadcast %cst_444 : f32 to vector<2x1xf32>
    %369 = arith.addf %367, %368 : vector<2x1xf32>
    %cst_445 = arith.constant 5.000000e-01 : f32
    %370 = vector.broadcast %cst_445 : f32 to vector<2x1xf32>
    %371 = arith.mulf %370, %369 : vector<2x1xf32>
    %c0_446 = arith.constant 0 : index
    %c0_447 = arith.constant 0 : index
    %372 = vector.load %arg26[%c0_446, %c0_447] : memref<2x1xf32, #tpu.memory_space<vmem>>, vector<2x1xf32>
    tpu.vector_store %arg26[%c0_446, %c0_447], %371 {strides = array<i32>} : memref<2x1xf32, #tpu.memory_space<vmem>>, vector<2x1xf32>,
    return
  }
  func.func @transform_0(%arg0: i32) -> (i32, i32, i32, i32) {
    %c0_i32 = arith.constant 0 : i32
    %c0_i32_0 = arith.constant 0 : i32
    %c0_i32_1 = arith.constant 0 : i32
    %c0_i32_2 = arith.constant 0 : i32
    return %arg0, %c0_i32, %c0_i32_0, %c0_i32_1 : i32, i32, i32, i32
  }
  func.func @transform_1(%arg0: i32) -> (i32, i32) {
    %c0_i32 = arith.constant 0 : i32
    %c0_i32_0 = arith.constant 0 : i32
    %c0_i32_1 = arith.constant 0 : i32
    return %c0_i32, %c0_i32_0 : i32, i32
  }
  func.func @transform_2(%arg0: i32) -> (i32, i32) {
    %c0_i32 = arith.constant 0 : i32
    %c0_i32_0 = arith.constant 0 : i32
    %c0_i32_1 = arith.constant 0 : i32
    return %c0_i32, %c0_i32_0 : i32, i32
  }
  func.func @transform_3(%arg0: i32) -> (i32, i32) {
    %c0_i32 = arith.constant 0 : i32
    %c0_i32_0 = arith.constant 0 : i32
    %c0_i32_1 = arith.constant 0 : i32
    return %c0_i32, %c0_i32_0 : i32, i32
  }
  func.func @transform_4(%arg0: i32) -> (i32, i32) {
    %c0_i32 = arith.constant 0 : i32
    %c0_i32_0 = arith.constant 0 : i32
    %c0_i32_1 = arith.constant 0 : i32
    return %c0_i32, %c0_i32_0 : i32, i32
  }
  func.func @transform_5(%arg0: i32) -> (i32, i32) {
    %c0_i32 = arith.constant 0 : i32
    %c0_i32_0 = arith.constant 0 : i32
    %c0_i32_1 = arith.constant 0 : i32
    return %c0_i32, %c0_i32_0 : i32, i32
  }
  func.func @transform_6(%arg0: i32) -> (i32, i32) {
    %c0_i32 = arith.constant 0 : i32
    %c0_i32_0 = arith.constant 0 : i32
    %c0_i32_1 = arith.constant 0 : i32
    return %c0_i32, %c0_i32_0 : i32, i32
  }
  func.func @transform_7(%arg0: i32) -> (i32, i32) {
    %c0_i32 = arith.constant 0 : i32
    %c0_i32_0 = arith.constant 0 : i32
    %c0_i32_1 = arith.constant 0 : i32
    return %c0_i32, %c0_i32_0 : i32, i32
  }
  func.func @transform_8(%arg0: i32) -> (i32, i32) {
    %c0_i32 = arith.constant 0 : i32
    %c0_i32_0 = arith.constant 0 : i32
    %c0_i32_1 = arith.constant 0 : i32
    return %c0_i32, %c0_i32_0 : i32, i32
  }
  func.func @transform_9(%arg0: i32) -> (i32, i32) {
    %c0_i32 = arith.constant 0 : i32
    %c0_i32_0 = arith.constant 0 : i32
    %c0_i32_1 = arith.constant 0 : i32
    return %c0_i32, %c0_i32_0 : i32, i32
  }
  func.func @transform_10(%arg0: i32) -> (i32, i32) {
    %c0_i32 = arith.constant 0 : i32
    %c0_i32_0 = arith.constant 0 : i32
    %c0_i32_1 = arith.constant 0 : i32
    return %c0_i32, %c0_i32_0 : i32, i32
  }
  func.func @transform_11(%arg0: i32) -> (i32, i32) {
    %c0_i32 = arith.constant 0 : i32
    %c0_i32_0 = arith.constant 0 : i32
    %c0_i32_1 = arith.constant 0 : i32
    return %c0_i32, %c0_i32_0 : i32, i32
  }
  func.func @transform_12(%arg0: i32) -> (i32, i32) {
    %c0_i32 = arith.constant 0 : i32
    %c0_i32_0 = arith.constant 0 : i32
    %c0_i32_1 = arith.constant 0 : i32
    return %c0_i32, %c0_i32_0 : i32, i32
  }
  func.func @transform_13(%arg0: i32) -> (i32, i32) {
    %c0_i32 = arith.constant 0 : i32
    %c0_i32_0 = arith.constant 0 : i32
    %c0_i32_1 = arith.constant 0 : i32
    return %c0_i32, %c0_i32_0 : i32, i32
  }
  func.func @transform_14(%arg0: i32) -> (i32, i32) {
    %c0_i32 = arith.constant 0 : i32
    %c0_i32_0 = arith.constant 0 : i32
    %c0_i32_1 = arith.constant 0 : i32
    return %c0_i32, %c0_i32_0 : i32, i32
  }
  func.func @transform_15(%arg0: i32) -> (i32, i32) {
    %c0_i32 = arith.constant 0 : i32
    %c0_i32_0 = arith.constant 0 : i32
    %c0_i32_1 = arith.constant 0 : i32
    return %c0_i32, %c0_i32_0 : i32, i32
  }
  func.func @transform_16(%arg0: i32) -> (i32, i32) {
    %c0_i32 = arith.constant 0 : i32
    %c0_i32_0 = arith.constant 0 : i32
    %c0_i32_1 = arith.constant 0 : i32
    return %c0_i32, %c0_i32_0 : i32, i32
  }
  func.func @transform_17(%arg0: i32) -> (i32, i32) {
    %c0_i32 = arith.constant 0 : i32
    %c0_i32_0 = arith.constant 0 : i32
    %c0_i32_1 = arith.constant 0 : i32
    return %c0_i32, %c0_i32_0 : i32, i32
  }
  func.func @transform_18(%arg0: i32) -> (i32, i32) {
    %c0_i32 = arith.constant 0 : i32
    %c0_i32_0 = arith.constant 0 : i32
    %c0_i32_1 = arith.constant 0 : i32
    return %c0_i32, %c0_i32_0 : i32, i32
  }
  func.func @transform_19(%arg0: i32) -> (i32, i32) {
    %c0_i32 = arith.constant 0 : i32
    %c0_i32_0 = arith.constant 0 : i32
    %c0_i32_1 = arith.constant 0 : i32
    return %c0_i32, %c0_i32_0 : i32, i32
  }
  func.func @transform_20(%arg0: i32) -> (i32, i32) {
    %c0_i32 = arith.constant 0 : i32
    %c0_i32_0 = arith.constant 0 : i32
    %c0_i32_1 = arith.constant 0 : i32
    return %c0_i32, %c0_i32_0 : i32, i32
  }
  func.func @transform_21(%arg0: i32) -> (i32, i32) {
    %c0_i32 = arith.constant 0 : i32
    %c0_i32_0 = arith.constant 0 : i32
    %c0_i32_1 = arith.constant 0 : i32
    return %c0_i32, %c0_i32_0 : i32, i32
  }
  func.func @transform_22(%arg0: i32) -> (i32, i32) {
    %c0_i32 = arith.constant 0 : i32
    %c0_i32_0 = arith.constant 0 : i32
    %c0_i32_1 = arith.constant 0 : i32
    return %c0_i32, %c0_i32_0 : i32, i32
  }
  func.func @transform_23(%arg0: i32) -> (i32, i32) {
    %c0_i32 = arith.constant 0 : i32
    %c0_i32_0 = arith.constant 0 : i32
    %c0_i32_1 = arith.constant 0 : i32
    return %c0_i32, %c0_i32_0 : i32, i32
  }
  func.func @transform_24(%arg0: i32) -> (i32, i32) {
    %c0_i32 = arith.constant 0 : i32
    %c0_i32_0 = arith.constant 0 : i32
    %c0_i32_1 = arith.constant 0 : i32
    return %c0_i32, %c0_i32_0 : i32, i32
  }
  func.func @transform_25(%arg0: i32) -> (i32, i32) {
    %c0_i32 = arith.constant 0 : i32
    %c0_i32_0 = arith.constant 0 : i32
    return %arg0, %c0_i32 : i32, i32
  }
}

</mosaic_0001>

<llo_original>
// kernel: tpu_custom_call.1
$region0: #{tpu_custom_call.1}
  #allocation0 [shape = 'u32[]', space=smem, size = 0x4, offset = 0x4, fixed_abs, tag = 'smem constant byte address 0x4 - core index']
  #allocation1 [shape = 'u32[144,128]{1,0:T(1,128)}', space=vmem, size = 0x12000, scoped, tag = 'internal scratch']
  #allocation2 [shape = 'f32[2,18,18,6]{3,2,1,0:T(8,128)}', space=vmem, size = 0x6c000, scoped, tag = 'scratch operand']
  #allocation3 [shape = 'f32[2,18,18,8]{3,2,1,0:T(8,128)}', space=vmem, size = 0x6c000, scoped, tag = 'scratch operand']
  #allocation4 [shape = 'f32[2,10,10,16]{3,2,1,0:T(8,128)}', space=vmem, size = 0x28000, scoped, tag = 'scratch operand']
  #allocation5 [shape = 'f32[2,6,6,32]{3,2,1,0:T(8,128)}', space=vmem, size = 0xc000, scoped, tag = 'scratch operand']
  #allocation6 [shape = 'f32[2,10,10,6]{3,2,1,0:T(8,128)}', space=vmem, size = 0x28000, scoped, tag = 'scratch operand']
  #allocation7 [shape = 'f32[2,10,10,8]{3,2,1,0:T(8,128)}', space=vmem, size = 0x28000, scoped, tag = 'scratch operand']
  #allocation8 [shape = 'f32[2,6,6,16]{3,2,1,0:T(8,128)}', space=vmem, size = 0xc000, scoped, tag = 'scratch operand']
  #allocation9 [shape = 'f32[2,4,4,32]{3,2,1,0:T(4,128)}', space=vmem, size = 0x4000, scoped, tag = 'scratch operand']
  %s0 = inlined_call_operand.vmem [shape: f32[2,16,16,6], index: 0, kind: input, shape index: {}]
  %s1 = inlined_call_operand.vmem [shape: bf16[54,8], index: 1, kind: input, shape index: {}]
  %s2 = inlined_call_operand.vmem [shape: f32[1,8], index: 2, kind: input, shape index: {}]
  %s3 = inlined_call_operand.vmem [shape: f32[1,8], index: 3, kind: input, shape index: {}]
  %s4 = inlined_call_operand.vmem [shape: bf16[72,16], index: 4, kind: input, shape index: {}]
  %s5 = inlined_call_operand.vmem [shape: f32[1,16], index: 5, kind: input, shape index: {}]
  %s6 = inlined_call_operand.vmem [shape: f32[1,16], index: 6, kind: input, shape index: {}]
  %s7 = inlined_call_operand.vmem [shape: bf16[144,32], index: 7, kind: input, shape index: {}]
  %s8 = inlined_call_operand.vmem [shape: f32[1,32], index: 8, kind: input, shape index: {}]
  %s9 = inlined_call_operand.vmem [shape: f32[1,32], index: 9, kind: input, shape index: {}]
  %s10 = inlined_call_operand.vmem [shape: bf16[288,64], index: 10, kind: input, shape index: {}]
  %s11 = inlined_call_operand.vmem [shape: f32[1,64], index: 11, kind: input, shape index: {}]
  %s12 = inlined_call_operand.vmem [shape: f32[1,64], index: 12, kind: input, shape index: {}]
  %s13 = inlined_call_operand.vmem [shape: bf16[54,8], index: 13, kind: input, shape index: {}]
  %s14 = inlined_call_operand.vmem [shape: f32[1,8], index: 14, kind: input, shape index: {}]
  %s15 = inlined_call_operand.vmem [shape: f32[1,8], index: 15, kind: input, shape index: {}]
  %s16 = inlined_call_operand.vmem [shape: bf16[72,16], index: 16, kind: input, shape index: {}]
  %s17 = inlined_call_operand.vmem [shape: f32[1,16], index: 17, kind: input, shape index: {}]
  %s18 = inlined_call_operand.vmem [shape: f32[1,16], index: 18, kind: input, shape index: {}]
  %s19 = inlined_call_operand.vmem [shape: bf16[144,32], index: 19, kind: input, shape index: {}]
  %s20 = inlined_call_operand.vmem [shape: f32[1,32], index: 20, kind: input, shape index: {}]
  %s21 = inlined_call_operand.vmem [shape: f32[1,32], index: 21, kind: input, shape index: {}]
  %s22 = inlined_call_operand.vmem [shape: bf16[288,64], index: 22, kind: input, shape index: {}]
  %s23 = inlined_call_operand.vmem [shape: f32[1,64], index: 23, kind: input, shape index: {}]
  %s24 = inlined_call_operand.vmem [shape: f32[1,64], index: 24, kind: input, shape index: {}]
  %s25 = inlined_call_operand.vmem [shape: f32[2,1], index: 25, kind: output, shape index: {}]
  %s26 = sld [smem:[#allocation0]]
  $region110: #{tpu_custom_call.1} parent=0
    _
  %s28 = ssub.s32 1, %s26
  %s29 = scalar_select 0, %s28, %s26
  // Predicated region
  $region2: #{tpu_custom_call.1} parent=0 // pred_check
    _
  $region3: #{tpu_custom_call.1} parent=0 // pred_check_branch
    %31 = sbr.rel (0) target = $region5
  $region4: #{tpu_custom_call.1} parent=0 // pred_region
    _
  $region5: #{tpu_custom_call.1} parent=0 // pred_fallthru
    _
  // Predicated region
  $region6: #{tpu_custom_call.1} parent=0 // pred_check
    _
  $region7: #{tpu_custom_call.1} parent=0 // pred_check_branch
    %33 = sbr.rel (0) target = $region9
  $region8: #{tpu_custom_call.1} parent=0 // pred_region
    _
  $region9: #{tpu_custom_call.1} parent=0 // pred_fallthru
    _
  // Predicated region
  $region10: #{tpu_custom_call.1} parent=0 // pred_check
    _
  $region11: #{tpu_custom_call.1} parent=0 // pred_check_branch
    %35 = sbr.rel (0) target = $region13
  $region12: #{tpu_custom_call.1} parent=0 // pred_region
    _
  $region13: #{tpu_custom_call.1} parent=0 // pred_fallthru
    _
  // Predicated region
  $region14: #{tpu_custom_call.1} parent=0 // pred_check
    _
  $region15: #{tpu_custom_call.1} parent=0 // pred_check_branch
    %37 = sbr.rel (0) target = $region17
  $region16: #{tpu_custom_call.1} parent=0 // pred_region
    _
  $region17: #{tpu_custom_call.1} parent=0 // pred_fallthru
    _
  // Predicated region
  $region18: #{tpu_custom_call.1} parent=0 // pred_check
    _
  $region19: #{tpu_custom_call.1} parent=0 // pred_check_branch
    %39 = sbr.rel (0) target = $region21
  $region20: #{tpu_custom_call.1} parent=0 // pred_region
    _
  $region21: #{tpu_custom_call.1} parent=0 // pred_fallthru
    _
  // Predicated region
  $region22: #{tpu_custom_call.1} parent=0 // pred_check
    _
  $region23: #{tpu_custom_call.1} parent=0 // pred_check_branch
    %41 = sbr.rel (0) target = $region25
  $region24: #{tpu_custom_call.1} parent=0 // pred_region
    _
  $region25: #{tpu_custom_call.1} parent=0 // pred_fallthru
    _
  // Predicated region
  $region26: #{tpu_custom_call.1} parent=0 // pred_check
    _
  $region27: #{tpu_custom_call.1} parent=0 // pred_check_branch
    %43 = sbr.rel (0) target = $region29
  $region28: #{tpu_custom_call.1} parent=0 // pred_region
    _
  $region29: #{tpu_custom_call.1} parent=0 // pred_fallthru
    _
  // Predicated region
  $region30: #{tpu_custom_call.1} parent=0 // pred_check
    _
  $region31: #{tpu_custom_call.1} parent=0 // pred_check_branch
    %45 = sbr.rel (0) target = $region33
  $region32: #{tpu_custom_call.1} parent=0 // pred_region
    _
  $region33: #{tpu_custom_call.1} parent=0 // pred_fallthru
    _
  // Predicated region
  $region34: #{tpu_custom_call.1} parent=0 // pred_check
    _
  $region35: #{tpu_custom_call.1} parent=0 // pred_check_branch
    %47 = sbr.rel (0) target = $region37
  $region36: #{tpu_custom_call.1} parent=0 // pred_region
    _
  $region37: #{tpu_custom_call.1} parent=0 // pred_fallthru
    _
  // Predicated region
  $region38: #{tpu_custom_call.1} parent=0 // pred_check
    _
  $region39: #{tpu_custom_call.1} parent=0 // pred_check_branch
    %49 = sbr.rel (0) target = $region41
  $region40: #{tpu_custom_call.1} parent=0 // pred_region
    _
  $region41: #{tpu_custom_call.1} parent=0 // pred_fallthru
    _
  // Predicated region
  $region42: #{tpu_custom_call.1} parent=0 // pred_check
    _
  $region43: #{tpu_custom_call.1} parent=0 // pred_check_branch
    %51 = sbr.rel (0) target = $region45
  $region44: #{tpu_custom_call.1} parent=0 // pred_region
    _
  $region45: #{tpu_custom_call.1} parent=0 // pred_fallthru
    _
  // Predicated region
  $region46: #{tpu_custom_call.1} parent=0 // pred_check
    _
  $region47: #{tpu_custom_call.1} parent=0 // pred_check_branch
    %53 = sbr.rel (0) target = $region49
  $region48: #{tpu_custom_call.1} parent=0 // pred_region
    _
  $region49: #{tpu_custom_call.1} parent=0 // pred_fallthru
    _
  // Predicated region
  $region50: #{tpu_custom_call.1} parent=0 // pred_check
    _
  $region51: #{tpu_custom_call.1} parent=0 // pred_check_branch
    %55 = sbr.rel (0) target = $region53
  $region52: #{tpu_custom_call.1} parent=0 // pred_region
    _
  $region53: #{tpu_custom_call.1} parent=0 // pred_fallthru
    _
  // Predicated region
  $region54: #{tpu_custom_call.1} parent=0 // pred_check
    _
  $region55: #{tpu_custom_call.1} parent=0 // pred_check_branch
    %57 = sbr.rel (0) target = $region57
  $region56: #{tpu_custom_call.1} parent=0 // pred_region
    _
  $region57: #{tpu_custom_call.1} parent=0 // pred_fallthru
    _
  // Predicated region
  $region58: #{tpu_custom_call.1} parent=0 // pred_check
    _
  $region59: #{tpu_custom_call.1} parent=0 // pred_check_branch
    %59 = sbr.rel (0) target = $region61
  $region60: #{tpu_custom_call.1} parent=0 // pred_region
    _
  $region61: #{tpu_custom_call.1} parent=0 // pred_fallthru
    _
  // Predicated region
  $region62: #{tpu_custom_call.1} parent=0 // pred_check
    _
  $region63: #{tpu_custom_call.1} parent=0 // pred_check_branch
    %61 = sbr.rel (0) target = $region65
  $region64: #{tpu_custom_call.1} parent=0 // pred_region
    _
  $region65: #{tpu_custom_call.1} parent=0 // pred_fallthru
    _
  // Predicated region
  $region66: #{tpu_custom_call.1} parent=0 // pred_check
    _
  $region67: #{tpu_custom_call.1} parent=0 // pred_check_branch
    %63 = sbr.rel (0) target = $region69
  $region68: #{tpu_custom_call.1} parent=0 // pred_region
    _
  $region69: #{tpu_custom_call.1} parent=0 // pred_fallthru
    _
  // Predicated region
  $region70: #{tpu_custom_call.1} parent=0 // pred_check
    _
  $region71: #{tpu_custom_call.1} parent=0 // pred_check_branch
    %65 = sbr.rel (0) target = $region73
  $region72: #{tpu_custom_call.1} parent=0 // pred_region
    _
  $region73: #{tpu_custom_call.1} parent=0 // pred_fallthru
    _
  // Predicated region
  $region74: #{tpu_custom_call.1} parent=0 // pred_check
    _
  $region75: #{tpu_custom_call.1} parent=0 // pred_check_branch
    %67 = sbr.rel (0) target = $region77
  $region76: #{tpu_custom_call.1} parent=0 // pred_region
    _
  $region77: #{tpu_custom_call.1} parent=0 // pred_fallthru
    _
  // Predicated region
  $region78: #{tpu_custom_call.1} parent=0 // pred_check
    _
  $region79: #{tpu_custom_call.1} parent=0 // pred_check_branch
    %69 = sbr.rel (0) target = $region81
  $region80: #{tpu_custom_call.1} parent=0 // pred_region
    _
  $region81: #{tpu_custom_call.1} parent=0 // pred_fallthru
    _
  // Predicated region
  $region82: #{tpu_custom_call.1} parent=0 // pred_check
    _
  $region83: #{tpu_custom_call.1} parent=0 // pred_check_branch
    %71 = sbr.rel (0) target = $region85
  $region84: #{tpu_custom_call.1} parent=0 // pred_region
    _
  $region85: #{tpu_custom_call.1} parent=0 // pred_fallthru
    _
  // Predicated region
  $region86: #{tpu_custom_call.1} parent=0 // pred_check
    _
  $region87: #{tpu_custom_call.1} parent=0 // pred_check_branch
    %73 = sbr.rel (0) target = $region89
  $region88: #{tpu_custom_call.1} parent=0 // pred_region
    _
  $region89: #{tpu_custom_call.1} parent=0 // pred_fallthru
    _
  // Predicated region
  $region90: #{tpu_custom_call.1} parent=0 // pred_check
    _
  $region91: #{tpu_custom_call.1} parent=0 // pred_check_branch
    %75 = sbr.rel (0) target = $region93
  $region92: #{tpu_custom_call.1} parent=0 // pred_region
    _
  $region93: #{tpu_custom_call.1} parent=0 // pred_fallthru
    _
  // Predicated region
  $region94: #{tpu_custom_call.1} parent=0 // pred_check
    _
  $region95: #{tpu_custom_call.1} parent=0 // pred_check_branch
    %77 = sbr.rel (0) target = $region97
  $region96: #{tpu_custom_call.1} parent=0 // pred_region
    _
  $region97: #{tpu_custom_call.1} parent=0 // pred_fallthru
    _
  // Predicated region
  $region98: #{tpu_custom_call.1} parent=0 // pred_check
    _
  $region99: #{tpu_custom_call.1} parent=0 // pred_check_branch
    %79 = sbr.rel (0) target = $region101
  $region100: #{tpu_custom_call.1} parent=0 // pred_region
    _
  $region101: #{tpu_custom_call.1} parent=0 // pred_fallthru
    _
  %vm81 = vcmask 48128
  %82 = vst.msk [vmem:[#allocation2] sm:$0xff] %vm81, 0.0
  %83 = vst.msk [vmem:[#allocation2 + $0x8] sm:$0xff] %vm81, 0.0
  %vm84 = vcmask 41984
  %85 = vst.msk [vmem:[#allocation2 + $0x10] sm:$0x3] %vm84, 0.0
  %86 = vst.msk [vmem:[#allocation2 + $0x1b0] sm:$0xff] %vm81, 0.0
  %87 = vst.msk [vmem:[#allocation2 + $0x1b8] sm:$0xff] %vm81, 0.0
  %88 = vst.msk [vmem:[#allocation2 + $0x1c0] sm:$0x3] %vm84, 0.0
  %s89 = scalar_lea.vmem [#allocation2], 408
  %90 = vst.msk [vmem:[%s89] sm:$0xff] %vm81, 0.0
  %91 = vst.msk [vmem:[%s89 + $0x8] sm:$0xff] %vm81, 0.0
  %92 = vst.msk [vmem:[%s89 + $0x10] sm:$0x3] %vm84, 0.0
  %93 = vst.msk [vmem:[%s89 + $0x1b0] sm:$0xff] %vm81, 0.0
  %94 = vst.msk [vmem:[%s89 + $0x1b8] sm:$0xff] %vm81, 0.0
  %95 = vst.msk [vmem:[%s89 + $0x1c0] sm:$0x3] %vm84, 0.0
  %vm96 = vcmask 40960
  %97 = vst.msk [vmem:[#allocation2] sm:$0x1] %vm96, 0.0
  %98 = vst.msk [vmem:[#allocation2 + $0x18] sm:$0x1] %vm96, 0.0
  %99 = vst.msk [vmem:[#allocation2 + $0x30] sm:$0x1] %vm96, 0.0
  %100 = vst.msk [vmem:[#allocation2 + $0x48] sm:$0x1] %vm96, 0.0
  %101 = vst.msk [vmem:[#allocation2 + $0x60] sm:$0x1] %vm96, 0.0
  %102 = vst.msk [vmem:[#allocation2 + $0x78] sm:$0x1] %vm96, 0.0
  %103 = vst.msk [vmem:[#allocation2 + $0x90] sm:$0x1] %vm96, 0.0
  %104 = vst.msk [vmem:[#allocation2 + $0xa8] sm:$0x1] %vm96, 0.0
  %105 = vst.msk [vmem:[#allocation2 + $0xc0] sm:$0x1] %vm96, 0.0
  %106 = vst.msk [vmem:[#allocation2 + $0xd8] sm:$0x1] %vm96, 0.0
  %107 = vst.msk [vmem:[#allocation2 + $0xf0] sm:$0x1] %vm96, 0.0
  %108 = vst.msk [vmem:[#allocation2 + $0x108] sm:$0x1] %vm96, 0.0
  %109 = vst.msk [vmem:[#allocation2 + $0x120] sm:$0x1] %vm96, 0.0
  %110 = vst.msk [vmem:[#allocation2 + $0x138] sm:$0x1] %vm96, 0.0
  %111 = vst.msk [vmem:[#allocation2 + $0x150] sm:$0x1] %vm96, 0.0
  %112 = vst.msk [vmem:[#allocation2 + $0x168] sm:$0x1] %vm96, 0.0
  %113 = vst.msk [vmem:[#allocation2 + $0x180] sm:$0x1] %vm96, 0.0
  %114 = vst.msk [vmem:[#allocation2 + $0x198] sm:$0x1] %vm96, 0.0
  %115 = vst.msk [vmem:[#allocation2 + $0x1b0] sm:$0x1] %vm96, 0.0
  %116 = vst.msk [vmem:[#allocation2 + $0x1c8] sm:$0x1] %vm96, 0.0
  %117 = vst.msk [vmem:[#allocation2 + $0x1e0] sm:$0x1] %vm96, 0.0
  %118 = vst.msk [vmem:[#allocation2 + $0x1f8] sm:$0x1] %vm96, 0.0
  %119 = vst.msk [vmem:[#allocation2 + $0x210] sm:$0x1] %vm96, 0.0
  %120 = vst.msk [vmem:[#allocation2 + $0x228] sm:$0x1] %vm96, 0.0
  %121 = vst.msk [vmem:[#allocation2 + $0x240] sm:$0x1] %vm96, 0.0
  %122 = vst.msk [vmem:[#allocation2 + $0x258] sm:$0x1] %vm96, 0.0
  %123 = vst.msk [vmem:[#allocation2 + $0x270] sm:$0x1] %vm96, 0.0
  %124 = vst.msk [vmem:[#allocation2 + $0x288] sm:$0x1] %vm96, 0.0
  %125 = vst.msk [vmem:[#allocation2 + $0x2a0] sm:$0x1] %vm96, 0.0
  %126 = vst.msk [vmem:[#allocation2 + $0x2b8] sm:$0x1] %vm96, 0.0
  %127 = vst.msk [vmem:[#allocation2 + $0x2d0] sm:$0x1] %vm96, 0.0
  %128 = vst.msk [vmem:[#allocation2 + $0x2e8] sm:$0x1] %vm96, 0.0
  %129 = vst.msk [vmem:[#allocation2 + $0x300] sm:$0x1] %vm96, 0.0
  %130 = vst.msk [vmem:[#allocation2 + $0x318] sm:$0x1] %vm96, 0.0
  %131 = vst.msk [vmem:[#allocation2 + $0x330] sm:$0x1] %vm96, 0.0
  %132 = vst.msk [vmem:[#allocation2 + $0x348] sm:$0x1] %vm96, 0.0
  %133 = vst.msk [vmem:[#allocation2 + $0x11] sm:$0x1] %vm96, 0.0
  %134 = vst.msk [vmem:[#allocation2 + $0x29] sm:$0x1] %vm96, 0.0
  %135 = vst.msk [vmem:[#allocation2 + $0x41] sm:$0x1] %vm96, 0.0
  %136 = vst.msk [vmem:[#allocation2 + $0x59] sm:$0x1] %vm96, 0.0
  %137 = vst.msk [vmem:[#allocation2 + $0x71] sm:$0x1] %vm96, 0.0
  %138 = vst.msk [vmem:[#allocation2 + $0x89] sm:$0x1] %vm96, 0.0
  %139 = vst.msk [vmem:[#allocation2 + $0xa1] sm:$0x1] %vm96, 0.0
  %140 = vst.msk [vmem:[#allocation2 + $0xb9] sm:$0x1] %vm96, 0.0
  %141 = vst.msk [vmem:[#allocation2 + $0xd1] sm:$0x1] %vm96, 0.0
  %142 = vst.msk [vmem:[#allocation2 + $0xe9] sm:$0x1] %vm96, 0.0
  %143 = vst.msk [vmem:[#allocation2 + $0x101] sm:$0x1] %vm96, 0.0
  %144 = vst.msk [vmem:[#allocation2 + $0x119] sm:$0x1] %vm96, 0.0
  %145 = vst.msk [vmem:[#allocation2 + $0x131] sm:$0x1] %vm96, 0.0
  %146 = vst.msk [vmem:[#allocation2 + $0x149] sm:$0x1] %vm96, 0.0
  %147 = vst.msk [vmem:[#allocation2 + $0x161] sm:$0x1] %vm96, 0.0
  %148 = vst.msk [vmem:[#allocation2 + $0x179] sm:$0x1] %vm96, 0.0
  %149 = vst.msk [vmem:[#allocation2 + $0x191] sm:$0x1] %vm96, 0.0
  %150 = vst.msk [vmem:[#allocation2 + $0x1a9] sm:$0x1] %vm96, 0.0
  %151 = vst.msk [vmem:[#allocation2 + $0x1c1] sm:$0x1] %vm96, 0.0
  %152 = vst.msk [vmem:[#allocation2 + $0x1d9] sm:$0x1] %vm96, 0.0
  %153 = vst.msk [vmem:[#allocation2 + $0x1f1] sm:$0x1] %vm96, 0.0
  %154 = vst.msk [vmem:[#allocation2 + $0x209] sm:$0x1] %vm96, 0.0
  %155 = vst.msk [vmem:[#allocation2 + $0x221] sm:$0x1] %vm96, 0.0
  %156 = vst.msk [vmem:[#allocation2 + $0x239] sm:$0x1] %vm96, 0.0
  %157 = vst.msk [vmem:[#allocation2 + $0x251] sm:$0x1] %vm96, 0.0
  %158 = vst.msk [vmem:[#allocation2 + $0x269] sm:$0x1] %vm96, 0.0
  %159 = vst.msk [vmem:[#allocation2 + $0x281] sm:$0x1] %vm96, 0.0
  %160 = vst.msk [vmem:[#allocation2 + $0x299] sm:$0x1] %vm96, 0.0
  %161 = vst.msk [vmem:[#allocation2 + $0x2b1] sm:$0x1] %vm96, 0.0
  %162 = vst.msk [vmem:[#allocation2 + $0x2c9] sm:$0x1] %vm96, 0.0
  %163 = vst.msk [vmem:[#allocation2 + $0x2e1] sm:$0x1] %vm96, 0.0
  %164 = vst.msk [vmem:[#allocation2 + $0x2f9] sm:$0x1] %vm96, 0.0
  %165 = vst.msk [vmem:[#allocation2 + $0x311] sm:$0x1] %vm96, 0.0
  %166 = vst.msk [vmem:[#allocation2 + $0x329] sm:$0x1] %vm96, 0.0
  %167 = vst.msk [vmem:[#allocation2 + $0x341] sm:$0x1] %vm96, 0.0
  %168 = vst.msk [vmem:[#allocation2 + $0x359] sm:$0x1] %vm96, 0.0
  %vm169 = vcmask 64512
  %170 = vst.msk [vmem:[#allocation3] sm:$0xff] %vm169, 0.0
  %171 = vst.msk [vmem:[#allocation3 + $0x8] sm:$0xff] %vm169, 0.0
  %vm172 = vcmask 58368
  %173 = vst.msk [vmem:[#allocation3 + $0x10] sm:$0x3] %vm172, 0.0
  %174 = vst.msk [vmem:[#allocation3 + $0x1b0] sm:$0xff] %vm169, 0.0
  %175 = vst.msk [vmem:[#allocation3 + $0x1b8] sm:$0xff] %vm169, 0.0
  %176 = vst.msk [vmem:[#allocation3 + $0x1c0] sm:$0x3] %vm172, 0.0
  %s177 = scalar_lea.vmem [#allocation3], 408
  %178 = vst.msk [vmem:[%s177] sm:$0xff] %vm169, 0.0
  %179 = vst.msk [vmem:[%s177 + $0x8] sm:$0xff] %vm169, 0.0
  %180 = vst.msk [vmem:[%s177 + $0x10] sm:$0x3] %vm172, 0.0
  %181 = vst.msk [vmem:[%s177 + $0x1b0] sm:$0xff] %vm169, 0.0
  %182 = vst.msk [vmem:[%s177 + $0x1b8] sm:$0xff] %vm169, 0.0
  %183 = vst.msk [vmem:[%s177 + $0x1c0] sm:$0x3] %vm172, 0.0
  %vm184 = vcmask 57344
  %185 = vst.msk [vmem:[#allocation3] sm:$0x1] %vm184, 0.0
  %186 = vst.msk [vmem:[#allocation3 + $0x18] sm:$0x1] %vm184, 0.0
  %187 = vst.msk [vmem:[#allocation3 + $0x30] sm:$0x1] %vm184, 0.0
  %188 = vst.msk [vmem:[#allocation3 + $0x48] sm:$0x1] %vm184, 0.0
  %189 = vst.msk [vmem:[#allocation3 + $0x60] sm:$0x1] %vm184, 0.0
  %190 = vst.msk [vmem:[#allocation3 + $0x78] sm:$0x1] %vm184, 0.0
  %191 = vst.msk [vmem:[#allocation3 + $0x90] sm:$0x1] %vm184, 0.0
  %192 = vst.msk [vmem:[#allocation3 + $0xa8] sm:$0x1] %vm184, 0.0
  %193 = vst.msk [vmem:[#allocation3 + $0xc0] sm:$0x1] %vm184, 0.0
  %194 = vst.msk [vmem:[#allocation3 + $0xd8] sm:$0x1] %vm184, 0.0
  %195 = vst.msk [vmem:[#allocation3 + $0xf0] sm:$0x1] %vm184, 0.0
  %196 = vst.msk [vmem:[#allocation3 + $0x108] sm:$0x1] %vm184, 0.0
  %197 = vst.msk [vmem:[#allocation3 + $0x120] sm:$0x1] %vm184, 0.0
  %198 = vst.msk [vmem:[#allocation3 + $0x138] sm:$0x1] %vm184, 0.0
  %199 = vst.msk [vmem:[#allocation3 + $0x150] sm:$0x1] %vm184, 0.0
  %200 = vst.msk [vmem:[#allocation3 + $0x168] sm:$0x1] %vm184, 0.0
  %201 = vst.msk [vmem:[#allocation3 + $0x180] sm:$0x1] %vm184, 0.0
  %202 = vst.msk [vmem:[#allocation3 + $0x198] sm:$0x1] %vm184, 0.0
  %203 = vst.msk [vmem:[#allocation3 + $0x1b0] sm:$0x1] %vm184, 0.0
  %204 = vst.msk [vmem:[#allocation3 + $0x1c8] sm:$0x1] %vm184, 0.0
  %205 = vst.msk [vmem:[#allocation3 + $0x1e0] sm:$0x1] %vm184, 0.0
  %206 = vst.msk [vmem:[#allocation3 + $0x1f8] sm:$0x1] %vm184, 0.0
  %207 = vst.msk [vmem:[#allocation3 + $0x210] sm:$0x1] %vm184, 0.0
  %208 = vst.msk [vmem:[#allocation3 + $0x228] sm:$0x1] %vm184, 0.0
  %209 = vst.msk [vmem:[#allocation3 + $0x240] sm:$0x1] %vm184, 0.0
  %210 = vst.msk [vmem:[#allocation3 + $0x258] sm:$0x1] %vm184, 0.0
  %211 = vst.msk [vmem:[#allocation3 + $0x270] sm:$0x1] %vm184, 0.0
  %212 = vst.msk [vmem:[#allocation3 + $0x288] sm:$0x1] %vm184, 0.0
  %213 = vst.msk [vmem:[#allocation3 + $0x2a0] sm:$0x1] %vm184, 0.0
  %214 = vst.msk [vmem:[#allocation3 + $0x2b8] sm:$0x1] %vm184, 0.0
  %215 = vst.msk [vmem:[#allocation3 + $0x2d0] sm:$0x1] %vm184, 0.0
  %216 = vst.msk [vmem:[#allocation3 + $0x2e8] sm:$0x1] %vm184, 0.0
  %217 = vst.msk [vmem:[#allocation3 + $0x300] sm:$0x1] %vm184, 0.0
  %218 = vst.msk [vmem:[#allocation3 + $0x318] sm:$0x1] %vm184, 0.0
  %219 = vst.msk [vmem:[#allocation3 + $0x330] sm:$0x1] %vm184, 0.0
  %220 = vst.msk [vmem:[#allocation3 + $0x348] sm:$0x1] %vm184, 0.0
  %221 = vst.msk [vmem:[#allocation3 + $0x11] sm:$0x1] %vm184, 0.0
  %222 = vst.msk [vmem:[#allocation3 + $0x29] sm:$0x1] %vm184, 0.0
  %223 = vst.msk [vmem:[#allocation3 + $0x41] sm:$0x1] %vm184, 0.0
  %224 = vst.msk [vmem:[#allocation3 + $0x59] sm:$0x1] %vm184, 0.0
  %225 = vst.msk [vmem:[#allocation3 + $0x71] sm:$0x1] %vm184, 0.0
  %226 = vst.msk [vmem:[#allocation3 + $0x89] sm:$0x1] %vm184, 0.0
  %227 = vst.msk [vmem:[#allocation3 + $0xa1] sm:$0x1] %vm184, 0.0
  %228 = vst.msk [vmem:[#allocation3 + $0xb9] sm:$0x1] %vm184, 0.0
  %229 = vst.msk [vmem:[#allocation3 + $0xd1] sm:$0x1] %vm184, 0.0
  %230 = vst.msk [vmem:[#allocation3 + $0xe9] sm:$0x1] %vm184, 0.0
  %231 = vst.msk [vmem:[#allocation3 + $0x101] sm:$0x1] %vm184, 0.0
  %232 = vst.msk [vmem:[#allocation3 + $0x119] sm:$0x1] %vm184, 0.0
  %233 = vst.msk [vmem:[#allocation3 + $0x131] sm:$0x1] %vm184, 0.0
  %234 = vst.msk [vmem:[#allocation3 + $0x149] sm:$0x1] %vm184, 0.0
  %235 = vst.msk [vmem:[#allocation3 + $0x161] sm:$0x1] %vm184, 0.0
  %236 = vst.msk [vmem:[#allocation3 + $0x179] sm:$0x1] %vm184, 0.0
  %237 = vst.msk [vmem:[#allocation3 + $0x191] sm:$0x1] %vm184, 0.0
  %238 = vst.msk [vmem:[#allocation3 + $0x1a9] sm:$0x1] %vm184, 0.0
  %239 = vst.msk [vmem:[#allocation3 + $0x1c1] sm:$0x1] %vm184, 0.0
  %240 = vst.msk [vmem:[#allocation3 + $0x1d9] sm:$0x1] %vm184, 0.0
  %241 = vst.msk [vmem:[#allocation3 + $0x1f1] sm:$0x1] %vm184, 0.0
  %242 = vst.msk [vmem:[#allocation3 + $0x209] sm:$0x1] %vm184, 0.0
  %243 = vst.msk [vmem:[#allocation3 + $0x221] sm:$0x1] %vm184, 0.0
  %244 = vst.msk [vmem:[#allocation3 + $0x239] sm:$0x1] %vm184, 0.0
  %245 = vst.msk [vmem:[#allocation3 + $0x251] sm:$0x1] %vm184, 0.0
  %246 = vst.msk [vmem:[#allocation3 + $0x269] sm:$0x1] %vm184, 0.0
  %247 = vst.msk [vmem:[#allocation3 + $0x281] sm:$0x1] %vm184, 0.0
  %248 = vst.msk [vmem:[#allocation3 + $0x299] sm:$0x1] %vm184, 0.0
  %249 = vst.msk [vmem:[#allocation3 + $0x2b1] sm:$0x1] %vm184, 0.0
  %250 = vst.msk [vmem:[#allocation3 + $0x2c9] sm:$0x1] %vm184, 0.0
  %251 = vst.msk [vmem:[#allocation3 + $0x2e1] sm:$0x1] %vm184, 0.0
  %252 = vst.msk [vmem:[#allocation3 + $0x2f9] sm:$0x1] %vm184, 0.0
  %253 = vst.msk [vmem:[#allocation3 + $0x311] sm:$0x1] %vm184, 0.0
  %254 = vst.msk [vmem:[#allocation3 + $0x329] sm:$0x1] %vm184, 0.0
  %255 = vst.msk [vmem:[#allocation3 + $0x341] sm:$0x1] %vm184, 0.0
  %256 = vst.msk [vmem:[#allocation3 + $0x359] sm:$0x1] %vm184, 0.0
  %vm257 = vcmask 130048
  %258 = vst.msk [vmem:[#allocation4] sm:$0xff] %vm257, 0.0
  %vm259 = vcmask 123904
  %260 = vst.msk [vmem:[#allocation4 + $0x8] sm:$0x3] %vm259, 0.0
  %261 = vst.msk [vmem:[#allocation4 + $0xa0] sm:$0xff] %vm257, 0.0
  %262 = vst.msk [vmem:[#allocation4 + $0xa8] sm:$0x3] %vm259, 0.0
  %s263 = scalar_lea.vmem [#allocation4], 144
  %264 = vst.msk [vmem:[%s263] sm:$0xff] %vm257, 0.0
  %265 = vst.msk [vmem:[%s263 + $0x8] sm:$0x3] %vm259, 0.0
  %266 = vst.msk [vmem:[%s263 + $0xa0] sm:$0xff] %vm257, 0.0
  %267 = vst.msk [vmem:[%s263 + $0xa8] sm:$0x3] %vm259, 0.0
  %vm268 = vcmask 122880
  %269 = vst.msk [vmem:[#allocation4] sm:$0x1] %vm268, 0.0
  %270 = vst.msk [vmem:[#allocation4 + $0x10] sm:$0x1] %vm268, 0.0
  %271 = vst.msk [vmem:[#allocation4 + $0x20] sm:$0x1] %vm268, 0.0
  %272 = vst.msk [vmem:[#allocation4 + $0x30] sm:$0x1] %vm268, 0.0
  %273 = vst.msk [vmem:[#allocation4 + $0x40] sm:$0x1] %vm268, 0.0
  %274 = vst.msk [vmem:[#allocation4 + $0x50] sm:$0x1] %vm268, 0.0
  %275 = vst.msk [vmem:[#allocation4 + $0x60] sm:$0x1] %vm268, 0.0
  %276 = vst.msk [vmem:[#allocation4 + $0x70] sm:$0x1] %vm268, 0.0
  %277 = vst.msk [vmem:[#allocation4 + $0x80] sm:$0x1] %vm268, 0.0
  %278 = vst.msk [vmem:[#allocation4 + $0x90] sm:$0x1] %vm268, 0.0
  %279 = vst.msk [vmem:[#allocation4 + $0xa0] sm:$0x1] %vm268, 0.0
  %280 = vst.msk [vmem:[#allocation4 + $0xb0] sm:$0x1] %vm268, 0.0
  %281 = vst.msk [vmem:[#allocation4 + $0xc0] sm:$0x1] %vm268, 0.0
  %282 = vst.msk [vmem:[#allocation4 + $0xd0] sm:$0x1] %vm268, 0.0
  %283 = vst.msk [vmem:[#allocation4 + $0xe0] sm:$0x1] %vm268, 0.0
  %284 = vst.msk [vmem:[#allocation4 + $0xf0] sm:$0x1] %vm268, 0.0
  %285 = vst.msk [vmem:[#allocation4 + $0x100] sm:$0x1] %vm268, 0.0
  %286 = vst.msk [vmem:[#allocation4 + $0x110] sm:$0x1] %vm268, 0.0
  %287 = vst.msk [vmem:[#allocation4 + $0x120] sm:$0x1] %vm268, 0.0
  %288 = vst.msk [vmem:[#allocation4 + $0x130] sm:$0x1] %vm268, 0.0
  %289 = vst.msk [vmem:[#allocation4 + $0x9] sm:$0x1] %vm268, 0.0
  %290 = vst.msk [vmem:[#allocation4 + $0x19] sm:$0x1] %vm268, 0.0
  %291 = vst.msk [vmem:[#allocation4 + $0x29] sm:$0x1] %vm268, 0.0
  %292 = vst.msk [vmem:[#allocation4 + $0x39] sm:$0x1] %vm268, 0.0
  %293 = vst.msk [vmem:[#allocation4 + $0x49] sm:$0x1] %vm268, 0.0
  %294 = vst.msk [vmem:[#allocation4 + $0x59] sm:$0x1] %vm268, 0.0
  %295 = vst.msk [vmem:[#allocation4 + $0x69] sm:$0x1] %vm268, 0.0
  %296 = vst.msk [vmem:[#allocation4 + $0x79] sm:$0x1] %vm268, 0.0
  %297 = vst.msk [vmem:[#allocation4 + $0x89] sm:$0x1] %vm268, 0.0
  %298 = vst.msk [vmem:[#allocation4 + $0x99] sm:$0x1] %vm268, 0.0
  %299 = vst.msk [vmem:[#allocation4 + $0xa9] sm:$0x1] %vm268, 0.0
  %300 = vst.msk [vmem:[#allocation4 + $0xb9] sm:$0x1] %vm268, 0.0
  %301 = vst.msk [vmem:[#allocation4 + $0xc9] sm:$0x1] %vm268, 0.0
  %302 = vst.msk [vmem:[#allocation4 + $0xd9] sm:$0x1] %vm268, 0.0
  %303 = vst.msk [vmem:[#allocation4 + $0xe9] sm:$0x1] %vm268, 0.0
  %304 = vst.msk [vmem:[#allocation4 + $0xf9] sm:$0x1] %vm268, 0.0
  %305 = vst.msk [vmem:[#allocation4 + $0x109] sm:$0x1] %vm268, 0.0
  %306 = vst.msk [vmem:[#allocation4 + $0x119] sm:$0x1] %vm268, 0.0
  %307 = vst.msk [vmem:[#allocation4 + $0x129] sm:$0x1] %vm268, 0.0
  %308 = vst.msk [vmem:[#allocation4 + $0x139] sm:$0x1] %vm268, 0.0
  %vm309 = vcmask 259072
  %310 = vst.msk [vmem:[#allocation5] sm:$0x3f] %vm309, 0.0
  %311 = vst.msk [vmem:[#allocation5 + $0x30] sm:$0x3f] %vm309, 0.0
  %s312 = scalar_lea.vmem [#allocation5], 40
  %313 = vst.msk [vmem:[%s312] sm:$0x3f] %vm309, 0.0
  %314 = vst.msk [vmem:[%s312 + $0x30] sm:$0x3f] %vm309, 0.0
  %vm315 = vcmask 253952
  %316 = vst.msk [vmem:[#allocation5] sm:$0x1] %vm315, 0.0
  %317 = vst.msk [vmem:[#allocation5 + $0x8] sm:$0x1] %vm315, 0.0
  %318 = vst.msk [vmem:[#allocation5 + $0x10] sm:$0x1] %vm315, 0.0
  %319 = vst.msk [vmem:[#allocation5 + $0x18] sm:$0x1] %vm315, 0.0
  %320 = vst.msk [vmem:[#allocation5 + $0x20] sm:$0x1] %vm315, 0.0
  %321 = vst.msk [vmem:[#allocation5 + $0x28] sm:$0x1] %vm315, 0.0
  %322 = vst.msk [vmem:[#allocation5 + $0x30] sm:$0x1] %vm315, 0.0
  %323 = vst.msk [vmem:[#allocation5 + $0x38] sm:$0x1] %vm315, 0.0
  %324 = vst.msk [vmem:[#allocation5 + $0x40] sm:$0x1] %vm315, 0.0
  %325 = vst.msk [vmem:[#allocation5 + $0x48] sm:$0x1] %vm315, 0.0
  %326 = vst.msk [vmem:[#allocation5 + $0x50] sm:$0x1] %vm315, 0.0
  %327 = vst.msk [vmem:[#allocation5 + $0x58] sm:$0x1] %vm315, 0.0
  %328 = vst.msk [vmem:[#allocation5 + $0x5] sm:$0x1] %vm315, 0.0
  %329 = vst.msk [vmem:[#allocation5 + $0xd] sm:$0x1] %vm315, 0.0
  %330 = vst.msk [vmem:[#allocation5 + $0x15] sm:$0x1] %vm315, 0.0
  %331 = vst.msk [vmem:[#allocation5 + $0x1d] sm:$0x1] %vm315, 0.0
  %332 = vst.msk [vmem:[#allocation5 + $0x25] sm:$0x1] %vm315, 0.0
  %333 = vst.msk [vmem:[#allocation5 + $0x2d] sm:$0x1] %vm315, 0.0
  %334 = vst.msk [vmem:[#allocation5 + $0x35] sm:$0x1] %vm315, 0.0
  %335 = vst.msk [vmem:[#allocation5 + $0x3d] sm:$0x1] %vm315, 0.0
  %336 = vst.msk [vmem:[#allocation5 + $0x45] sm:$0x1] %vm315, 0.0
  %337 = vst.msk [vmem:[#allocation5 + $0x4d] sm:$0x1] %vm315, 0.0
  %338 = vst.msk [vmem:[#allocation5 + $0x55] sm:$0x1] %vm315, 0.0
  %339 = vst.msk [vmem:[#allocation5 + $0x5d] sm:$0x1] %vm315, 0.0
  %340 = vst.msk [vmem:[#allocation6] sm:$0xff] %vm81, 0.0
  %341 = vst.msk [vmem:[#allocation6 + $0x8] sm:$0x3] %vm84, 0.0
  %342 = vst.msk [vmem:[#allocation6 + $0xa0] sm:$0xff] %vm81, 0.0
  %343 = vst.msk [vmem:[#allocation6 + $0xa8] sm:$0x3] %vm84, 0.0
  %s344 = scalar_lea.vmem [#allocation6], 144
  %345 = vst.msk [vmem:[%s344] sm:$0xff] %vm81, 0.0
  %346 = vst.msk [vmem:[%s344 + $0x8] sm:$0x3] %vm84, 0.0
  %347 = vst.msk [vmem:[%s344 + $0xa0] sm:$0xff] %vm81, 0.0
  %348 = vst.msk [vmem:[%s344 + $0xa8] sm:$0x3] %vm84, 0.0
  %349 = vst.msk [vmem:[#allocation6] sm:$0x1] %vm96, 0.0
  %350 = vst.msk [vmem:[#allocation6 + $0x10] sm:$0x1] %vm96, 0.0
  %351 = vst.msk [vmem:[#allocation6 + $0x20] sm:$0x1] %vm96, 0.0
  %352 = vst.msk [vmem:[#allocation6 + $0x30] sm:$0x1] %vm96, 0.0
  %353 = vst.msk [vmem:[#allocation6 + $0x40] sm:$0x1] %vm96, 0.0
  %354 = vst.msk [vmem:[#allocation6 + $0x50] sm:$0x1] %vm96, 0.0
  %355 = vst.msk [vmem:[#allocation6 + $0x60] sm:$0x1] %vm96, 0.0
  %356 = vst.msk [vmem:[#allocation6 + $0x70] sm:$0x1] %vm96, 0.0
  %357 = vst.msk [vmem:[#allocation6 + $0x80] sm:$0x1] %vm96, 0.0
  %358 = vst.msk [vmem:[#allocation6 + $0x90] sm:$0x1] %vm96, 0.0
  %359 = vst.msk [vmem:[#allocation6 + $0xa0] sm:$0x1] %vm96, 0.0
  %360 = vst.msk [vmem:[#allocation6 + $0xb0] sm:$0x1] %vm96, 0.0
  %361 = vst.msk [vmem:[#allocation6 + $0xc0] sm:$0x1] %vm96, 0.0
  %362 = vst.msk [vmem:[#allocation6 + $0xd0] sm:$0x1] %vm96, 0.0
  %363 = vst.msk [vmem:[#allocation6 + $0xe0] sm:$0x1] %vm96, 0.0
  %364 = vst.msk [vmem:[#allocation6 + $0xf0] sm:$0x1] %vm96, 0.0
  %365 = vst.msk [vmem:[#allocation6 + $0x100] sm:$0x1] %vm96, 0.0
  %366 = vst.msk [vmem:[#allocation6 + $0x110] sm:$0x1] %vm96, 0.0
  %367 = vst.msk [vmem:[#allocation6 + $0x120] sm:$0x1] %vm96, 0.0
  %368 = vst.msk [vmem:[#allocation6 + $0x130] sm:$0x1] %vm96, 0.0
  %369 = vst.msk [vmem:[#allocation6 + $0x9] sm:$0x1] %vm96, 0.0
  %370 = vst.msk [vmem:[#allocation6 + $0x19] sm:$0x1] %vm96, 0.0
  %371 = vst.msk [vmem:[#allocation6 + $0x29] sm:$0x1] %vm96, 0.0
  %372 = vst.msk [vmem:[#allocation6 + $0x39] sm:$0x1] %vm96, 0.0
  %373 = vst.msk [vmem:[#allocation6 + $0x49] sm:$0x1] %vm96, 0.0
  %374 = vst.msk [vmem:[#allocation6 + $0x59] sm:$0x1] %vm96, 0.0
  %375 = vst.msk [vmem:[#allocation6 + $0x69] sm:$0x1] %vm96, 0.0
  %376 = vst.msk [vmem:[#allocation6 + $0x79] sm:$0x1] %vm96, 0.0
  %377 = vst.msk [vmem:[#allocation6 + $0x89] sm:$0x1] %vm96, 0.0
  %378 = vst.msk [vmem:[#allocation6 + $0x99] sm:$0x1] %vm96, 0.0
  %379 = vst.msk [vmem:[#allocation6 + $0xa9] sm:$0x1] %vm96, 0.0
  %380 = vst.msk [vmem:[#allocation6 + $0xb9] sm:$0x1] %vm96, 0.0
  %381 = vst.msk [vmem:[#allocation6 + $0xc9] sm:$0x1] %vm96, 0.0
  %382 = vst.msk [vmem:[#allocation6 + $0xd9] sm:$0x1] %vm96, 0.0
  %383 = vst.msk [vmem:[#allocation6 + $0xe9] sm:$0x1] %vm96, 0.0
  %384 = vst.msk [vmem:[#allocation6 + $0xf9] sm:$0x1] %vm96, 0.0
  %385 = vst.msk [vmem:[#allocation6 + $0x109] sm:$0x1] %vm96, 0.0
  %386 = vst.msk [vmem:[#allocation6 + $0x119] sm:$0x1] %vm96, 0.0
  %387 = vst.msk [vmem:[#allocation6 + $0x129] sm:$0x1] %vm96, 0.0
  %388 = vst.msk [vmem:[#allocation6 + $0x139] sm:$0x1] %vm96, 0.0
  %389 = vst.msk [vmem:[#allocation7] sm:$0xff] %vm169, 0.0
  %390 = vst.msk [vmem:[#allocation7 + $0x8] sm:$0x3] %vm172, 0.0
  %391 = vst.msk [vmem:[#allocation7 + $0xa0] sm:$0xff] %vm169, 0.0
  %392 = vst.msk [vmem:[#allocation7 + $0xa8] sm:$0x3] %vm172, 0.0
  %s393 = scalar_lea.vmem [#allocation7], 144
  %394 = vst.msk [vmem:[%s393] sm:$0xff] %vm169, 0.0
  %395 = vst.msk [vmem:[%s393 + $0x8] sm:$0x3] %vm172, 0.0
  %396 = vst.msk [vmem:[%s393 + $0xa0] sm:$0xff] %vm169, 0.0
  %397 = vst.msk [vmem:[%s393 + $0xa8] sm:$0x3] %vm172, 0.0
  %398 = vst.msk [vmem:[#allocation7] sm:$0x1] %vm184, 0.0
  %399 = vst.msk [vmem:[#allocation7 + $0x10] sm:$0x1] %vm184, 0.0
  %400 = vst.msk [vmem:[#allocation7 + $0x20] sm:$0x1] %vm184, 0.0
  %401 = vst.msk [vmem:[#allocation7 + $0x30] sm:$0x1] %vm184, 0.0
  %402 = vst.msk [vmem:[#allocation7 + $0x40] sm:$0x1] %vm184, 0.0
  %403 = vst.msk [vmem:[#allocation7 + $0x50] sm:$0x1] %vm184, 0.0
  %404 = vst.msk [vmem:[#allocation7 + $0x60] sm:$0x1] %vm184, 0.0
  %405 = vst.msk [vmem:[#allocation7 + $0x70] sm:$0x1] %vm184, 0.0
  %406 = vst.msk [vmem:[#allocation7 + $0x80] sm:$0x1] %vm184, 0.0
  %407 = vst.msk [vmem:[#allocation7 + $0x90] sm:$0x1] %vm184, 0.0
  %408 = vst.msk [vmem:[#allocation7 + $0xa0] sm:$0x1] %vm184, 0.0
  %409 = vst.msk [vmem:[#allocation7 + $0xb0] sm:$0x1] %vm184, 0.0
  %410 = vst.msk [vmem:[#allocation7 + $0xc0] sm:$0x1] %vm184, 0.0
  %411 = vst.msk [vmem:[#allocation7 + $0xd0] sm:$0x1] %vm184, 0.0
  %412 = vst.msk [vmem:[#allocation7 + $0xe0] sm:$0x1] %vm184, 0.0
  %413 = vst.msk [vmem:[#allocation7 + $0xf0] sm:$0x1] %vm184, 0.0
  %414 = vst.msk [vmem:[#allocation7 + $0x100] sm:$0x1] %vm184, 0.0
  %415 = vst.msk [vmem:[#allocation7 + $0x110] sm:$0x1] %vm184, 0.0
  %416 = vst.msk [vmem:[#allocation7 + $0x120] sm:$0x1] %vm184, 0.0
  %417 = vst.msk [vmem:[#allocation7 + $0x130] sm:$0x1] %vm184, 0.0
  %418 = vst.msk [vmem:[#allocation7 + $0x9] sm:$0x1] %vm184, 0.0
  %419 = vst.msk [vmem:[#allocation7 + $0x19] sm:$0x1] %vm184, 0.0
  %420 = vst.msk [vmem:[#allocation7 + $0x29] sm:$0x1] %vm184, 0.0
  %421 = vst.msk [vmem:[#allocation7 + $0x39] sm:$0x1] %vm184, 0.0
  %422 = vst.msk [vmem:[#allocation7 + $0x49] sm:$0x1] %vm184, 0.0
  %423 = vst.msk [vmem:[#allocation7 + $0x59] sm:$0x1] %vm184, 0.0
  %424 = vst.msk [vmem:[#allocation7 + $0x69] sm:$0x1] %vm184, 0.0
  %425 = vst.msk [vmem:[#allocation7 + $0x79] sm:$0x1] %vm184, 0.0
  %426 = vst.msk [vmem:[#allocation7 + $0x89] sm:$0x1] %vm184, 0.0
  %427 = vst.msk [vmem:[#allocation7 + $0x99] sm:$0x1] %vm184, 0.0
  %428 = vst.msk [vmem:[#allocation7 + $0xa9] sm:$0x1] %vm184, 0.0
  %429 = vst.msk [vmem:[#allocation7 + $0xb9] sm:$0x1] %vm184, 0.0
  %430 = vst.msk [vmem:[#allocation7 + $0xc9] sm:$0x1] %vm184, 0.0
  %431 = vst.msk [vmem:[#allocation7 + $0xd9] sm:$0x1] %vm184, 0.0
  %432 = vst.msk [vmem:[#allocation7 + $0xe9] sm:$0x1] %vm184, 0.0
  %433 = vst.msk [vmem:[#allocation7 + $0xf9] sm:$0x1] %vm184, 0.0
  %434 = vst.msk [vmem:[#allocation7 + $0x109] sm:$0x1] %vm184, 0.0
  %435 = vst.msk [vmem:[#allocation7 + $0x119] sm:$0x1] %vm184, 0.0
  %436 = vst.msk [vmem:[#allocation7 + $0x129] sm:$0x1] %vm184, 0.0
  %437 = vst.msk [vmem:[#allocation7 + $0x139] sm:$0x1] %vm184, 0.0
  %vm438 = vcmask 128000
  %439 = vst.msk [vmem:[#allocation8] sm:$0x3f] %vm438, 0.0
  %440 = vst.msk [vmem:[#allocation8 + $0x30] sm:$0x3f] %vm438, 0.0
  %s441 = scalar_lea.vmem [#allocation8], 40
  %442 = vst.msk [vmem:[%s441] sm:$0x3f] %vm438, 0.0
  %443 = vst.msk [vmem:[%s441 + $0x30] sm:$0x3f] %vm438, 0.0
  %444 = vst.msk [vmem:[#allocation8] sm:$0x1] %vm268, 0.0
  %445 = vst.msk [vmem:[#allocation8 + $0x8] sm:$0x1] %vm268, 0.0
  %446 = vst.msk [vmem:[#allocation8 + $0x10] sm:$0x1] %vm268, 0.0
  %447 = vst.msk [vmem:[#allocation8 + $0x18] sm:$0x1] %vm268, 0.0
  %448 = vst.msk [vmem:[#allocation8 + $0x20] sm:$0x1] %vm268, 0.0
  %449 = vst.msk [vmem:[#allocation8 + $0x28] sm:$0x1] %vm268, 0.0
  %450 = vst.msk [vmem:[#allocation8 + $0x30] sm:$0x1] %vm268, 0.0
  %451 = vst.msk [vmem:[#allocation8 + $0x38] sm:$0x1] %vm268, 0.0
  %452 = vst.msk [vmem:[#allocation8 + $0x40] sm:$0x1] %vm268, 0.0
  %453 = vst.msk [vmem:[#allocation8 + $0x48] sm:$0x1] %vm268, 0.0
  %454 = vst.msk [vmem:[#allocation8 + $0x50] sm:$0x1] %vm268, 0.0
  %455 = vst.msk [vmem:[#allocation8 + $0x58] sm:$0x1] %vm268, 0.0
  %456 = vst.msk [vmem:[#allocation8 + $0x5] sm:$0x1] %vm268, 0.0
  %457 = vst.msk [vmem:[#allocation8 + $0xd] sm:$0x1] %vm268, 0.0
  %458 = vst.msk [vmem:[#allocation8 + $0x15] sm:$0x1] %vm268, 0.0
  %459 = vst.msk [vmem:[#allocation8 + $0x1d] sm:$0x1] %vm268, 0.0
  %460 = vst.msk [vmem:[#allocation8 + $0x25] sm:$0x1] %vm268, 0.0
  %461 = vst.msk [vmem:[#allocation8 + $0x2d] sm:$0x1] %vm268, 0.0
  %462 = vst.msk [vmem:[#allocation8 + $0x35] sm:$0x1] %vm268, 0.0
  %463 = vst.msk [vmem:[#allocation8 + $0x3d] sm:$0x1] %vm268, 0.0
  %464 = vst.msk [vmem:[#allocation8 + $0x45] sm:$0x1] %vm268, 0.0
  %465 = vst.msk [vmem:[#allocation8 + $0x4d] sm:$0x1] %vm268, 0.0
  %466 = vst.msk [vmem:[#allocation8 + $0x55] sm:$0x1] %vm268, 0.0
  %467 = vst.msk [vmem:[#allocation8 + $0x5d] sm:$0x1] %vm268, 0.0
  %vm468 = vcmask 257024
  %469 = vst.msk [vmem:[#allocation9] sm:$0xf] %vm468, 0.0
  %470 = vst.msk [vmem:[#allocation9 + $0x10] sm:$0xf] %vm468, 0.0
  %s471 = scalar_lea.vmem [#allocation9], 12
  %472 = vst.msk [vmem:[%s471] sm:$0xf] %vm468, 0.0
  %473 = vst.msk [vmem:[%s471 + $0x10] sm:$0xf] %vm468, 0.0
  %474 = vst.msk [vmem:[#allocation9] sm:$0x1] %vm315, 0.0
  %475 = vst.msk [vmem:[#allocation9 + $0x4] sm:$0x1] %vm315, 0.0
  %476 = vst.msk [vmem:[#allocation9 + $0x8] sm:$0x1] %vm315, 0.0
  %477 = vst.msk [vmem:[#allocation9 + $0xc] sm:$0x1] %vm315, 0.0
  %478 = vst.msk [vmem:[#allocation9 + $0x10] sm:$0x1] %vm315, 0.0
  %479 = vst.msk [vmem:[#allocation9 + $0x14] sm:$0x1] %vm315, 0.0
  %480 = vst.msk [vmem:[#allocation9 + $0x18] sm:$0x1] %vm315, 0.0
  %481 = vst.msk [vmem:[#allocation9 + $0x1c] sm:$0x1] %vm315, 0.0
  %482 = vst.msk [vmem:[#allocation9 + $0x3] sm:$0x1] %vm315, 0.0
  %483 = vst.msk [vmem:[#allocation9 + $0x7] sm:$0x1] %vm315, 0.0
  %484 = vst.msk [vmem:[#allocation9 + $0xb] sm:$0x1] %vm315, 0.0
  %485 = vst.msk [vmem:[#allocation9 + $0xf] sm:$0x1] %vm315, 0.0
  %486 = vst.msk [vmem:[#allocation9 + $0x13] sm:$0x1] %vm315, 0.0
  %487 = vst.msk [vmem:[#allocation9 + $0x17] sm:$0x1] %vm315, 0.0
  %488 = vst.msk [vmem:[#allocation9 + $0x1b] sm:$0x1] %vm315, 0.0
  %489 = vst.msk [vmem:[#allocation9 + $0x1f] sm:$0x1] %vm315, 0.0
  %v490 = vld [vmem:[%s0] sm:$0xff]
  %v491 = vld [vmem:[%s0 + $0x8] sm:$0xff]
  %v492 = vld [vmem:[%s0 + $0x10] sm:$0xff]
  %v493 = vld [vmem:[%s0 + $0x18] sm:$0xff]
  %v494 = vld [vmem:[%s0 + $0x20] sm:$0xff]
  %v495 = vld [vmem:[%s0 + $0x28] sm:$0xff]
  %v496 = vld [vmem:[%s0 + $0x30] sm:$0xff]
  %v497 = vld [vmem:[%s0 + $0x38] sm:$0xff]
  %v498 = vld [vmem:[%s0 + $0x40] sm:$0xff]
  %v499 = vld [vmem:[%s0 + $0x48] sm:$0xff]
  %v500 = vld [vmem:[%s0 + $0x50] sm:$0xff]
  %v501 = vld [vmem:[%s0 + $0x58] sm:$0xff]
  %v502 = vld [vmem:[%s0 + $0x60] sm:$0xff]
  %v503 = vld [vmem:[%s0 + $0x68] sm:$0xff]
  %v504 = vld [vmem:[%s0 + $0x70] sm:$0xff]
  %v505 = vld [vmem:[%s0 + $0x78] sm:$0xff]
  %v506 = vld [vmem:[%s0 + $0x80] sm:$0xff]
  %v507 = vld [vmem:[%s0 + $0x88] sm:$0xff]
  %v508 = vld [vmem:[%s0 + $0x90] sm:$0xff]
  %v509 = vld [vmem:[%s0 + $0x98] sm:$0xff]
  %v510 = vld [vmem:[%s0 + $0xa0] sm:$0xff]
  %v511 = vld [vmem:[%s0 + $0xa8] sm:$0xff]
  %v512 = vld [vmem:[%s0 + $0xb0] sm:$0xff]
  %v513 = vld [vmem:[%s0 + $0xb8] sm:$0xff]
  %v514 = vld [vmem:[%s0 + $0xc0] sm:$0xff]
  %v515 = vld [vmem:[%s0 + $0xc8] sm:$0xff]
  %v516 = vld [vmem:[%s0 + $0xd0] sm:$0xff]
  %v517 = vld [vmem:[%s0 + $0xd8] sm:$0xff]
  %v518 = vld [vmem:[%s0 + $0xe0] sm:$0xff]
  %v519 = vld [vmem:[%s0 + $0xe8] sm:$0xff]
  %v520 = vld [vmem:[%s0 + $0xf0] sm:$0xff]
  %v521 = vld [vmem:[%s0 + $0xf8] sm:$0xff]
  %v522 = vld [vmem:[%s0 + $0x100] sm:$0xff]
  %v523 = vld [vmem:[%s0 + $0x108] sm:$0xff]
  %v524 = vld [vmem:[%s0 + $0x110] sm:$0xff]
  %v525 = vld [vmem:[%s0 + $0x118] sm:$0xff]
  %v526 = vld [vmem:[%s0 + $0x120] sm:$0xff]
  %v527 = vld [vmem:[%s0 + $0x128] sm:$0xff]
  %v528 = vld [vmem:[%s0 + $0x130] sm:$0xff]
  %v529 = vld [vmem:[%s0 + $0x138] sm:$0xff]
  %v530 = vld [vmem:[%s0 + $0x140] sm:$0xff]
  %v531 = vld [vmem:[%s0 + $0x148] sm:$0xff]
  %v532 = vld [vmem:[%s0 + $0x150] sm:$0xff]
  %v533 = vld [vmem:[%s0 + $0x158] sm:$0xff]
  %v534 = vld [vmem:[%s0 + $0x160] sm:$0xff]
  %v535 = vld [vmem:[%s0 + $0x168] sm:$0xff]
  %v536 = vld [vmem:[%s0 + $0x170] sm:$0xff]
  %v537 = vld [vmem:[%s0 + $0x178] sm:$0xff]
  %v538 = vld [vmem:[%s0 + $0x180] sm:$0xff]
  %v539 = vld [vmem:[%s0 + $0x188] sm:$0xff]
  %v540 = vld [vmem:[%s0 + $0x190] sm:$0xff]
  %v541 = vld [vmem:[%s0 + $0x198] sm:$0xff]
  %v542 = vld [vmem:[%s0 + $0x1a0] sm:$0xff]
  %v543 = vld [vmem:[%s0 + $0x1a8] sm:$0xff]
  %v544 = vld [vmem:[%s0 + $0x1b0] sm:$0xff]
  %v545 = vld [vmem:[%s0 + $0x1b8] sm:$0xff]
  %v546 = vld [vmem:[%s0 + $0x1c0] sm:$0xff]
  %v547 = vld [vmem:[%s0 + $0x1c8] sm:$0xff]
  %v548 = vld [vmem:[%s0 + $0x1d0] sm:$0xff]
  %v549 = vld [vmem:[%s0 + $0x1d8] sm:$0xff]
  %v550 = vld [vmem:[%s0 + $0x1e0] sm:$0xff]
  %v551 = vld [vmem:[%s0 + $0x1e8] sm:$0xff]
  %v552 = vld [vmem:[%s0 + $0x1f0] sm:$0xff]
  %v553 = vld [vmem:[%s0 + $0x1f8] sm:$0xff]
  %s554 = scalar_lea.vmem [#allocation2], 24
  %555 = vst.msk [vmem:[%s554 + $0x1] sm:$0xff] %vm81, %v490
  %556 = vst.msk [vmem:[%s554 + $0x9] sm:$0xff] %vm81, %v491
  %557 = vst.msk [vmem:[%s554 + $0x19] sm:$0xff] %vm81, %v492
  %558 = vst.msk [vmem:[%s554 + $0x21] sm:$0xff] %vm81, %v493
  %559 = vst.msk [vmem:[%s554 + $0x31] sm:$0xff] %vm81, %v494
  %560 = vst.msk [vmem:[%s554 + $0x39] sm:$0xff] %vm81, %v495
  %561 = vst.msk [vmem:[%s554 + $0x49] sm:$0xff] %vm81, %v496
  %562 = vst.msk [vmem:[%s554 + $0x51] sm:$0xff] %vm81, %v497
  %563 = vst.msk [vmem:[%s554 + $0x61] sm:$0xff] %vm81, %v498
  %564 = vst.msk [vmem:[%s554 + $0x69] sm:$0xff] %vm81, %v499
  %565 = vst.msk [vmem:[%s554 + $0x79] sm:$0xff] %vm81, %v500
  %566 = vst.msk [vmem:[%s554 + $0x81] sm:$0xff] %vm81, %v501
  %567 = vst.msk [vmem:[%s554 + $0x91] sm:$0xff] %vm81, %v502
  %568 = vst.msk [vmem:[%s554 + $0x99] sm:$0xff] %vm81, %v503
  %569 = vst.msk [vmem:[%s554 + $0xa9] sm:$0xff] %vm81, %v504
  %570 = vst.msk [vmem:[%s554 + $0xb1] sm:$0xff] %vm81, %v505
  %571 = vst.msk [vmem:[%s554 + $0xc1] sm:$0xff] %vm81, %v506
  %572 = vst.msk [vmem:[%s554 + $0xc9] sm:$0xff] %vm81, %v507
  %573 = vst.msk [vmem:[%s554 + $0xd9] sm:$0xff] %vm81, %v508
  %574 = vst.msk [vmem:[%s554 + $0xe1] sm:$0xff] %vm81, %v509
  %575 = vst.msk [vmem:[%s554 + $0xf1] sm:$0xff] %vm81, %v510
  %576 = vst.msk [vmem:[%s554 + $0xf9] sm:$0xff] %vm81, %v511
  %577 = vst.msk [vmem:[%s554 + $0x109] sm:$0xff] %vm81, %v512
  %578 = vst.msk [vmem:[%s554 + $0x111] sm:$0xff] %vm81, %v513
  %579 = vst.msk [vmem:[%s554 + $0x121] sm:$0xff] %vm81, %v514
  %580 = vst.msk [vmem:[%s554 + $0x129] sm:$0xff] %vm81, %v515
  %581 = vst.msk [vmem:[%s554 + $0x139] sm:$0xff] %vm81, %v516
  %582 = vst.msk [vmem:[%s554 + $0x141] sm:$0xff] %vm81, %v517
  %583 = vst.msk [vmem:[%s554 + $0x151] sm:$0xff] %vm81, %v518
  %584 = vst.msk [vmem:[%s554 + $0x159] sm:$0xff] %vm81, %v519
  %585 = vst.msk [vmem:[%s554 + $0x169] sm:$0xff] %vm81, %v520
  %586 = vst.msk [vmem:[%s554 + $0x171] sm:$0xff] %vm81, %v521
  %587 = vst.msk [vmem:[%s554 + $0x1b1] sm:$0xff] %vm81, %v522
  %588 = vst.msk [vmem:[%s554 + $0x1b9] sm:$0xff] %vm81, %v523
  %589 = vst.msk [vmem:[%s554 + $0x1c9] sm:$0xff] %vm81, %v524
  %590 = vst.msk [vmem:[%s554 + $0x1d1] sm:$0xff] %vm81, %v525
  %591 = vst.msk [vmem:[%s554 + $0x1e1] sm:$0xff] %vm81, %v526
  %592 = vst.msk [vmem:[%s554 + $0x1e9] sm:$0xff] %vm81, %v527
  %593 = vst.msk [vmem:[%s554 + $0x1f9] sm:$0xff] %vm81, %v528
  %594 = vst.msk [vmem:[%s554 + $0x201] sm:$0xff] %vm81, %v529
  %595 = vst.msk [vmem:[%s554 + $0x211] sm:$0xff] %vm81, %v530
  %596 = vst.msk [vmem:[%s554 + $0x219] sm:$0xff] %vm81, %v531
  %597 = vst.msk [vmem:[%s554 + $0x229] sm:$0xff] %vm81, %v532
  %598 = vst.msk [vmem:[%s554 + $0x231] sm:$0xff] %vm81, %v533
  %599 = vst.msk [vmem:[%s554 + $0x241] sm:$0xff] %vm81, %v534
  %600 = vst.msk [vmem:[%s554 + $0x249] sm:$0xff] %vm81, %v535
  %601 = vst.msk [vmem:[%s554 + $0x259] sm:$0xff] %vm81, %v536
  %602 = vst.msk [vmem:[%s554 + $0x261] sm:$0xff] %vm81, %v537
  %603 = vst.msk [vmem:[%s554 + $0x271] sm:$0xff] %vm81, %v538
  %604 = vst.msk [vmem:[%s554 + $0x279] sm:$0xff] %vm81, %v539
  %605 = vst.msk [vmem:[%s554 + $0x289] sm:$0xff] %vm81, %v540
  %606 = vst.msk [vmem:[%s554 + $0x291] sm:$0xff] %vm81, %v541
  %607 = vst.msk [vmem:[%s554 + $0x2a1] sm:$0xff] %vm81, %v542
  %608 = vst.msk [vmem:[%s554 + $0x2a9] sm:$0xff] %vm81, %v543
  %609 = vst.msk [vmem:[%s554 + $0x2b9] sm:$0xff] %vm81, %v544
  %610 = vst.msk [vmem:[%s554 + $0x2c1] sm:$0xff] %vm81, %v545
  %611 = vst.msk [vmem:[%s554 + $0x2d1] sm:$0xff] %vm81, %v546
  %612 = vst.msk [vmem:[%s554 + $0x2d9] sm:$0xff] %vm81, %v547
  %613 = vst.msk [vmem:[%s554 + $0x2e9] sm:$0xff] %vm81, %v548
  %614 = vst.msk [vmem:[%s554 + $0x2f1] sm:$0xff] %vm81, %v549
  %615 = vst.msk [vmem:[%s554 + $0x301] sm:$0xff] %vm81, %v550
  %616 = vst.msk [vmem:[%s554 + $0x309] sm:$0xff] %vm81, %v551
  %617 = vst.msk [vmem:[%s554 + $0x319] sm:$0xff] %vm81, %v552
  %618 = vst.msk [vmem:[%s554 + $0x321] sm:$0xff] %vm81, %v553
  %v619 = vld [vmem:[#allocation2] sm:$0xff]
  %v620 = vld [vmem:[#allocation2 + $0x8] sm:$0xff]
  %v621 = vld [vmem:[#allocation2 + $0x18] sm:$0xff]
  %v622 = vld [vmem:[#allocation2 + $0x20] sm:$0xff]
  %v623 = vld [vmem:[#allocation2 + $0x30] sm:$0xff]
  %v624 = vld [vmem:[#allocation2 + $0x38] sm:$0xff]
  %v625 = vld [vmem:[#allocation2 + $0x48] sm:$0xff]
  %v626 = vld [vmem:[#allocation2 + $0x50] sm:$0xff]
  %v627 = vld [vmem:[#allocation2 + $0x60] sm:$0xff]
  %v628 = vld [vmem:[#allocation2 + $0x68] sm:$0xff]
  %v629 = vld [vmem:[#allocation2 + $0x78] sm:$0xff]
  %v630 = vld [vmem:[#allocation2 + $0x80] sm:$0xff]
  %v631 = vld [vmem:[#allocation2 + $0x90] sm:$0xff]
  %v632 = vld [vmem:[#allocation2 + $0x98] sm:$0xff]
  %v633 = vld [vmem:[#allocation2 + $0xa8] sm:$0xff]
  %v634 = vld [vmem:[#allocation2 + $0xb0] sm:$0xff]
  %v635 = vld [vmem:[#allocation2 + $0xc0] sm:$0xff]
  %v636 = vld [vmem:[#allocation2 + $0xc8] sm:$0xff]
  %v637 = vld [vmem:[#allocation2 + $0xd8] sm:$0xff]
  %v638 = vld [vmem:[#allocation2 + $0xe0] sm:$0xff]
  %v639 = vld [vmem:[#allocation2 + $0xf0] sm:$0xff]
  %v640 = vld [vmem:[#allocation2 + $0xf8] sm:$0xff]
  %v641 = vld [vmem:[#allocation2 + $0x108] sm:$0xff]
  %v642 = vld [vmem:[#allocation2 + $0x110] sm:$0xff]
  %v643 = vld [vmem:[#allocation2 + $0x120] sm:$0xff]
  %v644 = vld [vmem:[#allocation2 + $0x128] sm:$0xff]
  %v645 = vld [vmem:[#allocation2 + $0x138] sm:$0xff]
  %v646 = vld [vmem:[#allocation2 + $0x140] sm:$0xff]
  %v647 = vld [vmem:[#allocation2 + $0x150] sm:$0xff]
  %v648 = vld [vmem:[#allocation2 + $0x158] sm:$0xff]
  %v649 = vld [vmem:[#allocation2 + $0x168] sm:$0xff]
  %v650 = vld [vmem:[#allocation2 + $0x170] sm:$0xff]
  %v651 = vld [vmem:[#allocation2 + $0x1b0] sm:$0xff]
  %v652 = vld [vmem:[#allocation2 + $0x1b8] sm:$0xff]
  %v653 = vld [vmem:[#allocation2 + $0x1c8] sm:$0xff]
  %v654 = vld [vmem:[#allocation2 + $0x1d0] sm:$0xff]
  %v655 = vld [vmem:[#allocation2 + $0x1e0] sm:$0xff]
  %v656 = vld [vmem:[#allocation2 + $0x1e8] sm:$0xff]
  %v657 = vld [vmem:[#allocation2 + $0x1f8] sm:$0xff]
  %v658 = vld [vmem:[#allocation2 + $0x200] sm:$0xff]
  %v659 = vld [vmem:[#allocation2 + $0x210] sm:$0xff]
  %v660 = vld [vmem:[#allocation2 + $0x218] sm:$0xff]
  %v661 = vld [vmem:[#allocation2 + $0x228] sm:$0xff]
  %v662 = vld [vmem:[#allocation2 + $0x230] sm:$0xff]
  %v663 = vld [vmem:[#allocation2 + $0x240] sm:$0xff]
  %v664 = vld [vmem:[#allocation2 + $0x248] sm:$0xff]
  %v665 = vld [vmem:[#allocation2 + $0x258] sm:$0xff]
  %v666 = vld [vmem:[#allocation2 + $0x260] sm:$0xff]
  %v667 = vld [vmem:[#allocation2 + $0x270] sm:$0xff]
  %v668 = vld [vmem:[#allocation2 + $0x278] sm:$0xff]
  %v669 = vld [vmem:[#allocation2 + $0x288] sm:$0xff]
  %v670 = vld [vmem:[#allocation2 + $0x290] sm:$0xff]
  %v671 = vld [vmem:[#allocation2 + $0x2a0] sm:$0xff]
  %v672 = vld [vmem:[#allocation2 + $0x2a8] sm:$0xff]
  %v673 = vld [vmem:[#allocation2 + $0x2b8] sm:$0xff]
  %v674 = vld [vmem:[#allocation2 + $0x2c0] sm:$0xff]
  %v675 = vld [vmem:[#allocation2 + $0x2d0] sm:$0xff]
  %v676 = vld [vmem:[#allocation2 + $0x2d8] sm:$0xff]
  %v677 = vld [vmem:[#allocation2 + $0x2e8] sm:$0xff]
  %v678 = vld [vmem:[#allocation2 + $0x2f0] sm:$0xff]
  %v679 = vld [vmem:[#allocation2 + $0x300] sm:$0xff]
  %v680 = vld [vmem:[#allocation2 + $0x308] sm:$0xff]
  %v681 = vld [vmem:[#allocation2 + $0x318] sm:$0xff]
  %v682 = vld [vmem:[#allocation2 + $0x320] sm:$0xff]
  %v683 = vld [vmem:[#allocation2 + $0x1] sm:$0xff]
  %v684 = vld [vmem:[#allocation2 + $0x9] sm:$0xff]
  %v685 = vld [vmem:[#allocation2 + $0x19] sm:$0xff]
  %v686 = vld [vmem:[#allocation2 + $0x21] sm:$0xff]
  %v687 = vld [vmem:[#allocation2 + $0x31] sm:$0xff]
  %v688 = vld [vmem:[#allocation2 + $0x39] sm:$0xff]
  %v689 = vld [vmem:[#allocation2 + $0x49] sm:$0xff]
  %v690 = vld [vmem:[#allocation2 + $0x51] sm:$0xff]
  %v691 = vld [vmem:[#allocation2 + $0x61] sm:$0xff]
  %v692 = vld [vmem:[#allocation2 + $0x69] sm:$0xff]
  %v693 = vld [vmem:[#allocation2 + $0x79] sm:$0xff]
  %v694 = vld [vmem:[#allocation2 + $0x81] sm:$0xff]
  %v695 = vld [vmem:[#allocation2 + $0x91] sm:$0xff]
  %v696 = vld [vmem:[#allocation2 + $0x99] sm:$0xff]
  %v697 = vld [vmem:[#allocation2 + $0xa9] sm:$0xff]
  %v698 = vld [vmem:[#allocation2 + $0xb1] sm:$0xff]
  %v699 = vld [vmem:[#allocation2 + $0xc1] sm:$0xff]
  %v700 = vld [vmem:[#allocation2 + $0xc9] sm:$0xff]
  %v701 = vld [vmem:[#allocation2 + $0xd9] sm:$0xff]
  %v702 = vld [vmem:[#allocation2 + $0xe1] sm:$0xff]
  %v703 = vld [vmem:[#allocation2 + $0xf1] sm:$0xff]
  %v704 = vld [vmem:[#allocation2 + $0xf9] sm:$0xff]
  %v705 = vld [vmem:[#allocation2 + $0x109] sm:$0xff]
  %v706 = vld [vmem:[#allocation2 + $0x111] sm:$0xff]
  %v707 = vld [vmem:[#allocation2 + $0x121] sm:$0xff]
  %v708 = vld [vmem:[#allocation2 + $0x129] sm:$0xff]
  %v709 = vld [vmem:[#allocation2 + $0x139] sm:$0xff]
  %v710 = vld [vmem:[#allocation2 + $0x141] sm:$0xff]
  %v711 = vld [vmem:[#allocation2 + $0x151] sm:$0xff]
  %v712 = vld [vmem:[#allocation2 + $0x159] sm:$0xff]
  %v713 = vld [vmem:[#allocation2 + $0x169] sm:$0xff]
  %v714 = vld [vmem:[#allocation2 + $0x171] sm:$0xff]
  %v715 = vld [vmem:[#allocation2 + $0x1b1] sm:$0xff]
  %v716 = vld [vmem:[#allocation2 + $0x1b9] sm:$0xff]
  %v717 = vld [vmem:[#allocation2 + $0x1c9] sm:$0xff]
  %v718 = vld [vmem:[#allocation2 + $0x1d1] sm:$0xff]
  %v719 = vld [vmem:[#allocation2 + $0x1e1] sm:$0xff]
  %v720 = vld [vmem:[#allocation2 + $0x1e9] sm:$0xff]
  %v721 = vld [vmem:[#allocation2 + $0x1f9] sm:$0xff]
  %v722 = vld [vmem:[#allocation2 + $0x201] sm:$0xff]
  %v723 = vld [vmem:[#allocation2 + $0x211] sm:$0xff]
  %v724 = vld [vmem:[#allocation2 + $0x219] sm:$0xff]
  %v725 = vld [vmem:[#allocation2 + $0x229] sm:$0xff]
  %v726 = vld [vmem:[#allocation2 + $0x231] sm:$0xff]
  %v727 = vld [vmem:[#allocation2 + $0x241] sm:$0xff]
  %v728 = vld [vmem:[#allocation2 + $0x249] sm:$0xff]
  %v729 = vld [vmem:[#allocation2 + $0x259] sm:$0xff]
  %v730 = vld [vmem:[#allocation2 + $0x261] sm:$0xff]
  %v731 = vld [vmem:[#allocation2 + $0x271] sm:$0xff]
  %v732 = vld [vmem:[#allocation2 + $0x279] sm:$0xff]
  %v733 = vld [vmem:[#allocation2 + $0x289] sm:$0xff]
  %v734 = vld [vmem:[#allocation2 + $0x291] sm:$0xff]
  %v735 = vld [vmem:[#allocation2 + $0x2a1] sm:$0xff]
  %v736 = vld [vmem:[#allocation2 + $0x2a9] sm:$0xff]
  %v737 = vld [vmem:[#allocation2 + $0x2b9] sm:$0xff]
  %v738 = vld [vmem:[#allocation2 + $0x2c1] sm:$0xff]
  %v739 = vld [vmem:[#allocation2 + $0x2d1] sm:$0xff]
  %v740 = vld [vmem:[#allocation2 + $0x2d9] sm:$0xff]
  %v741 = vld [vmem:[#allocation2 + $0x2e9] sm:$0xff]
  %v742 = vld [vmem:[#allocation2 + $0x2f1] sm:$0xff]
  %v743 = vld [vmem:[#allocation2 + $0x301] sm:$0xff]
  %v744 = vld [vmem:[#allocation2 + $0x309] sm:$0xff]
  %v745 = vld [vmem:[#allocation2 + $0x319] sm:$0xff]
  %v746 = vld [vmem:[#allocation2 + $0x321] sm:$0xff]
  %v747 = vld [vmem:[#allocation2 + $0x2] sm:$0xff]
  %v748 = vld [vmem:[#allocation2 + $0xa] sm:$0xff]
  %v749 = vld [vmem:[#allocation2 + $0x1a] sm:$0xff]
  %v750 = vld [vmem:[#allocation2 + $0x22] sm:$0xff]
  %v751 = vld [vmem:[#allocation2 + $0x32] sm:$0xff]
  %v752 = vld [vmem:[#allocation2 + $0x3a] sm:$0xff]
  %v753 = vld [vmem:[#allocation2 + $0x4a] sm:$0xff]
  %v754 = vld [vmem:[#allocation2 + $0x52] sm:$0xff]
  %v755 = vld [vmem:[#allocation2 + $0x62] sm:$0xff]
  %v756 = vld [vmem:[#allocation2 + $0x6a] sm:$0xff]
  %v757 = vld [vmem:[#allocation2 + $0x7a] sm:$0xff]
  %v758 = vld [vmem:[#allocation2 + $0x82] sm:$0xff]
  %v759 = vld [vmem:[#allocation2 + $0x92] sm:$0xff]
  %v760 = vld [vmem:[#allocation2 + $0x9a] sm:$0xff]
  %v761 = vld [vmem:[#allocation2 + $0xaa] sm:$0xff]
  %v762 = vld [vmem:[#allocation2 + $0xb2] sm:$0xff]
  %v763 = vld [vmem:[#allocation2 + $0xc2] sm:$0xff]
  %v764 = vld [vmem:[#allocation2 + $0xca] sm:$0xff]
  %v765 = vld [vmem:[#allocation2 + $0xda] sm:$0xff]
  %v766 = vld [vmem:[#allocation2 + $0xe2] sm:$0xff]
  %v767 = vld [vmem:[#allocation2 + $0xf2] sm:$0xff]
  %v768 = vld [vmem:[#allocation2 + $0xfa] sm:$0xff]
  %v769 = vld [vmem:[#allocation2 + $0x10a] sm:$0xff]
  %v770 = vld [vmem:[#allocation2 + $0x112] sm:$0xff]
  %v771 = vld [vmem:[#allocation2 + $0x122] sm:$0xff]
  %v772 = vld [vmem:[#allocation2 + $0x12a] sm:$0xff]
  %v773 = vld [vmem:[#allocation2 + $0x13a] sm:$0xff]
  %v774 = vld [vmem:[#allocation2 + $0x142] sm:$0xff]
  %v775 = vld [vmem:[#allocation2 + $0x152] sm:$0xff]
  %v776 = vld [vmem:[#allocation2 + $0x15a] sm:$0xff]
  %v777 = vld [vmem:[#allocation2 + $0x16a] sm:$0xff]
  %v778 = vld [vmem:[#allocation2 + $0x172] sm:$0xff]
  %v779 = vld [vmem:[#allocation2 + $0x1b2] sm:$0xff]
  %v780 = vld [vmem:[#allocation2 + $0x1ba] sm:$0xff]
  %v781 = vld [vmem:[#allocation2 + $0x1ca] sm:$0xff]
  %v782 = vld [vmem:[#allocation2 + $0x1d2] sm:$0xff]
  %v783 = vld [vmem:[#allocation2 + $0x1e2] sm:$0xff]
  %v784 = vld [vmem:[#allocation2 + $0x1ea] sm:$0xff]
  %v785 = vld [vmem:[#allocation2 + $0x1fa] sm:$0xff]
  %v786 = vld [vmem:[#allocation2 + $0x202] sm:$0xff]
  %v787 = vld [vmem:[#allocation2 + $0x212] sm:$0xff]
  %v788 = vld [vmem:[#allocation2 + $0x21a] sm:$0xff]
  %v789 = vld [vmem:[#allocation2 + $0x22a] sm:$0xff]
  %v790 = vld [vmem:[#allocation2 + $0x232] sm:$0xff]
  %v791 = vld [vmem:[#allocation2 + $0x242] sm:$0xff]
  %v792 = vld [vmem:[#allocation2 + $0x24a] sm:$0xff]
  %v793 = vld [vmem:[#allocation2 + $0x25a] sm:$0xff]
  %v794 = vld [vmem:[#allocation2 + $0x262] sm:$0xff]
  %v795 = vld [vmem:[#allocation2 + $0x272] sm:$0xff]
  %v796 = vld [vmem:[#allocation2 + $0x27a] sm:$0xff]
  %v797 = vld [vmem:[#allocation2 + $0x28a] sm:$0xff]
  %v798 = vld [vmem:[#allocation2 + $0x292] sm:$0xff]
  %v799 = vld [vmem:[#allocation2 + $0x2a2] sm:$0xff]
  %v800 = vld [vmem:[#allocation2 + $0x2aa] sm:$0xff]
  %v801 = vld [vmem:[#allocation2 + $0x2ba] sm:$0xff]
  %v802 = vld [vmem:[#allocation2 + $0x2c2] sm:$0xff]
  %v803 = vld [vmem:[#allocation2 + $0x2d2] sm:$0xff]
  %v804 = vld [vmem:[#allocation2 + $0x2da] sm:$0xff]
  %v805 = vld [vmem:[#allocation2 + $0x2ea] sm:$0xff]
  %v806 = vld [vmem:[#allocation2 + $0x2f2] sm:$0xff]
  %v807 = vld [vmem:[#allocation2 + $0x302] sm:$0xff]
  %v808 = vld [vmem:[#allocation2 + $0x30a] sm:$0xff]
  %v809 = vld [vmem:[#allocation2 + $0x31a] sm:$0xff]
  %v810 = vld [vmem:[#allocation2 + $0x322] sm:$0xff]
  %v811 = vld [vmem:[%s554] sm:$0xff]
  %v812 = vld [vmem:[%s554 + $0x8] sm:$0xff]
  %v813 = vld [vmem:[%s554 + $0x18] sm:$0xff]
  %v814 = vld [vmem:[%s554 + $0x20] sm:$0xff]
  %v815 = vld [vmem:[%s554 + $0x30] sm:$0xff]
  %v816 = vld [vmem:[%s554 + $0x38] sm:$0xff]
  %v817 = vld [vmem:[%s554 + $0x48] sm:$0xff]
  %v818 = vld [vmem:[%s554 + $0x50] sm:$0xff]
  %v819 = vld [vmem:[%s554 + $0x60] sm:$0xff]
  %v820 = vld [vmem:[%s554 + $0x68] sm:$0xff]
  %v821 = vld [vmem:[%s554 + $0x78] sm:$0xff]
  %v822 = vld [vmem:[%s554 + $0x80] sm:$0xff]
  %v823 = vld [vmem:[%s554 + $0x90] sm:$0xff]
  %v824 = vld [vmem:[%s554 + $0x98] sm:$0xff]
  %v825 = vld [vmem:[%s554 + $0xa8] sm:$0xff]
  %v826 = vld [vmem:[%s554 + $0xb0] sm:$0xff]
  %v827 = vld [vmem:[%s554 + $0xc0] sm:$0xff]
  %v828 = vld [vmem:[%s554 + $0xc8] sm:$0xff]
  %v829 = vld [vmem:[%s554 + $0xd8] sm:$0xff]
  %v830 = vld [vmem:[%s554 + $0xe0] sm:$0xff]
  %v831 = vld [vmem:[%s554 + $0xf0] sm:$0xff]
  %v832 = vld [vmem:[%s554 + $0xf8] sm:$0xff]
  %v833 = vld [vmem:[%s554 + $0x108] sm:$0xff]
  %v834 = vld [vmem:[%s554 + $0x110] sm:$0xff]
  %v835 = vld [vmem:[%s554 + $0x120] sm:$0xff]
  %v836 = vld [vmem:[%s554 + $0x128] sm:$0xff]
  %v837 = vld [vmem:[%s554 + $0x138] sm:$0xff]
  %v838 = vld [vmem:[%s554 + $0x140] sm:$0xff]
  %v839 = vld [vmem:[%s554 + $0x150] sm:$0xff]
  %v840 = vld [vmem:[%s554 + $0x158] sm:$0xff]
  %v841 = vld [vmem:[%s554 + $0x168] sm:$0xff]
  %v842 = vld [vmem:[%s554 + $0x170] sm:$0xff]
  %v843 = vld [vmem:[%s554 + $0x1b0] sm:$0xff]
  %v844 = vld [vmem:[%s554 + $0x1b8] sm:$0xff]
  %v845 = vld [vmem:[%s554 + $0x1c8] sm:$0xff]
  %v846 = vld [vmem:[%s554 + $0x1d0] sm:$0xff]
  %v847 = vld [vmem:[%s554 + $0x1e0] sm:$0xff]
  %v848 = vld [vmem:[%s554 + $0x1e8] sm:$0xff]
  %v849 = vld [vmem:[%s554 + $0x1f8] sm:$0xff]
  %v850 = vld [vmem:[%s554 + $0x200] sm:$0xff]
  %v851 = vld [vmem:[%s554 + $0x210] sm:$0xff]
  %v852 = vld [vmem:[%s554 + $0x218] sm:$0xff]
  %v853 = vld [vmem:[%s554 + $0x228] sm:$0xff]
  %v854 = vld [vmem:[%s554 + $0x230] sm:$0xff]
  %v855 = vld [vmem:[%s554 + $0x240] sm:$0xff]
  %v856 = vld [vmem:[%s554 + $0x248] sm:$0xff]
  %v857 = vld [vmem:[%s554 + $0x258] sm:$0xff]
  %v858 = vld [vmem:[%s554 + $0x260] sm:$0xff]
  %v859 = vld [vmem:[%s554 + $0x270] sm:$0xff]
  %v860 = vld [vmem:[%s554 + $0x278] sm:$0xff]
  %v861 = vld [vmem:[%s554 + $0x288] sm:$0xff]
  %v862 = vld [vmem:[%s554 + $0x290] sm:$0xff]
  %v863 = vld [vmem:[%s554 + $0x2a0] sm:$0xff]
  %v864 = vld [vmem:[%s554 + $0x2a8] sm:$0xff]
  %v865 = vld [vmem:[%s554 + $0x2b8] sm:$0xff]
  %v866 = vld [vmem:[%s554 + $0x2c0] sm:$0xff]
  %v867 = vld [vmem:[%s554 + $0x2d0] sm:$0xff]
  %v868 = vld [vmem:[%s554 + $0x2d8] sm:$0xff]
  %v869 = vld [vmem:[%s554 + $0x2e8] sm:$0xff]
  %v870 = vld [vmem:[%s554 + $0x2f0] sm:$0xff]
  %v871 = vld [vmem:[%s554 + $0x300] sm:$0xff]
  %v872 = vld [vmem:[%s554 + $0x308] sm:$0xff]
  %v873 = vld [vmem:[%s554 + $0x318] sm:$0xff]
  %v874 = vld [vmem:[%s554 + $0x320] sm:$0xff]
  %v875 = vld [vmem:[%s554 + $0x1] sm:$0xff]
  %v876 = vld [vmem:[%s554 + $0x9] sm:$0xff]
  %v877 = vld [vmem:[%s554 + $0x19] sm:$0xff]
  %v878 = vld [vmem:[%s554 + $0x21] sm:$0xff]
  %v879 = vld [vmem:[%s554 + $0x31] sm:$0xff]
  %v880 = vld [vmem:[%s554 + $0x39] sm:$0xff]
  %v881 = vld [vmem:[%s554 + $0x49] sm:$0xff]
  %v882 = vld [vmem:[%s554 + $0x51] sm:$0xff]
  %v883 = vld [vmem:[%s554 + $0x61] sm:$0xff]
  %v884 = vld [vmem:[%s554 + $0x69] sm:$0xff]
  %v885 = vld [vmem:[%s554 + $0x79] sm:$0xff]
  %v886 = vld [vmem:[%s554 + $0x81] sm:$0xff]
  %v887 = vld [vmem:[%s554 + $0x91] sm:$0xff]
  %v888 = vld [vmem:[%s554 + $0x99] sm:$0xff]
  %v889 = vld [vmem:[%s554 + $0xa9] sm:$0xff]
  %v890 = vld [vmem:[%s554 + $0xb1] sm:$0xff]
  %v891 = vld [vmem:[%s554 + $0xc1] sm:$0xff]
  %v892 = vld [vmem:[%s554 + $0xc9] sm:$0xff]
  %v893 = vld [vmem:[%s554 + $0xd9] sm:$0xff]
  %v894 = vld [vmem:[%s554 + $0xe1] sm:$0xff]
  %v895 = vld [vmem:[%s554 + $0xf1] sm:$0xff]
  %v896 = vld [vmem:[%s554 + $0xf9] sm:$0xff]
  %v897 = vld [vmem:[%s554 + $0x109] sm:$0xff]
  %v898 = vld [vmem:[%s554 + $0x111] sm:$0xff]
  %v899 = vld [vmem:[%s554 + $0x121] sm:$0xff]
  %v900 = vld [vmem:[%s554 + $0x129] sm:$0xff]
  %v901 = vld [vmem:[%s554 + $0x139] sm:$0xff]
  %v902 = vld [vmem:[%s554 + $0x141] sm:$0xff]
  %v903 = vld [vmem:[%s554 + $0x151] sm:$0xff]
  %v904 = vld [vmem:[%s554 + $0x159] sm:$0xff]
  %v905 = vld [vmem:[%s554 + $0x169] sm:$0xff]
  %v906 = vld [vmem:[%s554 + $0x171] sm:$0xff]
  %v907 = vld [vmem:[%s554 + $0x1b1] sm:$0xff]
  %v908 = vld [vmem:[%s554 + $0x1b9] sm:$0xff]
  %v909 = vld [vmem:[%s554 + $0x1c9] sm:$0xff]
  %v910 = vld [vmem:[%s554 + $0x1d1] sm:$0xff]
  %v911 = vld [vmem:[%s554 + $0x1e1] sm:$0xff]
  %v912 = vld [vmem:[%s554 + $0x1e9] sm:$0xff]
  %v913 = vld [vmem:[%s554 + $0x1f9] sm:$0xff]
  %v914 = vld [vmem:[%s554 + $0x201] sm:$0xff]
  %v915 = vld [vmem:[%s554 + $0x211] sm:$0xff]
  %v916 = vld [vmem:[%s554 + $0x219] sm:$0xff]
  %v917 = vld [vmem:[%s554 + $0x229] sm:$0xff]
  %v918 = vld [vmem:[%s554 + $0x231] sm:$0xff]
  %v919 = vld [vmem:[%s554 + $0x241] sm:$0xff]
  %v920 = vld [vmem:[%s554 + $0x249] sm:$0xff]
  %v921 = vld [vmem:[%s554 + $0x259] sm:$0xff]
  %v922 = vld [vmem:[%s554 + $0x261] sm:$0xff]
  %v923 = vld [vmem:[%s554 + $0x271] sm:$0xff]
  %v924 = vld [vmem:[%s554 + $0x279] sm:$0xff]
  %v925 = vld [vmem:[%s554 + $0x289] sm:$0xff]
  %v926 = vld [vmem:[%s554 + $0x291] sm:$0xff]
  %v927 = vld [vmem:[%s554 + $0x2a1] sm:$0xff]
  %v928 = vld [vmem:[%s554 + $0x2a9] sm:$0xff]
  %v929 = vld [vmem:[%s554 + $0x2b9] sm:$0xff]
  %v930 = vld [vmem:[%s554 + $0x2c1] sm:$0xff]
  %v931 = vld [vmem:[%s554 + $0x2d1] sm:$0xff]
  %v932 = vld [vmem:[%s554 + $0x2d9] sm:$0xff]
  %v933 = vld [vmem:[%s554 + $0x2e9] sm:$0xff]
  %v934 = vld [vmem:[%s554 + $0x2f1] sm:$0xff]
  %v935 = vld [vmem:[%s554 + $0x301] sm:$0xff]
  %v936 = vld [vmem:[%s554 + $0x309] sm:$0xff]
  %v937 = vld [vmem:[%s554 + $0x319] sm:$0xff]
  %v938 = vld [vmem:[%s554 + $0x321] sm:$0xff]
  %v939 = vld [vmem:[%s554 + $0x2] sm:$0xff]
  %v940 = vld [vmem:[%s554 + $0xa] sm:$0xff]
  %v941 = vld [vmem:[%s554 + $0x1a] sm:$0xff]
  %v942 = vld [vmem:[%s554 + $0x22] sm:$0xff]
  %v943 = vld [vmem:[%s554 + $0x32] sm:$0xff]
  %v944 = vld [vmem:[%s554 + $0x3a] sm:$0xff]
  %v945 = vld [vmem:[%s554 + $0x4a] sm:$0xff]
  %v946 = vld [vmem:[%s554 + $0x52] sm:$0xff]
  %v947 = vld [vmem:[%s554 + $0x62] sm:$0xff]
  %v948 = vld [vmem:[%s554 + $0x6a] sm:$0xff]
  %v949 = vld [vmem:[%s554 + $0x7a] sm:$0xff]
  %v950 = vld [vmem:[%s554 + $0x82] sm:$0xff]
  %v951 = vld [vmem:[%s554 + $0x92] sm:$0xff]
  %v952 = vld [vmem:[%s554 + $0x9a] sm:$0xff]
  %v953 = vld [vmem:[%s554 + $0xaa] sm:$0xff]
  %v954 = vld [vmem:[%s554 + $0xb2] sm:$0xff]
  %v955 = vld [vmem:[%s554 + $0xc2] sm:$0xff]
  %v956 = vld [vmem:[%s554 + $0xca] sm:$0xff]
  %v957 = vld [vmem:[%s554 + $0xda] sm:$0xff]
  %v958 = vld [vmem:[%s554 + $0xe2] sm:$0xff]
  %v959 = vld [vmem:[%s554 + $0xf2] sm:$0xff]
  %v960 = vld [vmem:[%s554 + $0xfa] sm:$0xff]
  %v961 = vld [vmem:[%s554 + $0x10a] sm:$0xff]
  %v962 = vld [vmem:[%s554 + $0x112] sm:$0xff]
  %v963 = vld [vmem:[%s554 + $0x122] sm:$0xff]
  %v964 = vld [vmem:[%s554 + $0x12a] sm:$0xff]
  %v965 = vld [vmem:[%s554 + $0x13a] sm:$0xff]
  %v966 = vld [vmem:[%s554 + $0x142] sm:$0xff]
  %v967 = vld [vmem:[%s554 + $0x152] sm:$0xff]
  %v968 = vld [vmem:[%s554 + $0x15a] sm:$0xff]
  %v969 = vld [vmem:[%s554 + $0x16a] sm:$0xff]
  %v970 = vld [vmem:[%s554 + $0x172] sm:$0xff]
  %v971 = vld [vmem:[%s554 + $0x1b2] sm:$0xff]
  %v972 = vld [vmem:[%s554 + $0x1ba] sm:$0xff]
  %v973 = vld [vmem:[%s554 + $0x1ca] sm:$0xff]
  %v974 = vld [vmem:[%s554 + $0x1d2] sm:$0xff]
  %v975 = vld [vmem:[%s554 + $0x1e2] sm:$0xff]
  %v976 = vld [vmem:[%s554 + $0x1ea] sm:$0xff]
  %v977 = vld [vmem:[%s554 + $0x1fa] sm:$0xff]
  %v978 = vld [vmem:[%s554 + $0x202] sm:$0xff]
  %v979 = vld [vmem:[%s554 + $0x212] sm:$0xff]
  %v980 = vld [vmem:[%s554 + $0x21a] sm:$0xff]
  %v981 = vld [vmem:[%s554 + $0x22a] sm:$0xff]
  %v982 = vld [vmem:[%s554 + $0x232] sm:$0xff]
  %v983 = vld [vmem:[%s554 + $0x242] sm:$0xff]
  %v984 = vld [vmem:[%s554 + $0x24a] sm:$0xff]
  %v985 = vld [vmem:[%s554 + $0x25a] sm:$0xff]
  %v986 = vld [vmem:[%s554 + $0x262] sm:$0xff]
  %v987 = vld [vmem:[%s554 + $0x272] sm:$0xff]
  %v988 = vld [vmem:[%s554 + $0x27a] sm:$0xff]
  %v989 = vld [vmem:[%s554 + $0x28a] sm:$0xff]
  %v990 = vld [vmem:[%s554 + $0x292] sm:$0xff]
  %v991 = vld [vmem:[%s554 + $0x2a2] sm:$0xff]
  %v992 = vld [vmem:[%s554 + $0x2aa] sm:$0xff]
  %v993 = vld [vmem:[%s554 + $0x2ba] sm:$0xff]
  %v994 = vld [vmem:[%s554 + $0x2c2] sm:$0xff]
  %v995 = vld [vmem:[%s554 + $0x2d2] sm:$0xff]
  %v996 = vld [vmem:[%s554 + $0x2da] sm:$0xff]
  %v997 = vld [vmem:[%s554 + $0x2ea] sm:$0xff]
  %v998 = vld [vmem:[%s554 + $0x2f2] sm:$0xff]
  %v999 = vld [vmem:[%s554 + $0x302] sm:$0xff]
  %v1000 = vld [vmem:[%s554 + $0x30a] sm:$0xff]
  %v1001 = vld [vmem:[%s554 + $0x31a] sm:$0xff]
  %v1002 = vld [vmem:[%s554 + $0x322] sm:$0xff]
  %s1003 = scalar_lea.vmem [#allocation2], 48
  %v1004 = vld [vmem:[%s1003] sm:$0xff]
  %v1005 = vld [vmem:[%s1003 + $0x8] sm:$0xff]
  %v1006 = vld [vmem:[%s1003 + $0x18] sm:$0xff]
  %v1007 = vld [vmem:[%s1003 + $0x20] sm:$0xff]
  %v1008 = vld [vmem:[%s1003 + $0x30] sm:$0xff]
  %v1009 = vld [vmem:[%s1003 + $0x38] sm:$0xff]
  %v1010 = vld [vmem:[%s1003 + $0x48] sm:$0xff]
  %v1011 = vld [vmem:[%s1003 + $0x50] sm:$0xff]
  %v1012 = vld [vmem:[%s1003 + $0x60] sm:$0xff]
  %v1013 = vld [vmem:[%s1003 + $0x68] sm:$0xff]
  %v1014 = vld [vmem:[%s1003 + $0x78] sm:$0xff]
  %v1015 = vld [vmem:[%s1003 + $0x80] sm:$0xff]
  %v1016 = vld [vmem:[%s1003 + $0x90] sm:$0xff]
  %v1017 = vld [vmem:[%s1003 + $0x98] sm:$0xff]
  %v1018 = vld [vmem:[%s1003 + $0xa8] sm:$0xff]
  %v1019 = vld [vmem:[%s1003 + $0xb0] sm:$0xff]
  %v1020 = vld [vmem:[%s1003 + $0xc0] sm:$0xff]
  %v1021 = vld [vmem:[%s1003 + $0xc8] sm:$0xff]
  %v1022 = vld [vmem:[%s1003 + $0xd8] sm:$0xff]
  %v1023 = vld [vmem:[%s1003 + $0xe0] sm:$0xff]
  %v1024 = vld [vmem:[%s1003 + $0xf0] sm:$0xff]
  %v1025 = vld [vmem:[%s1003 + $0xf8] sm:$0xff]
  %v1026 = vld [vmem:[%s1003 + $0x108] sm:$0xff]
  %v1027 = vld [vmem:[%s1003 + $0x110] sm:$0xff]
  %v1028 = vld [vmem:[%s1003 + $0x120] sm:$0xff]
  %v1029 = vld [vmem:[%s1003 + $0x128] sm:$0xff]
  %v1030 = vld [vmem:[%s1003 + $0x138] sm:$0xff]
  %v1031 = vld [vmem:[%s1003 + $0x140] sm:$0xff]
  %v1032 = vld [vmem:[%s1003 + $0x150] sm:$0xff]
  %v1033 = vld [vmem:[%s1003 + $0x158] sm:$0xff]
  %v1034 = vld [vmem:[%s1003 + $0x168] sm:$0xff]
  %v1035 = vld [vmem:[%s1003 + $0x170] sm:$0xff]
  %v1036 = vld [vmem:[%s1003 + $0x1b0] sm:$0xff]
  %v1037 = vld [vmem:[%s1003 + $0x1b8] sm:$0xff]
  %v1038 = vld [vmem:[%s1003 + $0x1c8] sm:$0xff]
  %v1039 = vld [vmem:[%s1003 + $0x1d0] sm:$0xff]
  %v1040 = vld [vmem:[%s1003 + $0x1e0] sm:$0xff]
  %v1041 = vld [vmem:[%s1003 + $0x1e8] sm:$0xff]
  %v1042 = vld [vmem:[%s1003 + $0x1f8] sm:$0xff]
  %v1043 = vld [vmem:[%s1003 + $0x200] sm:$0xff]
  %v1044 = vld [vmem:[%s1003 + $0x210] sm:$0xff]
  %v1045 = vld [vmem:[%s1003 + $0x218] sm:$0xff]
  %v1046 = vld [vmem:[%s1003 + $0x228] sm:$0xff]
  %v1047 = vld [vmem:[%s1003 + $0x230] sm:$0xff]
  %v1048 = vld [vmem:[%s1003 + $0x240] sm:$0xff]
  %v1049 = vld [vmem:[%s1003 + $0x248] sm:$0xff]
  %v1050 = vld [vmem:[%s1003 + $0x258] sm:$0xff]
  %v1051 = vld [vmem:[%s1003 + $0x260] sm:$0xff]
  %v1052 = vld [vmem:[%s1003 + $0x270] sm:$0xff]
  %v1053 = vld [vmem:[%s1003 + $0x278] sm:$0xff]
  %v1054 = vld [vmem:[%s1003 + $0x288] sm:$0xff]
  %v1055 = vld [vmem:[%s1003 + $0x290] sm:$0xff]
  %v1056 = vld [vmem:[%s1003 + $0x2a0] sm:$0xff]
  %v1057 = vld [vmem:[%s1003 + $0x2a8] sm:$0xff]
  %v1058 = vld [vmem:[%s1003 + $0x2b8] sm:$0xff]
  %v1059 = vld [vmem:[%s1003 + $0x2c0] sm:$0xff]
  %v1060 = vld [vmem:[%s1003 + $0x2d0] sm:$0xff]
  %v1061 = vld [vmem:[%s1003 + $0x2d8] sm:$0xff]
  %v1062 = vld [vmem:[%s1003 + $0x2e8] sm:$0xff]
  %v1063 = vld [vmem:[%s1003 + $0x2f0] sm:$0xff]
  %v1064 = vld [vmem:[%s1003 + $0x300] sm:$0xff]
  %v1065 = vld [vmem:[%s1003 + $0x308] sm:$0xff]
  %v1066 = vld [vmem:[%s1003 + $0x318] sm:$0xff]
  %v1067 = vld [vmem:[%s1003 + $0x320] sm:$0xff]
  %v1068 = vld [vmem:[%s1003 + $0x1] sm:$0xff]
  %v1069 = vld [vmem:[%s1003 + $0x9] sm:$0xff]
  %v1070 = vld [vmem:[%s1003 + $0x19] sm:$0xff]
  %v1071 = vld [vmem:[%s1003 + $0x21] sm:$0xff]
  %v1072 = vld [vmem:[%s1003 + $0x31] sm:$0xff]
  %v1073 = vld [vmem:[%s1003 + $0x39] sm:$0xff]
  %v1074 = vld [vmem:[%s1003 + $0x49] sm:$0xff]
  %v1075 = vld [vmem:[%s1003 + $0x51] sm:$0xff]
  %v1076 = vld [vmem:[%s1003 + $0x61] sm:$0xff]
  %v1077 = vld [vmem:[%s1003 + $0x69] sm:$0xff]
  %v1078 = vld [vmem:[%s1003 + $0x79] sm:$0xff]
  %v1079 = vld [vmem:[%s1003 + $0x81] sm:$0xff]
  %v1080 = vld [vmem:[%s1003 + $0x91] sm:$0xff]
  %v1081 = vld [vmem:[%s1003 + $0x99] sm:$0xff]
  %v1082 = vld [vmem:[%s1003 + $0xa9] sm:$0xff]
  %v1083 = vld [vmem:[%s1003 + $0xb1] sm:$0xff]
  %v1084 = vld [vmem:[%s1003 + $0xc1] sm:$0xff]
  %v1085 = vld [vmem:[%s1003 + $0xc9] sm:$0xff]
  %v1086 = vld [vmem:[%s1003 + $0xd9] sm:$0xff]
  %v1087 = vld [vmem:[%s1003 + $0xe1] sm:$0xff]
  %v1088 = vld [vmem:[%s1003 + $0xf1] sm:$0xff]
  %v1089 = vld [vmem:[%s1003 + $0xf9] sm:$0xff]
  %v1090 = vld [vmem:[%s1003 + $0x109] sm:$0xff]
  %v1091 = vld [vmem:[%s1003 + $0x111] sm:$0xff]
  %v1092 = vld [vmem:[%s1003 + $0x121] sm:$0xff]
  %v1093 = vld [vmem:[%s1003 + $0x129] sm:$0xff]
  %v1094 = vld [vmem:[%s1003 + $0x139] sm:$0xff]
  %v1095 = vld [vmem:[%s1003 + $0x141] sm:$0xff]
  %v1096 = vld [vmem:[%s1003 + $0x151] sm:$0xff]
  %v1097 = vld [vmem:[%s1003 + $0x159] sm:$0xff]
  %v1098 = vld [vmem:[%s1003 + $0x169] sm:$0xff]
  %v1099 = vld [vmem:[%s1003 + $0x171] sm:$0xff]
  %v1100 = vld [vmem:[%s1003 + $0x1b1] sm:$0xff]
  %v1101 = vld [vmem:[%s1003 + $0x1b9] sm:$0xff]
  %v1102 = vld [vmem:[%s1003 + $0x1c9] sm:$0xff]
  %v1103 = vld [vmem:[%s1003 + $0x1d1] sm:$0xff]
  %v1104 = vld [vmem:[%s1003 + $0x1e1] sm:$0xff]
  %v1105 = vld [vmem:[%s1003 + $0x1e9] sm:$0xff]
  %v1106 = vld [vmem:[%s1003 + $0x1f9] sm:$0xff]
  %v1107 = vld [vmem:[%s1003 + $0x201] sm:$0xff]
  %v1108 = vld [vmem:[%s1003 + $0x211] sm:$0xff]
  %v1109 = vld [vmem:[%s1003 + $0x219] sm:$0xff]
  %v1110 = vld [vmem:[%s1003 + $0x229] sm:$0xff]
  %v1111 = vld [vmem:[%s1003 + $0x231] sm:$0xff]
  %v1112 = vld [vmem:[%s1003 + $0x241] sm:$0xff]
  %v1113 = vld [vmem:[%s1003 + $0x249] sm:$0xff]
  %v1114 = vld [vmem:[%s1003 + $0x259] sm:$0xff]
  %v1115 = vld [vmem:[%s1003 + $0x261] sm:$0xff]
  %v1116 = vld [vmem:[%s1003 + $0x271] sm:$0xff]
  %v1117 = vld [vmem:[%s1003 + $0x279] sm:$0xff]
  %v1118 = vld [vmem:[%s1003 + $0x289] sm:$0xff]
  %v1119 = vld [vmem:[%s1003 + $0x291] sm:$0xff]
  %v1120 = vld [vmem:[%s1003 + $0x2a1] sm:$0xff]
  %v1121 = vld [vmem:[%s1003 + $0x2a9] sm:$0xff]
  %v1122 = vld [vmem:[%s1003 + $0x2b9] sm:$0xff]
  %v1123 = vld [vmem:[%s1003 + $0x2c1] sm:$0xff]
  %v1124 = vld [vmem:[%s1003 + $0x2d1] sm:$0xff]
  %v1125 = vld [vmem:[%s1003 + $0x2d9] sm:$0xff]
  %v1126 = vld [vmem:[%s1003 + $0x2e9] sm:$0xff]
  %v1127 = vld [vmem:[%s1003 + $0x2f1] sm:$0xff]
  %v1128 = vld [vmem:[%s1003 + $0x301] sm:$0xff]
  %v1129 = vld [vmem:[%s1003 + $0x309] sm:$0xff]
  %v1130 = vld [vmem:[%s1003 + $0x319] sm:$0xff]
  %v1131 = vld [vmem:[%s1003 + $0x321] sm:$0xff]
  %v1132 = vld [vmem:[%s1003 + $0x2] sm:$0xff]
  %v1133 = vld [vmem:[%s1003 + $0xa] sm:$0xff]
  %v1134 = vld [vmem:[%s1003 + $0x1a] sm:$0xff]
  %v1135 = vld [vmem:[%s1003 + $0x22] sm:$0xff]
  %v1136 = vld [vmem:[%s1003 + $0x32] sm:$0xff]
  %v1137 = vld [vmem:[%s1003 + $0x3a] sm:$0xff]
  %v1138 = vld [vmem:[%s1003 + $0x4a] sm:$0xff]
  %v1139 = vld [vmem:[%s1003 + $0x52] sm:$0xff]
  %v1140 = vld [vmem:[%s1003 + $0x62] sm:$0xff]
  %v1141 = vld [vmem:[%s1003 + $0x6a] sm:$0xff]
  %v1142 = vld [vmem:[%s1003 + $0x7a] sm:$0xff]
  %v1143 = vld [vmem:[%s1003 + $0x82] sm:$0xff]
  %v1144 = vld [vmem:[%s1003 + $0x92] sm:$0xff]
  %v1145 = vld [vmem:[%s1003 + $0x9a] sm:$0xff]
  %v1146 = vld [vmem:[%s1003 + $0xaa] sm:$0xff]
  %v1147 = vld [vmem:[%s1003 + $0xb2] sm:$0xff]
  %v1148 = vld [vmem:[%s1003 + $0xc2] sm:$0xff]
  %v1149 = vld [vmem:[%s1003 + $0xca] sm:$0xff]
  %v1150 = vld [vmem:[%s1003 + $0xda] sm:$0xff]
  %v1151 = vld [vmem:[%s1003 + $0xe2] sm:$0xff]
  %v1152 = vld [vmem:[%s1003 + $0xf2] sm:$0xff]
  %v1153 = vld [vmem:[%s1003 + $0xfa] sm:$0xff]
  %v1154 = vld [vmem:[%s1003 + $0x10a] sm:$0xff]
  %v1155 = vld [vmem:[%s1003 + $0x112] sm:$0xff]
  %v1156 = vld [vmem:[%s1003 + $0x122] sm:$0xff]
  %v1157 = vld [vmem:[%s1003 + $0x12a] sm:$0xff]
  %v1158 = vld [vmem:[%s1003 + $0x13a] sm:$0xff]
  %v1159 = vld [vmem:[%s1003 + $0x142] sm:$0xff]
  %v1160 = vld [vmem:[%s1003 + $0x152] sm:$0xff]
  %v1161 = vld [vmem:[%s1003 + $0x15a] sm:$0xff]
  %v1162 = vld [vmem:[%s1003 + $0x16a] sm:$0xff]
  %v1163 = vld [vmem:[%s1003 + $0x172] sm:$0xff]
  %v1164 = vld [vmem:[%s1003 + $0x1b2] sm:$0xff]
  %v1165 = vld [vmem:[%s1003 + $0x1ba] sm:$0xff]
  %v1166 = vld [vmem:[%s1003 + $0x1ca] sm:$0xff]
  %v1167 = vld [vmem:[%s1003 + $0x1d2] sm:$0xff]
  %v1168 = vld [vmem:[%s1003 + $0x1e2] sm:$0xff]
  %v1169 = vld [vmem:[%s1003 + $0x1ea] sm:$0xff]
  %v1170 = vld [vmem:[%s1003 + $0x1fa] sm:$0xff]
  %v1171 = vld [vmem:[%s1003 + $0x202] sm:$0xff]
  %v1172 = vld [vmem:[%s1003 + $0x212] sm:$0xff]
  %v1173 = vld [vmem:[%s1003 + $0x21a] sm:$0xff]
  %v1174 = vld [vmem:[%s1003 + $0x22a] sm:$0xff]
  %v1175 = vld [vmem:[%s1003 + $0x232] sm:$0xff]
  %v1176 = vld [vmem:[%s1003 + $0x242] sm:$0xff]
  %v1177 = vld [vmem:[%s1003 + $0x24a] sm:$0xff]
  %v1178 = vld [vmem:[%s1003 + $0x25a] sm:$0xff]
  %v1179 = vld [vmem:[%s1003 + $0x262] sm:$0xff]
  %v1180 = vld [vmem:[%s1003 + $0x272] sm:$0xff]
  %v1181 = vld [vmem:[%s1003 + $0x27a] sm:$0xff]
  %v1182 = vld [vmem:[%s1003 + $0x28a] sm:$0xff]
  %v1183 = vld [vmem:[%s1003 + $0x292] sm:$0xff]
  %v1184 = vld [vmem:[%s1003 + $0x2a2] sm:$0xff]
  %v1185 = vld [vmem:[%s1003 + $0x2aa] sm:$0xff]
  %v1186 = vld [vmem:[%s1003 + $0x2ba] sm:$0xff]
  %v1187 = vld [vmem:[%s1003 + $0x2c2] sm:$0xff]
  %v1188 = vld [vmem:[%s1003 + $0x2d2] sm:$0xff]
  %v1189 = vld [vmem:[%s1003 + $0x2da] sm:$0xff]
  %v1190 = vld [vmem:[%s1003 + $0x2ea] sm:$0xff]
  %v1191 = vld [vmem:[%s1003 + $0x2f2] sm:$0xff]
  %v1192 = vld [vmem:[%s1003 + $0x302] sm:$0xff]
  %v1193 = vld [vmem:[%s1003 + $0x30a] sm:$0xff]
  %v1194 = vld [vmem:[%s1003 + $0x31a] sm:$0xff]
  %v1195 = vld [vmem:[%s1003 + $0x322] sm:$0xff]
  %1260 = vrot.lane.b32.xlu0 %v683, 6
  %v1261 = vpop.permute.xlu0 %1260
  %1262 = vrot.lane.b32.xlu0 %v684, 6
  %v1263 = vpop.permute.xlu0 %1262
  %1264 = vrot.lane.b32.xlu0 %v685, 6
  %v1265 = vpop.permute.xlu0 %1264
  %1266 = vrot.lane.b32.xlu0 %v686, 6
  %v1267 = vpop.permute.xlu0 %1266
  %1268 = vrot.lane.b32.xlu0 %v687, 6
  %v1269 = vpop.permute.xlu0 %1268
  %1270 = vrot.lane.b32.xlu0 %v688, 6
  %v1271 = vpop.permute.xlu0 %1270
  %1272 = vrot.lane.b32.xlu0 %v689, 6
  %v1273 = vpop.permute.xlu0 %1272
  %1274 = vrot.lane.b32.xlu0 %v690, 6
  %v1275 = vpop.permute.xlu0 %1274
  %1276 = vrot.lane.b32.xlu0 %v691, 6
  %v1277 = vpop.permute.xlu0 %1276
  %1278 = vrot.lane.b32.xlu0 %v692, 6
  %v1279 = vpop.permute.xlu0 %1278
  %1280 = vrot.lane.b32.xlu0 %v693, 6
  %v1281 = vpop.permute.xlu0 %1280
  %1282 = vrot.lane.b32.xlu0 %v694, 6
  %v1283 = vpop.permute.xlu0 %1282
  %1284 = vrot.lane.b32.xlu0 %v695, 6
  %v1285 = vpop.permute.xlu0 %1284
  %1286 = vrot.lane.b32.xlu0 %v696, 6
  %v1287 = vpop.permute.xlu0 %1286
  %1288 = vrot.lane.b32.xlu0 %v697, 6
  %v1289 = vpop.permute.xlu0 %1288
  %1290 = vrot.lane.b32.xlu0 %v698, 6
  %v1291 = vpop.permute.xlu0 %1290
  %1292 = vrot.lane.b32.xlu0 %v699, 6
  %v1293 = vpop.permute.xlu0 %1292
  %1294 = vrot.lane.b32.xlu0 %v700, 6
  %v1295 = vpop.permute.xlu0 %1294
  %1296 = vrot.lane.b32.xlu0 %v701, 6
  %v1297 = vpop.permute.xlu0 %1296
  %1298 = vrot.lane.b32.xlu0 %v702, 6
  %v1299 = vpop.permute.xlu0 %1298
  %1300 = vrot.lane.b32.xlu0 %v703, 6
  %v1301 = vpop.permute.xlu0 %1300
  %1302 = vrot.lane.b32.xlu0 %v704, 6
  %v1303 = vpop.permute.xlu0 %1302
  %1304 = vrot.lane.b32.xlu0 %v705, 6
  %v1305 = vpop.permute.xlu0 %1304
  %1306 = vrot.lane.b32.xlu0 %v706, 6
  %v1307 = vpop.permute.xlu0 %1306
  %1308 = vrot.lane.b32.xlu0 %v707, 6
  %v1309 = vpop.permute.xlu0 %1308
  %1310 = vrot.lane.b32.xlu0 %v708, 6
  %v1311 = vpop.permute.xlu0 %1310
  %1312 = vrot.lane.b32.xlu0 %v709, 6
  %v1313 = vpop.permute.xlu0 %1312
  %1314 = vrot.lane.b32.xlu0 %v710, 6
  %v1315 = vpop.permute.xlu0 %1314
  %1316 = vrot.lane.b32.xlu0 %v711, 6
  %v1317 = vpop.permute.xlu0 %1316
  %1318 = vrot.lane.b32.xlu0 %v712, 6
  %v1319 = vpop.permute.xlu0 %1318
  %1320 = vrot.lane.b32.xlu0 %v713, 6
  %v1321 = vpop.permute.xlu0 %1320
  %1322 = vrot.lane.b32.xlu0 %v714, 6
  %v1323 = vpop.permute.xlu0 %1322
  %1324 = vrot.lane.b32.xlu0 %v715, 6
  %v1325 = vpop.permute.xlu0 %1324
  %1326 = vrot.lane.b32.xlu0 %v716, 6
  %v1327 = vpop.permute.xlu0 %1326
  %1328 = vrot.lane.b32.xlu0 %v717, 6
  %v1329 = vpop.permute.xlu0 %1328
  %1330 = vrot.lane.b32.xlu0 %v718, 6
  %v1331 = vpop.permute.xlu0 %1330
  %1332 = vrot.lane.b32.xlu0 %v719, 6
  %v1333 = vpop.permute.xlu0 %1332
  %1334 = vrot.lane.b32.xlu0 %v720, 6
  %v1335 = vpop.permute.xlu0 %1334
  %1336 = vrot.lane.b32.xlu0 %v721, 6
  %v1337 = vpop.permute.xlu0 %1336
  %1338 = vrot.lane.b32.xlu0 %v722, 6
  %v1339 = vpop.permute.xlu0 %1338
  %1340 = vrot.lane.b32.xlu0 %v723, 6
  %v1341 = vpop.permute.xlu0 %1340
  %1342 = vrot.lane.b32.xlu0 %v724, 6
  %v1343 = vpop.permute.xlu0 %1342
  %1344 = vrot.lane.b32.xlu0 %v725, 6
  %v1345 = vpop.permute.xlu0 %1344
  %1346 = vrot.lane.b32.xlu0 %v726, 6
  %v1347 = vpop.permute.xlu0 %1346
  %1348 = vrot.lane.b32.xlu0 %v727, 6
  %v1349 = vpop.permute.xlu0 %1348
  %1350 = vrot.lane.b32.xlu0 %v728, 6
  %v1351 = vpop.permute.xlu0 %1350
  %1352 = vrot.lane.b32.xlu0 %v729, 6
  %v1353 = vpop.permute.xlu0 %1352
  %1354 = vrot.lane.b32.xlu0 %v730, 6
  %v1355 = vpop.permute.xlu0 %1354
  %1356 = vrot.lane.b32.xlu0 %v731, 6
  %v1357 = vpop.permute.xlu0 %1356
  %1358 = vrot.lane.b32.xlu0 %v732, 6
  %v1359 = vpop.permute.xlu0 %1358
  %1360 = vrot.lane.b32.xlu0 %v733, 6
  %v1361 = vpop.permute.xlu0 %1360
  %1362 = vrot.lane.b32.xlu0 %v734, 6
  %v1363 = vpop.permute.xlu0 %1362
  %1364 = vrot.lane.b32.xlu0 %v735, 6
  %v1365 = vpop.permute.xlu0 %1364
  %1366 = vrot.lane.b32.xlu0 %v736, 6
  %v1367 = vpop.permute.xlu0 %1366
  %1368 = vrot.lane.b32.xlu0 %v737, 6
  %v1369 = vpop.permute.xlu0 %1368
  %1370 = vrot.lane.b32.xlu0 %v738, 6
  %v1371 = vpop.permute.xlu0 %1370
  %1372 = vrot.lane.b32.xlu0 %v739, 6
  %v1373 = vpop.permute.xlu0 %1372
  %1374 = vrot.lane.b32.xlu0 %v740, 6
  %v1375 = vpop.permute.xlu0 %1374
  %1376 = vrot.lane.b32.xlu0 %v741, 6
  %v1377 = vpop.permute.xlu0 %1376
  %1378 = vrot.lane.b32.xlu0 %v742, 6
  %v1379 = vpop.permute.xlu0 %1378
  %1380 = vrot.lane.b32.xlu0 %v743, 6
  %v1381 = vpop.permute.xlu0 %1380
  %1382 = vrot.lane.b32.xlu0 %v744, 6
  %v1383 = vpop.permute.xlu0 %1382
  %1384 = vrot.lane.b32.xlu0 %v745, 6
  %v1385 = vpop.permute.xlu0 %1384
  %1386 = vrot.lane.b32.xlu0 %v746, 6
  %v1387 = vpop.permute.xlu0 %1386
  %1516 = vrot.lane.b32.xlu0 %v747, 12
  %v1517 = vpop.permute.xlu0 %1516
  %1518 = vrot.lane.b32.xlu0 %v748, 12
  %v1519 = vpop.permute.xlu0 %1518
  %1520 = vrot.lane.b32.xlu0 %v749, 12
  %v1521 = vpop.permute.xlu0 %1520
  %1522 = vrot.lane.b32.xlu0 %v750, 12
  %v1523 = vpop.permute.xlu0 %1522
  %1524 = vrot.lane.b32.xlu0 %v751, 12
  %v1525 = vpop.permute.xlu0 %1524
  %1526 = vrot.lane.b32.xlu0 %v752, 12
  %v1527 = vpop.permute.xlu0 %1526
  %1528 = vrot.lane.b32.xlu0 %v753, 12
  %v1529 = vpop.permute.xlu0 %1528
  %1530 = vrot.lane.b32.xlu0 %v754, 12
  %v1531 = vpop.permute.xlu0 %1530
  %1532 = vrot.lane.b32.xlu0 %v755, 12
  %v1533 = vpop.permute.xlu0 %1532
  %1534 = vrot.lane.b32.xlu0 %v756, 12
  %v1535 = vpop.permute.xlu0 %1534
  %1536 = vrot.lane.b32.xlu0 %v757, 12
  %v1537 = vpop.permute.xlu0 %1536
  %1538 = vrot.lane.b32.xlu0 %v758, 12
  %v1539 = vpop.permute.xlu0 %1538
  %1540 = vrot.lane.b32.xlu0 %v759, 12
  %v1541 = vpop.permute.xlu0 %1540
  %1542 = vrot.lane.b32.xlu0 %v760, 12
  %v1543 = vpop.permute.xlu0 %1542
  %1544 = vrot.lane.b32.xlu0 %v761, 12
  %v1545 = vpop.permute.xlu0 %1544
  %1546 = vrot.lane.b32.xlu0 %v762, 12
  %v1547 = vpop.permute.xlu0 %1546
  %1548 = vrot.lane.b32.xlu0 %v763, 12
  %v1549 = vpop.permute.xlu0 %1548
  %1550 = vrot.lane.b32.xlu0 %v764, 12
  %v1551 = vpop.permute.xlu0 %1550
  %1552 = vrot.lane.b32.xlu0 %v765, 12
  %v1553 = vpop.permute.xlu0 %1552
  %1554 = vrot.lane.b32.xlu0 %v766, 12
  %v1555 = vpop.permute.xlu0 %1554
  %1556 = vrot.lane.b32.xlu0 %v767, 12
  %v1557 = vpop.permute.xlu0 %1556
  %1558 = vrot.lane.b32.xlu0 %v768, 12
  %v1559 = vpop.permute.xlu0 %1558
  %1560 = vrot.lane.b32.xlu0 %v769, 12
  %v1561 = vpop.permute.xlu0 %1560
  %1562 = vrot.lane.b32.xlu0 %v770, 12
  %v1563 = vpop.permute.xlu0 %1562
  %1564 = vrot.lane.b32.xlu0 %v771, 12
  %v1565 = vpop.permute.xlu0 %1564
  %1566 = vrot.lane.b32.xlu0 %v772, 12
  %v1567 = vpop.permute.xlu0 %1566
  %1568 = vrot.lane.b32.xlu0 %v773, 12
  %v1569 = vpop.permute.xlu0 %1568
  %1570 = vrot.lane.b32.xlu0 %v774, 12
  %v1571 = vpop.permute.xlu0 %1570
  %1572 = vrot.lane.b32.xlu0 %v775, 12
  %v1573 = vpop.permute.xlu0 %1572
  %1574 = vrot.lane.b32.xlu0 %v776, 12
  %v1575 = vpop.permute.xlu0 %1574
  %1576 = vrot.lane.b32.xlu0 %v777, 12
  %v1577 = vpop.permute.xlu0 %1576
  %1578 = vrot.lane.b32.xlu0 %v778, 12
  %v1579 = vpop.permute.xlu0 %1578
  %1580 = vrot.lane.b32.xlu0 %v779, 12
  %v1581 = vpop.permute.xlu0 %1580
  %1582 = vrot.lane.b32.xlu0 %v780, 12
  %v1583 = vpop.permute.xlu0 %1582
  %1584 = vrot.lane.b32.xlu0 %v781, 12
  %v1585 = vpop.permute.xlu0 %1584
  %1586 = vrot.lane.b32.xlu0 %v782, 12
  %v1587 = vpop.permute.xlu0 %1586
  %1588 = vrot.lane.b32.xlu0 %v783, 12
  %v1589 = vpop.permute.xlu0 %1588
  %1590 = vrot.lane.b32.xlu0 %v784, 12
  %v1591 = vpop.permute.xlu0 %1590
  %1592 = vrot.lane.b32.xlu0 %v785, 12
  %v1593 = vpop.permute.xlu0 %1592
  %1594 = vrot.lane.b32.xlu0 %v786, 12
  %v1595 = vpop.permute.xlu0 %1594
  %1596 = vrot.lane.b32.xlu0 %v787, 12
  %v1597 = vpop.permute.xlu0 %1596
  %1598 = vrot.lane.b32.xlu0 %v788, 12
  %v1599 = vpop.permute.xlu0 %1598
  %1600 = vrot.lane.b32.xlu0 %v789, 12
  %v1601 = vpop.permute.xlu0 %1600
  %1602 = vrot.lane.b32.xlu0 %v790, 12
  %v1603 = vpop.permute.xlu0 %1602
  %1604 = vrot.lane.b32.xlu0 %v791, 12
  %v1605 = vpop.permute.xlu0 %1604
  %1606 = vrot.lane.b32.xlu0 %v792, 12
  %v1607 = vpop.permute.xlu0 %1606
  %1608 = vrot.lane.b32.xlu0 %v793, 12
  %v1609 = vpop.permute.xlu0 %1608
  %1610 = vrot.lane.b32.xlu0 %v794, 12
  %v1611 = vpop.permute.xlu0 %1610
  %1612 = vrot.lane.b32.xlu0 %v795, 12
  %v1613 = vpop.permute.xlu0 %1612
  %1614 = vrot.lane.b32.xlu0 %v796, 12
  %v1615 = vpop.permute.xlu0 %1614
  %1616 = vrot.lane.b32.xlu0 %v797, 12
  %v1617 = vpop.permute.xlu0 %1616
  %1618 = vrot.lane.b32.xlu0 %v798, 12
  %v1619 = vpop.permute.xlu0 %1618
  %1620 = vrot.lane.b32.xlu0 %v799, 12
  %v1621 = vpop.permute.xlu0 %1620
  %1622 = vrot.lane.b32.xlu0 %v800, 12
  %v1623 = vpop.permute.xlu0 %1622
  %1624 = vrot.lane.b32.xlu0 %v801, 12
  %v1625 = vpop.permute.xlu0 %1624
  %1626 = vrot.lane.b32.xlu0 %v802, 12
  %v1627 = vpop.permute.xlu0 %1626
  %1628 = vrot.lane.b32.xlu0 %v803, 12
  %v1629 = vpop.permute.xlu0 %1628
  %1630 = vrot.lane.b32.xlu0 %v804, 12
  %v1631 = vpop.permute.xlu0 %1630
  %1632 = vrot.lane.b32.xlu0 %v805, 12
  %v1633 = vpop.permute.xlu0 %1632
  %1634 = vrot.lane.b32.xlu0 %v806, 12
  %v1635 = vpop.permute.xlu0 %1634
  %1636 = vrot.lane.b32.xlu0 %v807, 12
  %v1637 = vpop.permute.xlu0 %1636
  %1638 = vrot.lane.b32.xlu0 %v808, 12
  %v1639 = vpop.permute.xlu0 %1638
  %1640 = vrot.lane.b32.xlu0 %v809, 12
  %v1641 = vpop.permute.xlu0 %1640
  %1642 = vrot.lane.b32.xlu0 %v810, 12
  %v1643 = vpop.permute.xlu0 %1642
  %1772 = vrot.lane.b32.xlu0 %v811, 18
  %v1773 = vpop.permute.xlu0 %1772
  %1774 = vrot.lane.b32.xlu0 %v812, 18
  %v1775 = vpop.permute.xlu0 %1774
  %1776 = vrot.lane.b32.xlu0 %v813, 18
  %v1777 = vpop.permute.xlu0 %1776
  %1778 = vrot.lane.b32.xlu0 %v814, 18
  %v1779 = vpop.permute.xlu0 %1778
  %1780 = vrot.lane.b32.xlu0 %v815, 18
  %v1781 = vpop.permute.xlu0 %1780
  %1782 = vrot.lane.b32.xlu0 %v816, 18
  %v1783 = vpop.permute.xlu0 %1782
  %1784 = vrot.lane.b32.xlu0 %v817, 18
  %v1785 = vpop.permute.xlu0 %1784
  %1786 = vrot.lane.b32.xlu0 %v818, 18
  %v1787 = vpop.permute.xlu0 %1786
  %1788 = vrot.lane.b32.xlu0 %v819, 18
  %v1789 = vpop.permute.xlu0 %1788
  %1790 = vrot.lane.b32.xlu0 %v820, 18
  %v1791 = vpop.permute.xlu0 %1790
  %1792 = vrot.lane.b32.xlu0 %v821, 18
  %v1793 = vpop.permute.xlu0 %1792
  %1794 = vrot.lane.b32.xlu0 %v822, 18
  %v1795 = vpop.permute.xlu0 %1794
  %1796 = vrot.lane.b32.xlu0 %v823, 18
  %v1797 = vpop.permute.xlu0 %1796
  %1798 = vrot.lane.b32.xlu0 %v824, 18
  %v1799 = vpop.permute.xlu0 %1798
  %1800 = vrot.lane.b32.xlu0 %v825, 18
  %v1801 = vpop.permute.xlu0 %1800
  %1802 = vrot.lane.b32.xlu0 %v826, 18
  %v1803 = vpop.permute.xlu0 %1802
  %1804 = vrot.lane.b32.xlu0 %v827, 18
  %v1805 = vpop.permute.xlu0 %1804
  %1806 = vrot.lane.b32.xlu0 %v828, 18
  %v1807 = vpop.permute.xlu0 %1806
  %1808 = vrot.lane.b32.xlu0 %v829, 18
  %v1809 = vpop.permute.xlu0 %1808
  %1810 = vrot.lane.b32.xlu0 %v830, 18
  %v1811 = vpop.permute.xlu0 %1810
  %1812 = vrot.lane.b32.xlu0 %v831, 18
  %v1813 = vpop.permute.xlu0 %1812
  %1814 = vrot.lane.b32.xlu0 %v832, 18
  %v1815 = vpop.permute.xlu0 %1814
  %1816 = vrot.lane.b32.xlu0 %v833, 18
  %v1817 = vpop.permute.xlu0 %1816
  %1818 = vrot.lane.b32.xlu0 %v834, 18
  %v1819 = vpop.permute.xlu0 %1818
  %1820 = vrot.lane.b32.xlu0 %v835, 18
  %v1821 = vpop.permute.xlu0 %1820
  %1822 = vrot.lane.b32.xlu0 %v836, 18
  %v1823 = vpop.permute.xlu0 %1822
  %1824 = vrot.lane.b32.xlu0 %v837, 18
  %v1825 = vpop.permute.xlu0 %1824
  %1826 = vrot.lane.b32.xlu0 %v838, 18
  %v1827 = vpop.permute.xlu0 %1826
  %1828 = vrot.lane.b32.xlu0 %v839, 18
  %v1829 = vpop.permute.xlu0 %1828
  %1830 = vrot.lane.b32.xlu0 %v840, 18
  %v1831 = vpop.permute.xlu0 %1830
  %1832 = vrot.lane.b32.xlu0 %v841, 18
  %v1833 = vpop.permute.xlu0 %1832
  %1834 = vrot.lane.b32.xlu0 %v842, 18
  %v1835 = vpop.permute.xlu0 %1834
  %1836 = vrot.lane.b32.xlu0 %v843, 18
  %v1837 = vpop.permute.xlu0 %1836
  %1838 = vrot.lane.b32.xlu0 %v844, 18
  %v1839 = vpop.permute.xlu0 %1838
  %1840 = vrot.lane.b32.xlu0 %v845, 18
  %v1841 = vpop.permute.xlu0 %1840
  %1842 = vrot.lane.b32.xlu0 %v846, 18
  %v1843 = vpop.permute.xlu0 %1842
  %1844 = vrot.lane.b32.xlu0 %v847, 18
  %v1845 = vpop.permute.xlu0 %1844
  %1846 = vrot.lane.b32.xlu0 %v848, 18
  %v1847 = vpop.permute.xlu0 %1846
  %1848 = vrot.lane.b32.xlu0 %v849, 18
  %v1849 = vpop.permute.xlu0 %1848
  %1850 = vrot.lane.b32.xlu0 %v850, 18
  %v1851 = vpop.permute.xlu0 %1850
  %1852 = vrot.lane.b32.xlu0 %v851, 18
  %v1853 = vpop.permute.xlu0 %1852
  %1854 = vrot.lane.b32.xlu0 %v852, 18
  %v1855 = vpop.permute.xlu0 %1854
  %1856 = vrot.lane.b32.xlu0 %v853, 18
  %v1857 = vpop.permute.xlu0 %1856
  %1858 = vrot.lane.b32.xlu0 %v854, 18
  %v1859 = vpop.permute.xlu0 %1858
  %1860 = vrot.lane.b32.xlu0 %v855, 18
  %v1861 = vpop.permute.xlu0 %1860
  %1862 = vrot.lane.b32.xlu0 %v856, 18
  %v1863 = vpop.permute.xlu0 %1862
  %1864 = vrot.lane.b32.xlu0 %v857, 18
  %v1865 = vpop.permute.xlu0 %1864
  %1866 = vrot.lane.b32.xlu0 %v858, 18
  %v1867 = vpop.permute.xlu0 %1866
  %1868 = vrot.lane.b32.xlu0 %v859, 18
  %v1869 = vpop.permute.xlu0 %1868
  %1870 = vrot.lane.b32.xlu0 %v860, 18
  %v1871 = vpop.permute.xlu0 %1870
  %1872 = vrot.lane.b32.xlu0 %v861, 18
  %v1873 = vpop.permute.xlu0 %1872
  %1874 = vrot.lane.b32.xlu0 %v862, 18
  %v1875 = vpop.permute.xlu0 %1874
  %1876 = vrot.lane.b32.xlu0 %v863, 18
  %v1877 = vpop.permute.xlu0 %1876
  %1878 = vrot.lane.b32.xlu0 %v864, 18
  %v1879 = vpop.permute.xlu0 %1878
  %1880 = vrot.lane.b32.xlu0 %v865, 18
  %v1881 = vpop.permute.xlu0 %1880
  %1882 = vrot.lane.b32.xlu0 %v866, 18
  %v1883 = vpop.permute.xlu0 %1882
  %1884 = vrot.lane.b32.xlu0 %v867, 18
  %v1885 = vpop.permute.xlu0 %1884
  %1886 = vrot.lane.b32.xlu0 %v868, 18
  %v1887 = vpop.permute.xlu0 %1886
  %1888 = vrot.lane.b32.xlu0 %v869, 18
  %v1889 = vpop.permute.xlu0 %1888
  %1890 = vrot.lane.b32.xlu0 %v870, 18
  %v1891 = vpop.permute.xlu0 %1890
  %1892 = vrot.lane.b32.xlu0 %v871, 18
  %v1893 = vpop.permute.xlu0 %1892
  %1894 = vrot.lane.b32.xlu0 %v872, 18
  %v1895 = vpop.permute.xlu0 %1894
  %1896 = vrot.lane.b32.xlu0 %v873, 18
  %v1897 = vpop.permute.xlu0 %1896
  %1898 = vrot.lane.b32.xlu0 %v874, 18
  %v1899 = vpop.permute.xlu0 %1898
  %2028 = vrot.lane.b32.xlu0 %v875, 24
  %v2029 = vpop.permute.xlu0 %2028
  %2030 = vrot.lane.b32.xlu0 %v876, 24
  %v2031 = vpop.permute.xlu0 %2030
  %2032 = vrot.lane.b32.xlu0 %v877, 24
  %v2033 = vpop.permute.xlu0 %2032
  %2034 = vrot.lane.b32.xlu0 %v878, 24
  %v2035 = vpop.permute.xlu0 %2034
  %2036 = vrot.lane.b32.xlu0 %v879, 24
  %v2037 = vpop.permute.xlu0 %2036
  %2038 = vrot.lane.b32.xlu0 %v880, 24
  %v2039 = vpop.permute.xlu0 %2038
  %2040 = vrot.lane.b32.xlu0 %v881, 24
  %v2041 = vpop.permute.xlu0 %2040
  %2042 = vrot.lane.b32.xlu0 %v882, 24
  %v2043 = vpop.permute.xlu0 %2042
  %2044 = vrot.lane.b32.xlu0 %v883, 24
  %v2045 = vpop.permute.xlu0 %2044
  %2046 = vrot.lane.b32.xlu0 %v884, 24
  %v2047 = vpop.permute.xlu0 %2046
  %2048 = vrot.lane.b32.xlu0 %v885, 24
  %v2049 = vpop.permute.xlu0 %2048
  %2050 = vrot.lane.b32.xlu0 %v886, 24
  %v2051 = vpop.permute.xlu0 %2050
  %2052 = vrot.lane.b32.xlu0 %v887, 24
  %v2053 = vpop.permute.xlu0 %2052
  %2054 = vrot.lane.b32.xlu0 %v888, 24
  %v2055 = vpop.permute.xlu0 %2054
  %2056 = vrot.lane.b32.xlu0 %v889, 24
  %v2057 = vpop.permute.xlu0 %2056
  %2058 = vrot.lane.b32.xlu0 %v890, 24
  %v2059 = vpop.permute.xlu0 %2058
  %2060 = vrot.lane.b32.xlu0 %v891, 24
  %v2061 = vpop.permute.xlu0 %2060
  %2062 = vrot.lane.b32.xlu0 %v892, 24
  %v2063 = vpop.permute.xlu0 %2062
  %2064 = vrot.lane.b32.xlu0 %v893, 24
  %v2065 = vpop.permute.xlu0 %2064
  %2066 = vrot.lane.b32.xlu0 %v894, 24
  %v2067 = vpop.permute.xlu0 %2066
  %2068 = vrot.lane.b32.xlu0 %v895, 24
  %v2069 = vpop.permute.xlu0 %2068
  %2070 = vrot.lane.b32.xlu0 %v896, 24
  %v2071 = vpop.permute.xlu0 %2070
  %2072 = vrot.lane.b32.xlu0 %v897, 24
  %v2073 = vpop.permute.xlu0 %2072
  %2074 = vrot.lane.b32.xlu0 %v898, 24
  %v2075 = vpop.permute.xlu0 %2074
  %2076 = vrot.lane.b32.xlu0 %v899, 24
  %v2077 = vpop.permute.xlu0 %2076
  %2078 = vrot.lane.b32.xlu0 %v900, 24
  %v2079 = vpop.permute.xlu0 %2078
  %2080 = vrot.lane.b32.xlu0 %v901, 24
  %v2081 = vpop.permute.xlu0 %2080
  %2082 = vrot.lane.b32.xlu0 %v902, 24
  %v2083 = vpop.permute.xlu0 %2082
  %2084 = vrot.lane.b32.xlu0 %v903, 24
  %v2085 = vpop.permute.xlu0 %2084
  %2086 = vrot.lane.b32.xlu0 %v904, 24
  %v2087 = vpop.permute.xlu0 %2086
  %2088 = vrot.lane.b32.xlu0 %v905, 24
  %v2089 = vpop.permute.xlu0 %2088
  %2090 = vrot.lane.b32.xlu0 %v906, 24
  %v2091 = vpop.permute.xlu0 %2090
  %2092 = vrot.lane.b32.xlu0 %v907, 24
  %v2093 = vpop.permute.xlu0 %2092
  %2094 = vrot.lane.b32.xlu0 %v908, 24
  %v2095 = vpop.permute.xlu0 %2094
  %2096 = vrot.lane.b32.xlu0 %v909, 24
  %v2097 = vpop.permute.xlu0 %2096
  %2098 = vrot.lane.b32.xlu0 %v910, 24
  %v2099 = vpop.permute.xlu0 %2098
  %2100 = vrot.lane.b32.xlu0 %v911, 24
  %v2101 = vpop.permute.xlu0 %2100
  %2102 = vrot.lane.b32.xlu0 %v912, 24
  %v2103 = vpop.permute.xlu0 %2102
  %2104 = vrot.lane.b32.xlu0 %v913, 24
  %v2105 = vpop.permute.xlu0 %2104
  %2106 = vrot.lane.b32.xlu0 %v914, 24
  %v2107 = vpop.permute.xlu0 %2106
  %2108 = vrot.lane.b32.xlu0 %v915, 24
  %v2109 = vpop.permute.xlu0 %2108
  %2110 = vrot.lane.b32.xlu0 %v916, 24
  %v2111 = vpop.permute.xlu0 %2110
  %2112 = vrot.lane.b32.xlu0 %v917, 24
  %v2113 = vpop.permute.xlu0 %2112
  %2114 = vrot.lane.b32.xlu0 %v918, 24
  %v2115 = vpop.permute.xlu0 %2114
  %2116 = vrot.lane.b32.xlu0 %v919, 24
  %v2117 = vpop.permute.xlu0 %2116
  %2118 = vrot.lane.b32.xlu0 %v920, 24
  %v2119 = vpop.permute.xlu0 %2118
  %2120 = vrot.lane.b32.xlu0 %v921, 24
  %v2121 = vpop.permute.xlu0 %2120
  %2122 = vrot.lane.b32.xlu0 %v922, 24
  %v2123 = vpop.permute.xlu0 %2122
  %2124 = vrot.lane.b32.xlu0 %v923, 24
  %v2125 = vpop.permute.xlu0 %2124
  %2126 = vrot.lane.b32.xlu0 %v924, 24
  %v2127 = vpop.permute.xlu0 %2126
  %2128 = vrot.lane.b32.xlu0 %v925, 24
  %v2129 = vpop.permute.xlu0 %2128
  %2130 = vrot.lane.b32.xlu0 %v926, 24
  %v2131 = vpop.permute.xlu0 %2130
  %2132 = vrot.lane.b32.xlu0 %v927, 24
  %v2133 = vpop.permute.xlu0 %2132
  %2134 = vrot.lane.b32.xlu0 %v928, 24
  %v2135 = vpop.permute.xlu0 %2134
  %2136 = vrot.lane.b32.xlu0 %v929, 24
  %v2137 = vpop.permute.xlu0 %2136
  %2138 = vrot.lane.b32.xlu0 %v930, 24
  %v2139 = vpop.permute.xlu0 %2138
  %2140 = vrot.lane.b32.xlu0 %v931, 24
  %v2141 = vpop.permute.xlu0 %2140
  %2142 = vrot.lane.b32.xlu0 %v932, 24
  %v2143 = vpop.permute.xlu0 %2142
  %2144 = vrot.lane.b32.xlu0 %v933, 24
  %v2145 = vpop.permute.xlu0 %2144
  %2146 = vrot.lane.b32.xlu0 %v934, 24
  %v2147 = vpop.permute.xlu0 %2146
  %2148 = vrot.lane.b32.xlu0 %v935, 24
  %v2149 = vpop.permute.xlu0 %2148
  %2150 = vrot.lane.b32.xlu0 %v936, 24
  %v2151 = vpop.permute.xlu0 %2150
  %2152 = vrot.lane.b32.xlu0 %v937, 24
  %v2153 = vpop.permute.xlu0 %2152
  %2154 = vrot.lane.b32.xlu0 %v938, 24
  %v2155 = vpop.permute.xlu0 %2154
  %2284 = vrot.lane.b32.xlu0 %v939, 30
  %v2285 = vpop.permute.xlu0 %2284
  %2286 = vrot.lane.b32.xlu0 %v940, 30
  %v2287 = vpop.permute.xlu0 %2286
  %2288 = vrot.lane.b32.xlu0 %v941, 30
  %v2289 = vpop.permute.xlu0 %2288
  %2290 = vrot.lane.b32.xlu0 %v942, 30
  %v2291 = vpop.permute.xlu0 %2290
  %2292 = vrot.lane.b32.xlu0 %v943, 30
  %v2293 = vpop.permute.xlu0 %2292
  %2294 = vrot.lane.b32.xlu0 %v944, 30
  %v2295 = vpop.permute.xlu0 %2294
  %2296 = vrot.lane.b32.xlu0 %v945, 30
  %v2297 = vpop.permute.xlu0 %2296
  %2298 = vrot.lane.b32.xlu0 %v946, 30
  %v2299 = vpop.permute.xlu0 %2298
  %2300 = vrot.lane.b32.xlu0 %v947, 30
  %v2301 = vpop.permute.xlu0 %2300
  %2302 = vrot.lane.b32.xlu0 %v948, 30
  %v2303 = vpop.permute.xlu0 %2302
  %2304 = vrot.lane.b32.xlu0 %v949, 30
  %v2305 = vpop.permute.xlu0 %2304
  %2306 = vrot.lane.b32.xlu0 %v950, 30
  %v2307 = vpop.permute.xlu0 %2306
  %2308 = vrot.lane.b32.xlu0 %v951, 30
  %v2309 = vpop.permute.xlu0 %2308
  %2310 = vrot.lane.b32.xlu0 %v952, 30
  %v2311 = vpop.permute.xlu0 %2310
  %2312 = vrot.lane.b32.xlu0 %v953, 30
  %v2313 = vpop.permute.xlu0 %2312
  %2314 = vrot.lane.b32.xlu0 %v954, 30
  %v2315 = vpop.permute.xlu0 %2314
  %2316 = vrot.lane.b32.xlu0 %v955, 30
  %v2317 = vpop.permute.xlu0 %2316
  %2318 = vrot.lane.b32.xlu0 %v956, 30
  %v2319 = vpop.permute.xlu0 %2318
  %2320 = vrot.lane.b32.xlu0 %v957, 30
  %v2321 = vpop.permute.xlu0 %2320
  %2322 = vrot.lane.b32.xlu0 %v958, 30
  %v2323 = vpop.permute.xlu0 %2322
  %2324 = vrot.lane.b32.xlu0 %v959, 30
  %v2325 = vpop.permute.xlu0 %2324
  %2326 = vrot.lane.b32.xlu0 %v960, 30
  %v2327 = vpop.permute.xlu0 %2326
  %2328 = vrot.lane.b32.xlu0 %v961, 30
  %v2329 = vpop.permute.xlu0 %2328
  %2330 = vrot.lane.b32.xlu0 %v962, 30
  %v2331 = vpop.permute.xlu0 %2330
  %2332 = vrot.lane.b32.xlu0 %v963, 30
  %v2333 = vpop.permute.xlu0 %2332
  %2334 = vrot.lane.b32.xlu0 %v964, 30
  %v2335 = vpop.permute.xlu0 %2334
  %2336 = vrot.lane.b32.xlu0 %v965, 30
  %v2337 = vpop.permute.xlu0 %2336
  %2338 = vrot.lane.b32.xlu0 %v966, 30
  %v2339 = vpop.permute.xlu0 %2338
  %2340 = vrot.lane.b32.xlu0 %v967, 30
  %v2341 = vpop.permute.xlu0 %2340
  %2342 = vrot.lane.b32.xlu0 %v968, 30
  %v2343 = vpop.permute.xlu0 %2342
  %2344 = vrot.lane.b32.xlu0 %v969, 30
  %v2345 = vpop.permute.xlu0 %2344
  %2346 = vrot.lane.b32.xlu0 %v970, 30
  %v2347 = vpop.permute.xlu0 %2346
  %2348 = vrot.lane.b32.xlu0 %v971, 30
  %v2349 = vpop.permute.xlu0 %2348
  %2350 = vrot.lane.b32.xlu0 %v972, 30
  %v2351 = vpop.permute.xlu0 %2350
  %2352 = vrot.lane.b32.xlu0 %v973, 30
  %v2353 = vpop.permute.xlu0 %2352
  %2354 = vrot.lane.b32.xlu0 %v974, 30
  %v2355 = vpop.permute.xlu0 %2354
  %2356 = vrot.lane.b32.xlu0 %v975, 30
  %v2357 = vpop.permute.xlu0 %2356
  %2358 = vrot.lane.b32.xlu0 %v976, 30
  %v2359 = vpop.permute.xlu0 %2358
  %2360 = vrot.lane.b32.xlu0 %v977, 30
  %v2361 = vpop.permute.xlu0 %2360
  %2362 = vrot.lane.b32.xlu0 %v978, 30
  %v2363 = vpop.permute.xlu0 %2362
  %2364 = vrot.lane.b32.xlu0 %v979, 30
  %v2365 = vpop.permute.xlu0 %2364
  %2366 = vrot.lane.b32.xlu0 %v980, 30
  %v2367 = vpop.permute.xlu0 %2366
  %2368 = vrot.lane.b32.xlu0 %v981, 30
  %v2369 = vpop.permute.xlu0 %2368
  %2370 = vrot.lane.b32.xlu0 %v982, 30
  %v2371 = vpop.permute.xlu0 %2370
  %2372 = vrot.lane.b32.xlu0 %v983, 30
  %v2373 = vpop.permute.xlu0 %2372
  %2374 = vrot.lane.b32.xlu0 %v984, 30
  %v2375 = vpop.permute.xlu0 %2374
  %2376 = vrot.lane.b32.xlu0 %v985, 30
  %v2377 = vpop.permute.xlu0 %2376
  %2378 = vrot.lane.b32.xlu0 %v986, 30
  %v2379 = vpop.permute.xlu0 %2378
  %2380 = vrot.lane.b32.xlu0 %v987, 30
  %v2381 = vpop.permute.xlu0 %2380
  %2382 = vrot.lane.b32.xlu0 %v988, 30
  %v2383 = vpop.permute.xlu0 %2382
  %2384 = vrot.lane.b32.xlu0 %v989, 30
  %v2385 = vpop.permute.xlu0 %2384
  %2386 = vrot.lane.b32.xlu0 %v990, 30
  %v2387 = vpop.permute.xlu0 %2386
  %2388 = vrot.lane.b32.xlu0 %v991, 30
  %v2389 = vpop.permute.xlu0 %2388
  %2390 = vrot.lane.b32.xlu0 %v992, 30
  %v2391 = vpop.permute.xlu0 %2390
  %2392 = vrot.lane.b32.xlu0 %v993, 30
  %v2393 = vpop.permute.xlu0 %2392
  %2394 = vrot.lane.b32.xlu0 %v994, 30
  %v2395 = vpop.permute.xlu0 %2394
  %2396 = vrot.lane.b32.xlu0 %v995, 30
  %v2397 = vpop.permute.xlu0 %2396
  %2398 = vrot.lane.b32.xlu0 %v996, 30
  %v2399 = vpop.permute.xlu0 %2398
  %2400 = vrot.lane.b32.xlu0 %v997, 30
  %v2401 = vpop.permute.xlu0 %2400
  %2402 = vrot.lane.b32.xlu0 %v998, 30
  %v2403 = vpop.permute.xlu0 %2402
  %2404 = vrot.lane.b32.xlu0 %v999, 30
  %v2405 = vpop.permute.xlu0 %2404
  %2406 = vrot.lane.b32.xlu0 %v1000, 30
  %v2407 = vpop.permute.xlu0 %2406
  %2408 = vrot.lane.b32.xlu0 %v1001, 30
  %v2409 = vpop.permute.xlu0 %2408
  %2410 = vrot.lane.b32.xlu0 %v1002, 30
  %v2411 = vpop.permute.xlu0 %2410
  %2540 = vrot.lane.b32.xlu0 %v1004, 36
  %v2541 = vpop.permute.xlu0 %2540
  %2542 = vrot.lane.b32.xlu0 %v1005, 36
  %v2543 = vpop.permute.xlu0 %2542
  %2544 = vrot.lane.b32.xlu0 %v1006, 36
  %v2545 = vpop.permute.xlu0 %2544
  %2546 = vrot.lane.b32.xlu0 %v1007, 36
  %v2547 = vpop.permute.xlu0 %2546
  %2548 = vrot.lane.b32.xlu0 %v1008, 36
  %v2549 = vpop.permute.xlu0 %2548
  %2550 = vrot.lane.b32.xlu0 %v1009, 36
  %v2551 = vpop.permute.xlu0 %2550
  %2552 = vrot.lane.b32.xlu0 %v1010, 36
  %v2553 = vpop.permute.xlu0 %2552
  %2554 = vrot.lane.b32.xlu0 %v1011, 36
  %v2555 = vpop.permute.xlu0 %2554
  %2556 = vrot.lane.b32.xlu0 %v1012, 36
  %v2557 = vpop.permute.xlu0 %2556
  %2558 = vrot.lane.b32.xlu0 %v1013, 36
  %v2559 = vpop.permute.xlu0 %2558
  %2560 = vrot.lane.b32.xlu0 %v1014, 36
  %v2561 = vpop.permute.xlu0 %2560
  %2562 = vrot.lane.b32.xlu0 %v1015, 36
  %v2563 = vpop.permute.xlu0 %2562
  %2564 = vrot.lane.b32.xlu0 %v1016, 36
  %v2565 = vpop.permute.xlu0 %2564
  %2566 = vrot.lane.b32.xlu0 %v1017, 36
  %v2567 = vpop.permute.xlu0 %2566
  %2568 = vrot.lane.b32.xlu0 %v1018, 36
  %v2569 = vpop.permute.xlu0 %2568
  %2570 = vrot.lane.b32.xlu0 %v1019, 36
  %v2571 = vpop.permute.xlu0 %2570
  %2572 = vrot.lane.b32.xlu0 %v1020, 36
  %v2573 = vpop.permute.xlu0 %2572
  %2574 = vrot.lane.b32.xlu0 %v1021, 36
  %v2575 = vpop.permute.xlu0 %2574
  %2576 = vrot.lane.b32.xlu0 %v1022, 36
  %v2577 = vpop.permute.xlu0 %2576
  %2578 = vrot.lane.b32.xlu0 %v1023, 36
  %v2579 = vpop.permute.xlu0 %2578
  %2580 = vrot.lane.b32.xlu0 %v1024, 36
  %v2581 = vpop.permute.xlu0 %2580
  %2582 = vrot.lane.b32.xlu0 %v1025, 36
  %v2583 = vpop.permute.xlu0 %2582
  %2584 = vrot.lane.b32.xlu0 %v1026, 36
  %v2585 = vpop.permute.xlu0 %2584
  %2586 = vrot.lane.b32.xlu0 %v1027, 36
  %v2587 = vpop.permute.xlu0 %2586
  %2588 = vrot.lane.b32.xlu0 %v1028, 36
  %v2589 = vpop.permute.xlu0 %2588
  %2590 = vrot.lane.b32.xlu0 %v1029, 36
  %v2591 = vpop.permute.xlu0 %2590
  %2592 = vrot.lane.b32.xlu0 %v1030, 36
  %v2593 = vpop.permute.xlu0 %2592
  %2594 = vrot.lane.b32.xlu0 %v1031, 36
  %v2595 = vpop.permute.xlu0 %2594
  %2596 = vrot.lane.b32.xlu0 %v1032, 36
  %v2597 = vpop.permute.xlu0 %2596
  %2598 = vrot.lane.b32.xlu0 %v1033, 36
  %v2599 = vpop.permute.xlu0 %2598
  %2600 = vrot.lane.b32.xlu0 %v1034, 36
  %v2601 = vpop.permute.xlu0 %2600
  %2602 = vrot.lane.b32.xlu0 %v1035, 36
  %v2603 = vpop.permute.xlu0 %2602
  %2604 = vrot.lane.b32.xlu0 %v1036, 36
  %v2605 = vpop.permute.xlu0 %2604
  %2606 = vrot.lane.b32.xlu0 %v1037, 36
  %v2607 = vpop.permute.xlu0 %2606
  %2608 = vrot.lane.b32.xlu0 %v1038, 36
  %v2609 = vpop.permute.xlu0 %2608
  %2610 = vrot.lane.b32.xlu0 %v1039, 36
  %v2611 = vpop.permute.xlu0 %2610
  %2612 = vrot.lane.b32.xlu0 %v1040, 36
  %v2613 = vpop.permute.xlu0 %2612
  %2614 = vrot.lane.b32.xlu0 %v1041, 36
  %v2615 = vpop.permute.xlu0 %2614
  %2616 = vrot.lane.b32.xlu0 %v1042, 36
  %v2617 = vpop.permute.xlu0 %2616
  %2618 = vrot.lane.b32.xlu0 %v1043, 36
  %v2619 = vpop.permute.xlu0 %2618
  %2620 = vrot.lane.b32.xlu0 %v1044, 36
  %v2621 = vpop.permute.xlu0 %2620
  %2622 = vrot.lane.b32.xlu0 %v1045, 36
  %v2623 = vpop.permute.xlu0 %2622
  %2624 = vrot.lane.b32.xlu0 %v1046, 36
  %v2625 = vpop.permute.xlu0 %2624
  %2626 = vrot.lane.b32.xlu0 %v1047, 36
  %v2627 = vpop.permute.xlu0 %2626
  %2628 = vrot.lane.b32.xlu0 %v1048, 36
  %v2629 = vpop.permute.xlu0 %2628
  %2630 = vrot.lane.b32.xlu0 %v1049, 36
  %v2631 = vpop.permute.xlu0 %2630
  %2632 = vrot.lane.b32.xlu0 %v1050, 36
  %v2633 = vpop.permute.xlu0 %2632
  %2634 = vrot.lane.b32.xlu0 %v1051, 36
  %v2635 = vpop.permute.xlu0 %2634
  %2636 = vrot.lane.b32.xlu0 %v1052, 36
  %v2637 = vpop.permute.xlu0 %2636
  %2638 = vrot.lane.b32.xlu0 %v1053, 36
  %v2639 = vpop.permute.xlu0 %2638
  %2640 = vrot.lane.b32.xlu0 %v1054, 36
  %v2641 = vpop.permute.xlu0 %2640
  %2642 = vrot.lane.b32.xlu0 %v1055, 36
  %v2643 = vpop.permute.xlu0 %2642
  %2644 = vrot.lane.b32.xlu0 %v1056, 36
  %v2645 = vpop.permute.xlu0 %2644
  %2646 = vrot.lane.b32.xlu0 %v1057, 36
  %v2647 = vpop.permute.xlu0 %2646
  %2648 = vrot.lane.b32.xlu0 %v1058, 36
  %v2649 = vpop.permute.xlu0 %2648
  %2650 = vrot.lane.b32.xlu0 %v1059, 36
  %v2651 = vpop.permute.xlu0 %2650
  %2652 = vrot.lane.b32.xlu0 %v1060, 36
  %v2653 = vpop.permute.xlu0 %2652
  %2654 = vrot.lane.b32.xlu0 %v1061, 36
  %v2655 = vpop.permute.xlu0 %2654
  %2656 = vrot.lane.b32.xlu0 %v1062, 36
  %v2657 = vpop.permute.xlu0 %2656
  %2658 = vrot.lane.b32.xlu0 %v1063, 36
  %v2659 = vpop.permute.xlu0 %2658
  %2660 = vrot.lane.b32.xlu0 %v1064, 36
  %v2661 = vpop.permute.xlu0 %2660
  %2662 = vrot.lane.b32.xlu0 %v1065, 36
  %v2663 = vpop.permute.xlu0 %2662
  %2664 = vrot.lane.b32.xlu0 %v1066, 36
  %v2665 = vpop.permute.xlu0 %2664
  %2666 = vrot.lane.b32.xlu0 %v1067, 36
  %v2667 = vpop.permute.xlu0 %2666
  %2796 = vrot.lane.b32.xlu0 %v1068, 42
  %v2797 = vpop.permute.xlu0 %2796
  %2798 = vrot.lane.b32.xlu0 %v1069, 42
  %v2799 = vpop.permute.xlu0 %2798
  %2800 = vrot.lane.b32.xlu0 %v1070, 42
  %v2801 = vpop.permute.xlu0 %2800
  %2802 = vrot.lane.b32.xlu0 %v1071, 42
  %v2803 = vpop.permute.xlu0 %2802
  %2804 = vrot.lane.b32.xlu0 %v1072, 42
  %v2805 = vpop.permute.xlu0 %2804
  %2806 = vrot.lane.b32.xlu0 %v1073, 42
  %v2807 = vpop.permute.xlu0 %2806
  %2808 = vrot.lane.b32.xlu0 %v1074, 42
  %v2809 = vpop.permute.xlu0 %2808
  %2810 = vrot.lane.b32.xlu0 %v1075, 42
  %v2811 = vpop.permute.xlu0 %2810
  %2812 = vrot.lane.b32.xlu0 %v1076, 42
  %v2813 = vpop.permute.xlu0 %2812
  %2814 = vrot.lane.b32.xlu0 %v1077, 42
  %v2815 = vpop.permute.xlu0 %2814
  %2816 = vrot.lane.b32.xlu0 %v1078, 42
  %v2817 = vpop.permute.xlu0 %2816
  %2818 = vrot.lane.b32.xlu0 %v1079, 42
  %v2819 = vpop.permute.xlu0 %2818
  %2820 = vrot.lane.b32.xlu0 %v1080, 42
  %v2821 = vpop.permute.xlu0 %2820
  %2822 = vrot.lane.b32.xlu0 %v1081, 42
  %v2823 = vpop.permute.xlu0 %2822
  %2824 = vrot.lane.b32.xlu0 %v1082, 42
  %v2825 = vpop.permute.xlu0 %2824
  %2826 = vrot.lane.b32.xlu0 %v1083, 42
  %v2827 = vpop.permute.xlu0 %2826
  %2828 = vrot.lane.b32.xlu0 %v1084, 42
  %v2829 = vpop.permute.xlu0 %2828
  %2830 = vrot.lane.b32.xlu0 %v1085, 42
  %v2831 = vpop.permute.xlu0 %2830
  %2832 = vrot.lane.b32.xlu0 %v1086, 42
  %v2833 = vpop.permute.xlu0 %2832
  %2834 = vrot.lane.b32.xlu0 %v1087, 42
  %v2835 = vpop.permute.xlu0 %2834
  %2836 = vrot.lane.b32.xlu0 %v1088, 42
  %v2837 = vpop.permute.xlu0 %2836
  %2838 = vrot.lane.b32.xlu0 %v1089, 42
  %v2839 = vpop.permute.xlu0 %2838
  %2840 = vrot.lane.b32.xlu0 %v1090, 42
  %v2841 = vpop.permute.xlu0 %2840
  %2842 = vrot.lane.b32.xlu0 %v1091, 42
  %v2843 = vpop.permute.xlu0 %2842
  %2844 = vrot.lane.b32.xlu0 %v1092, 42
  %v2845 = vpop.permute.xlu0 %2844
  %2846 = vrot.lane.b32.xlu0 %v1093, 42
  %v2847 = vpop.permute.xlu0 %2846
  %2848 = vrot.lane.b32.xlu0 %v1094, 42
  %v2849 = vpop.permute.xlu0 %2848
  %2850 = vrot.lane.b32.xlu0 %v1095, 42
  %v2851 = vpop.permute.xlu0 %2850
  %2852 = vrot.lane.b32.xlu0 %v1096, 42
  %v2853 = vpop.permute.xlu0 %2852
  %2854 = vrot.lane.b32.xlu0 %v1097, 42
  %v2855 = vpop.permute.xlu0 %2854
  %2856 = vrot.lane.b32.xlu0 %v1098, 42
  %v2857 = vpop.permute.xlu0 %2856
  %2858 = vrot.lane.b32.xlu0 %v1099, 42
  %v2859 = vpop.permute.xlu0 %2858
  %2860 = vrot.lane.b32.xlu0 %v1100, 42
  %v2861 = vpop.permute.xlu0 %2860
  %2862 = vrot.lane.b32.xlu0 %v1101, 42
  %v2863 = vpop.permute.xlu0 %2862
  %2864 = vrot.lane.b32.xlu0 %v1102, 42
  %v2865 = vpop.permute.xlu0 %2864
  %2866 = vrot.lane.b32.xlu0 %v1103, 42
  %v2867 = vpop.permute.xlu0 %2866
  %2868 = vrot.lane.b32.xlu0 %v1104, 42
  %v2869 = vpop.permute.xlu0 %2868
  %2870 = vrot.lane.b32.xlu0 %v1105, 42
  %v2871 = vpop.permute.xlu0 %2870
  %2872 = vrot.lane.b32.xlu0 %v1106, 42
  %v2873 = vpop.permute.xlu0 %2872
  %2874 = vrot.lane.b32.xlu0 %v1107, 42
  %v2875 = vpop.permute.xlu0 %2874
  %2876 = vrot.lane.b32.xlu0 %v1108, 42
  %v2877 = vpop.permute.xlu0 %2876
  %2878 = vrot.lane.b32.xlu0 %v1109, 42
  %v2879 = vpop.permute.xlu0 %2878
  %2880 = vrot.lane.b32.xlu0 %v1110, 42
  %v2881 = vpop.permute.xlu0 %2880
  %2882 = vrot.lane.b32.xlu0 %v1111, 42
  %v2883 = vpop.permute.xlu0 %2882
  %2884 = vrot.lane.b32.xlu0 %v1112, 42
  %v2885 = vpop.permute.xlu0 %2884
  %2886 = vrot.lane.b32.xlu0 %v1113, 42
  %v2887 = vpop.permute.xlu0 %2886
  %2888 = vrot.lane.b32.xlu0 %v1114, 42
  %v2889 = vpop.permute.xlu0 %2888
  %2890 = vrot.lane.b32.xlu0 %v1115, 42
  %v2891 = vpop.permute.xlu0 %2890
  %2892 = vrot.lane.b32.xlu0 %v1116, 42
  %v2893 = vpop.permute.xlu0 %2892
  %2894 = vrot.lane.b32.xlu0 %v1117, 42
  %v2895 = vpop.permute.xlu0 %2894
  %2896 = vrot.lane.b32.xlu0 %v1118, 42
  %v2897 = vpop.permute.xlu0 %2896
  %2898 = vrot.lane.b32.xlu0 %v1119, 42
  %v2899 = vpop.permute.xlu0 %2898
  %2900 = vrot.lane.b32.xlu0 %v1120, 42
  %v2901 = vpop.permute.xlu0 %2900
  %2902 = vrot.lane.b32.xlu0 %v1121, 42
  %v2903 = vpop.permute.xlu0 %2902
  %2904 = vrot.lane.b32.xlu0 %v1122, 42
  %v2905 = vpop.permute.xlu0 %2904
  %2906 = vrot.lane.b32.xlu0 %v1123, 42
  %v2907 = vpop.permute.xlu0 %2906
  %2908 = vrot.lane.b32.xlu0 %v1124, 42
  %v2909 = vpop.permute.xlu0 %2908
  %2910 = vrot.lane.b32.xlu0 %v1125, 42
  %v2911 = vpop.permute.xlu0 %2910
  %2912 = vrot.lane.b32.xlu0 %v1126, 42
  %v2913 = vpop.permute.xlu0 %2912
  %2914 = vrot.lane.b32.xlu0 %v1127, 42
  %v2915 = vpop.permute.xlu0 %2914
  %2916 = vrot.lane.b32.xlu0 %v1128, 42
  %v2917 = vpop.permute.xlu0 %2916
  %2918 = vrot.lane.b32.xlu0 %v1129, 42
  %v2919 = vpop.permute.xlu0 %2918
  %2920 = vrot.lane.b32.xlu0 %v1130, 42
  %v2921 = vpop.permute.xlu0 %2920
  %2922 = vrot.lane.b32.xlu0 %v1131, 42
  %v2923 = vpop.permute.xlu0 %2922
  %3052 = vrot.lane.b32.xlu0 %v1132, 48
  %v3053 = vpop.permute.xlu0 %3052
  %3054 = vrot.lane.b32.xlu0 %v1133, 48
  %v3055 = vpop.permute.xlu0 %3054
  %3056 = vrot.lane.b32.xlu0 %v1134, 48
  %v3057 = vpop.permute.xlu0 %3056
  %3058 = vrot.lane.b32.xlu0 %v1135, 48
  %v3059 = vpop.permute.xlu0 %3058
  %3060 = vrot.lane.b32.xlu0 %v1136, 48
  %v3061 = vpop.permute.xlu0 %3060
  %3062 = vrot.lane.b32.xlu0 %v1137, 48
  %v3063 = vpop.permute.xlu0 %3062
  %3064 = vrot.lane.b32.xlu0 %v1138, 48
  %v3065 = vpop.permute.xlu0 %3064
  %3066 = vrot.lane.b32.xlu0 %v1139, 48
  %v3067 = vpop.permute.xlu0 %3066
  %3068 = vrot.lane.b32.xlu0 %v1140, 48
  %v3069 = vpop.permute.xlu0 %3068
  %3070 = vrot.lane.b32.xlu0 %v1141, 48
  %v3071 = vpop.permute.xlu0 %3070
  %3072 = vrot.lane.b32.xlu0 %v1142, 48
  %v3073 = vpop.permute.xlu0 %3072
  %3074 = vrot.lane.b32.xlu0 %v1143, 48
  %v3075 = vpop.permute.xlu0 %3074
  %3076 = vrot.lane.b32.xlu0 %v1144, 48
  %v3077 = vpop.permute.xlu0 %3076
  %3078 = vrot.lane.b32.xlu0 %v1145, 48
  %v3079 = vpop.permute.xlu0 %3078
  %3080 = vrot.lane.b32.xlu0 %v1146, 48
  %v3081 = vpop.permute.xlu0 %3080
  %3082 = vrot.lane.b32.xlu0 %v1147, 48
  %v3083 = vpop.permute.xlu0 %3082
  %3084 = vrot.lane.b32.xlu0 %v1148, 48
  %v3085 = vpop.permute.xlu0 %3084
  %3086 = vrot.lane.b32.xlu0 %v1149, 48
  %v3087 = vpop.permute.xlu0 %3086
  %3088 = vrot.lane.b32.xlu0 %v1150, 48
  %v3089 = vpop.permute.xlu0 %3088
  %3090 = vrot.lane.b32.xlu0 %v1151, 48
  %v3091 = vpop.permute.xlu0 %3090
  %3092 = vrot.lane.b32.xlu0 %v1152, 48
  %v3093 = vpop.permute.xlu0 %3092
  %3094 = vrot.lane.b32.xlu0 %v1153, 48
  %v3095 = vpop.permute.xlu0 %3094
  %3096 = vrot.lane.b32.xlu0 %v1154, 48
  %v3097 = vpop.permute.xlu0 %3096
  %3098 = vrot.lane.b32.xlu0 %v1155, 48
  %v3099 = vpop.permute.xlu0 %3098
  %3100 = vrot.lane.b32.xlu0 %v1156, 48
  %v3101 = vpop.permute.xlu0 %3100
  %3102 = vrot.lane.b32.xlu0 %v1157, 48
  %v3103 = vpop.permute.xlu0 %3102
  %3104 = vrot.lane.b32.xlu0 %v1158, 48
  %v3105 = vpop.permute.xlu0 %3104
  %3106 = vrot.lane.b32.xlu0 %v1159, 48
  %v3107 = vpop.permute.xlu0 %3106
  %3108 = vrot.lane.b32.xlu0 %v1160, 48
  %v3109 = vpop.permute.xlu0 %3108
  %3110 = vrot.lane.b32.xlu0 %v1161, 48
  %v3111 = vpop.permute.xlu0 %3110
  %3112 = vrot.lane.b32.xlu0 %v1162, 48
  %v3113 = vpop.permute.xlu0 %3112
  %3114 = vrot.lane.b32.xlu0 %v1163, 48
  %v3115 = vpop.permute.xlu0 %3114
  %3116 = vrot.lane.b32.xlu0 %v1164, 48
  %v3117 = vpop.permute.xlu0 %3116
  %3118 = vrot.lane.b32.xlu0 %v1165, 48
  %v3119 = vpop.permute.xlu0 %3118
  %3120 = vrot.lane.b32.xlu0 %v1166, 48
  %v3121 = vpop.permute.xlu0 %3120
  %3122 = vrot.lane.b32.xlu0 %v1167, 48
  %v3123 = vpop.permute.xlu0 %3122
  %3124 = vrot.lane.b32.xlu0 %v1168, 48
  %v3125 = vpop.permute.xlu0 %3124
  %3126 = vrot.lane.b32.xlu0 %v1169, 48
  %v3127 = vpop.permute.xlu0 %3126
  %3128 = vrot.lane.b32.xlu0 %v1170, 48
  %v3129 = vpop.permute.xlu0 %3128
  %3130 = vrot.lane.b32.xlu0 %v1171, 48
  %v3131 = vpop.permute.xlu0 %3130
  %3132 = vrot.lane.b32.xlu0 %v1172, 48
  %v3133 = vpop.permute.xlu0 %3132
  %3134 = vrot.lane.b32.xlu0 %v1173, 48
  %v3135 = vpop.permute.xlu0 %3134
  %3136 = vrot.lane.b32.xlu0 %v1174, 48
  %v3137 = vpop.permute.xlu0 %3136
  %3138 = vrot.lane.b32.xlu0 %v1175, 48
  %v3139 = vpop.permute.xlu0 %3138
  %3140 = vrot.lane.b32.xlu0 %v1176, 48
  %v3141 = vpop.permute.xlu0 %3140
  %3142 = vrot.lane.b32.xlu0 %v1177, 48
  %v3143 = vpop.permute.xlu0 %3142
  %3144 = vrot.lane.b32.xlu0 %v1178, 48
  %v3145 = vpop.permute.xlu0 %3144
  %3146 = vrot.lane.b32.xlu0 %v1179, 48
  %v3147 = vpop.permute.xlu0 %3146
  %3148 = vrot.lane.b32.xlu0 %v1180, 48
  %v3149 = vpop.permute.xlu0 %3148
  %3150 = vrot.lane.b32.xlu0 %v1181, 48
  %v3151 = vpop.permute.xlu0 %3150
  %3152 = vrot.lane.b32.xlu0 %v1182, 48
  %v3153 = vpop.permute.xlu0 %3152
  %3154 = vrot.lane.b32.xlu0 %v1183, 48
  %v3155 = vpop.permute.xlu0 %3154
  %3156 = vrot.lane.b32.xlu0 %v1184, 48
  %v3157 = vpop.permute.xlu0 %3156
  %3158 = vrot.lane.b32.xlu0 %v1185, 48
  %v3159 = vpop.permute.xlu0 %3158
  %3160 = vrot.lane.b32.xlu0 %v1186, 48
  %v3161 = vpop.permute.xlu0 %3160
  %3162 = vrot.lane.b32.xlu0 %v1187, 48
  %v3163 = vpop.permute.xlu0 %3162
  %3164 = vrot.lane.b32.xlu0 %v1188, 48
  %v3165 = vpop.permute.xlu0 %3164
  %3166 = vrot.lane.b32.xlu0 %v1189, 48
  %v3167 = vpop.permute.xlu0 %3166
  %3168 = vrot.lane.b32.xlu0 %v1190, 48
  %v3169 = vpop.permute.xlu0 %3168
  %3170 = vrot.lane.b32.xlu0 %v1191, 48
  %v3171 = vpop.permute.xlu0 %3170
  %3172 = vrot.lane.b32.xlu0 %v1192, 48
  %v3173 = vpop.permute.xlu0 %3172
  %3174 = vrot.lane.b32.xlu0 %v1193, 48
  %v3175 = vpop.permute.xlu0 %3174
  %3176 = vrot.lane.b32.xlu0 %v1194, 48
  %v3177 = vpop.permute.xlu0 %3176
  %3178 = vrot.lane.b32.xlu0 %v1195, 48
  %v3179 = vpop.permute.xlu0 %3178
  %v3244 = vsel %vm81, %v619, %v1261
  %v3245 = vsel %vm81, %v620, %v1263
  %v3246 = vsel %vm81, %v621, %v1265
  %v3247 = vsel %vm81, %v622, %v1267
  %v3248 = vsel %vm81, %v623, %v1269
  %v3249 = vsel %vm81, %v624, %v1271
  %v3250 = vsel %vm81, %v625, %v1273
  %v3251 = vsel %vm81, %v626, %v1275
  %v3252 = vsel %vm81, %v627, %v1277
  %v3253 = vsel %vm81, %v628, %v1279
  %v3254 = vsel %vm81, %v629, %v1281
  %v3255 = vsel %vm81, %v630, %v1283
  %v3256 = vsel %vm81, %v631, %v1285
  %v3257 = vsel %vm81, %v632, %v1287
  %v3258 = vsel %vm81, %v633, %v1289
  %v3259 = vsel %vm81, %v634, %v1291
  %v3260 = vsel %vm81, %v635, %v1293
  %v3261 = vsel %vm81, %v636, %v1295
  %v3262 = vsel %vm81, %v637, %v1297
  %v3263 = vsel %vm81, %v638, %v1299
  %v3264 = vsel %vm81, %v639, %v1301
  %v3265 = vsel %vm81, %v640, %v1303
  %v3266 = vsel %vm81, %v641, %v1305
  %v3267 = vsel %vm81, %v642, %v1307
  %v3268 = vsel %vm81, %v643, %v1309
  %v3269 = vsel %vm81, %v644, %v1311
  %v3270 = vsel %vm81, %v645, %v1313
  %v3271 = vsel %vm81, %v646, %v1315
  %v3272 = vsel %vm81, %v647, %v1317
  %v3273 = vsel %vm81, %v648, %v1319
  %v3274 = vsel %vm81, %v649, %v1321
  %v3275 = vsel %vm81, %v650, %v1323
  %v3276 = vsel %vm81, %v651, %v1325
  %v3277 = vsel %vm81, %v652, %v1327
  %v3278 = vsel %vm81, %v653, %v1329
  %v3279 = vsel %vm81, %v654, %v1331
  %v3280 = vsel %vm81, %v655, %v1333
  %v3281 = vsel %vm81, %v656, %v1335
  %v3282 = vsel %vm81, %v657, %v1337
  %v3283 = vsel %vm81, %v658, %v1339
  %v3284 = vsel %vm81, %v659, %v1341
  %v3285 = vsel %vm81, %v660, %v1343
  %v3286 = vsel %vm81, %v661, %v1345
  %v3287 = vsel %vm81, %v662, %v1347
  %v3288 = vsel %vm81, %v663, %v1349
  %v3289 = vsel %vm81, %v664, %v1351
  %v3290 = vsel %vm81, %v665, %v1353
  %v3291 = vsel %vm81, %v666, %v1355
  %v3292 = vsel %vm81, %v667, %v1357
  %v3293 = vsel %vm81, %v668, %v1359
  %v3294 = vsel %vm81, %v669, %v1361
  %v3295 = vsel %vm81, %v670, %v1363
  %v3296 = vsel %vm81, %v671, %v1365
  %v3297 = vsel %vm81, %v672, %v1367
  %v3298 = vsel %vm81, %v673, %v1369
  %v3299 = vsel %vm81, %v674, %v1371
  %v3300 = vsel %vm81, %v675, %v1373
  %v3301 = vsel %vm81, %v676, %v1375
  %v3302 = vsel %vm81, %v677, %v1377
  %v3303 = vsel %vm81, %v678, %v1379
  %v3304 = vsel %vm81, %v679, %v1381
  %v3305 = vsel %vm81, %v680, %v1383
  %v3306 = vsel %vm81, %v681, %v1385
  %v3307 = vsel %vm81, %v682, %v1387
  %vm3308 = vcmask 97280
  %v3309 = vsel %vm3308, %v3244, %v1517
  %v3310 = vsel %vm3308, %v3245, %v1519
  %v3311 = vsel %vm3308, %v3246, %v1521
  %v3312 = vsel %vm3308, %v3247, %v1523
  %v3313 = vsel %vm3308, %v3248, %v1525
  %v3314 = vsel %vm3308, %v3249, %v1527
  %v3315 = vsel %vm3308, %v3250, %v1529
  %v3316 = vsel %vm3308, %v3251, %v1531
  %v3317 = vsel %vm3308, %v3252, %v1533
  %v3318 = vsel %vm3308, %v3253, %v1535
  %v3319 = vsel %vm3308, %v3254, %v1537
  %v3320 = vsel %vm3308, %v3255, %v1539
  %v3321 = vsel %vm3308, %v3256, %v1541
  %v3322 = vsel %vm3308, %v3257, %v1543
  %v3323 = vsel %vm3308, %v3258, %v1545
  %v3324 = vsel %vm3308, %v3259, %v1547
  %v3325 = vsel %vm3308, %v3260, %v1549
  %v3326 = vsel %vm3308, %v3261, %v1551
  %v3327 = vsel %vm3308, %v3262, %v1553
  %v3328 = vsel %vm3308, %v3263, %v1555
  %v3329 = vsel %vm3308, %v3264, %v1557
  %v3330 = vsel %vm3308, %v3265, %v1559
  %v3331 = vsel %vm3308, %v3266, %v1561
  %v3332 = vsel %vm3308, %v3267, %v1563
  %v3333 = vsel %vm3308, %v3268, %v1565
  %v3334 = vsel %vm3308, %v3269, %v1567
  %v3335 = vsel %vm3308, %v3270, %v1569
  %v3336 = vsel %vm3308, %v3271, %v1571
  %v3337 = vsel %vm3308, %v3272, %v1573
  %v3338 = vsel %vm3308, %v3273, %v1575
  %v3339 = vsel %vm3308, %v3274, %v1577
  %v3340 = vsel %vm3308, %v3275, %v1579
  %v3341 = vsel %vm3308, %v3276, %v1581
  %v3342 = vsel %vm3308, %v3277, %v1583
  %v3343 = vsel %vm3308, %v3278, %v1585
  %v3344 = vsel %vm3308, %v3279, %v1587
  %v3345 = vsel %vm3308, %v3280, %v1589
  %v3346 = vsel %vm3308, %v3281, %v1591
  %v3347 = vsel %vm3308, %v3282, %v1593
  %v3348 = vsel %vm3308, %v3283, %v1595
  %v3349 = vsel %vm3308, %v3284, %v1597
  %v3350 = vsel %vm3308, %v3285, %v1599
  %v3351 = vsel %vm3308, %v3286, %v1601
  %v3352 = vsel %vm3308, %v3287, %v1603
  %v3353 = vsel %vm3308, %v3288, %v1605
  %v3354 = vsel %vm3308, %v3289, %v1607
  %v3355 = vsel %vm3308, %v3290, %v1609
  %v3356 = vsel %vm3308, %v3291, %v1611
  %v3357 = vsel %vm3308, %v3292, %v1613
  %v3358 = vsel %vm3308, %v3293, %v1615
  %v3359 = vsel %vm3308, %v3294, %v1617
  %v3360 = vsel %vm3308, %v3295, %v1619
  %v3361 = vsel %vm3308, %v3296, %v1621
  %v3362 = vsel %vm3308, %v3297, %v1623
  %v3363 = vsel %vm3308, %v3298, %v1625
  %v3364 = vsel %vm3308, %v3299, %v1627
  %v3365 = vsel %vm3308, %v3300, %v1629
  %v3366 = vsel %vm3308, %v3301, %v1631
  %v3367 = vsel %vm3308, %v3302, %v1633
  %v3368 = vsel %vm3308, %v3303, %v1635
  %v3369 = vsel %vm3308, %v3304, %v1637
  %v3370 = vsel %vm3308, %v3305, %v1639
  %v3371 = vsel %vm3308, %v3306, %v1641
  %v3372 = vsel %vm3308, %v3307, %v1643
  %vm3373 = vcmask 146432
  %v3374 = vsel %vm3373, %v3309, %v1773
  %v3375 = vsel %vm3373, %v3310, %v1775
  %v3376 = vsel %vm3373, %v3311, %v1777
  %v3377 = vsel %vm3373, %v3312, %v1779
  %v3378 = vsel %vm3373, %v3313, %v1781
  %v3379 = vsel %vm3373, %v3314, %v1783
  %v3380 = vsel %vm3373, %v3315, %v1785
  %v3381 = vsel %vm3373, %v3316, %v1787
  %v3382 = vsel %vm3373, %v3317, %v1789
  %v3383 = vsel %vm3373, %v3318, %v1791
  %v3384 = vsel %vm3373, %v3319, %v1793
  %v3385 = vsel %vm3373, %v3320, %v1795
  %v3386 = vsel %vm3373, %v3321, %v1797
  %v3387 = vsel %vm3373, %v3322, %v1799
  %v3388 = vsel %vm3373, %v3323, %v1801
  %v3389 = vsel %vm3373, %v3324, %v1803
  %v3390 = vsel %vm3373, %v3325, %v1805
  %v3391 = vsel %vm3373, %v3326, %v1807
  %v3392 = vsel %vm3373, %v3327, %v1809
  %v3393 = vsel %vm3373, %v3328, %v1811
  %v3394 = vsel %vm3373, %v3329, %v1813
  %v3395 = vsel %vm3373, %v3330, %v1815
  %v3396 = vsel %vm3373, %v3331, %v1817
  %v3397 = vsel %vm3373, %v3332, %v1819
  %v3398 = vsel %vm3373, %v3333, %v1821
  %v3399 = vsel %vm3373, %v3334, %v1823
  %v3400 = vsel %vm3373, %v3335, %v1825
  %v3401 = vsel %vm3373, %v3336, %v1827
  %v3402 = vsel %vm3373, %v3337, %v1829
  %v3403 = vsel %vm3373, %v3338, %v1831
  %v3404 = vsel %vm3373, %v3339, %v1833
  %v3405 = vsel %vm3373, %v3340, %v1835
  %v3406 = vsel %vm3373, %v3341, %v1837
  %v3407 = vsel %vm3373, %v3342, %v1839
  %v3408 = vsel %vm3373, %v3343, %v1841
  %v3409 = vsel %vm3373, %v3344, %v1843
  %v3410 = vsel %vm3373, %v3345, %v1845
  %v3411 = vsel %vm3373, %v3346, %v1847
  %v3412 = vsel %vm3373, %v3347, %v1849
  %v3413 = vsel %vm3373, %v3348, %v1851
  %v3414 = vsel %vm3373, %v3349, %v1853
  %v3415 = vsel %vm3373, %v3350, %v1855
  %v3416 = vsel %vm3373, %v3351, %v1857
  %v3417 = vsel %vm3373, %v3352, %v1859
  %v3418 = vsel %vm3373, %v3353, %v1861
  %v3419 = vsel %vm3373, %v3354, %v1863
  %v3420 = vsel %vm3373, %v3355, %v1865
  %v3421 = vsel %vm3373, %v3356, %v1867
  %v3422 = vsel %vm3373, %v3357, %v1869
  %v3423 = vsel %vm3373, %v3358, %v1871
  %v3424 = vsel %vm3373, %v3359, %v1873
  %v3425 = vsel %vm3373, %v3360, %v1875
  %v3426 = vsel %vm3373, %v3361, %v1877
  %v3427 = vsel %vm3373, %v3362, %v1879
  %v3428 = vsel %vm3373, %v3363, %v1881
  %v3429 = vsel %vm3373, %v3364, %v1883
  %v3430 = vsel %vm3373, %v3365, %v1885
  %v3431 = vsel %vm3373, %v3366, %v1887
  %v3432 = vsel %vm3373, %v3367, %v1889
  %v3433 = vsel %vm3373, %v3368, %v1891
  %v3434 = vsel %vm3373, %v3369, %v1893
  %v3435 = vsel %vm3373, %v3370, %v1895
  %v3436 = vsel %vm3373, %v3371, %v1897
  %v3437 = vsel %vm3373, %v3372, %v1899
  %vm3438 = vcmask 195584
  %v3439 = vsel %vm3438, %v3374, %v2029
  %v3440 = vsel %vm3438, %v3375, %v2031
  %v3441 = vsel %vm3438, %v3376, %v2033
  %v3442 = vsel %vm3438, %v3377, %v2035
  %v3443 = vsel %vm3438, %v3378, %v2037
  %v3444 = vsel %vm3438, %v3379, %v2039
  %v3445 = vsel %vm3438, %v3380, %v2041
  %v3446 = vsel %vm3438, %v3381, %v2043
  %v3447 = vsel %vm3438, %v3382, %v2045
  %v3448 = vsel %vm3438, %v3383, %v2047
  %v3449 = vsel %vm3438, %v3384, %v2049
  %v3450 = vsel %vm3438, %v3385, %v2051
  %v3451 = vsel %vm3438, %v3386, %v2053
  %v3452 = vsel %vm3438, %v3387, %v2055
  %v3453 = vsel %vm3438, %v3388, %v2057
  %v3454 = vsel %vm3438, %v3389, %v2059
  %v3455 = vsel %vm3438, %v3390, %v2061
  %v3456 = vsel %vm3438, %v3391, %v2063
  %v3457 = vsel %vm3438, %v3392, %v2065
  %v3458 = vsel %vm3438, %v3393, %v2067
  %v3459 = vsel %vm3438, %v3394, %v2069
  %v3460 = vsel %vm3438, %v3395, %v2071
  %v3461 = vsel %vm3438, %v3396, %v2073
  %v3462 = vsel %vm3438, %v3397, %v2075
  %v3463 = vsel %vm3438, %v3398, %v2077
  %v3464 = vsel %vm3438, %v3399, %v2079
  %v3465 = vsel %vm3438, %v3400, %v2081
  %v3466 = vsel %vm3438, %v3401, %v2083
  %v3467 = vsel %vm3438, %v3402, %v2085
  %v3468 = vsel %vm3438, %v3403, %v2087
  %v3469 = vsel %vm3438, %v3404, %v2089
  %v3470 = vsel %vm3438, %v3405, %v2091
  %v3471 = vsel %vm3438, %v3406, %v2093
  %v3472 = vsel %vm3438, %v3407, %v2095
  %v3473 = vsel %vm3438, %v3408, %v2097
  %v3474 = vsel %vm3438, %v3409, %v2099
  %v3475 = vsel %vm3438, %v3410, %v2101
  %v3476 = vsel %vm3438, %v3411, %v2103
  %v3477 = vsel %vm3438, %v3412, %v2105
  %v3478 = vsel %vm3438, %v3413, %v2107
  %v3479 = vsel %vm3438, %v3414, %v2109
  %v3480 = vsel %vm3438, %v3415, %v2111
  %v3481 = vsel %vm3438, %v3416, %v2113
  %v3482 = vsel %vm3438, %v3417, %v2115
  %v3483 = vsel %vm3438, %v3418, %v2117
  %v3484 = vsel %vm3438, %v3419, %v2119
  %v3485 = vsel %vm3438, %v3420, %v2121
  %v3486 = vsel %vm3438, %v3421, %v2123
  %v3487 = vsel %vm3438, %v3422, %v2125
  %v3488 = vsel %vm3438, %v3423, %v2127
  %v3489 = vsel %vm3438, %v3424, %v2129
  %v3490 = vsel %vm3438, %v3425, %v2131
  %v3491 = vsel %vm3438, %v3426, %v2133
  %v3492 = vsel %vm3438, %v3427, %v2135
  %v3493 = vsel %vm3438, %v3428, %v2137
  %v3494 = vsel %vm3438, %v3429, %v2139
  %v3495 = vsel %vm3438, %v3430, %v2141
  %v3496 = vsel %vm3438, %v3431, %v2143
  %v3497 = vsel %vm3438, %v3432, %v2145
  %v3498 = vsel %vm3438, %v3433, %v2147
  %v3499 = vsel %vm3438, %v3434, %v2149
  %v3500 = vsel %vm3438, %v3435, %v2151
  %v3501 = vsel %vm3438, %v3436, %v2153
  %v3502 = vsel %vm3438, %v3437, %v2155
  %vm3503 = vcmask 244736
  %v3504 = vsel %vm3503, %v3439, %v2285
  %v3505 = vsel %vm3503, %v3440, %v2287
  %v3506 = vsel %vm3503, %v3441, %v2289
  %v3507 = vsel %vm3503, %v3442, %v2291
  %v3508 = vsel %vm3503, %v3443, %v2293
  %v3509 = vsel %vm3503, %v3444, %v2295
  %v3510 = vsel %vm3503, %v3445, %v2297
  %v3511 = vsel %vm3503, %v3446, %v2299
  %v3512 = vsel %vm3503, %v3447, %v2301
  %v3513 = vsel %vm3503, %v3448, %v2303
  %v3514 = vsel %vm3503, %v3449, %v2305
  %v3515 = vsel %vm3503, %v3450, %v2307
  %v3516 = vsel %vm3503, %v3451, %v2309
  %v3517 = vsel %vm3503, %v3452, %v2311
  %v3518 = vsel %vm3503, %v3453, %v2313
  %v3519 = vsel %vm3503, %v3454, %v2315
  %v3520 = vsel %vm3503, %v3455, %v2317
  %v3521 = vsel %vm3503, %v3456, %v2319
  %v3522 = vsel %vm3503, %v3457, %v2321
  %v3523 = vsel %vm3503, %v3458, %v2323
  %v3524 = vsel %vm3503, %v3459, %v2325
  %v3525 = vsel %vm3503, %v3460, %v2327
  %v3526 = vsel %vm3503, %v3461, %v2329
  %v3527 = vsel %vm3503, %v3462, %v2331
  %v3528 = vsel %vm3503, %v3463, %v2333
  %v3529 = vsel %vm3503, %v3464, %v2335
  %v3530 = vsel %vm3503, %v3465, %v2337
  %v3531 = vsel %vm3503, %v3466, %v2339
  %v3532 = vsel %vm3503, %v3467, %v2341
  %v3533 = vsel %vm3503, %v3468, %v2343
  %v3534 = vsel %vm3503, %v3469, %v2345
  %v3535 = vsel %vm3503, %v3470, %v2347
  %v3536 = vsel %vm3503, %v3471, %v2349
  %v3537 = vsel %vm3503, %v3472, %v2351
  %v3538 = vsel %vm3503, %v3473, %v2353
  %v3539 = vsel %vm3503, %v3474, %v2355
  %v3540 = vsel %vm3503, %v3475, %v2357
  %v3541 = vsel %vm3503, %v3476, %v2359
  %v3542 = vsel %vm3503, %v3477, %v2361
  %v3543 = vsel %vm3503, %v3478, %v2363
  %v3544 = vsel %vm3503, %v3479, %v2365
  %v3545 = vsel %vm3503, %v3480, %v2367
  %v3546 = vsel %vm3503, %v3481, %v2369
  %v3547 = vsel %vm3503, %v3482, %v2371
  %v3548 = vsel %vm3503, %v3483, %v2373
  %v3549 = vsel %vm3503, %v3484, %v2375
  %v3550 = vsel %vm3503, %v3485, %v2377
  %v3551 = vsel %vm3503, %v3486, %v2379
  %v3552 = vsel %vm3503, %v3487, %v2381
  %v3553 = vsel %vm3503, %v3488, %v2383
  %v3554 = vsel %vm3503, %v3489, %v2385
  %v3555 = vsel %vm3503, %v3490, %v2387
  %v3556 = vsel %vm3503, %v3491, %v2389
  %v3557 = vsel %vm3503, %v3492, %v2391
  %v3558 = vsel %vm3503, %v3493, %v2393
  %v3559 = vsel %vm3503, %v3494, %v2395
  %v3560 = vsel %vm3503, %v3495, %v2397
  %v3561 = vsel %vm3503, %v3496, %v2399
  %v3562 = vsel %vm3503, %v3497, %v2401
  %v3563 = vsel %vm3503, %v3498, %v2403
  %v3564 = vsel %vm3503, %v3499, %v2405
  %v3565 = vsel %vm3503, %v3500, %v2407
  %v3566 = vsel %vm3503, %v3501, %v2409
  %v3567 = vsel %vm3503, %v3502, %v2411
  %vm3568 = vcmask 293888
  %v3569 = vsel %vm3568, %v3504, %v2541
  %v3570 = vsel %vm3568, %v3505, %v2543
  %v3571 = vsel %vm3568, %v3506, %v2545
  %v3572 = vsel %vm3568, %v3507, %v2547
  %v3573 = vsel %vm3568, %v3508, %v2549
  %v3574 = vsel %vm3568, %v3509, %v2551
  %v3575 = vsel %vm3568, %v3510, %v2553
  %v3576 = vsel %vm3568, %v3511, %v2555
  %v3577 = vsel %vm3568, %v3512, %v2557
  %v3578 = vsel %vm3568, %v3513, %v2559
  %v3579 = vsel %vm3568, %v3514, %v2561
  %v3580 = vsel %vm3568, %v3515, %v2563
  %v3581 = vsel %vm3568, %v3516, %v2565
  %v3582 = vsel %vm3568, %v3517, %v2567
  %v3583 = vsel %vm3568, %v3518, %v2569
  %v3584 = vsel %vm3568, %v3519, %v2571
  %v3585 = vsel %vm3568, %v3520, %v2573
  %v3586 = vsel %vm3568, %v3521, %v2575
  %v3587 = vsel %vm3568, %v3522, %v2577
  %v3588 = vsel %vm3568, %v3523, %v2579
  %v3589 = vsel %vm3568, %v3524, %v2581
  %v3590 = vsel %vm3568, %v3525, %v2583
  %v3591 = vsel %vm3568, %v3526, %v2585
  %v3592 = vsel %vm3568, %v3527, %v2587
  %v3593 = vsel %vm3568, %v3528, %v2589
  %v3594 = vsel %vm3568, %v3529, %v2591
  %v3595 = vsel %vm3568, %v3530, %v2593
  %v3596 = vsel %vm3568, %v3531, %v2595
  %v3597 = vsel %vm3568, %v3532, %v2597
  %v3598 = vsel %vm3568, %v3533, %v2599
  %v3599 = vsel %vm3568, %v3534, %v2601
  %v3600 = vsel %vm3568, %v3535, %v2603
  %v3601 = vsel %vm3568, %v3536, %v2605
  %v3602 = vsel %vm3568, %v3537, %v2607
  %v3603 = vsel %vm3568, %v3538, %v2609
  %v3604 = vsel %vm3568, %v3539, %v2611
  %v3605 = vsel %vm3568, %v3540, %v2613
  %v3606 = vsel %vm3568, %v3541, %v2615
  %v3607 = vsel %vm3568, %v3542, %v2617
  %v3608 = vsel %vm3568, %v3543, %v2619
  %v3609 = vsel %vm3568, %v3544, %v2621
  %v3610 = vsel %vm3568, %v3545, %v2623
  %v3611 = vsel %vm3568, %v3546, %v2625
  %v3612 = vsel %vm3568, %v3547, %v2627
  %v3613 = vsel %vm3568, %v3548, %v2629
  %v3614 = vsel %vm3568, %v3549, %v2631
  %v3615 = vsel %vm3568, %v3550, %v2633
  %v3616 = vsel %vm3568, %v3551, %v2635
  %v3617 = vsel %vm3568, %v3552, %v2637
  %v3618 = vsel %vm3568, %v3553, %v2639
  %v3619 = vsel %vm3568, %v3554, %v2641
  %v3620 = vsel %vm3568, %v3555, %v2643
  %v3621 = vsel %vm3568, %v3556, %v2645
  %v3622 = vsel %vm3568, %v3557, %v2647
  %v3623 = vsel %vm3568, %v3558, %v2649
  %v3624 = vsel %vm3568, %v3559, %v2651
  %v3625 = vsel %vm3568, %v3560, %v2653
  %v3626 = vsel %vm3568, %v3561, %v2655
  %v3627 = vsel %vm3568, %v3562, %v2657
  %v3628 = vsel %vm3568, %v3563, %v2659
  %v3629 = vsel %vm3568, %v3564, %v2661
  %v3630 = vsel %vm3568, %v3565, %v2663
  %v3631 = vsel %vm3568, %v3566, %v2665
  %v3632 = vsel %vm3568, %v3567, %v2667
  %vm3633 = vcmask 343040
  %v3634 = vsel %vm3633, %v3569, %v2797
  %v3635 = vsel %vm3633, %v3570, %v2799
  %v3636 = vsel %vm3633, %v3571, %v2801
  %v3637 = vsel %vm3633, %v3572, %v2803
  %v3638 = vsel %vm3633, %v3573, %v2805
  %v3639 = vsel %vm3633, %v3574, %v2807
  %v3640 = vsel %vm3633, %v3575, %v2809
  %v3641 = vsel %vm3633, %v3576, %v2811
  %v3642 = vsel %vm3633, %v3577, %v2813
  %v3643 = vsel %vm3633, %v3578, %v2815
  %v3644 = vsel %vm3633, %v3579, %v2817
  %v3645 = vsel %vm3633, %v3580, %v2819
  %v3646 = vsel %vm3633, %v3581, %v2821
  %v3647 = vsel %vm3633, %v3582, %v2823
  %v3648 = vsel %vm3633, %v3583, %v2825
  %v3649 = vsel %vm3633, %v3584, %v2827
  %v3650 = vsel %vm3633, %v3585, %v2829
  %v3651 = vsel %vm3633, %v3586, %v2831
  %v3652 = vsel %vm3633, %v3587, %v2833
  %v3653 = vsel %vm3633, %v3588, %v2835
  %v3654 = vsel %vm3633, %v3589, %v2837
  %v3655 = vsel %vm3633, %v3590, %v2839
  %v3656 = vsel %vm3633, %v3591, %v2841
  %v3657 = vsel %vm3633, %v3592, %v2843
  %v3658 = vsel %vm3633, %v3593, %v2845
  %v3659 = vsel %vm3633, %v3594, %v2847
  %v3660 = vsel %vm3633, %v3595, %v2849
  %v3661 = vsel %vm3633, %v3596, %v2851
  %v3662 = vsel %vm3633, %v3597, %v2853
  %v3663 = vsel %vm3633, %v3598, %v2855
  %v3664 = vsel %vm3633, %v3599, %v2857
  %v3665 = vsel %vm3633, %v3600, %v2859
  %v3666 = vsel %vm3633, %v3601, %v2861
  %v3667 = vsel %vm3633, %v3602, %v2863
  %v3668 = vsel %vm3633, %v3603, %v2865
  %v3669 = vsel %vm3633, %v3604, %v2867
  %v3670 = vsel %vm3633, %v3605, %v2869
  %v3671 = vsel %vm3633, %v3606, %v2871
  %v3672 = vsel %vm3633, %v3607, %v2873
  %v3673 = vsel %vm3633, %v3608, %v2875
  %v3674 = vsel %vm3633, %v3609, %v2877
  %v3675 = vsel %vm3633, %v3610, %v2879
  %v3676 = vsel %vm3633, %v3611, %v2881
  %v3677 = vsel %vm3633, %v3612, %v2883
  %v3678 = vsel %vm3633, %v3613, %v2885
  %v3679 = vsel %vm3633, %v3614, %v2887
  %v3680 = vsel %vm3633, %v3615, %v2889
  %v3681 = vsel %vm3633, %v3616, %v2891
  %v3682 = vsel %vm3633, %v3617, %v2893
  %v3683 = vsel %vm3633, %v3618, %v2895
  %v3684 = vsel %vm3633, %v3619, %v2897
  %v3685 = vsel %vm3633, %v3620, %v2899
  %v3686 = vsel %vm3633, %v3621, %v2901
  %v3687 = vsel %vm3633, %v3622, %v2903
  %v3688 = vsel %vm3633, %v3623, %v2905
  %v3689 = vsel %vm3633, %v3624, %v2907
  %v3690 = vsel %vm3633, %v3625, %v2909
  %v3691 = vsel %vm3633, %v3626, %v2911
  %v3692 = vsel %vm3633, %v3627, %v2913
  %v3693 = vsel %vm3633, %v3628, %v2915
  %v3694 = vsel %vm3633, %v3629, %v2917
  %v3695 = vsel %vm3633, %v3630, %v2919
  %v3696 = vsel %vm3633, %v3631, %v2921
  %v3697 = vsel %vm3633, %v3632, %v2923
  %vm3698 = vcmask 392192
  %v3699 = vsel %vm3698, %v3634, %v3053
  %v3700 = vsel %vm3698, %v3635, %v3055
  %v3701 = vsel %vm3698, %v3636, %v3057
  %v3702 = vsel %vm3698, %v3637, %v3059
  %v3703 = vsel %vm3698, %v3638, %v3061
  %v3704 = vsel %vm3698, %v3639, %v3063
  %v3705 = vsel %vm3698, %v3640, %v3065
  %v3706 = vsel %vm3698, %v3641, %v3067
  %v3707 = vsel %vm3698, %v3642, %v3069
  %v3708 = vsel %vm3698, %v3643, %v3071
  %v3709 = vsel %vm3698, %v3644, %v3073
  %v3710 = vsel %vm3698, %v3645, %v3075
  %v3711 = vsel %vm3698, %v3646, %v3077
  %v3712 = vsel %vm3698, %v3647, %v3079
  %v3713 = vsel %vm3698, %v3648, %v3081
  %v3714 = vsel %vm3698, %v3649, %v3083
  %v3715 = vsel %vm3698, %v3650, %v3085
  %v3716 = vsel %vm3698, %v3651, %v3087
  %v3717 = vsel %vm3698, %v3652, %v3089
  %v3718 = vsel %vm3698, %v3653, %v3091
  %v3719 = vsel %vm3698, %v3654, %v3093
  %v3720 = vsel %vm3698, %v3655, %v3095
  %v3721 = vsel %vm3698, %v3656, %v3097
  %v3722 = vsel %vm3698, %v3657, %v3099
  %v3723 = vsel %vm3698, %v3658, %v3101
  %v3724 = vsel %vm3698, %v3659, %v3103
  %v3725 = vsel %vm3698, %v3660, %v3105
  %v3726 = vsel %vm3698, %v3661, %v3107
  %v3727 = vsel %vm3698, %v3662, %v3109
  %v3728 = vsel %vm3698, %v3663, %v3111
  %v3729 = vsel %vm3698, %v3664, %v3113
  %v3730 = vsel %vm3698, %v3665, %v3115
  %v3731 = vsel %vm3698, %v3666, %v3117
  %v3732 = vsel %vm3698, %v3667, %v3119
  %v3733 = vsel %vm3698, %v3668, %v3121
  %v3734 = vsel %vm3698, %v3669, %v3123
  %v3735 = vsel %vm3698, %v3670, %v3125
  %v3736 = vsel %vm3698, %v3671, %v3127
  %v3737 = vsel %vm3698, %v3672, %v3129
  %v3738 = vsel %vm3698, %v3673, %v3131
  %v3739 = vsel %vm3698, %v3674, %v3133
  %v3740 = vsel %vm3698, %v3675, %v3135
  %v3741 = vsel %vm3698, %v3676, %v3137
  %v3742 = vsel %vm3698, %v3677, %v3139
  %v3743 = vsel %vm3698, %v3678, %v3141
  %v3744 = vsel %vm3698, %v3679, %v3143
  %v3745 = vsel %vm3698, %v3680, %v3145
  %v3746 = vsel %vm3698, %v3681, %v3147
  %v3747 = vsel %vm3698, %v3682, %v3149
  %v3748 = vsel %vm3698, %v3683, %v3151
  %v3749 = vsel %vm3698, %v3684, %v3153
  %v3750 = vsel %vm3698, %v3685, %v3155
  %v3751 = vsel %vm3698, %v3686, %v3157
  %v3752 = vsel %vm3698, %v3687, %v3159
  %v3753 = vsel %vm3698, %v3688, %v3161
  %v3754 = vsel %vm3698, %v3689, %v3163
  %v3755 = vsel %vm3698, %v3690, %v3165
  %v3756 = vsel %vm3698, %v3691, %v3167
  %v3757 = vsel %vm3698, %v3692, %v3169
  %v3758 = vsel %vm3698, %v3693, %v3171
  %v3759 = vsel %vm3698, %v3694, %v3173
  %v3760 = vsel %vm3698, %v3695, %v3175
  %v3761 = vsel %vm3698, %v3696, %v3177
  %v3762 = vsel %vm3698, %v3697, %v3179
  %v3763 = vpack.c.bf16 %v3700, %v3699
  %v3764 = vpack.c.bf16 %v3702, %v3701
  %v3765 = vpack.c.bf16 %v3704, %v3703
  %v3766 = vpack.c.bf16 %v3706, %v3705
  %v3767 = vpack.c.bf16 %v3708, %v3707
  %v3768 = vpack.c.bf16 %v3710, %v3709
  %v3769 = vpack.c.bf16 %v3712, %v3711
  %v3770 = vpack.c.bf16 %v3714, %v3713
  %v3771 = vpack.c.bf16 %v3716, %v3715
  %v3772 = vpack.c.bf16 %v3718, %v3717
  %v3773 = vpack.c.bf16 %v3720, %v3719
  %v3774 = vpack.c.bf16 %v3722, %v3721
  %v3775 = vpack.c.bf16 %v3724, %v3723
  %v3776 = vpack.c.bf16 %v3726, %v3725
  %v3777 = vpack.c.bf16 %v3728, %v3727
  %v3778 = vpack.c.bf16 %v3730, %v3729
  %v3779 = vpack.c.bf16 %v3732, %v3731
  %v3780 = vpack.c.bf16 %v3734, %v3733
  %v3781 = vpack.c.bf16 %v3736, %v3735
  %v3782 = vpack.c.bf16 %v3738, %v3737
  %v3783 = vpack.c.bf16 %v3740, %v3739
  %v3784 = vpack.c.bf16 %v3742, %v3741
  %v3785 = vpack.c.bf16 %v3744, %v3743
  %v3786 = vpack.c.bf16 %v3746, %v3745
  %v3787 = vpack.c.bf16 %v3748, %v3747
  %v3788 = vpack.c.bf16 %v3750, %v3749
  %v3789 = vpack.c.bf16 %v3752, %v3751
  %v3790 = vpack.c.bf16 %v3754, %v3753
  %v3791 = vpack.c.bf16 %v3756, %v3755
  %v3792 = vpack.c.bf16 %v3758, %v3757
  %v3793 = vpack.c.bf16 %v3760, %v3759
  %v3794 = vpack.c.bf16 %v3762, %v3761
  %v3795 = vld [vmem:[%s1] sm:$0xf]
  %v3796 = vld [vmem:[%s1 + $0x4] sm:$0xf]
  %v3797 = vld [vmem:[%s1 + $0x8] sm:$0xf]
  %v3798 = vld [vmem:[%s1 + $0xc] sm:$0xf]
  %v3799 = vld [vmem:[%s1 + $0x10] sm:$0xf]
  %v3800 = vld [vmem:[%s1 + $0x14] sm:$0xf]
  %v3801 = vld [vmem:[%s1 + $0x18] sm:$0x7]
  %v3809 = vunpack.c.l.b16 %v3795
  %v3810 = vunpack.c.l.b16 %v3796
  %v3811 = vunpack.c.l.b16 %v3797
  %v3812 = vunpack.c.l.b16 %v3798
  %v3813 = vunpack.c.l.b16 %v3799
  %v3814 = vunpack.c.l.b16 %v3800
  %v3815 = vunpack.c.l.b16 %v3801
  %v3816 = vpack.c.b16 %v3810, %v3809
  %v3817 = vpack.c.b16 %v3812, %v3811
  %v3818 = vpack.c.b16 %v3814, %v3813
  %v3819 = vpack.c.b16 %v3815, %v3815
  %vm3823 = vcmask 441344
  %v3825 = vsel %vm3823, %v3763, 0
  %v3828 = vsel %vm3823, %v3764, 0
  %v3831 = vsel %vm3823, %v3765, 0
  %v3834 = vsel %vm3823, %v3766, 0
  %v3837 = vsel %vm3823, %v3767, 0
  %v3840 = vsel %vm3823, %v3768, 0
  %v3843 = vsel %vm3823, %v3769, 0
  %v3846 = vsel %vm3823, %v3770, 0
  %v3849 = vsel %vm3823, %v3771, 0
  %v3852 = vsel %vm3823, %v3772, 0
  %v3855 = vsel %vm3823, %v3773, 0
  %v3858 = vsel %vm3823, %v3774, 0
  %v3861 = vsel %vm3823, %v3775, 0
  %v3864 = vsel %vm3823, %v3776, 0
  %v3867 = vsel %vm3823, %v3777, 0
  %v3870 = vsel %vm3823, %v3778, 0
  %v3873 = vsel %vm3823, %v3779, 0
  %v3876 = vsel %vm3823, %v3780, 0
  %v3879 = vsel %vm3823, %v3781, 0
  %v3882 = vsel %vm3823, %v3782, 0
  %v3885 = vsel %vm3823, %v3783, 0
  %v3888 = vsel %vm3823, %v3784, 0
  %v3891 = vsel %vm3823, %v3785, 0
  %v3894 = vsel %vm3823, %v3786, 0
  %v3897 = vsel %vm3823, %v3787, 0
  %v3900 = vsel %vm3823, %v3788, 0
  %v3903 = vsel %vm3823, %v3789, 0
  %v3906 = vsel %vm3823, %v3790, 0
  %v3909 = vsel %vm3823, %v3791, 0
  %v3912 = vsel %vm3823, %v3792, 0
  %v3915 = vsel %vm3823, %v3793, 0
  %v3918 = vsel %vm3823, %v3794, 0
  %vm3920 = vcmask 1042432
  %v3922 = vsel %vm3920, %v3819, 0
  %3924 = vmatprep.subr.bf16.mxu0 0
  %3925 = vmatpush1.bf16.msra.mxu0 0
  %3926 = vmatprep.subr.bf16.mxu0 0
  %3927 = vmatpush1.bf16.msra.mxu0 0
  %3928 = vmatprep.subr.bf16.mxu0 0
  %3929 = vmatpush1.bf16.msra.mxu0 0
  %3930 = vmatprep.subr.bf16.mxu0 0
  %3931 = vmatpush1.bf16.msra.mxu0 0
  %3932 = vmatprep.subr.bf16.mxu0 0
  %3933 = vmatpush1.bf16.msra.mxu0 %v3922
  %3934 = vmatprep.subr.bf16.mxu0 0
  %3935 = vmatpush1.bf16.msra.mxu0 %v3818
  %3936 = vmatprep.subr.bf16.mxu0 0
  %3937 = vmatpush1.bf16.msra.mxu0 %v3817
  %3938 = vmatprep.subr.bf16.mxu0 0
  %3939 = vmatpush1.bf16.msra.mxu0 %v3816
  %3940 = vmatprep.subr.bf16.mxu0 0
  %3941 = vmatpush2.bf16.msra.mxu0 0
  %3942 = vmatprep.subr.bf16.mxu0 0
  %3943 = vmatpush2.bf16.msra.mxu0 0
  %3944 = vmatprep.subr.bf16.mxu0 0
  %3945 = vmatpush2.bf16.msra.mxu0 0
  %3946 = vmatprep.subr.bf16.mxu0 0
  %3947 = vmatpush2.bf16.msra.mxu0 0
  %3948 = vmatprep.subr.bf16.mxu0 0
  %3949 = vmatpush2.bf16.msra.mxu0 0
  %3950 = vmatprep.subr.bf16.mxu0 0
  %3951 = vmatpush2.bf16.msra.mxu0 0
  %3952 = vmatprep.subr.bf16.mxu0 0
  %3953 = vmatpush2.bf16.msra.mxu0 0
  %3954 = vmatprep.subr.bf16.mxu0 0
  %3955 = vmatpush2.bf16.msra.mxu0 0
  %3956 = vmatprep.mubr.bf16.mxu0 0
  %3957 = vmatmul.mubr.bf16.gmra.mxu0 %v3825
  %v3958 = vpop.f32.mrf.mxu0
  %v3959 = vadd.f32 0.0, %v3958
  %v3960 = vpop.f32.mrf.mxu0
  %v3961 = vpop.f32.mrf.mxu0
  %v3962 = vadd.f32 0.0, %v3961
  %v3963 = vpop.f32.mrf.mxu0
  %3964 = vmatprep.mubr.bf16.mxu0 0
  %3965 = vmatmul.mubr.bf16.gmra.mxu0 %v3828
  %v3966 = vpop.f32.mrf.mxu0
  %v3967 = vadd.f32 0.0, %v3966
  %v3968 = vpop.f32.mrf.mxu0
  %v3969 = vpop.f32.mrf.mxu0
  %v3970 = vadd.f32 0.0, %v3969
  %v3971 = vpop.f32.mrf.mxu0
  %3972 = vmatprep.mubr.bf16.mxu0 0
  %3973 = vmatmul.mubr.bf16.gmra.mxu0 %v3831
  %v3974 = vpop.f32.mrf.mxu0
  %v3975 = vadd.f32 0.0, %v3974
  %v3976 = vpop.f32.mrf.mxu0
  %v3977 = vpop.f32.mrf.mxu0
  %v3978 = vadd.f32 0.0, %v3977
  %v3979 = vpop.f32.mrf.mxu0
  %3980 = vmatprep.mubr.bf16.mxu0 0
  %3981 = vmatmul.mubr.bf16.gmra.mxu0 %v3834
  %v3982 = vpop.f32.mrf.mxu0
  %v3983 = vadd.f32 0.0, %v3982
  %v3984 = vpop.f32.mrf.mxu0
  %v3985 = vpop.f32.mrf.mxu0
  %v3986 = vadd.f32 0.0, %v3985
  %v3987 = vpop.f32.mrf.mxu0
  %3988 = vmatprep.mubr.bf16.mxu0 0
  %3989 = vmatmul.mubr.bf16.gmra.mxu0 %v3837
  %v3990 = vpop.f32.mrf.mxu0
  %v3991 = vadd.f32 0.0, %v3990
  %v3992 = vpop.f32.mrf.mxu0
  %v3993 = vpop.f32.mrf.mxu0
  %v3994 = vadd.f32 0.0, %v3993
  %v3995 = vpop.f32.mrf.mxu0
  %3996 = vmatprep.mubr.bf16.mxu0 0
  %3997 = vmatmul.mubr.bf16.gmra.mxu0 %v3840
  %v3998 = vpop.f32.mrf.mxu0
  %v3999 = vadd.f32 0.0, %v3998
  %v4000 = vpop.f32.mrf.mxu0
  %v4001 = vpop.f32.mrf.mxu0
  %v4002 = vadd.f32 0.0, %v4001
  %v4003 = vpop.f32.mrf.mxu0
  %4004 = vmatprep.mubr.bf16.mxu0 0
  %4005 = vmatmul.mubr.bf16.gmra.mxu0 %v3843
  %v4006 = vpop.f32.mrf.mxu0
  %v4007 = vadd.f32 0.0, %v4006
  %v4008 = vpop.f32.mrf.mxu0
  %v4009 = vpop.f32.mrf.mxu0
  %v4010 = vadd.f32 0.0, %v4009
  %v4011 = vpop.f32.mrf.mxu0
  %4012 = vmatprep.mubr.bf16.mxu0 0
  %4013 = vmatmul.mubr.bf16.gmra.mxu0 %v3846
  %v4014 = vpop.f32.mrf.mxu0
  %v4015 = vadd.f32 0.0, %v4014
  %v4016 = vpop.f32.mrf.mxu0
  %v4017 = vpop.f32.mrf.mxu0
  %v4018 = vadd.f32 0.0, %v4017
  %v4019 = vpop.f32.mrf.mxu0
  %4020 = vmatprep.mubr.bf16.mxu0 0
  %4021 = vmatmul.mubr.bf16.gmra.mxu0 %v3849
  %v4022 = vpop.f32.mrf.mxu0
  %v4023 = vadd.f32 0.0, %v4022
  %v4024 = vpop.f32.mrf.mxu0
  %v4025 = vpop.f32.mrf.mxu0
  %v4026 = vadd.f32 0.0, %v4025
  %v4027 = vpop.f32.mrf.mxu0
  %4028 = vmatprep.mubr.bf16.mxu0 0
  %4029 = vmatmul.mubr.bf16.gmra.mxu0 %v3852
  %v4030 = vpop.f32.mrf.mxu0
  %v4031 = vadd.f32 0.0, %v4030
  %v4032 = vpop.f32.mrf.mxu0
  %v4033 = vpop.f32.mrf.mxu0
  %v4034 = vadd.f32 0.0, %v4033
  %v4035 = vpop.f32.mrf.mxu0
  %4036 = vmatprep.mubr.bf16.mxu0 0
  %4037 = vmatmul.mubr.bf16.gmra.mxu0 %v3855
  %v4038 = vpop.f32.mrf.mxu0
  %v4039 = vadd.f32 0.0, %v4038
  %v4040 = vpop.f32.mrf.mxu0
  %v4041 = vpop.f32.mrf.mxu0
  %v4042 = vadd.f32 0.0, %v4041
  %v4043 = vpop.f32.mrf.mxu0
  %4044 = vmatprep.mubr.bf16.mxu0 0
  %4045 = vmatmul.mubr.bf16.gmra.mxu0 %v3858
  %v4046 = vpop.f32.mrf.mxu0
  %v4047 = vadd.f32 0.0, %v4046
  %v4048 = vpop.f32.mrf.mxu0
  %v4049 = vpop.f32.mrf.mxu0
  %v4050 = vadd.f32 0.0, %v4049
  %v4051 = vpop.f32.mrf.mxu0
  %4052 = vmatprep.mubr.bf16.mxu0 0
  %4053 = vmatmul.mubr.bf16.gmra.mxu0 %v3861
  %v4054 = vpop.f32.mrf.mxu0
  %v4055 = vadd.f32 0.0, %v4054
  %v4056 = vpop.f32.mrf.mxu0
  %v4057 = vpop.f32.mrf.mxu0
  %v4058 = vadd.f32 0.0, %v4057
  %v4059 = vpop.f32.mrf.mxu0
  %4060 = vmatprep.mubr.bf16.mxu0 0
  %4061 = vmatmul.mubr.bf16.gmra.mxu0 %v3864
  %v4062 = vpop.f32.mrf.mxu0
  %v4063 = vadd.f32 0.0, %v4062
  %v4064 = vpop.f32.mrf.mxu0
  %v4065 = vpop.f32.mrf.mxu0
  %v4066 = vadd.f32 0.0, %v4065
  %v4067 = vpop.f32.mrf.mxu0
  %4068 = vmatprep.mubr.bf16.mxu0 0
  %4069 = vmatmul.mubr.bf16.gmra.mxu0 %v3867
  %v4070 = vpop.f32.mrf.mxu0
  %v4071 = vadd.f32 0.0, %v4070
  %v4072 = vpop.f32.mrf.mxu0
  %v4073 = vpop.f32.mrf.mxu0
  %v4074 = vadd.f32 0.0, %v4073
  %v4075 = vpop.f32.mrf.mxu0
  %4076 = vmatprep.mubr.bf16.mxu0 0
  %4077 = vmatmul.mubr.bf16.gmra.mxu0 %v3870
  %v4078 = vpop.f32.mrf.mxu0
  %v4079 = vadd.f32 0.0, %v4078
  %v4080 = vpop.f32.mrf.mxu0
  %v4081 = vpop.f32.mrf.mxu0
  %v4082 = vadd.f32 0.0, %v4081
  %v4083 = vpop.f32.mrf.mxu0
  %4084 = vmatprep.mubr.bf16.mxu0 0
  %4085 = vmatmul.mubr.bf16.gmra.mxu0 %v3873
  %v4086 = vpop.f32.mrf.mxu0
  %v4087 = vadd.f32 0.0, %v4086
  %v4088 = vpop.f32.mrf.mxu0
  %v4089 = vpop.f32.mrf.mxu0
  %v4090 = vadd.f32 0.0, %v4089
  %v4091 = vpop.f32.mrf.mxu0
  %4092 = vmatprep.mubr.bf16.mxu0 0
  %4093 = vmatmul.mubr.bf16.gmra.mxu0 %v3876
  %v4094 = vpop.f32.mrf.mxu0
  %v4095 = vadd.f32 0.0, %v4094
  %v4096 = vpop.f32.mrf.mxu0
  %v4097 = vpop.f32.mrf.mxu0
  %v4098 = vadd.f32 0.0, %v4097
  %v4099 = vpop.f32.mrf.mxu0
  %4100 = vmatprep.mubr.bf16.mxu0 0
  %4101 = vmatmul.mubr.bf16.gmra.mxu0 %v3879
  %v4102 = vpop.f32.mrf.mxu0
  %v4103 = vadd.f32 0.0, %v4102
  %v4104 = vpop.f32.mrf.mxu0
  %v4105 = vpop.f32.mrf.mxu0
  %v4106 = vadd.f32 0.0, %v4105
  %v4107 = vpop.f32.mrf.mxu0
  %4108 = vmatprep.mubr.bf16.mxu0 0
  %4109 = vmatmul.mubr.bf16.gmra.mxu0 %v3882
  %v4110 = vpop.f32.mrf.mxu0
  %v4111 = vadd.f32 0.0, %v4110
  %v4112 = vpop.f32.mrf.mxu0
  %v4113 = vpop.f32.mrf.mxu0
  %v4114 = vadd.f32 0.0, %v4113
  %v4115 = vpop.f32.mrf.mxu0
  %4116 = vmatprep.mubr.bf16.mxu0 0
  %4117 = vmatmul.mubr.bf16.gmra.mxu0 %v3885
  %v4118 = vpop.f32.mrf.mxu0
  %v4119 = vadd.f32 0.0, %v4118
  %v4120 = vpop.f32.mrf.mxu0
  %v4121 = vpop.f32.mrf.mxu0
  %v4122 = vadd.f32 0.0, %v4121
  %v4123 = vpop.f32.mrf.mxu0
  %4124 = vmatprep.mubr.bf16.mxu0 0
  %4125 = vmatmul.mubr.bf16.gmra.mxu0 %v3888
  %v4126 = vpop.f32.mrf.mxu0
  %v4127 = vadd.f32 0.0, %v4126
  %v4128 = vpop.f32.mrf.mxu0
  %v4129 = vpop.f32.mrf.mxu0
  %v4130 = vadd.f32 0.0, %v4129
  %v4131 = vpop.f32.mrf.mxu0
  %4132 = vmatprep.mubr.bf16.mxu0 0
  %4133 = vmatmul.mubr.bf16.gmra.mxu0 %v3891
  %v4134 = vpop.f32.mrf.mxu0
  %v4135 = vadd.f32 0.0, %v4134
  %v4136 = vpop.f32.mrf.mxu0
  %v4137 = vpop.f32.mrf.mxu0
  %v4138 = vadd.f32 0.0, %v4137
  %v4139 = vpop.f32.mrf.mxu0
  %4140 = vmatprep.mubr.bf16.mxu0 0
  %4141 = vmatmul.mubr.bf16.gmra.mxu0 %v3894
  %v4142 = vpop.f32.mrf.mxu0
  %v4143 = vadd.f32 0.0, %v4142
  %v4144 = vpop.f32.mrf.mxu0
  %v4145 = vpop.f32.mrf.mxu0
  %v4146 = vadd.f32 0.0, %v4145
  %v4147 = vpop.f32.mrf.mxu0
  %4148 = vmatprep.mubr.bf16.mxu0 0
  %4149 = vmatmul.mubr.bf16.gmra.mxu0 %v3897
  %v4150 = vpop.f32.mrf.mxu0
  %v4151 = vadd.f32 0.0, %v4150
  %v4152 = vpop.f32.mrf.mxu0
  %v4153 = vpop.f32.mrf.mxu0
  %v4154 = vadd.f32 0.0, %v4153
  %v4155 = vpop.f32.mrf.mxu0
  %4156 = vmatprep.mubr.bf16.mxu0 0
  %4157 = vmatmul.mubr.bf16.gmra.mxu0 %v3900
  %v4158 = vpop.f32.mrf.mxu0
  %v4159 = vadd.f32 0.0, %v4158
  %v4160 = vpop.f32.mrf.mxu0
  %v4161 = vpop.f32.mrf.mxu0
  %v4162 = vadd.f32 0.0, %v4161
  %v4163 = vpop.f32.mrf.mxu0
  %4164 = vmatprep.mubr.bf16.mxu0 0
  %4165 = vmatmul.mubr.bf16.gmra.mxu0 %v3903
  %v4166 = vpop.f32.mrf.mxu0
  %v4167 = vadd.f32 0.0, %v4166
  %v4168 = vpop.f32.mrf.mxu0
  %v4169 = vpop.f32.mrf.mxu0
  %v4170 = vadd.f32 0.0, %v4169
  %v4171 = vpop.f32.mrf.mxu0
  %4172 = vmatprep.mubr.bf16.mxu0 0
  %4173 = vmatmul.mubr.bf16.gmra.mxu0 %v3906
  %v4174 = vpop.f32.mrf.mxu0
  %v4175 = vadd.f32 0.0, %v4174
  %v4176 = vpop.f32.mrf.mxu0
  %v4177 = vpop.f32.mrf.mxu0
  %v4178 = vadd.f32 0.0, %v4177
  %v4179 = vpop.f32.mrf.mxu0
  %4180 = vmatprep.mubr.bf16.mxu0 0
  %4181 = vmatmul.mubr.bf16.gmra.mxu0 %v3909
  %v4182 = vpop.f32.mrf.mxu0
  %v4183 = vadd.f32 0.0, %v4182
  %v4184 = vpop.f32.mrf.mxu0
  %v4185 = vpop.f32.mrf.mxu0
  %v4186 = vadd.f32 0.0, %v4185
  %v4187 = vpop.f32.mrf.mxu0
  %4188 = vmatprep.mubr.bf16.mxu0 0
  %4189 = vmatmul.mubr.bf16.gmra.mxu0 %v3912
  %v4190 = vpop.f32.mrf.mxu0
  %v4191 = vadd.f32 0.0, %v4190
  %v4192 = vpop.f32.mrf.mxu0
  %v4193 = vpop.f32.mrf.mxu0
  %v4194 = vadd.f32 0.0, %v4193
  %v4195 = vpop.f32.mrf.mxu0
  %4196 = vmatprep.mubr.bf16.mxu0 0
  %4197 = vmatmul.mubr.bf16.gmra.mxu0 %v3915
  %v4198 = vpop.f32.mrf.mxu0
  %v4199 = vadd.f32 0.0, %v4198
  %v4200 = vpop.f32.mrf.mxu0
  %v4201 = vpop.f32.mrf.mxu0
  %v4202 = vadd.f32 0.0, %v4201
  %v4203 = vpop.f32.mrf.mxu0
  %4204 = vmatprep.mubr.bf16.mxu0 0
  %4205 = vmatmul.mubr.bf16.gmra.mxu0 %v3918
  %v4206 = vpop.f32.mrf.mxu0
  %v4207 = vadd.f32 0.0, %v4206
  %v4208 = vpop.f32.mrf.mxu0
  %v4209 = vpop.f32.mrf.mxu0
  %v4210 = vadd.f32 0.0, %v4209
  %v4211 = vpop.f32.mrf.mxu0
  %4212 = vdwg.mxu0
  %v4213 = vld [vmem:[%s2] sm:$0x1]
  %v4215 = vlaneseq
  %v4216 = vshrl.u32 %v4215, 7
  %v4217 = vsub.s32 0, %v4216
  %v4218 = vrot.slane %v4213, %v4217
  %v4220 = vmul.f32 %v3959, %v4218
  %v4221 = vmul.f32 %v3962, %v4218
  %v4222 = vmul.f32 %v3967, %v4218
  %v4223 = vmul.f32 %v3970, %v4218
  %v4224 = vmul.f32 %v3975, %v4218
  %v4225 = vmul.f32 %v3978, %v4218
  %v4226 = vmul.f32 %v3983, %v4218
  %v4227 = vmul.f32 %v3986, %v4218
  %v4228 = vmul.f32 %v3991, %v4218
  %v4229 = vmul.f32 %v3994, %v4218
  %v4230 = vmul.f32 %v3999, %v4218
  %v4231 = vmul.f32 %v4002, %v4218
  %v4232 = vmul.f32 %v4007, %v4218
  %v4233 = vmul.f32 %v4010, %v4218
  %v4234 = vmul.f32 %v4015, %v4218
  %v4235 = vmul.f32 %v4018, %v4218
  %v4236 = vmul.f32 %v4023, %v4218
  %v4237 = vmul.f32 %v4026, %v4218
  %v4238 = vmul.f32 %v4031, %v4218
  %v4239 = vmul.f32 %v4034, %v4218
  %v4240 = vmul.f32 %v4039, %v4218
  %v4241 = vmul.f32 %v4042, %v4218
  %v4242 = vmul.f32 %v4047, %v4218
  %v4243 = vmul.f32 %v4050, %v4218
  %v4244 = vmul.f32 %v4055, %v4218
  %v4245 = vmul.f32 %v4058, %v4218
  %v4246 = vmul.f32 %v4063, %v4218
  %v4247 = vmul.f32 %v4066, %v4218
  %v4248 = vmul.f32 %v4071, %v4218
  %v4249 = vmul.f32 %v4074, %v4218
  %v4250 = vmul.f32 %v4079, %v4218
  %v4251 = vmul.f32 %v4082, %v4218
  %v4252 = vmul.f32 %v4087, %v4218
  %v4253 = vmul.f32 %v4090, %v4218
  %v4254 = vmul.f32 %v4095, %v4218
  %v4255 = vmul.f32 %v4098, %v4218
  %v4256 = vmul.f32 %v4103, %v4218
  %v4257 = vmul.f32 %v4106, %v4218
  %v4258 = vmul.f32 %v4111, %v4218
  %v4259 = vmul.f32 %v4114, %v4218
  %v4260 = vmul.f32 %v4119, %v4218
  %v4261 = vmul.f32 %v4122, %v4218
  %v4262 = vmul.f32 %v4127, %v4218
  %v4263 = vmul.f32 %v4130, %v4218
  %v4264 = vmul.f32 %v4135, %v4218
  %v4265 = vmul.f32 %v4138, %v4218
  %v4266 = vmul.f32 %v4143, %v4218
  %v4267 = vmul.f32 %v4146, %v4218
  %v4268 = vmul.f32 %v4151, %v4218
  %v4269 = vmul.f32 %v4154, %v4218
  %v4270 = vmul.f32 %v4159, %v4218
  %v4271 = vmul.f32 %v4162, %v4218
  %v4272 = vmul.f32 %v4167, %v4218
  %v4273 = vmul.f32 %v4170, %v4218
  %v4274 = vmul.f32 %v4175, %v4218
  %v4275 = vmul.f32 %v4178, %v4218
  %v4276 = vmul.f32 %v4183, %v4218
  %v4277 = vmul.f32 %v4186, %v4218
  %v4278 = vmul.f32 %v4191, %v4218
  %v4279 = vmul.f32 %v4194, %v4218
  %v4280 = vmul.f32 %v4199, %v4218
  %v4281 = vmul.f32 %v4202, %v4218
  %v4282 = vmul.f32 %v4207, %v4218
  %v4283 = vmul.f32 %v4210, %v4218
  %v4284 = vld [vmem:[%s3] sm:$0x1]
  %v4286 = vlaneseq
  %v4287 = vshrl.u32 %v4286, 7
  %v4288 = vsub.s32 0, %v4287
  %v4289 = vrot.slane %v4284, %v4288
  %v4291 = vadd.f32 %v4220, %v4289
  %v4292 = vadd.f32 %v4221, %v4289
  %v4293 = vadd.f32 %v4222, %v4289
  %v4294 = vadd.f32 %v4223, %v4289
  %v4295 = vadd.f32 %v4224, %v4289
  %v4296 = vadd.f32 %v4225, %v4289
  %v4297 = vadd.f32 %v4226, %v4289
  %v4298 = vadd.f32 %v4227, %v4289
  %v4299 = vadd.f32 %v4228, %v4289
  %v4300 = vadd.f32 %v4229, %v4289
  %v4301 = vadd.f32 %v4230, %v4289
  %v4302 = vadd.f32 %v4231, %v4289
  %v4303 = vadd.f32 %v4232, %v4289
  %v4304 = vadd.f32 %v4233, %v4289
  %v4305 = vadd.f32 %v4234, %v4289
  %v4306 = vadd.f32 %v4235, %v4289
  %v4307 = vadd.f32 %v4236, %v4289
  %v4308 = vadd.f32 %v4237, %v4289
  %v4309 = vadd.f32 %v4238, %v4289
  %v4310 = vadd.f32 %v4239, %v4289
  %v4311 = vadd.f32 %v4240, %v4289
  %v4312 = vadd.f32 %v4241, %v4289
  %v4313 = vadd.f32 %v4242, %v4289
  %v4314 = vadd.f32 %v4243, %v4289
  %v4315 = vadd.f32 %v4244, %v4289
  %v4316 = vadd.f32 %v4245, %v4289
  %v4317 = vadd.f32 %v4246, %v4289
  %v4318 = vadd.f32 %v4247, %v4289
  %v4319 = vadd.f32 %v4248, %v4289
  %v4320 = vadd.f32 %v4249, %v4289
  %v4321 = vadd.f32 %v4250, %v4289
  %v4322 = vadd.f32 %v4251, %v4289
  %v4323 = vadd.f32 %v4252, %v4289
  %v4324 = vadd.f32 %v4253, %v4289
  %v4325 = vadd.f32 %v4254, %v4289
  %v4326 = vadd.f32 %v4255, %v4289
  %v4327 = vadd.f32 %v4256, %v4289
  %v4328 = vadd.f32 %v4257, %v4289
  %v4329 = vadd.f32 %v4258, %v4289
  %v4330 = vadd.f32 %v4259, %v4289
  %v4331 = vadd.f32 %v4260, %v4289
  %v4332 = vadd.f32 %v4261, %v4289
  %v4333 = vadd.f32 %v4262, %v4289
  %v4334 = vadd.f32 %v4263, %v4289
  %v4335 = vadd.f32 %v4264, %v4289
  %v4336 = vadd.f32 %v4265, %v4289
  %v4337 = vadd.f32 %v4266, %v4289
  %v4338 = vadd.f32 %v4267, %v4289
  %v4339 = vadd.f32 %v4268, %v4289
  %v4340 = vadd.f32 %v4269, %v4289
  %v4341 = vadd.f32 %v4270, %v4289
  %v4342 = vadd.f32 %v4271, %v4289
  %v4343 = vadd.f32 %v4272, %v4289
  %v4344 = vadd.f32 %v4273, %v4289
  %v4345 = vadd.f32 %v4274, %v4289
  %v4346 = vadd.f32 %v4275, %v4289
  %v4347 = vadd.f32 %v4276, %v4289
  %v4348 = vadd.f32 %v4277, %v4289
  %v4349 = vadd.f32 %v4278, %v4289
  %v4350 = vadd.f32 %v4279, %v4289
  %v4351 = vadd.f32 %v4280, %v4289
  %v4352 = vadd.f32 %v4281, %v4289
  %v4353 = vadd.f32 %v4282, %v4289
  %v4354 = vadd.f32 %v4283, %v4289
  %v4355 = vmax.f32 %v4291, 0.0
  %v4356 = vmax.f32 %v4292, 0.0
  %v4357 = vmax.f32 %v4293, 0.0
  %v4358 = vmax.f32 %v4294, 0.0
  %v4359 = vmax.f32 %v4295, 0.0
  %v4360 = vmax.f32 %v4296, 0.0
  %v4361 = vmax.f32 %v4297, 0.0
  %v4362 = vmax.f32 %v4298, 0.0
  %v4363 = vmax.f32 %v4299, 0.0
  %v4364 = vmax.f32 %v4300, 0.0
  %v4365 = vmax.f32 %v4301, 0.0
  %v4366 = vmax.f32 %v4302, 0.0
  %v4367 = vmax.f32 %v4303, 0.0
  %v4368 = vmax.f32 %v4304, 0.0
  %v4369 = vmax.f32 %v4305, 0.0
  %v4370 = vmax.f32 %v4306, 0.0
  %v4371 = vmax.f32 %v4307, 0.0
  %v4372 = vmax.f32 %v4308, 0.0
  %v4373 = vmax.f32 %v4309, 0.0
  %v4374 = vmax.f32 %v4310, 0.0
  %v4375 = vmax.f32 %v4311, 0.0
  %v4376 = vmax.f32 %v4312, 0.0
  %v4377 = vmax.f32 %v4313, 0.0
  %v4378 = vmax.f32 %v4314, 0.0
  %v4379 = vmax.f32 %v4315, 0.0
  %v4380 = vmax.f32 %v4316, 0.0
  %v4381 = vmax.f32 %v4317, 0.0
  %v4382 = vmax.f32 %v4318, 0.0
  %v4383 = vmax.f32 %v4319, 0.0
  %v4384 = vmax.f32 %v4320, 0.0
  %v4385 = vmax.f32 %v4321, 0.0
  %v4386 = vmax.f32 %v4322, 0.0
  %v4387 = vmax.f32 %v4323, 0.0
  %v4388 = vmax.f32 %v4324, 0.0
  %v4389 = vmax.f32 %v4325, 0.0
  %v4390 = vmax.f32 %v4326, 0.0
  %v4391 = vmax.f32 %v4327, 0.0
  %v4392 = vmax.f32 %v4328, 0.0
  %v4393 = vmax.f32 %v4329, 0.0
  %v4394 = vmax.f32 %v4330, 0.0
  %v4395 = vmax.f32 %v4331, 0.0
  %v4396 = vmax.f32 %v4332, 0.0
  %v4397 = vmax.f32 %v4333, 0.0
  %v4398 = vmax.f32 %v4334, 0.0
  %v4399 = vmax.f32 %v4335, 0.0
  %v4400 = vmax.f32 %v4336, 0.0
  %v4401 = vmax.f32 %v4337, 0.0
  %v4402 = vmax.f32 %v4338, 0.0
  %v4403 = vmax.f32 %v4339, 0.0
  %v4404 = vmax.f32 %v4340, 0.0
  %v4405 = vmax.f32 %v4341, 0.0
  %v4406 = vmax.f32 %v4342, 0.0
  %v4407 = vmax.f32 %v4343, 0.0
  %v4408 = vmax.f32 %v4344, 0.0
  %v4409 = vmax.f32 %v4345, 0.0
  %v4410 = vmax.f32 %v4346, 0.0
  %v4411 = vmax.f32 %v4347, 0.0
  %v4412 = vmax.f32 %v4348, 0.0
  %v4413 = vmax.f32 %v4349, 0.0
  %v4414 = vmax.f32 %v4350, 0.0
  %v4415 = vmax.f32 %v4351, 0.0
  %v4416 = vmax.f32 %v4352, 0.0
  %v4417 = vmax.f32 %v4353, 0.0
  %v4418 = vmax.f32 %v4354, 0.0
  %s4419 = scalar_lea.vmem [#allocation3], 24
  %4420 = vst.msk [vmem:[%s4419 + $0x1] sm:$0xff] %vm169, %v4355
  %4421 = vst.msk [vmem:[%s4419 + $0x9] sm:$0xff] %vm169, %v4356
  %4422 = vst.msk [vmem:[%s4419 + $0x19] sm:$0xff] %vm169, %v4357
  %4423 = vst.msk [vmem:[%s4419 + $0x21] sm:$0xff] %vm169, %v4358
  %4424 = vst.msk [vmem:[%s4419 + $0x31] sm:$0xff] %vm169, %v4359
  %4425 = vst.msk [vmem:[%s4419 + $0x39] sm:$0xff] %vm169, %v4360
  %4426 = vst.msk [vmem:[%s4419 + $0x49] sm:$0xff] %vm169, %v4361
  %4427 = vst.msk [vmem:[%s4419 + $0x51] sm:$0xff] %vm169, %v4362
  %4428 = vst.msk [vmem:[%s4419 + $0x61] sm:$0xff] %vm169, %v4363
  %4429 = vst.msk [vmem:[%s4419 + $0x69] sm:$0xff] %vm169, %v4364
  %4430 = vst.msk [vmem:[%s4419 + $0x79] sm:$0xff] %vm169, %v4365
  %4431 = vst.msk [vmem:[%s4419 + $0x81] sm:$0xff] %vm169, %v4366
  %4432 = vst.msk [vmem:[%s4419 + $0x91] sm:$0xff] %vm169, %v4367
  %4433 = vst.msk [vmem:[%s4419 + $0x99] sm:$0xff] %vm169, %v4368
  %4434 = vst.msk [vmem:[%s4419 + $0xa9] sm:$0xff] %vm169, %v4369
  %4435 = vst.msk [vmem:[%s4419 + $0xb1] sm:$0xff] %vm169, %v4370
  %4436 = vst.msk [vmem:[%s4419 + $0xc1] sm:$0xff] %vm169, %v4371
  %4437 = vst.msk [vmem:[%s4419 + $0xc9] sm:$0xff] %vm169, %v4372
  %4438 = vst.msk [vmem:[%s4419 + $0xd9] sm:$0xff] %vm169, %v4373
  %4439 = vst.msk [vmem:[%s4419 + $0xe1] sm:$0xff] %vm169, %v4374
  %4440 = vst.msk [vmem:[%s4419 + $0xf1] sm:$0xff] %vm169, %v4375
  %4441 = vst.msk [vmem:[%s4419 + $0xf9] sm:$0xff] %vm169, %v4376
  %4442 = vst.msk [vmem:[%s4419 + $0x109] sm:$0xff] %vm169, %v4377
  %4443 = vst.msk [vmem:[%s4419 + $0x111] sm:$0xff] %vm169, %v4378
  %4444 = vst.msk [vmem:[%s4419 + $0x121] sm:$0xff] %vm169, %v4379
  %4445 = vst.msk [vmem:[%s4419 + $0x129] sm:$0xff] %vm169, %v4380
  %4446 = vst.msk [vmem:[%s4419 + $0x139] sm:$0xff] %vm169, %v4381
  %4447 = vst.msk [vmem:[%s4419 + $0x141] sm:$0xff] %vm169, %v4382
  %4448 = vst.msk [vmem:[%s4419 + $0x151] sm:$0xff] %vm169, %v4383
  %4449 = vst.msk [vmem:[%s4419 + $0x159] sm:$0xff] %vm169, %v4384
  %4450 = vst.msk [vmem:[%s4419 + $0x169] sm:$0xff] %vm169, %v4385
  %4451 = vst.msk [vmem:[%s4419 + $0x171] sm:$0xff] %vm169, %v4386
  %4452 = vst.msk [vmem:[%s4419 + $0x1b1] sm:$0xff] %vm169, %v4387
  %4453 = vst.msk [vmem:[%s4419 + $0x1b9] sm:$0xff] %vm169, %v4388
  %4454 = vst.msk [vmem:[%s4419 + $0x1c9] sm:$0xff] %vm169, %v4389
  %4455 = vst.msk [vmem:[%s4419 + $0x1d1] sm:$0xff] %vm169, %v4390
  %4456 = vst.msk [vmem:[%s4419 + $0x1e1] sm:$0xff] %vm169, %v4391
  %4457 = vst.msk [vmem:[%s4419 + $0x1e9] sm:$0xff] %vm169, %v4392
  %4458 = vst.msk [vmem:[%s4419 + $0x1f9] sm:$0xff] %vm169, %v4393
  %4459 = vst.msk [vmem:[%s4419 + $0x201] sm:$0xff] %vm169, %v4394
  %4460 = vst.msk [vmem:[%s4419 + $0x211] sm:$0xff] %vm169, %v4395
  %4461 = vst.msk [vmem:[%s4419 + $0x219] sm:$0xff] %vm169, %v4396
  %4462 = vst.msk [vmem:[%s4419 + $0x229] sm:$0xff] %vm169, %v4397
  %4463 = vst.msk [vmem:[%s4419 + $0x231] sm:$0xff] %vm169, %v4398
  %4464 = vst.msk [vmem:[%s4419 + $0x241] sm:$0xff] %vm169, %v4399
  %4465 = vst.msk [vmem:[%s4419 + $0x249] sm:$0xff] %vm169, %v4400
  %4466 = vst.msk [vmem:[%s4419 + $0x259] sm:$0xff] %vm169, %v4401
  %4467 = vst.msk [vmem:[%s4419 + $0x261] sm:$0xff] %vm169, %v4402
  %4468 = vst.msk [vmem:[%s4419 + $0x271] sm:$0xff] %vm169, %v4403
  %4469 = vst.msk [vmem:[%s4419 + $0x279] sm:$0xff] %vm169, %v4404
  %4470 = vst.msk [vmem:[%s4419 + $0x289] sm:$0xff] %vm169, %v4405
  %4471 = vst.msk [vmem:[%s4419 + $0x291] sm:$0xff] %vm169, %v4406
  %4472 = vst.msk [vmem:[%s4419 + $0x2a1] sm:$0xff] %vm169, %v4407
  %4473 = vst.msk [vmem:[%s4419 + $0x2a9] sm:$0xff] %vm169, %v4408
  %4474 = vst.msk [vmem:[%s4419 + $0x2b9] sm:$0xff] %vm169, %v4409
  %4475 = vst.msk [vmem:[%s4419 + $0x2c1] sm:$0xff] %vm169, %v4410
  %4476 = vst.msk [vmem:[%s4419 + $0x2d1] sm:$0xff] %vm169, %v4411
  %4477 = vst.msk [vmem:[%s4419 + $0x2d9] sm:$0xff] %vm169, %v4412
  %4478 = vst.msk [vmem:[%s4419 + $0x2e9] sm:$0xff] %vm169, %v4413
  %4479 = vst.msk [vmem:[%s4419 + $0x2f1] sm:$0xff] %vm169, %v4414
  %4480 = vst.msk [vmem:[%s4419 + $0x301] sm:$0xff] %vm169, %v4415
  %4481 = vst.msk [vmem:[%s4419 + $0x309] sm:$0xff] %vm169, %v4416
  %4482 = vst.msk [vmem:[%s4419 + $0x319] sm:$0xff] %vm169, %v4417
  %4483 = vst.msk [vmem:[%s4419 + $0x321] sm:$0xff] %vm169, %v4418
  %v4484 = vld [vmem:[#allocation3] ss:$2 sm:$0xff]
  %s4485 = scalar_lea.vmem [#allocation3], 16
  %v4486 = vld [vmem:[%s4485] ss:$2 sm:$0x1]
  %s4487 = scalar_lea.vmem [#allocation3], 48
  %v4488 = vld [vmem:[%s4487] ss:$2 sm:$0xff]
  %s4489 = scalar_lea.vmem [#allocation3], 64
  %v4490 = vld [vmem:[%s4489] ss:$2 sm:$0x1]
  %s4491 = scalar_lea.vmem [#allocation3], 96
  %v4492 = vld [vmem:[%s4491] ss:$2 sm:$0xff]
  %s4493 = scalar_lea.vmem [#allocation3], 112
  %v4494 = vld [vmem:[%s4493] ss:$2 sm:$0x1]
  %s4495 = scalar_lea.vmem [#allocation3], 144
  %v4496 = vld [vmem:[%s4495] ss:$2 sm:$0xff]
  %s4497 = scalar_lea.vmem [#allocation3], 160
  %v4498 = vld [vmem:[%s4497] ss:$2 sm:$0x1]
  %s4499 = scalar_lea.vmem [#allocation3], 192
  %v4500 = vld [vmem:[%s4499] ss:$2 sm:$0xff]
  %s4501 = scalar_lea.vmem [#allocation3], 208
  %v4502 = vld [vmem:[%s4501] ss:$2 sm:$0x1]
  %s4503 = scalar_lea.vmem [#allocation3], 240
  %v4504 = vld [vmem:[%s4503] ss:$2 sm:$0xff]
  %s4505 = scalar_lea.vmem [#allocation3], 256
  %v4506 = vld [vmem:[%s4505] ss:$2 sm:$0x1]
  %s4507 = scalar_lea.vmem [#allocation3], 288
  %v4508 = vld [vmem:[%s4507] ss:$2 sm:$0xff]
  %s4509 = scalar_lea.vmem [#allocation3], 304
  %v4510 = vld [vmem:[%s4509] ss:$2 sm:$0x1]
  %s4511 = scalar_lea.vmem [#allocation3], 336
  %v4512 = vld [vmem:[%s4511] ss:$2 sm:$0xff]
  %s4513 = scalar_lea.vmem [#allocation3], 352
  %v4514 = vld [vmem:[%s4513] ss:$2 sm:$0x1]
  %s4515 = scalar_lea.vmem [#allocation3], 384
  %v4516 = vld [vmem:[%s4515] ss:$2 sm:$0xff]
  %s4517 = scalar_lea.vmem [#allocation3], 400
  %v4518 = vld [vmem:[%s4517] ss:$2 sm:$0x1]
  %s4519 = scalar_lea.vmem [#allocation3], 432
  %v4520 = vld [vmem:[%s4519] ss:$2 sm:$0xff]
  %s4521 = scalar_lea.vmem [#allocation3], 448
  %v4522 = vld [vmem:[%s4521] ss:$2 sm:$0x1]
  %s4523 = scalar_lea.vmem [#allocation3], 480
  %v4524 = vld [vmem:[%s4523] ss:$2 sm:$0xff]
  %s4525 = scalar_lea.vmem [#allocation3], 496
  %v4526 = vld [vmem:[%s4525] ss:$2 sm:$0x1]
  %s4527 = scalar_lea.vmem [#allocation3], 528
  %v4528 = vld [vmem:[%s4527] ss:$2 sm:$0xff]
  %s4529 = scalar_lea.vmem [#allocation3], 544
  %v4530 = vld [vmem:[%s4529] ss:$2 sm:$0x1]
  %s4531 = scalar_lea.vmem [#allocation3], 576
  %v4532 = vld [vmem:[%s4531] ss:$2 sm:$0xff]
  %s4533 = scalar_lea.vmem [#allocation3], 592
  %v4534 = vld [vmem:[%s4533] ss:$2 sm:$0x1]
  %s4535 = scalar_lea.vmem [#allocation3], 624
  %v4536 = vld [vmem:[%s4535] ss:$2 sm:$0xff]
  %s4537 = scalar_lea.vmem [#allocation3], 640
  %v4538 = vld [vmem:[%s4537] ss:$2 sm:$0x1]
  %s4539 = scalar_lea.vmem [#allocation3], 672
  %v4540 = vld [vmem:[%s4539] ss:$2 sm:$0xff]
  %s4541 = scalar_lea.vmem [#allocation3], 688
  %v4542 = vld [vmem:[%s4541] ss:$2 sm:$0x1]
  %s4543 = scalar_lea.vmem [#allocation3], 720
  %v4544 = vld [vmem:[%s4543] ss:$2 sm:$0xff]
  %s4545 = scalar_lea.vmem [#allocation3], 736
  %v4546 = vld [vmem:[%s4545] ss:$2 sm:$0x1]
  %s4547 = scalar_lea.vmem [#allocation3], 768
  %v4548 = vld [vmem:[%s4547] ss:$2 sm:$0xff]
  %s4549 = scalar_lea.vmem [#allocation3], 784
  %v4550 = vld [vmem:[%s4549] ss:$2 sm:$0x1]
  %s4551 = scalar_lea.vmem [#allocation3], 816
  %v4552 = vld [vmem:[%s4551] ss:$2 sm:$0xff]
  %s4553 = scalar_lea.vmem [#allocation3], 832
  %v4554 = vld [vmem:[%s4553] ss:$2 sm:$0x1]
  %s4555 = scalar_lea.vmem [#allocation3], 1
  %v4556 = vld [vmem:[%s4555] ss:$2 sm:$0xff]
  %s4557 = scalar_lea.vmem [#allocation3], 49
  %v4558 = vld [vmem:[%s4557] ss:$2 sm:$0xff]
  %s4559 = scalar_lea.vmem [#allocation3], 97
  %v4560 = vld [vmem:[%s4559] ss:$2 sm:$0xff]
  %s4561 = scalar_lea.vmem [#allocation3], 145
  %v4562 = vld [vmem:[%s4561] ss:$2 sm:$0xff]
  %s4563 = scalar_lea.vmem [#allocation3], 193
  %v4564 = vld [vmem:[%s4563] ss:$2 sm:$0xff]
  %s4565 = scalar_lea.vmem [#allocation3], 241
  %v4566 = vld [vmem:[%s4565] ss:$2 sm:$0xff]
  %s4567 = scalar_lea.vmem [#allocation3], 289
  %v4568 = vld [vmem:[%s4567] ss:$2 sm:$0xff]
  %s4569 = scalar_lea.vmem [#allocation3], 337
  %v4570 = vld [vmem:[%s4569] ss:$2 sm:$0xff]
  %s4571 = scalar_lea.vmem [#allocation3], 385
  %v4572 = vld [vmem:[%s4571] ss:$2 sm:$0xff]
  %s4573 = scalar_lea.vmem [#allocation3], 433
  %v4574 = vld [vmem:[%s4573] ss:$2 sm:$0xff]
  %s4575 = scalar_lea.vmem [#allocation3], 481
  %v4576 = vld [vmem:[%s4575] ss:$2 sm:$0xff]
  %s4577 = scalar_lea.vmem [#allocation3], 529
  %v4578 = vld [vmem:[%s4577] ss:$2 sm:$0xff]
  %s4579 = scalar_lea.vmem [#allocation3], 577
  %v4580 = vld [vmem:[%s4579] ss:$2 sm:$0xff]
  %s4581 = scalar_lea.vmem [#allocation3], 625
  %v4582 = vld [vmem:[%s4581] ss:$2 sm:$0xff]
  %s4583 = scalar_lea.vmem [#allocation3], 673
  %v4584 = vld [vmem:[%s4583] ss:$2 sm:$0xff]
  %s4585 = scalar_lea.vmem [#allocation3], 721
  %v4586 = vld [vmem:[%s4585] ss:$2 sm:$0xff]
  %s4587 = scalar_lea.vmem [#allocation3], 769
  %v4588 = vld [vmem:[%s4587] ss:$2 sm:$0xff]
  %s4589 = scalar_lea.vmem [#allocation3], 817
  %v4590 = vld [vmem:[%s4589] ss:$2 sm:$0xff]
  %v4591 = vld [vmem:[%s4419] ss:$2 sm:$0xff]
  %s4592 = scalar_lea.vmem %s4419, 16 [#allocation3]
  %v4593 = vld [vmem:[%s4592] ss:$2 sm:$0x1]
  %s4594 = scalar_lea.vmem %s4419, 48 [#allocation3]
  %v4595 = vld [vmem:[%s4594] ss:$2 sm:$0xff]
  %s4596 = scalar_lea.vmem %s4419, 64 [#allocation3]
  %v4597 = vld [vmem:[%s4596] ss:$2 sm:$0x1]
  %s4598 = scalar_lea.vmem %s4419, 96 [#allocation3]
  %v4599 = vld [vmem:[%s4598] ss:$2 sm:$0xff]
  %s4600 = scalar_lea.vmem %s4419, 112 [#allocation3]
  %v4601 = vld [vmem:[%s4600] ss:$2 sm:$0x1]
  %s4602 = scalar_lea.vmem %s4419, 144 [#allocation3]
  %v4603 = vld [vmem:[%s4602] ss:$2 sm:$0xff]
  %s4604 = scalar_lea.vmem %s4419, 160 [#allocation3]
  %v4605 = vld [vmem:[%s4604] ss:$2 sm:$0x1]
  %s4606 = scalar_lea.vmem %s4419, 192 [#allocation3]
  %v4607 = vld [vmem:[%s4606] ss:$2 sm:$0xff]
  %s4608 = scalar_lea.vmem %s4419, 208 [#allocation3]
  %v4609 = vld [vmem:[%s4608] ss:$2 sm:$0x1]
  %s4610 = scalar_lea.vmem %s4419, 240 [#allocation3]
  %v4611 = vld [vmem:[%s4610] ss:$2 sm:$0xff]
  %s4612 = scalar_lea.vmem %s4419, 256 [#allocation3]
  %v4613 = vld [vmem:[%s4612] ss:$2 sm:$0x1]
  %s4614 = scalar_lea.vmem %s4419, 288 [#allocation3]
  %v4615 = vld [vmem:[%s4614] ss:$2 sm:$0xff]
  %s4616 = scalar_lea.vmem %s4419, 304 [#allocation3]
  %v4617 = vld [vmem:[%s4616] ss:$2 sm:$0x1]
  %s4618 = scalar_lea.vmem %s4419, 336 [#allocation3]
  %v4619 = vld [vmem:[%s4618] ss:$2 sm:$0xff]
  %s4620 = scalar_lea.vmem %s4419, 352 [#allocation3]
  %v4621 = vld [vmem:[%s4620] ss:$2 sm:$0x1]
  %s4622 = scalar_lea.vmem %s4419, 432 [#allocation3]
  %v4623 = vld [vmem:[%s4622] ss:$2 sm:$0xff]
  %s4624 = scalar_lea.vmem %s4419, 448 [#allocation3]
  %v4625 = vld [vmem:[%s4624] ss:$2 sm:$0x1]
  %s4626 = scalar_lea.vmem %s4419, 480 [#allocation3]
  %v4627 = vld [vmem:[%s4626] ss:$2 sm:$0xff]
  %s4628 = scalar_lea.vmem %s4419, 496 [#allocation3]
  %v4629 = vld [vmem:[%s4628] ss:$2 sm:$0x1]
  %s4630 = scalar_lea.vmem %s4419, 528 [#allocation3]
  %v4631 = vld [vmem:[%s4630] ss:$2 sm:$0xff]
  %s4632 = scalar_lea.vmem %s4419, 544 [#allocation3]
  %v4633 = vld [vmem:[%s4632] ss:$2 sm:$0x1]
  %s4634 = scalar_lea.vmem %s4419, 576 [#allocation3]
  %v4635 = vld [vmem:[%s4634] ss:$2 sm:$0xff]
  %s4636 = scalar_lea.vmem %s4419, 592 [#allocation3]
  %v4637 = vld [vmem:[%s4636] ss:$2 sm:$0x1]
  %s4638 = scalar_lea.vmem %s4419, 624 [#allocation3]
  %v4639 = vld [vmem:[%s4638] ss:$2 sm:$0xff]
  %s4640 = scalar_lea.vmem %s4419, 640 [#allocation3]
  %v4641 = vld [vmem:[%s4640] ss:$2 sm:$0x1]
  %s4642 = scalar_lea.vmem %s4419, 672 [#allocation3]
  %v4643 = vld [vmem:[%s4642] ss:$2 sm:$0xff]
  %s4644 = scalar_lea.vmem %s4419, 688 [#allocation3]
  %v4645 = vld [vmem:[%s4644] ss:$2 sm:$0x1]
  %s4646 = scalar_lea.vmem %s4419, 720 [#allocation3]
  %v4647 = vld [vmem:[%s4646] ss:$2 sm:$0xff]
  %s4648 = scalar_lea.vmem %s4419, 736 [#allocation3]
  %v4649 = vld [vmem:[%s4648] ss:$2 sm:$0x1]
  %s4650 = scalar_lea.vmem %s4419, 768 [#allocation3]
  %v4651 = vld [vmem:[%s4650] ss:$2 sm:$0xff]
  %s4652 = scalar_lea.vmem %s4419, 784 [#allocation3]
  %v4653 = vld [vmem:[%s4652] ss:$2 sm:$0x1]
  %s4654 = scalar_lea.vmem %s4419, 1 [#allocation3]
  %v4655 = vld [vmem:[%s4654] ss:$2 sm:$0xff]
  %s4656 = scalar_lea.vmem %s4419, 49 [#allocation3]
  %v4657 = vld [vmem:[%s4656] ss:$2 sm:$0xff]
  %s4658 = scalar_lea.vmem %s4419, 97 [#allocation3]
  %v4659 = vld [vmem:[%s4658] ss:$2 sm:$0xff]
  %s4660 = scalar_lea.vmem %s4419, 145 [#allocation3]
  %v4661 = vld [vmem:[%s4660] ss:$2 sm:$0xff]
  %s4662 = scalar_lea.vmem %s4419, 193 [#allocation3]
  %v4663 = vld [vmem:[%s4662] ss:$2 sm:$0xff]
  %s4664 = scalar_lea.vmem %s4419, 241 [#allocation3]
  %v4665 = vld [vmem:[%s4664] ss:$2 sm:$0xff]
  %s4666 = scalar_lea.vmem %s4419, 289 [#allocation3]
  %v4667 = vld [vmem:[%s4666] ss:$2 sm:$0xff]
  %s4668 = scalar_lea.vmem %s4419, 337 [#allocation3]
  %v4669 = vld [vmem:[%s4668] ss:$2 sm:$0xff]
  %s4670 = scalar_lea.vmem %s4419, 433 [#allocation3]
  %v4671 = vld [vmem:[%s4670] ss:$2 sm:$0xff]
  %s4672 = scalar_lea.vmem %s4419, 481 [#allocation3]
  %v4673 = vld [vmem:[%s4672] ss:$2 sm:$0xff]
  %s4674 = scalar_lea.vmem %s4419, 529 [#allocation3]
  %v4675 = vld [vmem:[%s4674] ss:$2 sm:$0xff]
  %s4676 = scalar_lea.vmem %s4419, 577 [#allocation3]
  %v4677 = vld [vmem:[%s4676] ss:$2 sm:$0xff]
  %s4678 = scalar_lea.vmem %s4419, 625 [#allocation3]
  %v4679 = vld [vmem:[%s4678] ss:$2 sm:$0xff]
  %s4680 = scalar_lea.vmem %s4419, 673 [#allocation3]
  %v4681 = vld [vmem:[%s4680] ss:$2 sm:$0xff]
  %s4682 = scalar_lea.vmem %s4419, 721 [#allocation3]
  %v4683 = vld [vmem:[%s4682] ss:$2 sm:$0xff]
  %s4684 = scalar_lea.vmem %s4419, 769 [#allocation3]
  %v4685 = vld [vmem:[%s4684] ss:$2 sm:$0xff]
  %vm4718 = vcmask 1046528
  %v4719 = vrot.slane %v4484, 1
  %v4720 = vrot.slane %v4486, 1
  %v4721 = vsel %vm4718, %v4719, %v4720
  %v4722 = vrot.slane %v4488, 1
  %v4723 = vrot.slane %v4490, 1
  %v4724 = vsel %vm4718, %v4722, %v4723
  %v4725 = vrot.slane %v4492, 1
  %v4726 = vrot.slane %v4494, 1
  %v4727 = vsel %vm4718, %v4725, %v4726
  %v4728 = vrot.slane %v4496, 1
  %v4729 = vrot.slane %v4498, 1
  %v4730 = vsel %vm4718, %v4728, %v4729
  %v4731 = vrot.slane %v4500, 1
  %v4732 = vrot.slane %v4502, 1
  %v4733 = vsel %vm4718, %v4731, %v4732
  %v4734 = vrot.slane %v4504, 1
  %v4735 = vrot.slane %v4506, 1
  %v4736 = vsel %vm4718, %v4734, %v4735
  %v4737 = vrot.slane %v4508, 1
  %v4738 = vrot.slane %v4510, 1
  %v4739 = vsel %vm4718, %v4737, %v4738
  %v4740 = vrot.slane %v4512, 1
  %v4741 = vrot.slane %v4514, 1
  %v4742 = vsel %vm4718, %v4740, %v4741
  %v4743 = vrot.slane %v4520, 1
  %v4744 = vrot.slane %v4522, 1
  %v4745 = vsel %vm4718, %v4743, %v4744
  %v4746 = vrot.slane %v4524, 1
  %v4747 = vrot.slane %v4526, 1
  %v4748 = vsel %vm4718, %v4746, %v4747
  %v4749 = vrot.slane %v4528, 1
  %v4750 = vrot.slane %v4530, 1
  %v4751 = vsel %vm4718, %v4749, %v4750
  %v4752 = vrot.slane %v4532, 1
  %v4753 = vrot.slane %v4534, 1
  %v4754 = vsel %vm4718, %v4752, %v4753
  %v4755 = vrot.slane %v4536, 1
  %v4756 = vrot.slane %v4538, 1
  %v4757 = vsel %vm4718, %v4755, %v4756
  %v4758 = vrot.slane %v4540, 1
  %v4759 = vrot.slane %v4542, 1
  %v4760 = vsel %vm4718, %v4758, %v4759
  %v4761 = vrot.slane %v4544, 1
  %v4762 = vrot.slane %v4546, 1
  %v4763 = vsel %vm4718, %v4761, %v4762
  %v4764 = vrot.slane %v4548, 1
  %v4765 = vrot.slane %v4550, 1
  %v4766 = vsel %vm4718, %v4764, %v4765
  %v4799 = vrot.slane %v4591, 1
  %v4800 = vrot.slane %v4593, 1
  %v4801 = vsel %vm4718, %v4799, %v4800
  %v4802 = vrot.slane %v4595, 1
  %v4803 = vrot.slane %v4597, 1
  %v4804 = vsel %vm4718, %v4802, %v4803
  %v4805 = vrot.slane %v4599, 1
  %v4806 = vrot.slane %v4601, 1
  %v4807 = vsel %vm4718, %v4805, %v4806
  %v4808 = vrot.slane %v4603, 1
  %v4809 = vrot.slane %v4605, 1
  %v4810 = vsel %vm4718, %v4808, %v4809
  %v4811 = vrot.slane %v4607, 1
  %v4812 = vrot.slane %v4609, 1
  %v4813 = vsel %vm4718, %v4811, %v4812
  %v4814 = vrot.slane %v4611, 1
  %v4815 = vrot.slane %v4613, 1
  %v4816 = vsel %vm4718, %v4814, %v4815
  %v4817 = vrot.slane %v4615, 1
  %v4818 = vrot.slane %v4617, 1
  %v4819 = vsel %vm4718, %v4817, %v4818
  %v4820 = vrot.slane %v4619, 1
  %v4821 = vrot.slane %v4621, 1
  %v4822 = vsel %vm4718, %v4820, %v4821
  %v4823 = vrot.slane %v4623, 1
  %v4824 = vrot.slane %v4625, 1
  %v4825 = vsel %vm4718, %v4823, %v4824
  %v4826 = vrot.slane %v4627, 1
  %v4827 = vrot.slane %v4629, 1
  %v4828 = vsel %vm4718, %v4826, %v4827
  %v4829 = vrot.slane %v4631, 1
  %v4830 = vrot.slane %v4633, 1
  %v4831 = vsel %vm4718, %v4829, %v4830
  %v4832 = vrot.slane %v4635, 1
  %v4833 = vrot.slane %v4637, 1
  %v4834 = vsel %vm4718, %v4832, %v4833
  %v4835 = vrot.slane %v4639, 1
  %v4836 = vrot.slane %v4641, 1
  %v4837 = vsel %vm4718, %v4835, %v4836
  %v4838 = vrot.slane %v4643, 1
  %v4839 = vrot.slane %v4645, 1
  %v4840 = vsel %vm4718, %v4838, %v4839
  %v4841 = vrot.slane %v4647, 1
  %v4842 = vrot.slane %v4649, 1
  %v4843 = vsel %vm4718, %v4841, %v4842
  %v4844 = vrot.slane %v4651, 1
  %v4845 = vrot.slane %v4653, 1
  %v4846 = vsel %vm4718, %v4844, %v4845
  %v4851 = vrot.slane %v4516, 1
  %v4852 = vrot.slane %v4518, 1
  %v4853 = vsel %vm4718, %v4851, %v4852
  %v4854 = vrot.slane %v4552, 1
  %v4855 = vrot.slane %v4554, 1
  %v4856 = vsel %vm4718, %v4854, %v4855
  %4873 = vrot.lane.b32.xlu0 %v4556, 8
  %v4874 = vpop.permute.xlu0 %4873
  %4875 = vrot.lane.b32.xlu0 %v4558, 8
  %v4876 = vpop.permute.xlu0 %4875
  %4877 = vrot.lane.b32.xlu0 %v4560, 8
  %v4878 = vpop.permute.xlu0 %4877
  %4879 = vrot.lane.b32.xlu0 %v4562, 8
  %v4880 = vpop.permute.xlu0 %4879
  %4881 = vrot.lane.b32.xlu0 %v4564, 8
  %v4882 = vpop.permute.xlu0 %4881
  %4883 = vrot.lane.b32.xlu0 %v4566, 8
  %v4884 = vpop.permute.xlu0 %4883
  %4885 = vrot.lane.b32.xlu0 %v4568, 8
  %v4886 = vpop.permute.xlu0 %4885
  %4887 = vrot.lane.b32.xlu0 %v4570, 8
  %v4888 = vpop.permute.xlu0 %4887
  %4889 = vrot.lane.b32.xlu0 %v4574, 8
  %v4890 = vpop.permute.xlu0 %4889
  %4891 = vrot.lane.b32.xlu0 %v4576, 8
  %v4892 = vpop.permute.xlu0 %4891
  %4893 = vrot.lane.b32.xlu0 %v4578, 8
  %v4894 = vpop.permute.xlu0 %4893
  %4895 = vrot.lane.b32.xlu0 %v4580, 8
  %v4896 = vpop.permute.xlu0 %4895
  %4897 = vrot.lane.b32.xlu0 %v4582, 8
  %v4898 = vpop.permute.xlu0 %4897
  %4899 = vrot.lane.b32.xlu0 %v4584, 8
  %v4900 = vpop.permute.xlu0 %4899
  %4901 = vrot.lane.b32.xlu0 %v4586, 8
  %v4902 = vpop.permute.xlu0 %4901
  %4903 = vrot.lane.b32.xlu0 %v4588, 8
  %v4904 = vpop.permute.xlu0 %4903
  %4921 = vrot.lane.b32.xlu0 %v4721, 16
  %v4922 = vpop.permute.xlu0 %4921
  %4923 = vrot.lane.b32.xlu0 %v4724, 16
  %v4924 = vpop.permute.xlu0 %4923
  %4925 = vrot.lane.b32.xlu0 %v4727, 16
  %v4926 = vpop.permute.xlu0 %4925
  %4927 = vrot.lane.b32.xlu0 %v4730, 16
  %v4928 = vpop.permute.xlu0 %4927
  %4929 = vrot.lane.b32.xlu0 %v4733, 16
  %v4930 = vpop.permute.xlu0 %4929
  %4931 = vrot.lane.b32.xlu0 %v4736, 16
  %v4932 = vpop.permute.xlu0 %4931
  %4933 = vrot.lane.b32.xlu0 %v4739, 16
  %v4934 = vpop.permute.xlu0 %4933
  %4935 = vrot.lane.b32.xlu0 %v4742, 16
  %v4936 = vpop.permute.xlu0 %4935
  %4937 = vrot.lane.b32.xlu0 %v4745, 16
  %v4938 = vpop.permute.xlu0 %4937
  %4939 = vrot.lane.b32.xlu0 %v4748, 16
  %v4940 = vpop.permute.xlu0 %4939
  %4941 = vrot.lane.b32.xlu0 %v4751, 16
  %v4942 = vpop.permute.xlu0 %4941
  %4943 = vrot.lane.b32.xlu0 %v4754, 16
  %v4944 = vpop.permute.xlu0 %4943
  %4945 = vrot.lane.b32.xlu0 %v4757, 16
  %v4946 = vpop.permute.xlu0 %4945
  %4947 = vrot.lane.b32.xlu0 %v4760, 16
  %v4948 = vpop.permute.xlu0 %4947
  %4949 = vrot.lane.b32.xlu0 %v4763, 16
  %v4950 = vpop.permute.xlu0 %4949
  %4951 = vrot.lane.b32.xlu0 %v4766, 16
  %v4952 = vpop.permute.xlu0 %4951
  %4969 = vrot.lane.b32.xlu0 %v4591, 24
  %v4970 = vpop.permute.xlu0 %4969
  %4971 = vrot.lane.b32.xlu0 %v4595, 24
  %v4972 = vpop.permute.xlu0 %4971
  %4973 = vrot.lane.b32.xlu0 %v4599, 24
  %v4974 = vpop.permute.xlu0 %4973
  %4975 = vrot.lane.b32.xlu0 %v4603, 24
  %v4976 = vpop.permute.xlu0 %4975
  %4977 = vrot.lane.b32.xlu0 %v4607, 24
  %v4978 = vpop.permute.xlu0 %4977
  %4979 = vrot.lane.b32.xlu0 %v4611, 24
  %v4980 = vpop.permute.xlu0 %4979
  %4981 = vrot.lane.b32.xlu0 %v4615, 24
  %v4982 = vpop.permute.xlu0 %4981
  %4983 = vrot.lane.b32.xlu0 %v4619, 24
  %v4984 = vpop.permute.xlu0 %4983
  %4985 = vrot.lane.b32.xlu0 %v4623, 24
  %v4986 = vpop.permute.xlu0 %4985
  %4987 = vrot.lane.b32.xlu0 %v4627, 24
  %v4988 = vpop.permute.xlu0 %4987
  %4989 = vrot.lane.b32.xlu0 %v4631, 24
  %v4990 = vpop.permute.xlu0 %4989
  %4991 = vrot.lane.b32.xlu0 %v4635, 24
  %v4992 = vpop.permute.xlu0 %4991
  %4993 = vrot.lane.b32.xlu0 %v4639, 24
  %v4994 = vpop.permute.xlu0 %4993
  %4995 = vrot.lane.b32.xlu0 %v4643, 24
  %v4996 = vpop.permute.xlu0 %4995
  %4997 = vrot.lane.b32.xlu0 %v4647, 24
  %v4998 = vpop.permute.xlu0 %4997
  %4999 = vrot.lane.b32.xlu0 %v4651, 24
  %v5000 = vpop.permute.xlu0 %4999
  %5033 = vrot.lane.b32.xlu0 %v4655, 32
  %v5034 = vpop.permute.xlu0 %5033
  %5035 = vrot.lane.b32.xlu0 %v4657, 32
  %v5036 = vpop.permute.xlu0 %5035
  %5037 = vrot.lane.b32.xlu0 %v4659, 32
  %v5038 = vpop.permute.xlu0 %5037
  %5039 = vrot.lane.b32.xlu0 %v4661, 32
  %v5040 = vpop.permute.xlu0 %5039
  %5041 = vrot.lane.b32.xlu0 %v4663, 32
  %v5042 = vpop.permute.xlu0 %5041
  %5043 = vrot.lane.b32.xlu0 %v4665, 32
  %v5044 = vpop.permute.xlu0 %5043
  %5045 = vrot.lane.b32.xlu0 %v4667, 32
  %v5046 = vpop.permute.xlu0 %5045
  %5047 = vrot.lane.b32.xlu0 %v4669, 32
  %v5048 = vpop.permute.xlu0 %5047
  %5049 = vrot.lane.b32.xlu0 %v4671, 32
  %v5050 = vpop.permute.xlu0 %5049
  %5051 = vrot.lane.b32.xlu0 %v4673, 32
  %v5052 = vpop.permute.xlu0 %5051
  %5053 = vrot.lane.b32.xlu0 %v4675, 32
  %v5054 = vpop.permute.xlu0 %5053
  %5055 = vrot.lane.b32.xlu0 %v4677, 32
  %v5056 = vpop.permute.xlu0 %5055
  %5057 = vrot.lane.b32.xlu0 %v4679, 32
  %v5058 = vpop.permute.xlu0 %5057
  %5059 = vrot.lane.b32.xlu0 %v4681, 32
  %v5060 = vpop.permute.xlu0 %5059
  %5061 = vrot.lane.b32.xlu0 %v4683, 32
  %v5062 = vpop.permute.xlu0 %5061
  %5063 = vrot.lane.b32.xlu0 %v4685, 32
  %v5064 = vpop.permute.xlu0 %5063
  %5081 = vrot.lane.b32.xlu0 %v4801, 40
  %v5082 = vpop.permute.xlu0 %5081
  %5083 = vrot.lane.b32.xlu0 %v4804, 40
  %v5084 = vpop.permute.xlu0 %5083
  %5085 = vrot.lane.b32.xlu0 %v4807, 40
  %v5086 = vpop.permute.xlu0 %5085
  %5087 = vrot.lane.b32.xlu0 %v4810, 40
  %v5088 = vpop.permute.xlu0 %5087
  %5089 = vrot.lane.b32.xlu0 %v4813, 40
  %v5090 = vpop.permute.xlu0 %5089
  %5091 = vrot.lane.b32.xlu0 %v4816, 40
  %v5092 = vpop.permute.xlu0 %5091
  %5093 = vrot.lane.b32.xlu0 %v4819, 40
  %v5094 = vpop.permute.xlu0 %5093
  %5095 = vrot.lane.b32.xlu0 %v4822, 40
  %v5096 = vpop.permute.xlu0 %5095
  %5097 = vrot.lane.b32.xlu0 %v4825, 40
  %v5098 = vpop.permute.xlu0 %5097
  %5099 = vrot.lane.b32.xlu0 %v4828, 40
  %v5100 = vpop.permute.xlu0 %5099
  %5101 = vrot.lane.b32.xlu0 %v4831, 40
  %v5102 = vpop.permute.xlu0 %5101
  %5103 = vrot.lane.b32.xlu0 %v4834, 40
  %v5104 = vpop.permute.xlu0 %5103
  %5105 = vrot.lane.b32.xlu0 %v4837, 40
  %v5106 = vpop.permute.xlu0 %5105
  %5107 = vrot.lane.b32.xlu0 %v4840, 40
  %v5108 = vpop.permute.xlu0 %5107
  %5109 = vrot.lane.b32.xlu0 %v4843, 40
  %v5110 = vpop.permute.xlu0 %5109
  %5111 = vrot.lane.b32.xlu0 %v4846, 40
  %v5112 = vpop.permute.xlu0 %5111
  %5129 = vrot.lane.b32.xlu0 %v4488, 48
  %v5130 = vpop.permute.xlu0 %5129
  %5131 = vrot.lane.b32.xlu0 %v4492, 48
  %v5132 = vpop.permute.xlu0 %5131
  %5133 = vrot.lane.b32.xlu0 %v4496, 48
  %v5134 = vpop.permute.xlu0 %5133
  %5135 = vrot.lane.b32.xlu0 %v4500, 48
  %v5136 = vpop.permute.xlu0 %5135
  %5137 = vrot.lane.b32.xlu0 %v4504, 48
  %v5138 = vpop.permute.xlu0 %5137
  %5139 = vrot.lane.b32.xlu0 %v4508, 48
  %v5140 = vpop.permute.xlu0 %5139
  %5141 = vrot.lane.b32.xlu0 %v4512, 48
  %v5142 = vpop.permute.xlu0 %5141
  %5143 = vrot.lane.b32.xlu0 %v4516, 48
  %v5144 = vpop.permute.xlu0 %5143
  %5145 = vrot.lane.b32.xlu0 %v4524, 48
  %v5146 = vpop.permute.xlu0 %5145
  %5147 = vrot.lane.b32.xlu0 %v4528, 48
  %v5148 = vpop.permute.xlu0 %5147
  %5149 = vrot.lane.b32.xlu0 %v4532, 48
  %v5150 = vpop.permute.xlu0 %5149
  %5151 = vrot.lane.b32.xlu0 %v4536, 48
  %v5152 = vpop.permute.xlu0 %5151
  %5153 = vrot.lane.b32.xlu0 %v4540, 48
  %v5154 = vpop.permute.xlu0 %5153
  %5155 = vrot.lane.b32.xlu0 %v4544, 48
  %v5156 = vpop.permute.xlu0 %5155
  %5157 = vrot.lane.b32.xlu0 %v4548, 48
  %v5158 = vpop.permute.xlu0 %5157
  %5159 = vrot.lane.b32.xlu0 %v4552, 48
  %v5160 = vpop.permute.xlu0 %5159
  %5179 = vrot.lane.b32.xlu0 %v4558, 56
  %v5180 = vpop.permute.xlu0 %5179
  %5181 = vrot.lane.b32.xlu0 %v4560, 56
  %v5182 = vpop.permute.xlu0 %5181
  %5183 = vrot.lane.b32.xlu0 %v4562, 56
  %v5184 = vpop.permute.xlu0 %5183
  %5185 = vrot.lane.b32.xlu0 %v4564, 56
  %v5186 = vpop.permute.xlu0 %5185
  %5187 = vrot.lane.b32.xlu0 %v4566, 56
  %v5188 = vpop.permute.xlu0 %5187
  %5189 = vrot.lane.b32.xlu0 %v4568, 56
  %v5190 = vpop.permute.xlu0 %5189
  %5191 = vrot.lane.b32.xlu0 %v4570, 56
  %v5192 = vpop.permute.xlu0 %5191
  %5193 = vrot.lane.b32.xlu0 %v4572, 56
  %v5194 = vpop.permute.xlu0 %5193
  %5195 = vrot.lane.b32.xlu0 %v4576, 56
  %v5196 = vpop.permute.xlu0 %5195
  %5197 = vrot.lane.b32.xlu0 %v4578, 56
  %v5198 = vpop.permute.xlu0 %5197
  %5199 = vrot.lane.b32.xlu0 %v4580, 56
  %v5200 = vpop.permute.xlu0 %5199
  %5201 = vrot.lane.b32.xlu0 %v4582, 56
  %v5202 = vpop.permute.xlu0 %5201
  %5203 = vrot.lane.b32.xlu0 %v4584, 56
  %v5204 = vpop.permute.xlu0 %5203
  %5205 = vrot.lane.b32.xlu0 %v4586, 56
  %v5206 = vpop.permute.xlu0 %5205
  %5207 = vrot.lane.b32.xlu0 %v4588, 56
  %v5208 = vpop.permute.xlu0 %5207
  %5209 = vrot.lane.b32.xlu0 %v4590, 56
  %v5210 = vpop.permute.xlu0 %5209
  %5227 = vrot.lane.b32.xlu0 %v4724, 64
  %v5228 = vpop.permute.xlu0 %5227
  %5229 = vrot.lane.b32.xlu0 %v4727, 64
  %v5230 = vpop.permute.xlu0 %5229
  %5231 = vrot.lane.b32.xlu0 %v4730, 64
  %v5232 = vpop.permute.xlu0 %5231
  %5233 = vrot.lane.b32.xlu0 %v4733, 64
  %v5234 = vpop.permute.xlu0 %5233
  %5235 = vrot.lane.b32.xlu0 %v4736, 64
  %v5236 = vpop.permute.xlu0 %5235
  %5237 = vrot.lane.b32.xlu0 %v4739, 64
  %v5238 = vpop.permute.xlu0 %5237
  %5239 = vrot.lane.b32.xlu0 %v4742, 64
  %v5240 = vpop.permute.xlu0 %5239
  %5241 = vrot.lane.b32.xlu0 %v4853, 64
  %v5242 = vpop.permute.xlu0 %5241
  %5243 = vrot.lane.b32.xlu0 %v4748, 64
  %v5244 = vpop.permute.xlu0 %5243
  %5245 = vrot.lane.b32.xlu0 %v4751, 64
  %v5246 = vpop.permute.xlu0 %5245
  %5247 = vrot.lane.b32.xlu0 %v4754, 64
  %v5248 = vpop.permute.xlu0 %5247
  %5249 = vrot.lane.b32.xlu0 %v4757, 64
  %v5250 = vpop.permute.xlu0 %5249
  %5251 = vrot.lane.b32.xlu0 %v4760, 64
  %v5252 = vpop.permute.xlu0 %5251
  %5253 = vrot.lane.b32.xlu0 %v4763, 64
  %v5254 = vpop.permute.xlu0 %5253
  %5255 = vrot.lane.b32.xlu0 %v4766, 64
  %v5256 = vpop.permute.xlu0 %5255
  %5257 = vrot.lane.b32.xlu0 %v4856, 64
  %v5258 = vpop.permute.xlu0 %5257
  %v5275 = vsel %vm169, %v4484, %v4874
  %v5276 = vsel %vm169, %v4488, %v4876
  %v5277 = vsel %vm169, %v4492, %v4878
  %v5278 = vsel %vm169, %v4496, %v4880
  %v5279 = vsel %vm169, %v4500, %v4882
  %v5280 = vsel %vm169, %v4504, %v4884
  %v5281 = vsel %vm169, %v4508, %v4886
  %v5282 = vsel %vm169, %v4512, %v4888
  %v5283 = vsel %vm169, %v4520, %v4890
  %v5284 = vsel %vm169, %v4524, %v4892
  %v5285 = vsel %vm169, %v4528, %v4894
  %v5286 = vsel %vm169, %v4532, %v4896
  %v5287 = vsel %vm169, %v4536, %v4898
  %v5288 = vsel %vm169, %v4540, %v4900
  %v5289 = vsel %vm169, %v4544, %v4902
  %v5290 = vsel %vm169, %v4548, %v4904
  %v5291 = vsel %vm257, %v5275, %v4922
  %v5292 = vsel %vm257, %v5276, %v4924
  %v5293 = vsel %vm257, %v5277, %v4926
  %v5294 = vsel %vm257, %v5278, %v4928
  %v5295 = vsel %vm257, %v5279, %v4930
  %v5296 = vsel %vm257, %v5280, %v4932
  %v5297 = vsel %vm257, %v5281, %v4934
  %v5298 = vsel %vm257, %v5282, %v4936
  %v5299 = vsel %vm257, %v5283, %v4938
  %v5300 = vsel %vm257, %v5284, %v4940
  %v5301 = vsel %vm257, %v5285, %v4942
  %v5302 = vsel %vm257, %v5286, %v4944
  %v5303 = vsel %vm257, %v5287, %v4946
  %v5304 = vsel %vm257, %v5288, %v4948
  %v5305 = vsel %vm257, %v5289, %v4950
  %v5306 = vsel %vm257, %v5290, %v4952
  %v5307 = vsel %vm3438, %v5291, %v4970
  %v5308 = vsel %vm3438, %v5292, %v4972
  %v5309 = vsel %vm3438, %v5293, %v4974
  %v5310 = vsel %vm3438, %v5294, %v4976
  %v5311 = vsel %vm3438, %v5295, %v4978
  %v5312 = vsel %vm3438, %v5296, %v4980
  %v5313 = vsel %vm3438, %v5297, %v4982
  %v5314 = vsel %vm3438, %v5298, %v4984
  %v5315 = vsel %vm3438, %v5299, %v4986
  %v5316 = vsel %vm3438, %v5300, %v4988
  %v5317 = vsel %vm3438, %v5301, %v4990
  %v5318 = vsel %vm3438, %v5302, %v4992
  %v5319 = vsel %vm3438, %v5303, %v4994
  %v5320 = vsel %vm3438, %v5304, %v4996
  %v5321 = vsel %vm3438, %v5305, %v4998
  %v5322 = vsel %vm3438, %v5306, %v5000
  %vm5323 = vcmask 261120
  %v5324 = vsel %vm5323, %v5307, %v5034
  %v5325 = vsel %vm5323, %v5308, %v5036
  %v5326 = vsel %vm5323, %v5309, %v5038
  %v5327 = vsel %vm5323, %v5310, %v5040
  %v5328 = vsel %vm5323, %v5311, %v5042
  %v5329 = vsel %vm5323, %v5312, %v5044
  %v5330 = vsel %vm5323, %v5313, %v5046
  %v5331 = vsel %vm5323, %v5314, %v5048
  %v5332 = vsel %vm5323, %v5315, %v5050
  %v5333 = vsel %vm5323, %v5316, %v5052
  %v5334 = vsel %vm5323, %v5317, %v5054
  %v5335 = vsel %vm5323, %v5318, %v5056
  %v5336 = vsel %vm5323, %v5319, %v5058
  %v5337 = vsel %vm5323, %v5320, %v5060
  %v5338 = vsel %vm5323, %v5321, %v5062
  %v5339 = vsel %vm5323, %v5322, %v5064
  %vm5340 = vcmask 326656
  %v5341 = vsel %vm5340, %v5324, %v5082
  %v5342 = vsel %vm5340, %v5325, %v5084
  %v5343 = vsel %vm5340, %v5326, %v5086
  %v5344 = vsel %vm5340, %v5327, %v5088
  %v5345 = vsel %vm5340, %v5328, %v5090
  %v5346 = vsel %vm5340, %v5329, %v5092
  %v5347 = vsel %vm5340, %v5330, %v5094
  %v5348 = vsel %vm5340, %v5331, %v5096
  %v5349 = vsel %vm5340, %v5332, %v5098
  %v5350 = vsel %vm5340, %v5333, %v5100
  %v5351 = vsel %vm5340, %v5334, %v5102
  %v5352 = vsel %vm5340, %v5335, %v5104
  %v5353 = vsel %vm5340, %v5336, %v5106
  %v5354 = vsel %vm5340, %v5337, %v5108
  %v5355 = vsel %vm5340, %v5338, %v5110
  %v5356 = vsel %vm5340, %v5339, %v5112
  %v5357 = vsel %vm3698, %v5341, %v5130
  %v5358 = vsel %vm3698, %v5342, %v5132
  %v5359 = vsel %vm3698, %v5343, %v5134
  %v5360 = vsel %vm3698, %v5344, %v5136
  %v5361 = vsel %vm3698, %v5345, %v5138
  %v5362 = vsel %vm3698, %v5346, %v5140
  %v5363 = vsel %vm3698, %v5347, %v5142
  %v5364 = vsel %vm3698, %v5348, %v5144
  %v5365 = vsel %vm3698, %v5349, %v5146
  %v5366 = vsel %vm3698, %v5350, %v5148
  %v5367 = vsel %vm3698, %v5351, %v5150
  %v5368 = vsel %vm3698, %v5352, %v5152
  %v5369 = vsel %vm3698, %v5353, %v5154
  %v5370 = vsel %vm3698, %v5354, %v5156
  %v5371 = vsel %vm3698, %v5355, %v5158
  %v5372 = vsel %vm3698, %v5356, %v5160
  %vm5373 = vcmask 457728
  %v5374 = vsel %vm5373, %v5357, %v5180
  %v5375 = vsel %vm5373, %v5358, %v5182
  %v5376 = vsel %vm5373, %v5359, %v5184
  %v5377 = vsel %vm5373, %v5360, %v5186
  %v5378 = vsel %vm5373, %v5361, %v5188
  %v5379 = vsel %vm5373, %v5362, %v5190
  %v5380 = vsel %vm5373, %v5363, %v5192
  %v5381 = vsel %vm5373, %v5364, %v5194
  %v5382 = vsel %vm5373, %v5365, %v5196
  %v5383 = vsel %vm5373, %v5366, %v5198
  %v5384 = vsel %vm5373, %v5367, %v5200
  %v5385 = vsel %vm5373, %v5368, %v5202
  %v5386 = vsel %vm5373, %v5369, %v5204
  %v5387 = vsel %vm5373, %v5370, %v5206
  %v5388 = vsel %vm5373, %v5371, %v5208
  %v5389 = vsel %vm5373, %v5372, %v5210
  %vm5390 = vcmask 523264
  %v5391 = vsel %vm5390, %v5374, %v5228
  %v5392 = vsel %vm5390, %v5375, %v5230
  %v5393 = vsel %vm5390, %v5376, %v5232
  %v5394 = vsel %vm5390, %v5377, %v5234
  %v5395 = vsel %vm5390, %v5378, %v5236
  %v5396 = vsel %vm5390, %v5379, %v5238
  %v5397 = vsel %vm5390, %v5380, %v5240
  %v5398 = vsel %vm5390, %v5381, %v5242
  %v5399 = vsel %vm5390, %v5382, %v5244
  %v5400 = vsel %vm5390, %v5383, %v5246
  %v5401 = vsel %vm5390, %v5384, %v5248
  %v5402 = vsel %vm5390, %v5385, %v5250
  %v5403 = vsel %vm5390, %v5386, %v5252
  %v5404 = vsel %vm5390, %v5387, %v5254
  %v5405 = vsel %vm5390, %v5388, %v5256
  %v5406 = vsel %vm5390, %v5389, %v5258
  %v5407 = vpack.c.bf16 %v5392, %v5391
  %v5408 = vpack.c.bf16 %v5394, %v5393
  %v5409 = vpack.c.bf16 %v5396, %v5395
  %v5410 = vpack.c.bf16 %v5398, %v5397
  %v5411 = vpack.c.bf16 %v5400, %v5399
  %v5412 = vpack.c.bf16 %v5402, %v5401
  %v5413 = vpack.c.bf16 %v5404, %v5403
  %v5414 = vpack.c.bf16 %v5406, %v5405
  %v5415 = vld [vmem:[%s4] sm:$0xf]
  %v5416 = vld [vmem:[%s4 + $0x4] sm:$0xf]
  %v5417 = vld [vmem:[%s4 + $0x8] sm:$0xf]
  %v5418 = vld [vmem:[%s4 + $0xc] sm:$0xf]
  %v5419 = vld [vmem:[%s4 + $0x10] sm:$0xf]
  %v5420 = vld [vmem:[%s4 + $0x14] sm:$0xf]
  %v5421 = vld [vmem:[%s4 + $0x18] sm:$0xf]
  %v5422 = vld [vmem:[%s4 + $0x1c] sm:$0xf]
  %v5423 = vld [vmem:[%s4 + $0x20] sm:$0xf]
  %v5433 = vunpack.c.l.b16 %v5415
  %v5434 = vunpack.c.l.b16 %v5416
  %v5435 = vunpack.c.l.b16 %v5417
  %v5436 = vunpack.c.l.b16 %v5418
  %v5437 = vunpack.c.l.b16 %v5419
  %v5438 = vunpack.c.l.b16 %v5420
  %v5439 = vunpack.c.l.b16 %v5421
  %v5440 = vunpack.c.l.b16 %v5422
  %v5441 = vunpack.c.l.b16 %v5423
  %v5442 = vpack.c.b16 %v5434, %v5433
  %v5443 = vpack.c.b16 %v5436, %v5435
  %v5444 = vpack.c.b16 %v5438, %v5437
  %v5445 = vpack.c.b16 %v5440, %v5439
  %v5446 = vpack.c.b16 %v5441, %v5441
  %vm5451 = vcmask 588800
  %v5453 = vsel %vm5451, %v5407, 0
  %v5456 = vsel %vm5451, %v5408, 0
  %v5459 = vsel %vm5451, %v5409, 0
  %v5462 = vsel %vm5451, %v5410, 0
  %v5465 = vsel %vm5451, %v5411, 0
  %v5468 = vsel %vm5451, %v5412, 0
  %v5471 = vsel %vm5451, %v5413, 0
  %v5474 = vsel %vm5451, %v5414, 0
  %vm5476 = vcmask 1043456
  %v5478 = vsel %vm5476, %v5446, 0
  %5480 = vmatprep.subr.bf16.mxu0 0
  %5481 = vmatpush1.bf16.msra.mxu0 0
  %5482 = vmatprep.subr.bf16.mxu0 0
  %5483 = vmatpush1.bf16.msra.mxu0 0
  %5484 = vmatprep.subr.bf16.mxu0 0
  %5485 = vmatpush1.bf16.msra.mxu0 0
  %5486 = vmatprep.subr.bf16.mxu0 0
  %5487 = vmatpush1.bf16.msra.mxu0 %v5478
  %5488 = vmatprep.subr.bf16.mxu0 0
  %5489 = vmatpush1.bf16.msra.mxu0 %v5445
  %5490 = vmatprep.subr.bf16.mxu0 0
  %5491 = vmatpush1.bf16.msra.mxu0 %v5444
  %5492 = vmatprep.subr.bf16.mxu0 0
  %5493 = vmatpush1.bf16.msra.mxu0 %v5443
  %5494 = vmatprep.subr.bf16.mxu0 0
  %5495 = vmatpush1.bf16.msra.mxu0 %v5442
  %5496 = vmatprep.subr.bf16.mxu0 0
  %5497 = vmatpush2.bf16.msra.mxu0 0
  %5498 = vmatprep.subr.bf16.mxu0 0
  %5499 = vmatpush2.bf16.msra.mxu0 0
  %5500 = vmatprep.subr.bf16.mxu0 0
  %5501 = vmatpush2.bf16.msra.mxu0 0
  %5502 = vmatprep.subr.bf16.mxu0 0
  %5503 = vmatpush2.bf16.msra.mxu0 0
  %5504 = vmatprep.subr.bf16.mxu0 0
  %5505 = vmatpush2.bf16.msra.mxu0 0
  %5506 = vmatprep.subr.bf16.mxu0 0
  %5507 = vmatpush2.bf16.msra.mxu0 0
  %5508 = vmatprep.subr.bf16.mxu0 0
  %5509 = vmatpush2.bf16.msra.mxu0 0
  %5510 = vmatprep.subr.bf16.mxu0 0
  %5511 = vmatpush2.bf16.msra.mxu0 0
  %5512 = vmatprep.mubr.bf16.mxu0 0
  %5513 = vmatmul.mubr.bf16.gmra.mxu0 %v5453
  %v5514 = vpop.f32.mrf.mxu0
  %v5515 = vadd.f32 0.0, %v5514
  %v5516 = vpop.f32.mrf.mxu0
  %v5517 = vpop.f32.mrf.mxu0
  %v5518 = vadd.f32 0.0, %v5517
  %v5519 = vpop.f32.mrf.mxu0
  %5520 = vmatprep.mubr.bf16.mxu0 0
  %5521 = vmatmul.mubr.bf16.gmra.mxu0 %v5456
  %v5522 = vpop.f32.mrf.mxu0
  %v5523 = vadd.f32 0.0, %v5522
  %v5524 = vpop.f32.mrf.mxu0
  %v5525 = vpop.f32.mrf.mxu0
  %v5526 = vadd.f32 0.0, %v5525
  %v5527 = vpop.f32.mrf.mxu0
  %5528 = vmatprep.mubr.bf16.mxu0 0
  %5529 = vmatmul.mubr.bf16.gmra.mxu0 %v5459
  %v5530 = vpop.f32.mrf.mxu0
  %v5531 = vadd.f32 0.0, %v5530
  %v5532 = vpop.f32.mrf.mxu0
  %v5533 = vpop.f32.mrf.mxu0
  %v5534 = vadd.f32 0.0, %v5533
  %v5535 = vpop.f32.mrf.mxu0
  %5536 = vmatprep.mubr.bf16.mxu0 0
  %5537 = vmatmul.mubr.bf16.gmra.mxu0 %v5462
  %v5538 = vpop.f32.mrf.mxu0
  %v5539 = vadd.f32 0.0, %v5538
  %v5540 = vpop.f32.mrf.mxu0
  %v5541 = vpop.f32.mrf.mxu0
  %v5542 = vadd.f32 0.0, %v5541
  %v5543 = vpop.f32.mrf.mxu0
  %5544 = vmatprep.mubr.bf16.mxu0 0
  %5545 = vmatmul.mubr.bf16.gmra.mxu0 %v5465
  %v5546 = vpop.f32.mrf.mxu0
  %v5547 = vadd.f32 0.0, %v5546
  %v5548 = vpop.f32.mrf.mxu0
  %v5549 = vpop.f32.mrf.mxu0
  %v5550 = vadd.f32 0.0, %v5549
  %v5551 = vpop.f32.mrf.mxu0
  %5552 = vmatprep.mubr.bf16.mxu0 0
  %5553 = vmatmul.mubr.bf16.gmra.mxu0 %v5468
  %v5554 = vpop.f32.mrf.mxu0
  %v5555 = vadd.f32 0.0, %v5554
  %v5556 = vpop.f32.mrf.mxu0
  %v5557 = vpop.f32.mrf.mxu0
  %v5558 = vadd.f32 0.0, %v5557
  %v5559 = vpop.f32.mrf.mxu0
  %5560 = vmatprep.mubr.bf16.mxu0 0
  %5561 = vmatmul.mubr.bf16.gmra.mxu0 %v5471
  %v5562 = vpop.f32.mrf.mxu0
  %v5563 = vadd.f32 0.0, %v5562
  %v5564 = vpop.f32.mrf.mxu0
  %v5565 = vpop.f32.mrf.mxu0
  %v5566 = vadd.f32 0.0, %v5565
  %v5567 = vpop.f32.mrf.mxu0
  %5568 = vmatprep.mubr.bf16.mxu0 0
  %5569 = vmatmul.mubr.bf16.gmra.mxu0 %v5474
  %v5570 = vpop.f32.mrf.mxu0
  %v5571 = vadd.f32 0.0, %v5570
  %v5572 = vpop.f32.mrf.mxu0
  %v5573 = vpop.f32.mrf.mxu0
  %v5574 = vadd.f32 0.0, %v5573
  %v5575 = vpop.f32.mrf.mxu0
  %5576 = vdwg.mxu0
  %v5577 = vld [vmem:[%s5] sm:$0x1]
  %v5579 = vlaneseq
  %v5580 = vshrl.u32 %v5579, 7
  %v5581 = vsub.s32 0, %v5580
  %v5582 = vrot.slane %v5577, %v5581
  %v5584 = vmul.f32 %v5515, %v5582
  %v5585 = vmul.f32 %v5518, %v5582
  %v5586 = vmul.f32 %v5523, %v5582
  %v5587 = vmul.f32 %v5526, %v5582
  %v5588 = vmul.f32 %v5531, %v5582
  %v5589 = vmul.f32 %v5534, %v5582
  %v5590 = vmul.f32 %v5539, %v5582
  %v5591 = vmul.f32 %v5542, %v5582
  %v5592 = vmul.f32 %v5547, %v5582
  %v5593 = vmul.f32 %v5550, %v5582
  %v5594 = vmul.f32 %v5555, %v5582
  %v5595 = vmul.f32 %v5558, %v5582
  %v5596 = vmul.f32 %v5563, %v5582
  %v5597 = vmul.f32 %v5566, %v5582
  %v5598 = vmul.f32 %v5571, %v5582
  %v5599 = vmul.f32 %v5574, %v5582
  %v5600 = vld [vmem:[%s6] sm:$0x1]
  %v5602 = vlaneseq
  %v5603 = vshrl.u32 %v5602, 7
  %v5604 = vsub.s32 0, %v5603
  %v5605 = vrot.slane %v5600, %v5604
  %v5607 = vadd.f32 %v5584, %v5605
  %v5608 = vadd.f32 %v5585, %v5605
  %v5609 = vadd.f32 %v5586, %v5605
  %v5610 = vadd.f32 %v5587, %v5605
  %v5611 = vadd.f32 %v5588, %v5605
  %v5612 = vadd.f32 %v5589, %v5605
  %v5613 = vadd.f32 %v5590, %v5605
  %v5614 = vadd.f32 %v5591, %v5605
  %v5615 = vadd.f32 %v5592, %v5605
  %v5616 = vadd.f32 %v5593, %v5605
  %v5617 = vadd.f32 %v5594, %v5605
  %v5618 = vadd.f32 %v5595, %v5605
  %v5619 = vadd.f32 %v5596, %v5605
  %v5620 = vadd.f32 %v5597, %v5605
  %v5621 = vadd.f32 %v5598, %v5605
  %v5622 = vadd.f32 %v5599, %v5605
  %v5623 = vmax.f32 %v5607, 0.0
  %v5624 = vmax.f32 %v5608, 0.0
  %v5625 = vmax.f32 %v5609, 0.0
  %v5626 = vmax.f32 %v5610, 0.0
  %v5627 = vmax.f32 %v5611, 0.0
  %v5628 = vmax.f32 %v5612, 0.0
  %v5629 = vmax.f32 %v5613, 0.0
  %v5630 = vmax.f32 %v5614, 0.0
  %v5631 = vmax.f32 %v5615, 0.0
  %v5632 = vmax.f32 %v5616, 0.0
  %v5633 = vmax.f32 %v5617, 0.0
  %v5634 = vmax.f32 %v5618, 0.0
  %v5635 = vmax.f32 %v5619, 0.0
  %v5636 = vmax.f32 %v5620, 0.0
  %v5637 = vmax.f32 %v5621, 0.0
  %v5638 = vmax.f32 %v5622, 0.0
  %s5639 = scalar_lea.vmem [#allocation4], 16
  %5640 = vst.msk [vmem:[%s5639 + $0x1] sm:$0xff] %vm257, %v5623
  %5641 = vst.msk [vmem:[%s5639 + $0x11] sm:$0xff] %vm257, %v5624
  %5642 = vst.msk [vmem:[%s5639 + $0x21] sm:$0xff] %vm257, %v5625
  %5643 = vst.msk [vmem:[%s5639 + $0x31] sm:$0xff] %vm257, %v5626
  %5644 = vst.msk [vmem:[%s5639 + $0x41] sm:$0xff] %vm257, %v5627
  %5645 = vst.msk [vmem:[%s5639 + $0x51] sm:$0xff] %vm257, %v5628
  %5646 = vst.msk [vmem:[%s5639 + $0x61] sm:$0xff] %vm257, %v5629
  %5647 = vst.msk [vmem:[%s5639 + $0x71] sm:$0xff] %vm257, %v5630
  %5648 = vst.msk [vmem:[%s5639 + $0xa1] sm:$0xff] %vm257, %v5631
  %5649 = vst.msk [vmem:[%s5639 + $0xb1] sm:$0xff] %vm257, %v5632
  %5650 = vst.msk [vmem:[%s5639 + $0xc1] sm:$0xff] %vm257, %v5633
  %5651 = vst.msk [vmem:[%s5639 + $0xd1] sm:$0xff] %vm257, %v5634
  %5652 = vst.msk [vmem:[%s5639 + $0xe1] sm:$0xff] %vm257, %v5635
  %5653 = vst.msk [vmem:[%s5639 + $0xf1] sm:$0xff] %vm257, %v5636
  %5654 = vst.msk [vmem:[%s5639 + $0x101] sm:$0xff] %vm257, %v5637
  %5655 = vst.msk [vmem:[%s5639 + $0x111] sm:$0xff] %vm257, %v5638
  %v5656 = vld [vmem:[#allocation4] ss:$2 sm:$0x1f]
  %s5657 = scalar_lea.vmem [#allocation4], 32
  %v5658 = vld [vmem:[%s5657] ss:$2 sm:$0x1f]
  %s5659 = scalar_lea.vmem [#allocation4], 64
  %v5660 = vld [vmem:[%s5659] ss:$2 sm:$0x1f]
  %s5661 = scalar_lea.vmem [#allocation4], 96
  %v5662 = vld [vmem:[%s5661] ss:$2 sm:$0x1f]
  %s5663 = scalar_lea.vmem [#allocation4], 128
  %v5664 = vld [vmem:[%s5663] ss:$2 sm:$0x1f]
  %s5665 = scalar_lea.vmem [#allocation4], 160
  %v5666 = vld [vmem:[%s5665] ss:$2 sm:$0x1f]
  %s5667 = scalar_lea.vmem [#allocation4], 192
  %v5668 = vld [vmem:[%s5667] ss:$2 sm:$0x1f]
  %s5669 = scalar_lea.vmem [#allocation4], 224
  %v5670 = vld [vmem:[%s5669] ss:$2 sm:$0x1f]
  %s5671 = scalar_lea.vmem [#allocation4], 256
  %v5672 = vld [vmem:[%s5671] ss:$2 sm:$0x1f]
  %s5673 = scalar_lea.vmem [#allocation4], 288
  %v5674 = vld [vmem:[%s5673] ss:$2 sm:$0x1f]
  %s5675 = scalar_lea.vmem [#allocation4], 1
  %v5676 = vld [vmem:[%s5675] ss:$2 sm:$0x1f]
  %s5677 = scalar_lea.vmem [#allocation4], 33
  %v5678 = vld [vmem:[%s5677] ss:$2 sm:$0x1f]
  %s5679 = scalar_lea.vmem [#allocation4], 65
  %v5680 = vld [vmem:[%s5679] ss:$2 sm:$0x1f]
  %s5681 = scalar_lea.vmem [#allocation4], 97
  %v5682 = vld [vmem:[%s5681] ss:$2 sm:$0x1f]
  %s5683 = scalar_lea.vmem [#allocation4], 129
  %v5684 = vld [vmem:[%s5683] ss:$2 sm:$0x1f]
  %s5685 = scalar_lea.vmem [#allocation4], 161
  %v5686 = vld [vmem:[%s5685] ss:$2 sm:$0x1f]
  %s5687 = scalar_lea.vmem [#allocation4], 193
  %v5688 = vld [vmem:[%s5687] ss:$2 sm:$0x1f]
  %s5689 = scalar_lea.vmem [#allocation4], 225
  %v5690 = vld [vmem:[%s5689] ss:$2 sm:$0x1f]
  %s5691 = scalar_lea.vmem [#allocation4], 257
  %v5692 = vld [vmem:[%s5691] ss:$2 sm:$0x1f]
  %s5693 = scalar_lea.vmem [#allocation4], 289
  %v5694 = vld [vmem:[%s5693] ss:$2 sm:$0x1f]
  %v5695 = vld [vmem:[%s5639] ss:$2 sm:$0x1f]
  %s5696 = scalar_lea.vmem %s5639, 32 [#allocation4]
  %v5697 = vld [vmem:[%s5696] ss:$2 sm:$0x1f]
  %s5698 = scalar_lea.vmem %s5639, 64 [#allocation4]
  %v5699 = vld [vmem:[%s5698] ss:$2 sm:$0x1f]
  %s5700 = scalar_lea.vmem %s5639, 96 [#allocation4]
  %v5701 = vld [vmem:[%s5700] ss:$2 sm:$0x1f]
  %s5702 = scalar_lea.vmem %s5639, 160 [#allocation4]
  %v5703 = vld [vmem:[%s5702] ss:$2 sm:$0x1f]
  %s5704 = scalar_lea.vmem %s5639, 192 [#allocation4]
  %v5705 = vld [vmem:[%s5704] ss:$2 sm:$0x1f]
  %s5706 = scalar_lea.vmem %s5639, 224 [#allocation4]
  %v5707 = vld [vmem:[%s5706] ss:$2 sm:$0x1f]
  %s5708 = scalar_lea.vmem %s5639, 256 [#allocation4]
  %v5709 = vld [vmem:[%s5708] ss:$2 sm:$0x1f]
  %s5710 = scalar_lea.vmem %s5639, 1 [#allocation4]
  %v5711 = vld [vmem:[%s5710] ss:$2 sm:$0x1f]
  %s5712 = scalar_lea.vmem %s5639, 33 [#allocation4]
  %v5713 = vld [vmem:[%s5712] ss:$2 sm:$0x1f]
  %s5714 = scalar_lea.vmem %s5639, 65 [#allocation4]
  %v5715 = vld [vmem:[%s5714] ss:$2 sm:$0x1f]
  %s5716 = scalar_lea.vmem %s5639, 97 [#allocation4]
  %v5717 = vld [vmem:[%s5716] ss:$2 sm:$0x1f]
  %s5718 = scalar_lea.vmem %s5639, 161 [#allocation4]
  %v5719 = vld [vmem:[%s5718] ss:$2 sm:$0x1f]
  %s5720 = scalar_lea.vmem %s5639, 193 [#allocation4]
  %v5721 = vld [vmem:[%s5720] ss:$2 sm:$0x1f]
  %s5722 = scalar_lea.vmem %s5639, 225 [#allocation4]
  %v5723 = vld [vmem:[%s5722] ss:$2 sm:$0x1f]
  %s5724 = scalar_lea.vmem %s5639, 257 [#allocation4]
  %v5725 = vld [vmem:[%s5724] ss:$2 sm:$0x1f]
  %v5734 = vcombine.high %v5656, %v5656
  %v5735 = vcombine.high %v5658, %v5658
  %v5736 = vcombine.high %v5660, %v5660
  %v5737 = vcombine.high %v5662, %v5662
  %v5738 = vcombine.high %v5666, %v5666
  %v5739 = vcombine.high %v5668, %v5668
  %v5740 = vcombine.high %v5670, %v5670
  %v5741 = vcombine.high %v5672, %v5672
  %vm5742 = vcmask 1046532
  %vm5743 = vmor %vm3920, %vm5742
  %v5744 = vrot.slane %v5656, 5
  %v5745 = vrot.slane %v5744, 4
  %v5746 = vrot.slane %v5734, 5
  %v5747 = vsel %vm5743, %v5745, %v5746
  %v5748 = vrot.slane %v5658, 5
  %v5749 = vrot.slane %v5748, 4
  %v5750 = vrot.slane %v5735, 5
  %v5751 = vsel %vm5743, %v5749, %v5750
  %v5752 = vrot.slane %v5660, 5
  %v5753 = vrot.slane %v5752, 4
  %v5754 = vrot.slane %v5736, 5
  %v5755 = vsel %vm5743, %v5753, %v5754
  %v5756 = vrot.slane %v5662, 5
  %v5757 = vrot.slane %v5756, 4
  %v5758 = vrot.slane %v5737, 5
  %v5759 = vsel %vm5743, %v5757, %v5758
  %v5760 = vrot.slane %v5666, 5
  %v5761 = vrot.slane %v5760, 4
  %v5762 = vrot.slane %v5738, 5
  %v5763 = vsel %vm5743, %v5761, %v5762
  %v5764 = vrot.slane %v5668, 5
  %v5765 = vrot.slane %v5764, 4
  %v5766 = vrot.slane %v5739, 5
  %v5767 = vsel %vm5743, %v5765, %v5766
  %v5768 = vrot.slane %v5670, 5
  %v5769 = vrot.slane %v5768, 4
  %v5770 = vrot.slane %v5740, 5
  %v5771 = vsel %vm5743, %v5769, %v5770
  %v5772 = vrot.slane %v5672, 5
  %v5773 = vrot.slane %v5772, 4
  %v5774 = vrot.slane %v5741, 5
  %v5775 = vsel %vm5743, %v5773, %v5774
  %v5784 = vcombine.high %v5695, %v5695
  %v5785 = vcombine.high %v5697, %v5697
  %v5786 = vcombine.high %v5699, %v5699
  %v5787 = vcombine.high %v5701, %v5701
  %v5788 = vcombine.high %v5703, %v5703
  %v5789 = vcombine.high %v5705, %v5705
  %v5790 = vcombine.high %v5707, %v5707
  %v5791 = vcombine.high %v5709, %v5709
  %v5792 = vrot.slane %v5695, 5
  %v5793 = vrot.slane %v5792, 4
  %v5794 = vrot.slane %v5784, 5
  %v5795 = vsel %vm5743, %v5793, %v5794
  %v5796 = vrot.slane %v5697, 5
  %v5797 = vrot.slane %v5796, 4
  %v5798 = vrot.slane %v5785, 5
  %v5799 = vsel %vm5743, %v5797, %v5798
  %v5800 = vrot.slane %v5699, 5
  %v5801 = vrot.slane %v5800, 4
  %v5802 = vrot.slane %v5786, 5
  %v5803 = vsel %vm5743, %v5801, %v5802
  %v5804 = vrot.slane %v5701, 5
  %v5805 = vrot.slane %v5804, 4
  %v5806 = vrot.slane %v5787, 5
  %v5807 = vsel %vm5743, %v5805, %v5806
  %v5808 = vrot.slane %v5703, 5
  %v5809 = vrot.slane %v5808, 4
  %v5810 = vrot.slane %v5788, 5
  %v5811 = vsel %vm5743, %v5809, %v5810
  %v5812 = vrot.slane %v5705, 5
  %v5813 = vrot.slane %v5812, 4
  %v5814 = vrot.slane %v5789, 5
  %v5815 = vsel %vm5743, %v5813, %v5814
  %v5816 = vrot.slane %v5707, 5
  %v5817 = vrot.slane %v5816, 4
  %v5818 = vrot.slane %v5790, 5
  %v5819 = vsel %vm5743, %v5817, %v5818
  %v5820 = vrot.slane %v5709, 5
  %v5821 = vrot.slane %v5820, 4
  %v5822 = vrot.slane %v5791, 5
  %v5823 = vsel %vm5743, %v5821, %v5822
  %v5826 = vcombine.high %v5664, %v5664
  %v5827 = vcombine.high %v5674, %v5674
  %v5828 = vrot.slane %v5664, 5
  %v5829 = vrot.slane %v5828, 4
  %v5830 = vrot.slane %v5826, 5
  %v5831 = vsel %vm5743, %v5829, %v5830
  %v5832 = vrot.slane %v5674, 5
  %v5833 = vrot.slane %v5832, 4
  %v5834 = vrot.slane %v5827, 5
  %v5835 = vsel %vm5743, %v5833, %v5834
  %v5836 = vcombine.low %v5656, %v5658
  %v5837 = vcombine.low %v5660, %v5662
  %v5838 = vcombine.low %v5666, %v5668
  %v5839 = vcombine.low %v5670, %v5672
  %v5852 = vcombine.low %v5676, %v5678
  %v5853 = vcombine.low %v5680, %v5682
  %v5854 = vcombine.low %v5686, %v5688
  %v5855 = vcombine.low %v5690, %v5692
  %5856 = vrot.lane.b32.xlu0 %v5852, 16
  %v5857 = vpop.permute.xlu0 %5856
  %5858 = vrot.lane.b32.xlu0 %v5853, 16
  %v5859 = vpop.permute.xlu0 %5858
  %5860 = vrot.lane.b32.xlu0 %v5854, 16
  %v5861 = vpop.permute.xlu0 %5860
  %5862 = vrot.lane.b32.xlu0 %v5855, 16
  %v5863 = vpop.permute.xlu0 %5862
  %v5868 = vcombine.low %v5747, %v5751
  %v5869 = vcombine.low %v5755, %v5759
  %v5870 = vcombine.low %v5763, %v5767
  %v5871 = vcombine.low %v5771, %v5775
  %5872 = vrot.lane.b32.xlu0 %v5868, 32
  %v5873 = vpop.permute.xlu0 %5872
  %5874 = vrot.lane.b32.xlu0 %v5869, 32
  %v5875 = vpop.permute.xlu0 %5874
  %5876 = vrot.lane.b32.xlu0 %v5870, 32
  %v5877 = vpop.permute.xlu0 %5876
  %5878 = vrot.lane.b32.xlu0 %v5871, 32
  %v5879 = vpop.permute.xlu0 %5878
  %v5884 = vcombine.low %v5695, %v5697
  %v5885 = vcombine.low %v5699, %v5701
  %v5886 = vcombine.low %v5703, %v5705
  %v5887 = vcombine.low %v5707, %v5709
  %5888 = vrot.lane.b32.xlu0 %v5884, 48
  %v5889 = vpop.permute.xlu0 %5888
  %5890 = vrot.lane.b32.xlu0 %v5885, 48
  %v5891 = vpop.permute.xlu0 %5890
  %5892 = vrot.lane.b32.xlu0 %v5886, 48
  %v5893 = vpop.permute.xlu0 %5892
  %5894 = vrot.lane.b32.xlu0 %v5887, 48
  %v5895 = vpop.permute.xlu0 %5894
  %v5908 = vcombine.low %v5711, %v5713
  %v5909 = vcombine.low %v5715, %v5717
  %v5910 = vcombine.low %v5719, %v5721
  %v5911 = vcombine.low %v5723, %v5725
  %5912 = vrot.lane.b32.xlu0 %v5908, 64
  %v5913 = vpop.permute.xlu0 %5912
  %5914 = vrot.lane.b32.xlu0 %v5909, 64
  %v5915 = vpop.permute.xlu0 %5914
  %5916 = vrot.lane.b32.xlu0 %v5910, 64
  %v5917 = vpop.permute.xlu0 %5916
  %5918 = vrot.lane.b32.xlu0 %v5911, 64
  %v5919 = vpop.permute.xlu0 %5918
  %v5924 = vcombine.low %v5795, %v5799
  %v5925 = vcombine.low %v5803, %v5807
  %v5926 = vcombine.low %v5811, %v5815
  %v5927 = vcombine.low %v5819, %v5823
  %5928 = vrot.lane.b32.xlu0 %v5924, 80
  %v5929 = vpop.permute.xlu0 %5928
  %5930 = vrot.lane.b32.xlu0 %v5925, 80
  %v5931 = vpop.permute.xlu0 %5930
  %5932 = vrot.lane.b32.xlu0 %v5926, 80
  %v5933 = vpop.permute.xlu0 %5932
  %5934 = vrot.lane.b32.xlu0 %v5927, 80
  %v5935 = vpop.permute.xlu0 %5934
  %v5940 = vcombine.low %v5658, %v5660
  %v5941 = vcombine.low %v5662, %v5664
  %v5942 = vcombine.low %v5668, %v5670
  %v5943 = vcombine.low %v5672, %v5674
  %5944 = vrot.lane.b32.xlu0 %v5940, 96
  %v5945 = vpop.permute.xlu0 %5944
  %5946 = vrot.lane.b32.xlu0 %v5941, 96
  %v5947 = vpop.permute.xlu0 %5946
  %5948 = vrot.lane.b32.xlu0 %v5942, 96
  %v5949 = vpop.permute.xlu0 %5948
  %5950 = vrot.lane.b32.xlu0 %v5943, 96
  %v5951 = vpop.permute.xlu0 %5950
  %v5958 = vcombine.low %v5678, %v5680
  %v5959 = vcombine.low %v5682, %v5684
  %v5960 = vcombine.low %v5688, %v5690
  %v5961 = vcombine.low %v5692, %v5694
  %5962 = vrot.lane.b32.xlu0 %v5958, 112
  %v5963 = vpop.permute.xlu0 %5962
  %5964 = vrot.lane.b32.xlu0 %v5959, 112
  %v5965 = vpop.permute.xlu0 %5964
  %5966 = vrot.lane.b32.xlu0 %v5960, 112
  %v5967 = vpop.permute.xlu0 %5966
  %5968 = vrot.lane.b32.xlu0 %v5961, 112
  %v5969 = vpop.permute.xlu0 %5968
  %v5974 = vcombine.low %v5751, %v5755
  %v5975 = vcombine.low %v5759, %v5831
  %v5976 = vcombine.low %v5767, %v5771
  %v5977 = vcombine.low %v5775, %v5835
  %v5982 = vsel %vm257, %v5836, %v5857
  %v5983 = vsel %vm257, %v5837, %v5859
  %v5984 = vsel %vm257, %v5838, %v5861
  %v5985 = vsel %vm257, %v5839, %v5863
  %v5986 = vsel %vm5323, %v5982, %v5873
  %v5987 = vsel %vm5323, %v5983, %v5875
  %v5988 = vsel %vm5323, %v5984, %v5877
  %v5989 = vsel %vm5323, %v5985, %v5879
  %v5990 = vsel %vm3698, %v5986, %v5889
  %v5991 = vsel %vm3698, %v5987, %v5891
  %v5992 = vsel %vm3698, %v5988, %v5893
  %v5993 = vsel %vm3698, %v5989, %v5895
  %v5994 = vsel %vm5390, %v5990, %v5913
  %v5995 = vsel %vm5390, %v5991, %v5915
  %v5996 = vsel %vm5390, %v5992, %v5917
  %v5997 = vsel %vm5390, %v5993, %v5919
  %vm5998 = vcmask 654336
  %v5999 = vsel %vm5998, %v5994, %v5929
  %v6000 = vsel %vm5998, %v5995, %v5931
  %v6001 = vsel %vm5998, %v5996, %v5933
  %v6002 = vsel %vm5998, %v5997, %v5935
  %vm6003 = vcmask 785408
  %v6004 = vsel %vm6003, %v5999, %v5945
  %v6005 = vsel %vm6003, %v6000, %v5947
  %v6006 = vsel %vm6003, %v6001, %v5949
  %v6007 = vsel %vm6003, %v6002, %v5951
  %vm6008 = vcmask 916480
  %v6009 = vsel %vm6008, %v6004, %v5963
  %v6010 = vsel %vm6008, %v6005, %v5965
  %v6011 = vsel %vm6008, %v6006, %v5967
  %v6012 = vsel %vm6008, %v6007, %v5969
  %v6013 = vpack.c.bf16 %v6010, %v6009
  %v6014 = vpack.c.bf16 %v5975, %v5974
  %v6015 = vpack.c.bf16 %v6012, %v6011
  %v6016 = vpack.c.bf16 %v5977, %v5976
  %v6017 = vld [vmem:[%s7] sm:$0xf]
  %v6018 = vld [vmem:[%s7 + $0x4] sm:$0xf]
  %v6019 = vld [vmem:[%s7 + $0x8] sm:$0xf]
  %v6020 = vld [vmem:[%s7 + $0xc] sm:$0xf]
  %v6021 = vld [vmem:[%s7 + $0x10] sm:$0xf]
  %v6022 = vld [vmem:[%s7 + $0x14] sm:$0xf]
  %v6023 = vld [vmem:[%s7 + $0x18] sm:$0xf]
  %v6024 = vld [vmem:[%s7 + $0x1c] sm:$0xf]
  %v6025 = vld [vmem:[%s7 + $0x20] sm:$0xf]
  %v6026 = vld [vmem:[%s7 + $0x24] sm:$0xf]
  %v6027 = vld [vmem:[%s7 + $0x28] sm:$0xf]
  %v6028 = vld [vmem:[%s7 + $0x2c] sm:$0xf]
  %v6029 = vld [vmem:[%s7 + $0x30] sm:$0xf]
  %v6030 = vld [vmem:[%s7 + $0x34] sm:$0xf]
  %v6031 = vld [vmem:[%s7 + $0x38] sm:$0xf]
  %v6032 = vld [vmem:[%s7 + $0x3c] sm:$0xf]
  %v6033 = vld [vmem:[%s7 + $0x40] sm:$0xf]
  %v6034 = vld [vmem:[%s7 + $0x44] sm:$0xf]
  %v6053 = vunpack.c.l.b16 %v6017
  %v6054 = vunpack.c.l.b16 %v6018
  %v6055 = vunpack.c.l.b16 %v6019
  %v6056 = vunpack.c.l.b16 %v6020
  %v6057 = vunpack.c.l.b16 %v6021
  %v6058 = vunpack.c.l.b16 %v6022
  %v6059 = vunpack.c.l.b16 %v6023
  %v6060 = vunpack.c.l.b16 %v6024
  %v6061 = vunpack.c.l.b16 %v6025
  %v6062 = vunpack.c.l.b16 %v6026
  %v6063 = vunpack.c.l.b16 %v6027
  %v6064 = vunpack.c.l.b16 %v6028
  %v6065 = vunpack.c.l.b16 %v6029
  %v6066 = vunpack.c.l.b16 %v6030
  %v6067 = vunpack.c.l.b16 %v6031
  %v6068 = vunpack.c.l.b16 %v6032
  %v6069 = vunpack.c.l.b16 %v6033
  %v6070 = vunpack.c.l.b16 %v6034
  %v6071 = vpack.c.b16 %v6054, %v6053
  %v6072 = vpack.c.b16 %v6056, %v6055
  %v6073 = vpack.c.b16 %v6058, %v6057
  %v6074 = vpack.c.b16 %v6060, %v6059
  %v6075 = vpack.c.b16 %v6062, %v6061
  %v6076 = vpack.c.b16 %v6064, %v6063
  %v6077 = vpack.c.b16 %v6066, %v6065
  %v6078 = vpack.c.b16 %v6068, %v6067
  %v6079 = vpack.c.b16 %v6070, %v6069
  %v6090 = vsel %vm257, %v6014, 0
  %v6093 = vsel %vm257, %v6016, 0
  %6095 = vmatprep.subr.bf16.mxu0 0
  %6096 = vmatpush1.bf16.msra.mxu0 %v6078
  %6097 = vmatprep.subr.bf16.mxu0 0
  %6098 = vmatpush1.bf16.msra.mxu0 %v6077
  %6099 = vmatprep.subr.bf16.mxu0 0
  %6100 = vmatpush1.bf16.msra.mxu0 %v6076
  %6101 = vmatprep.subr.bf16.mxu0 0
  %6102 = vmatpush1.bf16.msra.mxu0 %v6075
  %6103 = vmatprep.subr.bf16.mxu0 0
  %6104 = vmatpush1.bf16.msra.mxu0 %v6074
  %6105 = vmatprep.subr.bf16.mxu0 0
  %6106 = vmatpush1.bf16.msra.mxu0 %v6073
  %6107 = vmatprep.subr.bf16.mxu0 0
  %6108 = vmatpush1.bf16.msra.mxu0 %v6072
  %6109 = vmatprep.subr.bf16.mxu0 0
  %6110 = vmatpush1.bf16.msra.mxu0 %v6071
  %6111 = vmatprep.subr.bf16.mxu0 0
  %6112 = vmatpush2.bf16.msra.mxu0 0
  %6113 = vmatprep.subr.bf16.mxu0 0
  %6114 = vmatpush2.bf16.msra.mxu0 0
  %6115 = vmatprep.subr.bf16.mxu0 0
  %6116 = vmatpush2.bf16.msra.mxu0 0
  %6117 = vmatprep.subr.bf16.mxu0 0
  %6118 = vmatpush2.bf16.msra.mxu0 0
  %6119 = vmatprep.subr.bf16.mxu0 0
  %6120 = vmatpush2.bf16.msra.mxu0 0
  %6121 = vmatprep.subr.bf16.mxu0 0
  %6122 = vmatpush2.bf16.msra.mxu0 0
  %6123 = vmatprep.subr.bf16.mxu0 0
  %6124 = vmatpush2.bf16.msra.mxu0 0
  %6125 = vmatprep.subr.bf16.mxu0 0
  %6126 = vmatpush2.bf16.msra.mxu0 %v6079
  %6127 = vmatprep.mubr.bf16.mxu0 %v6090
  %6128 = vmatmul.mubr.bf16.gmra.mxu0 %v6013
  %v6129 = vpop.f32.mrf.mxu0
  %v6130 = vadd.f32 0.0, %v6129
  %v6131 = vpop.f32.mrf.mxu0
  %v6132 = vpop.f32.mrf.mxu0
  %v6133 = vadd.f32 0.0, %v6132
  %v6134 = vpop.f32.mrf.mxu0
  %6135 = vmatprep.mubr.bf16.mxu0 %v6093
  %6136 = vmatmul.mubr.bf16.gmra.mxu0 %v6015
  %v6137 = vpop.f32.mrf.mxu0
  %v6138 = vadd.f32 0.0, %v6137
  %v6139 = vpop.f32.mrf.mxu0
  %v6140 = vpop.f32.mrf.mxu0
  %v6141 = vadd.f32 0.0, %v6140
  %v6142 = vpop.f32.mrf.mxu0
  %6143 = vdwg.mxu0
  %v6144 = vld [vmem:[%s8] sm:$0x1]
  %v6146 = vlaneseq
  %v6147 = vshrl.u32 %v6146, 7
  %v6148 = vsub.s32 0, %v6147
  %v6149 = vrot.slane %v6144, %v6148
  %v6151 = vmul.f32 %v6130, %v6149
  %v6152 = vmul.f32 %v6133, %v6149
  %v6153 = vmul.f32 %v6138, %v6149
  %v6154 = vmul.f32 %v6141, %v6149
  %v6155 = vld [vmem:[%s9] sm:$0x1]
  %v6157 = vlaneseq
  %v6158 = vshrl.u32 %v6157, 7
  %v6159 = vsub.s32 0, %v6158
  %v6160 = vrot.slane %v6155, %v6159
  %v6162 = vadd.f32 %v6151, %v6160
  %v6163 = vadd.f32 %v6152, %v6160
  %v6164 = vadd.f32 %v6153, %v6160
  %v6165 = vadd.f32 %v6154, %v6160
  %v6166 = vmax.f32 %v6162, 0.0
  %v6167 = vmax.f32 %v6163, 0.0
  %v6168 = vmax.f32 %v6164, 0.0
  %v6169 = vmax.f32 %v6165, 0.0
  %v6174 = vcombine.high %v6166, %v6166
  %v6175 = vcombine.high %v6167, %v6167
  %v6176 = vcombine.high %v6168, %v6168
  %v6177 = vcombine.high %v6169, %v6169
  %s6182 = scalar_lea.vmem [#allocation5], 8
  %6183 = vst.msk [vmem:[%s6182 + $0x1] sm:$0xf] %vm468, %v6166
  %6184 = vst.msk [vmem:[%s6182 + $0x9] sm:$0xf] %vm468, %v6174
  %6185 = vst.msk [vmem:[%s6182 + $0x11] sm:$0xf] %vm468, %v6167
  %6186 = vst.msk [vmem:[%s6182 + $0x19] sm:$0xf] %vm468, %v6175
  %6187 = vst.msk [vmem:[%s6182 + $0x31] sm:$0xf] %vm468, %v6168
  %6188 = vst.msk [vmem:[%s6182 + $0x39] sm:$0xf] %vm468, %v6176
  %6189 = vst.msk [vmem:[%s6182 + $0x41] sm:$0xf] %vm468, %v6169
  %6190 = vst.msk [vmem:[%s6182 + $0x49] sm:$0xf] %vm468, %v6177
  %v6191 = vld [vmem:[#allocation5] ss:$2 sm:$0x7]
  %s6192 = scalar_lea.vmem [#allocation5], 16
  %v6193 = vld [vmem:[%s6192] ss:$2 sm:$0x7]
  %s6194 = scalar_lea.vmem [#allocation5], 32
  %v6195 = vld [vmem:[%s6194] ss:$2 sm:$0x7]
  %s6196 = scalar_lea.vmem [#allocation5], 48
  %v6197 = vld [vmem:[%s6196] ss:$2 sm:$0x7]
  %s6198 = scalar_lea.vmem [#allocation5], 64
  %v6199 = vld [vmem:[%s6198] ss:$2 sm:$0x7]
  %s6200 = scalar_lea.vmem [#allocation5], 80
  %v6201 = vld [vmem:[%s6200] ss:$2 sm:$0x7]
  %s6202 = scalar_lea.vmem [#allocation5], 1
  %v6203 = vld [vmem:[%s6202] ss:$2 sm:$0x7]
  %s6204 = scalar_lea.vmem [#allocation5], 17
  %v6205 = vld [vmem:[%s6204] ss:$2 sm:$0x7]
  %s6206 = scalar_lea.vmem [#allocation5], 33
  %v6207 = vld [vmem:[%s6206] ss:$2 sm:$0x7]
  %s6208 = scalar_lea.vmem [#allocation5], 49
  %v6209 = vld [vmem:[%s6208] ss:$2 sm:$0x7]
  %s6210 = scalar_lea.vmem [#allocation5], 65
  %v6211 = vld [vmem:[%s6210] ss:$2 sm:$0x7]
  %s6212 = scalar_lea.vmem [#allocation5], 81
  %v6213 = vld [vmem:[%s6212] ss:$2 sm:$0x7]
  %v6214 = vld [vmem:[%s6182] ss:$2 sm:$0x7]
  %s6215 = scalar_lea.vmem %s6182, 16 [#allocation5]
  %v6216 = vld [vmem:[%s6215] ss:$2 sm:$0x7]
  %s6217 = scalar_lea.vmem %s6182, 48 [#allocation5]
  %v6218 = vld [vmem:[%s6217] ss:$2 sm:$0x7]
  %s6219 = scalar_lea.vmem %s6182, 64 [#allocation5]
  %v6220 = vld [vmem:[%s6219] ss:$2 sm:$0x7]
  %s6221 = scalar_lea.vmem %s6182, 1 [#allocation5]
  %v6222 = vld [vmem:[%s6221] ss:$2 sm:$0x7]
  %s6223 = scalar_lea.vmem %s6182, 17 [#allocation5]
  %v6224 = vld [vmem:[%s6223] ss:$2 sm:$0x7]
  %s6225 = scalar_lea.vmem %s6182, 49 [#allocation5]
  %v6226 = vld [vmem:[%s6225] ss:$2 sm:$0x7]
  %s6227 = scalar_lea.vmem %s6182, 65 [#allocation5]
  %v6228 = vld [vmem:[%s6227] ss:$2 sm:$0x7]
  %v6234 = vunpack.c.l.s4 1983009808
  %v6235 = vunpack.c.0.s8 %v6234
  %v6236 = vlaneseq
  %v6237 = vshrl.u32 %v6236, 7
  %v6238 = vsub.s32 %v6235, %v6237
  %v6239 = vrot.slane %v6191, %v6238
  %v6240 = vcombine.high %v6239, %v6239
  %v6242 = vunpack.c.l.s4 1983009808
  %v6243 = vunpack.c.0.s8 %v6242
  %v6244 = vlaneseq
  %v6245 = vshrl.u32 %v6244, 7
  %v6246 = vsub.s32 %v6243, %v6245
  %v6247 = vrot.slane %v6193, %v6246
  %v6248 = vcombine.high %v6247, %v6247
  %v6250 = vunpack.c.l.s4 1983009808
  %v6251 = vunpack.c.0.s8 %v6250
  %v6252 = vlaneseq
  %v6253 = vshrl.u32 %v6252, 7
  %v6254 = vsub.s32 %v6251, %v6253
  %v6255 = vrot.slane %v6197, %v6254
  %v6256 = vcombine.high %v6255, %v6255
  %v6258 = vunpack.c.l.s4 1983009808
  %v6259 = vunpack.c.0.s8 %v6258
  %v6260 = vlaneseq
  %v6261 = vshrl.u32 %v6260, 7
  %v6262 = vsub.s32 %v6259, %v6261
  %v6263 = vrot.slane %v6199, %v6262
  %v6264 = vcombine.high %v6263, %v6263
  %vm6265 = vcmask 1040384
  %vm6266 = vcmask 1042434
  %vm6267 = vmor %vm6265, %vm6266
  %vm6268 = vcmask 1044484
  %vm6269 = vmor %vm6267, %vm6268
  %vm6270 = vcmask 1046534
  %vm6271 = vmor %vm6269, %vm6270
  %v6272 = vrot.slane %v6239, 7
  %v6273 = vrot.slane %v6272, 2
  %v6274 = vrot.slane %v6240, 7
  %v6275 = vsel %vm6271, %v6273, %v6274
  %v6276 = vrot.slane %v6247, 7
  %v6277 = vrot.slane %v6276, 2
  %v6278 = vrot.slane %v6248, 7
  %v6279 = vsel %vm6271, %v6277, %v6278
  %v6280 = vrot.slane %v6255, 7
  %v6281 = vrot.slane %v6280, 2
  %v6282 = vrot.slane %v6256, 7
  %v6283 = vsel %vm6271, %v6281, %v6282
  %v6284 = vrot.slane %v6263, 7
  %v6285 = vrot.slane %v6284, 2
  %v6286 = vrot.slane %v6264, 7
  %v6287 = vsel %vm6271, %v6285, %v6286
  %v6293 = vunpack.c.l.s4 1983009808
  %v6294 = vunpack.c.0.s8 %v6293
  %v6295 = vlaneseq
  %v6296 = vshrl.u32 %v6295, 7
  %v6297 = vsub.s32 %v6294, %v6296
  %v6298 = vrot.slane %v6214, %v6297
  %v6299 = vcombine.high %v6298, %v6298
  %v6301 = vunpack.c.l.s4 1983009808
  %v6302 = vunpack.c.0.s8 %v6301
  %v6303 = vlaneseq
  %v6304 = vshrl.u32 %v6303, 7
  %v6305 = vsub.s32 %v6302, %v6304
  %v6306 = vrot.slane %v6216, %v6305
  %v6307 = vcombine.high %v6306, %v6306
  %v6309 = vunpack.c.l.s4 1983009808
  %v6310 = vunpack.c.0.s8 %v6309
  %v6311 = vlaneseq
  %v6312 = vshrl.u32 %v6311, 7
  %v6313 = vsub.s32 %v6310, %v6312
  %v6314 = vrot.slane %v6218, %v6313
  %v6315 = vcombine.high %v6314, %v6314
  %v6317 = vunpack.c.l.s4 1983009808
  %v6318 = vunpack.c.0.s8 %v6317
  %v6319 = vlaneseq
  %v6320 = vshrl.u32 %v6319, 7
  %v6321 = vsub.s32 %v6318, %v6320
  %v6322 = vrot.slane %v6220, %v6321
  %v6323 = vcombine.high %v6322, %v6322
  %v6324 = vrot.slane %v6298, 7
  %v6325 = vrot.slane %v6324, 2
  %v6326 = vrot.slane %v6299, 7
  %v6327 = vsel %vm6271, %v6325, %v6326
  %v6328 = vrot.slane %v6306, 7
  %v6329 = vrot.slane %v6328, 2
  %v6330 = vrot.slane %v6307, 7
  %v6331 = vsel %vm6271, %v6329, %v6330
  %v6332 = vrot.slane %v6314, 7
  %v6333 = vrot.slane %v6332, 2
  %v6334 = vrot.slane %v6315, 7
  %v6335 = vsel %vm6271, %v6333, %v6334
  %v6336 = vrot.slane %v6322, 7
  %v6337 = vrot.slane %v6336, 2
  %v6338 = vrot.slane %v6323, 7
  %v6339 = vsel %vm6271, %v6337, %v6338
  %v6343 = vunpack.c.l.s4 1983009808
  %v6344 = vunpack.c.0.s8 %v6343
  %v6345 = vlaneseq
  %v6346 = vshrl.u32 %v6345, 7
  %v6347 = vsub.s32 %v6344, %v6346
  %v6348 = vrot.slane %v6195, %v6347
  %v6349 = vcombine.high %v6348, %v6348
  %v6351 = vunpack.c.l.s4 1983009808
  %v6352 = vunpack.c.0.s8 %v6351
  %v6353 = vlaneseq
  %v6354 = vshrl.u32 %v6353, 7
  %v6355 = vsub.s32 %v6352, %v6354
  %v6356 = vrot.slane %v6201, %v6355
  %v6357 = vcombine.high %v6356, %v6356
  %v6358 = vrot.slane %v6348, 7
  %v6359 = vrot.slane %v6358, 2
  %v6360 = vrot.slane %v6349, 7
  %v6361 = vsel %vm6271, %v6359, %v6360
  %v6362 = vrot.slane %v6356, 7
  %v6363 = vrot.slane %v6362, 2
  %v6364 = vrot.slane %v6357, 7
  %v6365 = vsel %vm6271, %v6363, %v6364
  %v6366 = vcombine.low %v6191, %v6193
  %v6367 = vcombine.low %v6197, %v6199
  %v6369 = vunpack.c.l.s4 1983009808
  %v6370 = vunpack.c.0.s8 %v6369
  %v6371 = vlaneseq
  %v6372 = vshrl.u32 %v6371, 7
  %v6373 = vsub.s32 %v6370, %v6372
  %v6374 = vrot.slane %v6366, %v6373
  %v6376 = vunpack.c.l.s4 1983009808
  %v6377 = vunpack.c.0.s8 %v6376
  %v6378 = vlaneseq
  %v6379 = vshrl.u32 %v6378, 7
  %v6380 = vsub.s32 %v6377, %v6379
  %v6381 = vrot.slane %v6367, %v6380
  %v6382 = vcombine.low %v6374, %v6381
  %v6388 = vcombine.low %v6203, %v6205
  %v6389 = vcombine.low %v6209, %v6211
  %v6391 = vunpack.c.l.s4 1983009808
  %v6392 = vunpack.c.0.s8 %v6391
  %v6393 = vlaneseq
  %v6394 = vshrl.u32 %v6393, 7
  %v6395 = vsub.s32 %v6392, %v6394
  %v6396 = vrot.slane %v6388, %v6395
  %v6398 = vunpack.c.l.s4 1983009808
  %v6399 = vunpack.c.0.s8 %v6398
  %v6400 = vlaneseq
  %v6401 = vshrl.u32 %v6400, 7
  %v6402 = vsub.s32 %v6399, %v6401
  %v6403 = vrot.slane %v6389, %v6402
  %v6404 = vcombine.low %v6396, %v6403
  %6405 = vrot.lane.b32.xlu0 %v6404, 32
  %v6406 = vpop.permute.xlu0 %6405
  %v6408 = vcombine.low %v6275, %v6279
  %v6409 = vcombine.low %v6283, %v6287
  %v6411 = vunpack.c.l.s4 1983009808
  %v6412 = vunpack.c.0.s8 %v6411
  %v6413 = vlaneseq
  %v6414 = vshrl.u32 %v6413, 7
  %v6415 = vsub.s32 %v6412, %v6414
  %v6416 = vrot.slane %v6408, %v6415
  %v6418 = vunpack.c.l.s4 1983009808
  %v6419 = vunpack.c.0.s8 %v6418
  %v6420 = vlaneseq
  %v6421 = vshrl.u32 %v6420, 7
  %v6422 = vsub.s32 %v6419, %v6421
  %v6423 = vrot.slane %v6409, %v6422
  %v6424 = vcombine.low %v6416, %v6423
  %6425 = vrot.lane.b32.xlu0 %v6424, 64
  %v6426 = vpop.permute.xlu0 %6425
  %v6428 = vcombine.low %v6214, %v6216
  %v6429 = vcombine.low %v6218, %v6220
  %v6431 = vunpack.c.l.s4 1983009808
  %v6432 = vunpack.c.0.s8 %v6431
  %v6433 = vlaneseq
  %v6434 = vshrl.u32 %v6433, 7
  %v6435 = vsub.s32 %v6432, %v6434
  %v6436 = vrot.slane %v6428, %v6435
  %v6438 = vunpack.c.l.s4 1983009808
  %v6439 = vunpack.c.0.s8 %v6438
  %v6440 = vlaneseq
  %v6441 = vshrl.u32 %v6440, 7
  %v6442 = vsub.s32 %v6439, %v6441
  %v6443 = vrot.slane %v6429, %v6442
  %v6444 = vcombine.low %v6436, %v6443
  %6445 = vrot.lane.b32.xlu0 %v6444, 96
  %v6446 = vpop.permute.xlu0 %6445
  %v6452 = vcombine.low %v6222, %v6224
  %v6453 = vcombine.low %v6226, %v6228
  %v6455 = vunpack.c.l.s4 1983009808
  %v6456 = vunpack.c.0.s8 %v6455
  %v6457 = vlaneseq
  %v6458 = vshrl.u32 %v6457, 7
  %v6459 = vsub.s32 %v6456, %v6458
  %v6460 = vrot.slane %v6452, %v6459
  %v6462 = vunpack.c.l.s4 1983009808
  %v6463 = vunpack.c.0.s8 %v6462
  %v6464 = vlaneseq
  %v6465 = vshrl.u32 %v6464, 7
  %v6466 = vsub.s32 %v6463, %v6465
  %v6467 = vrot.slane %v6453, %v6466
  %v6468 = vcombine.low %v6460, %v6467
  %v6470 = vcombine.low %v6327, %v6331
  %v6471 = vcombine.low %v6335, %v6339
  %v6473 = vunpack.c.l.s4 1983009808
  %v6474 = vunpack.c.0.s8 %v6473
  %v6475 = vlaneseq
  %v6476 = vshrl.u32 %v6475, 7
  %v6477 = vsub.s32 %v6474, %v6476
  %v6478 = vrot.slane %v6470, %v6477
  %v6480 = vunpack.c.l.s4 1983009808
  %v6481 = vunpack.c.0.s8 %v6480
  %v6482 = vlaneseq
  %v6483 = vshrl.u32 %v6482, 7
  %v6484 = vsub.s32 %v6481, %v6483
  %v6485 = vrot.slane %v6471, %v6484
  %v6486 = vcombine.low %v6478, %v6485
  %6487 = vrot.lane.b32.xlu0 %v6486, 32
  %v6488 = vpop.permute.xlu0 %6487
  %v6490 = vcombine.low %v6193, %v6195
  %v6491 = vcombine.low %v6199, %v6201
  %v6493 = vunpack.c.l.s4 1983009808
  %v6494 = vunpack.c.0.s8 %v6493
  %v6495 = vlaneseq
  %v6496 = vshrl.u32 %v6495, 7
  %v6497 = vsub.s32 %v6494, %v6496
  %v6498 = vrot.slane %v6490, %v6497
  %v6500 = vunpack.c.l.s4 1983009808
  %v6501 = vunpack.c.0.s8 %v6500
  %v6502 = vlaneseq
  %v6503 = vshrl.u32 %v6502, 7
  %v6504 = vsub.s32 %v6501, %v6503
  %v6505 = vrot.slane %v6491, %v6504
  %v6506 = vcombine.low %v6498, %v6505
  %6507 = vrot.lane.b32.xlu0 %v6506, 64
  %v6508 = vpop.permute.xlu0 %6507
  %v6512 = vcombine.low %v6205, %v6207
  %v6513 = vcombine.low %v6211, %v6213
  %v6515 = vunpack.c.l.s4 1983009808
  %v6516 = vunpack.c.0.s8 %v6515
  %v6517 = vlaneseq
  %v6518 = vshrl.u32 %v6517, 7
  %v6519 = vsub.s32 %v6516, %v6518
  %v6520 = vrot.slane %v6512, %v6519
  %v6522 = vunpack.c.l.s4 1983009808
  %v6523 = vunpack.c.0.s8 %v6522
  %v6524 = vlaneseq
  %v6525 = vshrl.u32 %v6524, 7
  %v6526 = vsub.s32 %v6523, %v6525
  %v6527 = vrot.slane %v6513, %v6526
  %v6528 = vcombine.low %v6520, %v6527
  %6529 = vrot.lane.b32.xlu0 %v6528, 96
  %v6530 = vpop.permute.xlu0 %6529
  %v6532 = vcombine.low %v6279, %v6361
  %v6533 = vcombine.low %v6287, %v6365
  %v6535 = vunpack.c.l.s4 1983009808
  %v6536 = vunpack.c.0.s8 %v6535
  %v6537 = vlaneseq
  %v6538 = vshrl.u32 %v6537, 7
  %v6539 = vsub.s32 %v6536, %v6538
  %v6540 = vrot.slane %v6532, %v6539
  %v6542 = vunpack.c.l.s4 1983009808
  %v6543 = vunpack.c.0.s8 %v6542
  %v6544 = vlaneseq
  %v6545 = vshrl.u32 %v6544, 7
  %v6546 = vsub.s32 %v6543, %v6545
  %v6547 = vrot.slane %v6533, %v6546
  %v6548 = vcombine.low %v6540, %v6547
  %v6550 = vsel %vm5323, %v6382, %v6406
  %v6551 = vsel %vm5390, %v6550, %v6426
  %v6552 = vsel %vm6003, %v6551, %v6446
  %v6553 = vsel %vm5323, %v6468, %v6488
  %v6554 = vsel %vm5390, %v6553, %v6508
  %v6555 = vsel %vm6003, %v6554, %v6530
  %v6556 = vpack.c.bf16 %v6552, %v6552
  %v6557 = vpack.c.bf16 %v6555, %v6555
  %v6558 = vpack.c.bf16 %v6548, %v6548
  %v6559 = vld [vmem:[%s10] sm:$0xf]
  %v6560 = vld [vmem:[%s10 + $0x4] sm:$0xf]
  %v6561 = vld [vmem:[%s10 + $0x8] sm:$0xf]
  %v6562 = vld [vmem:[%s10 + $0xc] sm:$0xf]
  %v6563 = vld [vmem:[%s10 + $0x10] sm:$0xf]
  %v6564 = vld [vmem:[%s10 + $0x14] sm:$0xf]
  %v6565 = vld [vmem:[%s10 + $0x18] sm:$0xf]
  %v6566 = vld [vmem:[%s10 + $0x1c] sm:$0xf]
  %v6567 = vld [vmem:[%s10 + $0x20] sm:$0xf]
  %v6568 = vld [vmem:[%s10 + $0x24] sm:$0xf]
  %v6569 = vld [vmem:[%s10 + $0x28] sm:$0xf]
  %v6570 = vld [vmem:[%s10 + $0x2c] sm:$0xf]
  %v6571 = vld [vmem:[%s10 + $0x30] sm:$0xf]
  %v6572 = vld [vmem:[%s10 + $0x34] sm:$0xf]
  %v6573 = vld [vmem:[%s10 + $0x38] sm:$0xf]
  %v6574 = vld [vmem:[%s10 + $0x3c] sm:$0xf]
  %v6575 = vld [vmem:[%s10 + $0x40] sm:$0xf]
  %v6576 = vld [vmem:[%s10 + $0x44] sm:$0xf]
  %v6577 = vld [vmem:[%s10 + $0x48] sm:$0xf]
  %v6578 = vld [vmem:[%s10 + $0x4c] sm:$0xf]
  %v6579 = vld [vmem:[%s10 + $0x50] sm:$0xf]
  %v6580 = vld [vmem:[%s10 + $0x54] sm:$0xf]
  %v6581 = vld [vmem:[%s10 + $0x58] sm:$0xf]
  %v6582 = vld [vmem:[%s10 + $0x5c] sm:$0xf]
  %v6583 = vld [vmem:[%s10 + $0x60] sm:$0xf]
  %v6584 = vld [vmem:[%s10 + $0x64] sm:$0xf]
  %v6585 = vld [vmem:[%s10 + $0x68] sm:$0xf]
  %v6586 = vld [vmem:[%s10 + $0x6c] sm:$0xf]
  %v6587 = vld [vmem:[%s10 + $0x70] sm:$0xf]
  %v6588 = vld [vmem:[%s10 + $0x74] sm:$0xf]
  %v6589 = vld [vmem:[%s10 + $0x78] sm:$0xf]
  %v6590 = vld [vmem:[%s10 + $0x7c] sm:$0xf]
  %v6591 = vld [vmem:[%s10 + $0x80] sm:$0xf]
  %v6592 = vld [vmem:[%s10 + $0x84] sm:$0xf]
  %v6593 = vld [vmem:[%s10 + $0x88] sm:$0xf]
  %v6594 = vld [vmem:[%s10 + $0x8c] sm:$0xf]
  %v6631 = vunpack.c.l.b16 %v6559
  %v6632 = vunpack.c.l.b16 %v6560
  %v6633 = vunpack.c.l.b16 %v6561
  %v6634 = vunpack.c.l.b16 %v6562
  %v6635 = vunpack.c.l.b16 %v6563
  %v6636 = vunpack.c.l.b16 %v6564
  %v6637 = vunpack.c.l.b16 %v6565
  %v6638 = vunpack.c.l.b16 %v6566
  %v6639 = vunpack.c.l.b16 %v6567
  %v6640 = vunpack.c.l.b16 %v6568
  %v6641 = vunpack.c.l.b16 %v6569
  %v6642 = vunpack.c.l.b16 %v6570
  %v6643 = vunpack.c.l.b16 %v6571
  %v6644 = vunpack.c.l.b16 %v6572
  %v6645 = vunpack.c.l.b16 %v6573
  %v6646 = vunpack.c.l.b16 %v6574
  %v6647 = vunpack.c.l.b16 %v6575
  %v6648 = vunpack.c.l.b16 %v6576
  %v6649 = vunpack.c.l.b16 %v6577
  %v6650 = vunpack.c.l.b16 %v6578
  %v6651 = vunpack.c.l.b16 %v6579
  %v6652 = vunpack.c.l.b16 %v6580
  %v6653 = vunpack.c.l.b16 %v6581
  %v6654 = vunpack.c.l.b16 %v6582
  %v6655 = vunpack.c.l.b16 %v6583
  %v6656 = vunpack.c.l.b16 %v6584
  %v6657 = vunpack.c.l.b16 %v6585
  %v6658 = vunpack.c.l.b16 %v6586
  %v6659 = vunpack.c.l.b16 %v6587
  %v6660 = vunpack.c.l.b16 %v6588
  %v6661 = vunpack.c.l.b16 %v6589
  %v6662 = vunpack.c.l.b16 %v6590
  %v6663 = vunpack.c.l.b16 %v6591
  %v6664 = vunpack.c.l.b16 %v6592
  %v6665 = vunpack.c.l.b16 %v6593
  %v6666 = vunpack.c.l.b16 %v6594
  %v6667 = vpack.c.b16 %v6632, %v6631
  %v6668 = vpack.c.b16 %v6634, %v6633
  %v6669 = vpack.c.b16 %v6636, %v6635
  %v6670 = vpack.c.b16 %v6638, %v6637
  %v6671 = vpack.c.b16 %v6640, %v6639
  %v6672 = vpack.c.b16 %v6642, %v6641
  %v6673 = vpack.c.b16 %v6644, %v6643
  %v6674 = vpack.c.b16 %v6646, %v6645
  %v6675 = vpack.c.b16 %v6648, %v6647
  %v6676 = vpack.c.b16 %v6650, %v6649
  %v6677 = vpack.c.b16 %v6652, %v6651
  %v6678 = vpack.c.b16 %v6654, %v6653
  %v6679 = vpack.c.b16 %v6656, %v6655
  %v6680 = vpack.c.b16 %v6658, %v6657
  %v6681 = vpack.c.b16 %v6660, %v6659
  %v6682 = vpack.c.b16 %v6662, %v6661
  %v6683 = vpack.c.b16 %v6664, %v6663
  %v6684 = vpack.c.b16 %v6666, %v6665
  %v6704 = vsel %vm5323, %v6558, 0
  %6706 = vmatprep.subr.bf16.mxu0 0
  %6707 = vmatpush1.bf16.msra.mxu0 %v6674
  %6708 = vmatprep.subr.bf16.mxu0 0
  %6709 = vmatpush1.bf16.msra.mxu0 %v6673
  %6710 = vmatprep.subr.bf16.mxu0 0
  %6711 = vmatpush1.bf16.msra.mxu0 %v6672
  %6712 = vmatprep.subr.bf16.mxu0 0
  %6713 = vmatpush1.bf16.msra.mxu0 %v6671
  %6714 = vmatprep.subr.bf16.mxu0 0
  %6715 = vmatpush1.bf16.msra.mxu0 %v6670
  %6716 = vmatprep.subr.bf16.mxu0 0
  %6717 = vmatpush1.bf16.msra.mxu0 %v6669
  %6718 = vmatprep.subr.bf16.mxu0 0
  %6719 = vmatpush1.bf16.msra.mxu0 %v6668
  %6720 = vmatprep.subr.bf16.mxu0 0
  %6721 = vmatpush1.bf16.msra.mxu0 %v6667
  %6722 = vmatprep.subr.bf16.mxu0 0
  %6723 = vmatpush2.bf16.msra.mxu0 %v6682
  %6724 = vmatprep.subr.bf16.mxu0 0
  %6725 = vmatpush2.bf16.msra.mxu0 %v6681
  %6726 = vmatprep.subr.bf16.mxu0 0
  %6727 = vmatpush2.bf16.msra.mxu0 %v6680
  %6728 = vmatprep.subr.bf16.mxu0 0
  %6729 = vmatpush2.bf16.msra.mxu0 %v6679
  %6730 = vmatprep.subr.bf16.mxu0 0
  %6731 = vmatpush2.bf16.msra.mxu0 %v6678
  %6732 = vmatprep.subr.bf16.mxu0 0
  %6733 = vmatpush2.bf16.msra.mxu0 %v6677
  %6734 = vmatprep.subr.bf16.mxu0 0
  %6735 = vmatpush2.bf16.msra.mxu0 %v6676
  %6736 = vmatprep.subr.bf16.mxu0 0
  %6737 = vmatpush2.bf16.msra.mxu0 %v6675
  %6738 = vmatprep.mubr.bf16.mxu0 %v6557
  %6739 = vmatmul.mubr.bf16.gmra.mxu0 %v6556
  %v6740 = vpop.f32.mrf.mxu0
  %v6741 = vadd.f32 0.0, %v6740
  %v6742 = vpop.f32.mrf.mxu0
  %v6743 = vpop.f32.mrf.mxu0
  %v6744 = vpop.f32.mrf.mxu0
  %6745 = vdwg.mxu0
  %6746 = vmatprep.subr.bf16.mxu0 0
  %6747 = vmatpush1.bf16.msra.mxu0 0
  %6748 = vmatprep.subr.bf16.mxu0 0
  %6749 = vmatpush1.bf16.msra.mxu0 0
  %6750 = vmatprep.subr.bf16.mxu0 0
  %6751 = vmatpush1.bf16.msra.mxu0 0
  %6752 = vmatprep.subr.bf16.mxu0 0
  %6753 = vmatpush1.bf16.msra.mxu0 0
  %6754 = vmatprep.subr.bf16.mxu0 0
  %6755 = vmatpush1.bf16.msra.mxu0 0
  %6756 = vmatprep.subr.bf16.mxu0 0
  %6757 = vmatpush1.bf16.msra.mxu0 0
  %6758 = vmatprep.subr.bf16.mxu0 0
  %6759 = vmatpush1.bf16.msra.mxu0 %v6684
  %6760 = vmatprep.subr.bf16.mxu0 0
  %6761 = vmatpush1.bf16.msra.mxu0 %v6683
  %6762 = vmatprep.subr.bf16.mxu0 0
  %6763 = vmatpush2.bf16.msra.mxu0 0
  %6764 = vmatprep.subr.bf16.mxu0 0
  %6765 = vmatpush2.bf16.msra.mxu0 0
  %6766 = vmatprep.subr.bf16.mxu0 0
  %6767 = vmatpush2.bf16.msra.mxu0 0
  %6768 = vmatprep.subr.bf16.mxu0 0
  %6769 = vmatpush2.bf16.msra.mxu0 0
  %6770 = vmatprep.subr.bf16.mxu0 0
  %6771 = vmatpush2.bf16.msra.mxu0 0
  %6772 = vmatprep.subr.bf16.mxu0 0
  %6773 = vmatpush2.bf16.msra.mxu0 0
  %6774 = vmatprep.subr.bf16.mxu0 0
  %6775 = vmatpush2.bf16.msra.mxu0 0
  %6776 = vmatprep.subr.bf16.mxu0 0
  %6777 = vmatpush2.bf16.msra.mxu0 0
  %6778 = vmatprep.mubr.bf16.mxu0 0
  %6779 = vmatmul.mubr.bf16.gmra.mxu0 %v6704
  %v6780 = vpop.f32.mrf.mxu0
  %v6781 = vadd.f32 %v6741, %v6780
  %v6782 = vpop.f32.mrf.mxu0
  %v6783 = vpop.f32.mrf.mxu0
  %v6784 = vpop.f32.mrf.mxu0
  %6785 = vdwg.mxu0
  %v6786 = vld [vmem:[%s11] sm:$0x1]
  %v6788 = vlaneseq
  %v6789 = vshrl.u32 %v6788, 7
  %v6790 = vsub.s32 0, %v6789
  %v6791 = vrot.slane %v6786, %v6790
  %v6793 = vmul.f32 %v6781, %v6791
  %v6794 = vld [vmem:[%s12] sm:$0x1]
  %v6796 = vlaneseq
  %v6797 = vshrl.u32 %v6796, 7
  %v6798 = vsub.s32 0, %v6797
  %v6799 = vrot.slane %v6794, %v6798
  %v6801 = vadd.f32 %v6793, %v6799
  %v6802 = vmax.f32 %v6801, 0.0
  %v6804 = vcombine.high %v6802, %v6802
  %vm6806 = vcmask 519168
  %v6807 = vsel %vm6806, %v6802, 0.0
  %v6808 = vrot.slane %v6807, 4
  %v6809 = vadd.f32 %v6807, %v6808
  %v6810 = vrot.slane %v6809, 2
  %v6811 = vadd.f32 %v6809, %v6810
  %v6812 = vrot.slane %v6811, 1
  %v6813 = vadd.f32 %v6811, %v6812
  %v6814 = vsel %vm6806, %v6804, 0.0
  %v6815 = vrot.slane %v6814, 4
  %v6816 = vadd.f32 %v6814, %v6815
  %v6817 = vrot.slane %v6816, 2
  %v6818 = vadd.f32 %v6816, %v6817
  %v6819 = vrot.slane %v6818, 1
  %v6820 = vadd.f32 %v6818, %v6819
  %vm6823 = vcmask 1041409
  %v6824 = vsel %vm6823, %v6820, %v6813
  %vm6826 = vcmask 517120
  %v6827 = vsel %vm6826, %v6824, 0.0
  %6828 = vadd.xlane.f32.xlu0 %v6827
  %v6829 = vpop.xlane.xlu0 %6828
  %v6830 = vmul.f32 %v6829, 0.00390625
  %v6831 = vld [vmem:[%s0] ss:$2 sm:$0xff]
  %s6832 = scalar_lea.vmem %s0, 32
  %v6833 = vld [vmem:[%s6832] ss:$2 sm:$0xff]
  %s6834 = scalar_lea.vmem %s0, 64
  %v6835 = vld [vmem:[%s6834] ss:$2 sm:$0xff]
  %s6836 = scalar_lea.vmem %s0, 96
  %v6837 = vld [vmem:[%s6836] ss:$2 sm:$0xff]
  %s6838 = scalar_lea.vmem %s0, 128
  %v6839 = vld [vmem:[%s6838] ss:$2 sm:$0xff]
  %s6840 = scalar_lea.vmem %s0, 160
  %v6841 = vld [vmem:[%s6840] ss:$2 sm:$0xff]
  %s6842 = scalar_lea.vmem %s0, 192
  %v6843 = vld [vmem:[%s6842] ss:$2 sm:$0xff]
  %s6844 = scalar_lea.vmem %s0, 224
  %v6845 = vld [vmem:[%s6844] ss:$2 sm:$0xff]
  %s6846 = scalar_lea.vmem %s0, 256
  %v6847 = vld [vmem:[%s6846] ss:$2 sm:$0xff]
  %s6848 = scalar_lea.vmem %s0, 288
  %v6849 = vld [vmem:[%s6848] ss:$2 sm:$0xff]
  %s6850 = scalar_lea.vmem %s0, 320
  %v6851 = vld [vmem:[%s6850] ss:$2 sm:$0xff]
  %s6852 = scalar_lea.vmem %s0, 352
  %v6853 = vld [vmem:[%s6852] ss:$2 sm:$0xff]
  %s6854 = scalar_lea.vmem %s0, 384
  %v6855 = vld [vmem:[%s6854] ss:$2 sm:$0xff]
  %s6856 = scalar_lea.vmem %s0, 416
  %v6857 = vld [vmem:[%s6856] ss:$2 sm:$0xff]
  %s6858 = scalar_lea.vmem %s0, 448
  %v6859 = vld [vmem:[%s6858] ss:$2 sm:$0xff]
  %s6860 = scalar_lea.vmem %s0, 480
  %v6861 = vld [vmem:[%s6860] ss:$2 sm:$0xff]
  %s6862 = scalar_lea.vmem %s0, 1
  %v6863 = vld [vmem:[%s6862] ss:$2 sm:$0xff]
  %s6864 = scalar_lea.vmem %s0, 33
  %v6865 = vld [vmem:[%s6864] ss:$2 sm:$0xff]
  %s6866 = scalar_lea.vmem %s0, 65
  %v6867 = vld [vmem:[%s6866] ss:$2 sm:$0xff]
  %s6868 = scalar_lea.vmem %s0, 97
  %v6869 = vld [vmem:[%s6868] ss:$2 sm:$0xff]
  %s6870 = scalar_lea.vmem %s0, 129
  %v6871 = vld [vmem:[%s6870] ss:$2 sm:$0xff]
  %s6872 = scalar_lea.vmem %s0, 161
  %v6873 = vld [vmem:[%s6872] ss:$2 sm:$0xff]
  %s6874 = scalar_lea.vmem %s0, 193
  %v6875 = vld [vmem:[%s6874] ss:$2 sm:$0xff]
  %s6876 = scalar_lea.vmem %s0, 225
  %v6877 = vld [vmem:[%s6876] ss:$2 sm:$0xff]
  %s6878 = scalar_lea.vmem %s0, 257
  %v6879 = vld [vmem:[%s6878] ss:$2 sm:$0xff]
  %s6880 = scalar_lea.vmem %s0, 289
  %v6881 = vld [vmem:[%s6880] ss:$2 sm:$0xff]
  %s6882 = scalar_lea.vmem %s0, 321
  %v6883 = vld [vmem:[%s6882] ss:$2 sm:$0xff]
  %s6884 = scalar_lea.vmem %s0, 353
  %v6885 = vld [vmem:[%s6884] ss:$2 sm:$0xff]
  %s6886 = scalar_lea.vmem %s0, 385
  %v6887 = vld [vmem:[%s6886] ss:$2 sm:$0xff]
  %s6888 = scalar_lea.vmem %s0, 417
  %v6889 = vld [vmem:[%s6888] ss:$2 sm:$0xff]
  %s6890 = scalar_lea.vmem %s0, 449
  %v6891 = vld [vmem:[%s6890] ss:$2 sm:$0xff]
  %s6892 = scalar_lea.vmem %s0, 481
  %v6893 = vld [vmem:[%s6892] ss:$2 sm:$0xff]
  %v6894 = vadd.f32 %v6831, %v6863
  %v6895 = vadd.f32 %v6833, %v6865
  %v6896 = vadd.f32 %v6835, %v6867
  %v6897 = vadd.f32 %v6837, %v6869
  %v6898 = vadd.f32 %v6839, %v6871
  %v6899 = vadd.f32 %v6841, %v6873
  %v6900 = vadd.f32 %v6843, %v6875
  %v6901 = vadd.f32 %v6845, %v6877
  %v6902 = vadd.f32 %v6847, %v6879
  %v6903 = vadd.f32 %v6849, %v6881
  %v6904 = vadd.f32 %v6851, %v6883
  %v6905 = vadd.f32 %v6853, %v6885
  %v6906 = vadd.f32 %v6855, %v6887
  %v6907 = vadd.f32 %v6857, %v6889
  %v6908 = vadd.f32 %v6859, %v6891
  %v6909 = vadd.f32 %v6861, %v6893
  %s6910 = scalar_lea.vmem %s0, 16
  %v6911 = vld [vmem:[%s6910] ss:$2 sm:$0xff]
  %s6912 = scalar_lea.vmem %s6910, 32
  %v6913 = vld [vmem:[%s6912] ss:$2 sm:$0xff]
  %s6914 = scalar_lea.vmem %s6910, 64
  %v6915 = vld [vmem:[%s6914] ss:$2 sm:$0xff]
  %s6916 = scalar_lea.vmem %s6910, 96
  %v6917 = vld [vmem:[%s6916] ss:$2 sm:$0xff]
  %s6918 = scalar_lea.vmem %s6910, 128
  %v6919 = vld [vmem:[%s6918] ss:$2 sm:$0xff]
  %s6920 = scalar_lea.vmem %s6910, 160
  %v6921 = vld [vmem:[%s6920] ss:$2 sm:$0xff]
  %s6922 = scalar_lea.vmem %s6910, 192
  %v6923 = vld [vmem:[%s6922] ss:$2 sm:$0xff]
  %s6924 = scalar_lea.vmem %s6910, 224
  %v6925 = vld [vmem:[%s6924] ss:$2 sm:$0xff]
  %s6926 = scalar_lea.vmem %s6910, 256
  %v6927 = vld [vmem:[%s6926] ss:$2 sm:$0xff]
  %s6928 = scalar_lea.vmem %s6910, 288
  %v6929 = vld [vmem:[%s6928] ss:$2 sm:$0xff]
  %s6930 = scalar_lea.vmem %s6910, 320
  %v6931 = vld [vmem:[%s6930] ss:$2 sm:$0xff]
  %s6932 = scalar_lea.vmem %s6910, 352
  %v6933 = vld [vmem:[%s6932] ss:$2 sm:$0xff]
  %s6934 = scalar_lea.vmem %s6910, 384
  %v6935 = vld [vmem:[%s6934] ss:$2 sm:$0xff]
  %s6936 = scalar_lea.vmem %s6910, 416
  %v6937 = vld [vmem:[%s6936] ss:$2 sm:$0xff]
  %s6938 = scalar_lea.vmem %s6910, 448
  %v6939 = vld [vmem:[%s6938] ss:$2 sm:$0xff]
  %s6940 = scalar_lea.vmem %s6910, 480
  %v6941 = vld [vmem:[%s6940] ss:$2 sm:$0xff]
  %v6942 = vadd.f32 %v6894, %v6911
  %v6943 = vadd.f32 %v6895, %v6913
  %v6944 = vadd.f32 %v6896, %v6915
  %v6945 = vadd.f32 %v6897, %v6917
  %v6946 = vadd.f32 %v6898, %v6919
  %v6947 = vadd.f32 %v6899, %v6921
  %v6948 = vadd.f32 %v6900, %v6923
  %v6949 = vadd.f32 %v6901, %v6925
  %v6950 = vadd.f32 %v6902, %v6927
  %v6951 = vadd.f32 %v6903, %v6929
  %v6952 = vadd.f32 %v6904, %v6931
  %v6953 = vadd.f32 %v6905, %v6933
  %v6954 = vadd.f32 %v6906, %v6935
  %v6955 = vadd.f32 %v6907, %v6937
  %v6956 = vadd.f32 %v6908, %v6939
  %v6957 = vadd.f32 %v6909, %v6941
  %s6958 = scalar_lea.vmem %s6910, 1
  %v6959 = vld [vmem:[%s6958] ss:$2 sm:$0xff]
  %s6960 = scalar_lea.vmem %s6910, 33
  %v6961 = vld [vmem:[%s6960] ss:$2 sm:$0xff]
  %s6962 = scalar_lea.vmem %s6910, 65
  %v6963 = vld [vmem:[%s6962] ss:$2 sm:$0xff]
  %s6964 = scalar_lea.vmem %s6910, 97
  %v6965 = vld [vmem:[%s6964] ss:$2 sm:$0xff]
  %s6966 = scalar_lea.vmem %s6910, 129
  %v6967 = vld [vmem:[%s6966] ss:$2 sm:$0xff]
  %s6968 = scalar_lea.vmem %s6910, 161
  %v6969 = vld [vmem:[%s6968] ss:$2 sm:$0xff]
  %s6970 = scalar_lea.vmem %s6910, 193
  %v6971 = vld [vmem:[%s6970] ss:$2 sm:$0xff]
  %s6972 = scalar_lea.vmem %s6910, 225
  %v6973 = vld [vmem:[%s6972] ss:$2 sm:$0xff]
  %s6974 = scalar_lea.vmem %s6910, 257
  %v6975 = vld [vmem:[%s6974] ss:$2 sm:$0xff]
  %s6976 = scalar_lea.vmem %s6910, 289
  %v6977 = vld [vmem:[%s6976] ss:$2 sm:$0xff]
  %s6978 = scalar_lea.vmem %s6910, 321
  %v6979 = vld [vmem:[%s6978] ss:$2 sm:$0xff]
  %s6980 = scalar_lea.vmem %s6910, 353
  %v6981 = vld [vmem:[%s6980] ss:$2 sm:$0xff]
  %s6982 = scalar_lea.vmem %s6910, 385
  %v6983 = vld [vmem:[%s6982] ss:$2 sm:$0xff]
  %s6984 = scalar_lea.vmem %s6910, 417
  %v6985 = vld [vmem:[%s6984] ss:$2 sm:$0xff]
  %s6986 = scalar_lea.vmem %s6910, 449
  %v6987 = vld [vmem:[%s6986] ss:$2 sm:$0xff]
  %s6988 = scalar_lea.vmem %s6910, 481
  %v6989 = vld [vmem:[%s6988] ss:$2 sm:$0xff]
  %v6990 = vadd.f32 %v6942, %v6959
  %v6991 = vadd.f32 %v6943, %v6961
  %v6992 = vadd.f32 %v6944, %v6963
  %v6993 = vadd.f32 %v6945, %v6965
  %v6994 = vadd.f32 %v6946, %v6967
  %v6995 = vadd.f32 %v6947, %v6969
  %v6996 = vadd.f32 %v6948, %v6971
  %v6997 = vadd.f32 %v6949, %v6973
  %v6998 = vadd.f32 %v6950, %v6975
  %v6999 = vadd.f32 %v6951, %v6977
  %v7000 = vadd.f32 %v6952, %v6979
  %v7001 = vadd.f32 %v6953, %v6981
  %v7002 = vadd.f32 %v6954, %v6983
  %v7003 = vadd.f32 %v6955, %v6985
  %v7004 = vadd.f32 %v6956, %v6987
  %v7005 = vadd.f32 %v6957, %v6989
  %v7006 = vmul.f32 %v6990, 0.25
  %v7007 = vmul.f32 %v6991, 0.25
  %v7008 = vmul.f32 %v6992, 0.25
  %v7009 = vmul.f32 %v6993, 0.25
  %v7010 = vmul.f32 %v6994, 0.25
  %v7011 = vmul.f32 %v6995, 0.25
  %v7012 = vmul.f32 %v6996, 0.25
  %v7013 = vmul.f32 %v6997, 0.25
  %v7014 = vmul.f32 %v6998, 0.25
  %v7015 = vmul.f32 %v6999, 0.25
  %v7016 = vmul.f32 %v7000, 0.25
  %v7017 = vmul.f32 %v7001, 0.25
  %v7018 = vmul.f32 %v7002, 0.25
  %v7019 = vmul.f32 %v7003, 0.25
  %v7020 = vmul.f32 %v7004, 0.25
  %v7021 = vmul.f32 %v7005, 0.25
  %s7022 = scalar_lea.vmem [#allocation6], 16
  %7023 = vst.msk [vmem:[%s7022 + $0x1] sm:$0xff] %vm81, %v7006
  %7024 = vst.msk [vmem:[%s7022 + $0x11] sm:$0xff] %vm81, %v7007
  %7025 = vst.msk [vmem:[%s7022 + $0x21] sm:$0xff] %vm81, %v7008
  %7026 = vst.msk [vmem:[%s7022 + $0x31] sm:$0xff] %vm81, %v7009
  %7027 = vst.msk [vmem:[%s7022 + $0x41] sm:$0xff] %vm81, %v7010
  %7028 = vst.msk [vmem:[%s7022 + $0x51] sm:$0xff] %vm81, %v7011
  %7029 = vst.msk [vmem:[%s7022 + $0x61] sm:$0xff] %vm81, %v7012
  %7030 = vst.msk [vmem:[%s7022 + $0x71] sm:$0xff] %vm81, %v7013
  %7031 = vst.msk [vmem:[%s7022 + $0xa1] sm:$0xff] %vm81, %v7014
  %7032 = vst.msk [vmem:[%s7022 + $0xb1] sm:$0xff] %vm81, %v7015
  %7033 = vst.msk [vmem:[%s7022 + $0xc1] sm:$0xff] %vm81, %v7016
  %7034 = vst.msk [vmem:[%s7022 + $0xd1] sm:$0xff] %vm81, %v7017
  %7035 = vst.msk [vmem:[%s7022 + $0xe1] sm:$0xff] %vm81, %v7018
  %7036 = vst.msk [vmem:[%s7022 + $0xf1] sm:$0xff] %vm81, %v7019
  %7037 = vst.msk [vmem:[%s7022 + $0x101] sm:$0xff] %vm81, %v7020
  %7038 = vst.msk [vmem:[%s7022 + $0x111] sm:$0xff] %vm81, %v7021
  %v7039 = vld [vmem:[#allocation6] sm:$0xff]
  %v7040 = vld [vmem:[#allocation6 + $0x10] sm:$0xff]
  %v7041 = vld [vmem:[#allocation6 + $0x20] sm:$0xff]
  %v7042 = vld [vmem:[#allocation6 + $0x30] sm:$0xff]
  %v7043 = vld [vmem:[#allocation6 + $0x40] sm:$0xff]
  %v7044 = vld [vmem:[#allocation6 + $0x50] sm:$0xff]
  %v7045 = vld [vmem:[#allocation6 + $0x60] sm:$0xff]
  %v7046 = vld [vmem:[#allocation6 + $0x70] sm:$0xff]
  %v7047 = vld [vmem:[#allocation6 + $0xa0] sm:$0xff]
  %v7048 = vld [vmem:[#allocation6 + $0xb0] sm:$0xff]
  %v7049 = vld [vmem:[#allocation6 + $0xc0] sm:$0xff]
  %v7050 = vld [vmem:[#allocation6 + $0xd0] sm:$0xff]
  %v7051 = vld [vmem:[#allocation6 + $0xe0] sm:$0xff]
  %v7052 = vld [vmem:[#allocation6 + $0xf0] sm:$0xff]
  %v7053 = vld [vmem:[#allocation6 + $0x100] sm:$0xff]
  %v7054 = vld [vmem:[#allocation6 + $0x110] sm:$0xff]
  %v7055 = vld [vmem:[#allocation6 + $0x1] sm:$0xff]
  %v7056 = vld [vmem:[#allocation6 + $0x11] sm:$0xff]
  %v7057 = vld [vmem:[#allocation6 + $0x21] sm:$0xff]
  %v7058 = vld [vmem:[#allocation6 + $0x31] sm:$0xff]
  %v7059 = vld [vmem:[#allocation6 + $0x41] sm:$0xff]
  %v7060 = vld [vmem:[#allocation6 + $0x51] sm:$0xff]
  %v7061 = vld [vmem:[#allocation6 + $0x61] sm:$0xff]
  %v7062 = vld [vmem:[#allocation6 + $0x71] sm:$0xff]
  %v7063 = vld [vmem:[#allocation6 + $0xa1] sm:$0xff]
  %v7064 = vld [vmem:[#allocation6 + $0xb1] sm:$0xff]
  %v7065 = vld [vmem:[#allocation6 + $0xc1] sm:$0xff]
  %v7066 = vld [vmem:[#allocation6 + $0xd1] sm:$0xff]
  %v7067 = vld [vmem:[#allocation6 + $0xe1] sm:$0xff]
  %v7068 = vld [vmem:[#allocation6 + $0xf1] sm:$0xff]
  %v7069 = vld [vmem:[#allocation6 + $0x101] sm:$0xff]
  %v7070 = vld [vmem:[#allocation6 + $0x111] sm:$0xff]
  %v7071 = vld [vmem:[#allocation6 + $0x2] sm:$0xff]
  %v7072 = vld [vmem:[#allocation6 + $0x12] sm:$0xff]
  %v7073 = vld [vmem:[#allocation6 + $0x22] sm:$0xff]
  %v7074 = vld [vmem:[#allocation6 + $0x32] sm:$0xff]
  %v7075 = vld [vmem:[#allocation6 + $0x42] sm:$0xff]
  %v7076 = vld [vmem:[#allocation6 + $0x52] sm:$0xff]
  %v7077 = vld [vmem:[#allocation6 + $0x62] sm:$0xff]
  %v7078 = vld [vmem:[#allocation6 + $0x72] sm:$0xff]
  %v7079 = vld [vmem:[#allocation6 + $0xa2] sm:$0xff]
  %v7080 = vld [vmem:[#allocation6 + $0xb2] sm:$0xff]
  %v7081 = vld [vmem:[#allocation6 + $0xc2] sm:$0xff]
  %v7082 = vld [vmem:[#allocation6 + $0xd2] sm:$0xff]
  %v7083 = vld [vmem:[#allocation6 + $0xe2] sm:$0xff]
  %v7084 = vld [vmem:[#allocation6 + $0xf2] sm:$0xff]
  %v7085 = vld [vmem:[#allocation6 + $0x102] sm:$0xff]
  %v7086 = vld [vmem:[#allocation6 + $0x112] sm:$0xff]
  %v7087 = vld [vmem:[%s7022] sm:$0xff]
  %v7088 = vld [vmem:[%s7022 + $0x10] sm:$0xff]
  %v7089 = vld [vmem:[%s7022 + $0x20] sm:$0xff]
  %v7090 = vld [vmem:[%s7022 + $0x30] sm:$0xff]
  %v7091 = vld [vmem:[%s7022 + $0x40] sm:$0xff]
  %v7092 = vld [vmem:[%s7022 + $0x50] sm:$0xff]
  %v7093 = vld [vmem:[%s7022 + $0x60] sm:$0xff]
  %v7094 = vld [vmem:[%s7022 + $0x70] sm:$0xff]
  %v7095 = vld [vmem:[%s7022 + $0xa0] sm:$0xff]
  %v7096 = vld [vmem:[%s7022 + $0xb0] sm:$0xff]
  %v7097 = vld [vmem:[%s7022 + $0xc0] sm:$0xff]
  %v7098 = vld [vmem:[%s7022 + $0xd0] sm:$0xff]
  %v7099 = vld [vmem:[%s7022 + $0xe0] sm:$0xff]
  %v7100 = vld [vmem:[%s7022 + $0xf0] sm:$0xff]
  %v7101 = vld [vmem:[%s7022 + $0x100] sm:$0xff]
  %v7102 = vld [vmem:[%s7022 + $0x110] sm:$0xff]
  %v7103 = vld [vmem:[%s7022 + $0x1] sm:$0xff]
  %v7104 = vld [vmem:[%s7022 + $0x11] sm:$0xff]
  %v7105 = vld [vmem:[%s7022 + $0x21] sm:$0xff]
  %v7106 = vld [vmem:[%s7022 + $0x31] sm:$0xff]
  %v7107 = vld [vmem:[%s7022 + $0x41] sm:$0xff]
  %v7108 = vld [vmem:[%s7022 + $0x51] sm:$0xff]
  %v7109 = vld [vmem:[%s7022 + $0x61] sm:$0xff]
  %v7110 = vld [vmem:[%s7022 + $0x71] sm:$0xff]
  %v7111 = vld [vmem:[%s7022 + $0xa1] sm:$0xff]
  %v7112 = vld [vmem:[%s7022 + $0xb1] sm:$0xff]
  %v7113 = vld [vmem:[%s7022 + $0xc1] sm:$0xff]
  %v7114 = vld [vmem:[%s7022 + $0xd1] sm:$0xff]
  %v7115 = vld [vmem:[%s7022 + $0xe1] sm:$0xff]
  %v7116 = vld [vmem:[%s7022 + $0xf1] sm:$0xff]
  %v7117 = vld [vmem:[%s7022 + $0x101] sm:$0xff]
  %v7118 = vld [vmem:[%s7022 + $0x111] sm:$0xff]
  %v7119 = vld [vmem:[%s7022 + $0x2] sm:$0xff]
  %v7120 = vld [vmem:[%s7022 + $0x12] sm:$0xff]
  %v7121 = vld [vmem:[%s7022 + $0x22] sm:$0xff]
  %v7122 = vld [vmem:[%s7022 + $0x32] sm:$0xff]
  %v7123 = vld [vmem:[%s7022 + $0x42] sm:$0xff]
  %v7124 = vld [vmem:[%s7022 + $0x52] sm:$0xff]
  %v7125 = vld [vmem:[%s7022 + $0x62] sm:$0xff]
  %v7126 = vld [vmem:[%s7022 + $0x72] sm:$0xff]
  %v7127 = vld [vmem:[%s7022 + $0xa2] sm:$0xff]
  %v7128 = vld [vmem:[%s7022 + $0xb2] sm:$0xff]
  %v7129 = vld [vmem:[%s7022 + $0xc2] sm:$0xff]
  %v7130 = vld [vmem:[%s7022 + $0xd2] sm:$0xff]
  %v7131 = vld [vmem:[%s7022 + $0xe2] sm:$0xff]
  %v7132 = vld [vmem:[%s7022 + $0xf2] sm:$0xff]
  %v7133 = vld [vmem:[%s7022 + $0x102] sm:$0xff]
  %v7134 = vld [vmem:[%s7022 + $0x112] sm:$0xff]
  %s7135 = scalar_lea.vmem [#allocation6], 32
  %v7136 = vld [vmem:[%s7135] sm:$0xff]
  %v7137 = vld [vmem:[%s7135 + $0x10] sm:$0xff]
  %v7138 = vld [vmem:[%s7135 + $0x20] sm:$0xff]
  %v7139 = vld [vmem:[%s7135 + $0x30] sm:$0xff]
  %v7140 = vld [vmem:[%s7135 + $0x40] sm:$0xff]
  %v7141 = vld [vmem:[%s7135 + $0x50] sm:$0xff]
  %v7142 = vld [vmem:[%s7135 + $0x60] sm:$0xff]
  %v7143 = vld [vmem:[%s7135 + $0x70] sm:$0xff]
  %v7144 = vld [vmem:[%s7135 + $0xa0] sm:$0xff]
  %v7145 = vld [vmem:[%s7135 + $0xb0] sm:$0xff]
  %v7146 = vld [vmem:[%s7135 + $0xc0] sm:$0xff]
  %v7147 = vld [vmem:[%s7135 + $0xd0] sm:$0xff]
  %v7148 = vld [vmem:[%s7135 + $0xe0] sm:$0xff]
  %v7149 = vld [vmem:[%s7135 + $0xf0] sm:$0xff]
  %v7150 = vld [vmem:[%s7135 + $0x100] sm:$0xff]
  %v7151 = vld [vmem:[%s7135 + $0x110] sm:$0xff]
  %v7152 = vld [vmem:[%s7135 + $0x1] sm:$0xff]
  %v7153 = vld [vmem:[%s7135 + $0x11] sm:$0xff]
  %v7154 = vld [vmem:[%s7135 + $0x21] sm:$0xff]
  %v7155 = vld [vmem:[%s7135 + $0x31] sm:$0xff]
  %v7156 = vld [vmem:[%s7135 + $0x41] sm:$0xff]
  %v7157 = vld [vmem:[%s7135 + $0x51] sm:$0xff]
  %v7158 = vld [vmem:[%s7135 + $0x61] sm:$0xff]
  %v7159 = vld [vmem:[%s7135 + $0x71] sm:$0xff]
  %v7160 = vld [vmem:[%s7135 + $0xa1] sm:$0xff]
  %v7161 = vld [vmem:[%s7135 + $0xb1] sm:$0xff]
  %v7162 = vld [vmem:[%s7135 + $0xc1] sm:$0xff]
  %v7163 = vld [vmem:[%s7135 + $0xd1] sm:$0xff]
  %v7164 = vld [vmem:[%s7135 + $0xe1] sm:$0xff]
  %v7165 = vld [vmem:[%s7135 + $0xf1] sm:$0xff]
  %v7166 = vld [vmem:[%s7135 + $0x101] sm:$0xff]
  %v7167 = vld [vmem:[%s7135 + $0x111] sm:$0xff]
  %v7168 = vld [vmem:[%s7135 + $0x2] sm:$0xff]
  %v7169 = vld [vmem:[%s7135 + $0x12] sm:$0xff]
  %v7170 = vld [vmem:[%s7135 + $0x22] sm:$0xff]
  %v7171 = vld [vmem:[%s7135 + $0x32] sm:$0xff]
  %v7172 = vld [vmem:[%s7135 + $0x42] sm:$0xff]
  %v7173 = vld [vmem:[%s7135 + $0x52] sm:$0xff]
  %v7174 = vld [vmem:[%s7135 + $0x62] sm:$0xff]
  %v7175 = vld [vmem:[%s7135 + $0x72] sm:$0xff]
  %v7176 = vld [vmem:[%s7135 + $0xa2] sm:$0xff]
  %v7177 = vld [vmem:[%s7135 + $0xb2] sm:$0xff]
  %v7178 = vld [vmem:[%s7135 + $0xc2] sm:$0xff]
  %v7179 = vld [vmem:[%s7135 + $0xd2] sm:$0xff]
  %v7180 = vld [vmem:[%s7135 + $0xe2] sm:$0xff]
  %v7181 = vld [vmem:[%s7135 + $0xf2] sm:$0xff]
  %v7182 = vld [vmem:[%s7135 + $0x102] sm:$0xff]
  %v7183 = vld [vmem:[%s7135 + $0x112] sm:$0xff]
  %7200 = vrot.lane.b32.xlu0 %v7055, 6
  %v7201 = vpop.permute.xlu0 %7200
  %7202 = vrot.lane.b32.xlu0 %v7056, 6
  %v7203 = vpop.permute.xlu0 %7202
  %7204 = vrot.lane.b32.xlu0 %v7057, 6
  %v7205 = vpop.permute.xlu0 %7204
  %7206 = vrot.lane.b32.xlu0 %v7058, 6
  %v7207 = vpop.permute.xlu0 %7206
  %7208 = vrot.lane.b32.xlu0 %v7059, 6
  %v7209 = vpop.permute.xlu0 %7208
  %7210 = vrot.lane.b32.xlu0 %v7060, 6
  %v7211 = vpop.permute.xlu0 %7210
  %7212 = vrot.lane.b32.xlu0 %v7061, 6
  %v7213 = vpop.permute.xlu0 %7212
  %7214 = vrot.lane.b32.xlu0 %v7062, 6
  %v7215 = vpop.permute.xlu0 %7214
  %7216 = vrot.lane.b32.xlu0 %v7063, 6
  %v7217 = vpop.permute.xlu0 %7216
  %7218 = vrot.lane.b32.xlu0 %v7064, 6
  %v7219 = vpop.permute.xlu0 %7218
  %7220 = vrot.lane.b32.xlu0 %v7065, 6
  %v7221 = vpop.permute.xlu0 %7220
  %7222 = vrot.lane.b32.xlu0 %v7066, 6
  %v7223 = vpop.permute.xlu0 %7222
  %7224 = vrot.lane.b32.xlu0 %v7067, 6
  %v7225 = vpop.permute.xlu0 %7224
  %7226 = vrot.lane.b32.xlu0 %v7068, 6
  %v7227 = vpop.permute.xlu0 %7226
  %7228 = vrot.lane.b32.xlu0 %v7069, 6
  %v7229 = vpop.permute.xlu0 %7228
  %7230 = vrot.lane.b32.xlu0 %v7070, 6
  %v7231 = vpop.permute.xlu0 %7230
  %7264 = vrot.lane.b32.xlu0 %v7071, 12
  %v7265 = vpop.permute.xlu0 %7264
  %7266 = vrot.lane.b32.xlu0 %v7072, 12
  %v7267 = vpop.permute.xlu0 %7266
  %7268 = vrot.lane.b32.xlu0 %v7073, 12
  %v7269 = vpop.permute.xlu0 %7268
  %7270 = vrot.lane.b32.xlu0 %v7074, 12
  %v7271 = vpop.permute.xlu0 %7270
  %7272 = vrot.lane.b32.xlu0 %v7075, 12
  %v7273 = vpop.permute.xlu0 %7272
  %7274 = vrot.lane.b32.xlu0 %v7076, 12
  %v7275 = vpop.permute.xlu0 %7274
  %7276 = vrot.lane.b32.xlu0 %v7077, 12
  %v7277 = vpop.permute.xlu0 %7276
  %7278 = vrot.lane.b32.xlu0 %v7078, 12
  %v7279 = vpop.permute.xlu0 %7278
  %7280 = vrot.lane.b32.xlu0 %v7079, 12
  %v7281 = vpop.permute.xlu0 %7280
  %7282 = vrot.lane.b32.xlu0 %v7080, 12
  %v7283 = vpop.permute.xlu0 %7282
  %7284 = vrot.lane.b32.xlu0 %v7081, 12
  %v7285 = vpop.permute.xlu0 %7284
  %7286 = vrot.lane.b32.xlu0 %v7082, 12
  %v7287 = vpop.permute.xlu0 %7286
  %7288 = vrot.lane.b32.xlu0 %v7083, 12
  %v7289 = vpop.permute.xlu0 %7288
  %7290 = vrot.lane.b32.xlu0 %v7084, 12
  %v7291 = vpop.permute.xlu0 %7290
  %7292 = vrot.lane.b32.xlu0 %v7085, 12
  %v7293 = vpop.permute.xlu0 %7292
  %7294 = vrot.lane.b32.xlu0 %v7086, 12
  %v7295 = vpop.permute.xlu0 %7294
  %7328 = vrot.lane.b32.xlu0 %v7087, 18
  %v7329 = vpop.permute.xlu0 %7328
  %7330 = vrot.lane.b32.xlu0 %v7088, 18
  %v7331 = vpop.permute.xlu0 %7330
  %7332 = vrot.lane.b32.xlu0 %v7089, 18
  %v7333 = vpop.permute.xlu0 %7332
  %7334 = vrot.lane.b32.xlu0 %v7090, 18
  %v7335 = vpop.permute.xlu0 %7334
  %7336 = vrot.lane.b32.xlu0 %v7091, 18
  %v7337 = vpop.permute.xlu0 %7336
  %7338 = vrot.lane.b32.xlu0 %v7092, 18
  %v7339 = vpop.permute.xlu0 %7338
  %7340 = vrot.lane.b32.xlu0 %v7093, 18
  %v7341 = vpop.permute.xlu0 %7340
  %7342 = vrot.lane.b32.xlu0 %v7094, 18
  %v7343 = vpop.permute.xlu0 %7342
  %7344 = vrot.lane.b32.xlu0 %v7095, 18
  %v7345 = vpop.permute.xlu0 %7344
  %7346 = vrot.lane.b32.xlu0 %v7096, 18
  %v7347 = vpop.permute.xlu0 %7346
  %7348 = vrot.lane.b32.xlu0 %v7097, 18
  %v7349 = vpop.permute.xlu0 %7348
  %7350 = vrot.lane.b32.xlu0 %v7098, 18
  %v7351 = vpop.permute.xlu0 %7350
  %7352 = vrot.lane.b32.xlu0 %v7099, 18
  %v7353 = vpop.permute.xlu0 %7352
  %7354 = vrot.lane.b32.xlu0 %v7100, 18
  %v7355 = vpop.permute.xlu0 %7354
  %7356 = vrot.lane.b32.xlu0 %v7101, 18
  %v7357 = vpop.permute.xlu0 %7356
  %7358 = vrot.lane.b32.xlu0 %v7102, 18
  %v7359 = vpop.permute.xlu0 %7358
  %7392 = vrot.lane.b32.xlu0 %v7103, 24
  %v7393 = vpop.permute.xlu0 %7392
  %7394 = vrot.lane.b32.xlu0 %v7104, 24
  %v7395 = vpop.permute.xlu0 %7394
  %7396 = vrot.lane.b32.xlu0 %v7105, 24
  %v7397 = vpop.permute.xlu0 %7396
  %7398 = vrot.lane.b32.xlu0 %v7106, 24
  %v7399 = vpop.permute.xlu0 %7398
  %7400 = vrot.lane.b32.xlu0 %v7107, 24
  %v7401 = vpop.permute.xlu0 %7400
  %7402 = vrot.lane.b32.xlu0 %v7108, 24
  %v7403 = vpop.permute.xlu0 %7402
  %7404 = vrot.lane.b32.xlu0 %v7109, 24
  %v7405 = vpop.permute.xlu0 %7404
  %7406 = vrot.lane.b32.xlu0 %v7110, 24
  %v7407 = vpop.permute.xlu0 %7406
  %7408 = vrot.lane.b32.xlu0 %v7111, 24
  %v7409 = vpop.permute.xlu0 %7408
  %7410 = vrot.lane.b32.xlu0 %v7112, 24
  %v7411 = vpop.permute.xlu0 %7410
  %7412 = vrot.lane.b32.xlu0 %v7113, 24
  %v7413 = vpop.permute.xlu0 %7412
  %7414 = vrot.lane.b32.xlu0 %v7114, 24
  %v7415 = vpop.permute.xlu0 %7414
  %7416 = vrot.lane.b32.xlu0 %v7115, 24
  %v7417 = vpop.permute.xlu0 %7416
  %7418 = vrot.lane.b32.xlu0 %v7116, 24
  %v7419 = vpop.permute.xlu0 %7418
  %7420 = vrot.lane.b32.xlu0 %v7117, 24
  %v7421 = vpop.permute.xlu0 %7420
  %7422 = vrot.lane.b32.xlu0 %v7118, 24
  %v7423 = vpop.permute.xlu0 %7422
  %7456 = vrot.lane.b32.xlu0 %v7119, 30
  %v7457 = vpop.permute.xlu0 %7456
  %7458 = vrot.lane.b32.xlu0 %v7120, 30
  %v7459 = vpop.permute.xlu0 %7458
  %7460 = vrot.lane.b32.xlu0 %v7121, 30
  %v7461 = vpop.permute.xlu0 %7460
  %7462 = vrot.lane.b32.xlu0 %v7122, 30
  %v7463 = vpop.permute.xlu0 %7462
  %7464 = vrot.lane.b32.xlu0 %v7123, 30
  %v7465 = vpop.permute.xlu0 %7464
  %7466 = vrot.lane.b32.xlu0 %v7124, 30
  %v7467 = vpop.permute.xlu0 %7466
  %7468 = vrot.lane.b32.xlu0 %v7125, 30
  %v7469 = vpop.permute.xlu0 %7468
  %7470 = vrot.lane.b32.xlu0 %v7126, 30
  %v7471 = vpop.permute.xlu0 %7470
  %7472 = vrot.lane.b32.xlu0 %v7127, 30
  %v7473 = vpop.permute.xlu0 %7472
  %7474 = vrot.lane.b32.xlu0 %v7128, 30
  %v7475 = vpop.permute.xlu0 %7474
  %7476 = vrot.lane.b32.xlu0 %v7129, 30
  %v7477 = vpop.permute.xlu0 %7476
  %7478 = vrot.lane.b32.xlu0 %v7130, 30
  %v7479 = vpop.permute.xlu0 %7478
  %7480 = vrot.lane.b32.xlu0 %v7131, 30
  %v7481 = vpop.permute.xlu0 %7480
  %7482 = vrot.lane.b32.xlu0 %v7132, 30
  %v7483 = vpop.permute.xlu0 %7482
  %7484 = vrot.lane.b32.xlu0 %v7133, 30
  %v7485 = vpop.permute.xlu0 %7484
  %7486 = vrot.lane.b32.xlu0 %v7134, 30
  %v7487 = vpop.permute.xlu0 %7486
  %7520 = vrot.lane.b32.xlu0 %v7136, 36
  %v7521 = vpop.permute.xlu0 %7520
  %7522 = vrot.lane.b32.xlu0 %v7137, 36
  %v7523 = vpop.permute.xlu0 %7522
  %7524 = vrot.lane.b32.xlu0 %v7138, 36
  %v7525 = vpop.permute.xlu0 %7524
  %7526 = vrot.lane.b32.xlu0 %v7139, 36
  %v7527 = vpop.permute.xlu0 %7526
  %7528 = vrot.lane.b32.xlu0 %v7140, 36
  %v7529 = vpop.permute.xlu0 %7528
  %7530 = vrot.lane.b32.xlu0 %v7141, 36
  %v7531 = vpop.permute.xlu0 %7530
  %7532 = vrot.lane.b32.xlu0 %v7142, 36
  %v7533 = vpop.permute.xlu0 %7532
  %7534 = vrot.lane.b32.xlu0 %v7143, 36
  %v7535 = vpop.permute.xlu0 %7534
  %7536 = vrot.lane.b32.xlu0 %v7144, 36
  %v7537 = vpop.permute.xlu0 %7536
  %7538 = vrot.lane.b32.xlu0 %v7145, 36
  %v7539 = vpop.permute.xlu0 %7538
  %7540 = vrot.lane.b32.xlu0 %v7146, 36
  %v7541 = vpop.permute.xlu0 %7540
  %7542 = vrot.lane.b32.xlu0 %v7147, 36
  %v7543 = vpop.permute.xlu0 %7542
  %7544 = vrot.lane.b32.xlu0 %v7148, 36
  %v7545 = vpop.permute.xlu0 %7544
  %7546 = vrot.lane.b32.xlu0 %v7149, 36
  %v7547 = vpop.permute.xlu0 %7546
  %7548 = vrot.lane.b32.xlu0 %v7150, 36
  %v7549 = vpop.permute.xlu0 %7548
  %7550 = vrot.lane.b32.xlu0 %v7151, 36
  %v7551 = vpop.permute.xlu0 %7550
  %7584 = vrot.lane.b32.xlu0 %v7152, 42
  %v7585 = vpop.permute.xlu0 %7584
  %7586 = vrot.lane.b32.xlu0 %v7153, 42
  %v7587 = vpop.permute.xlu0 %7586
  %7588 = vrot.lane.b32.xlu0 %v7154, 42
  %v7589 = vpop.permute.xlu0 %7588
  %7590 = vrot.lane.b32.xlu0 %v7155, 42
  %v7591 = vpop.permute.xlu0 %7590
  %7592 = vrot.lane.b32.xlu0 %v7156, 42
  %v7593 = vpop.permute.xlu0 %7592
  %7594 = vrot.lane.b32.xlu0 %v7157, 42
  %v7595 = vpop.permute.xlu0 %7594
  %7596 = vrot.lane.b32.xlu0 %v7158, 42
  %v7597 = vpop.permute.xlu0 %7596
  %7598 = vrot.lane.b32.xlu0 %v7159, 42
  %v7599 = vpop.permute.xlu0 %7598
  %7600 = vrot.lane.b32.xlu0 %v7160, 42
  %v7601 = vpop.permute.xlu0 %7600
  %7602 = vrot.lane.b32.xlu0 %v7161, 42
  %v7603 = vpop.permute.xlu0 %7602
  %7604 = vrot.lane.b32.xlu0 %v7162, 42
  %v7605 = vpop.permute.xlu0 %7604
  %7606 = vrot.lane.b32.xlu0 %v7163, 42
  %v7607 = vpop.permute.xlu0 %7606
  %7608 = vrot.lane.b32.xlu0 %v7164, 42
  %v7609 = vpop.permute.xlu0 %7608
  %7610 = vrot.lane.b32.xlu0 %v7165, 42
  %v7611 = vpop.permute.xlu0 %7610
  %7612 = vrot.lane.b32.xlu0 %v7166, 42
  %v7613 = vpop.permute.xlu0 %7612
  %7614 = vrot.lane.b32.xlu0 %v7167, 42
  %v7615 = vpop.permute.xlu0 %7614
  %7648 = vrot.lane.b32.xlu0 %v7168, 48
  %v7649 = vpop.permute.xlu0 %7648
  %7650 = vrot.lane.b32.xlu0 %v7169, 48
  %v7651 = vpop.permute.xlu0 %7650
  %7652 = vrot.lane.b32.xlu0 %v7170, 48
  %v7653 = vpop.permute.xlu0 %7652
  %7654 = vrot.lane.b32.xlu0 %v7171, 48
  %v7655 = vpop.permute.xlu0 %7654
  %7656 = vrot.lane.b32.xlu0 %v7172, 48
  %v7657 = vpop.permute.xlu0 %7656
  %7658 = vrot.lane.b32.xlu0 %v7173, 48
  %v7659 = vpop.permute.xlu0 %7658
  %7660 = vrot.lane.b32.xlu0 %v7174, 48
  %v7661 = vpop.permute.xlu0 %7660
  %7662 = vrot.lane.b32.xlu0 %v7175, 48
  %v7663 = vpop.permute.xlu0 %7662
  %7664 = vrot.lane.b32.xlu0 %v7176, 48
  %v7665 = vpop.permute.xlu0 %7664
  %7666 = vrot.lane.b32.xlu0 %v7177, 48
  %v7667 = vpop.permute.xlu0 %7666
  %7668 = vrot.lane.b32.xlu0 %v7178, 48
  %v7669 = vpop.permute.xlu0 %7668
  %7670 = vrot.lane.b32.xlu0 %v7179, 48
  %v7671 = vpop.permute.xlu0 %7670
  %7672 = vrot.lane.b32.xlu0 %v7180, 48
  %v7673 = vpop.permute.xlu0 %7672
  %7674 = vrot.lane.b32.xlu0 %v7181, 48
  %v7675 = vpop.permute.xlu0 %7674
  %7676 = vrot.lane.b32.xlu0 %v7182, 48
  %v7677 = vpop.permute.xlu0 %7676
  %7678 = vrot.lane.b32.xlu0 %v7183, 48
  %v7679 = vpop.permute.xlu0 %7678
  %v7696 = vsel %vm81, %v7039, %v7201
  %v7697 = vsel %vm81, %v7040, %v7203
  %v7698 = vsel %vm81, %v7041, %v7205
  %v7699 = vsel %vm81, %v7042, %v7207
  %v7700 = vsel %vm81, %v7043, %v7209
  %v7701 = vsel %vm81, %v7044, %v7211
  %v7702 = vsel %vm81, %v7045, %v7213
  %v7703 = vsel %vm81, %v7046, %v7215
  %v7704 = vsel %vm81, %v7047, %v7217
  %v7705 = vsel %vm81, %v7048, %v7219
  %v7706 = vsel %vm81, %v7049, %v7221
  %v7707 = vsel %vm81, %v7050, %v7223
  %v7708 = vsel %vm81, %v7051, %v7225
  %v7709 = vsel %vm81, %v7052, %v7227
  %v7710 = vsel %vm81, %v7053, %v7229
  %v7711 = vsel %vm81, %v7054, %v7231
  %v7712 = vsel %vm3308, %v7696, %v7265
  %v7713 = vsel %vm3308, %v7697, %v7267
  %v7714 = vsel %vm3308, %v7698, %v7269
  %v7715 = vsel %vm3308, %v7699, %v7271
  %v7716 = vsel %vm3308, %v7700, %v7273
  %v7717 = vsel %vm3308, %v7701, %v7275
  %v7718 = vsel %vm3308, %v7702, %v7277
  %v7719 = vsel %vm3308, %v7703, %v7279
  %v7720 = vsel %vm3308, %v7704, %v7281
  %v7721 = vsel %vm3308, %v7705, %v7283
  %v7722 = vsel %vm3308, %v7706, %v7285
  %v7723 = vsel %vm3308, %v7707, %v7287
  %v7724 = vsel %vm3308, %v7708, %v7289
  %v7725 = vsel %vm3308, %v7709, %v7291
  %v7726 = vsel %vm3308, %v7710, %v7293
  %v7727 = vsel %vm3308, %v7711, %v7295
  %v7728 = vsel %vm3373, %v7712, %v7329
  %v7729 = vsel %vm3373, %v7713, %v7331
  %v7730 = vsel %vm3373, %v7714, %v7333
  %v7731 = vsel %vm3373, %v7715, %v7335
  %v7732 = vsel %vm3373, %v7716, %v7337
  %v7733 = vsel %vm3373, %v7717, %v7339
  %v7734 = vsel %vm3373, %v7718, %v7341
  %v7735 = vsel %vm3373, %v7719, %v7343
  %v7736 = vsel %vm3373, %v7720, %v7345
  %v7737 = vsel %vm3373, %v7721, %v7347
  %v7738 = vsel %vm3373, %v7722, %v7349
  %v7739 = vsel %vm3373, %v7723, %v7351
  %v7740 = vsel %vm3373, %v7724, %v7353
  %v7741 = vsel %vm3373, %v7725, %v7355
  %v7742 = vsel %vm3373, %v7726, %v7357
  %v7743 = vsel %vm3373, %v7727, %v7359
  %v7744 = vsel %vm3438, %v7728, %v7393
  %v7745 = vsel %vm3438, %v7729, %v7395
  %v7746 = vsel %vm3438, %v7730, %v7397
  %v7747 = vsel %vm3438, %v7731, %v7399
  %v7748 = vsel %vm3438, %v7732, %v7401
  %v7749 = vsel %vm3438, %v7733, %v7403
  %v7750 = vsel %vm3438, %v7734, %v7405
  %v7751 = vsel %vm3438, %v7735, %v7407
  %v7752 = vsel %vm3438, %v7736, %v7409
  %v7753 = vsel %vm3438, %v7737, %v7411
  %v7754 = vsel %vm3438, %v7738, %v7413
  %v7755 = vsel %vm3438, %v7739, %v7415
  %v7756 = vsel %vm3438, %v7740, %v7417
  %v7757 = vsel %vm3438, %v7741, %v7419
  %v7758 = vsel %vm3438, %v7742, %v7421
  %v7759 = vsel %vm3438, %v7743, %v7423
  %v7760 = vsel %vm3503, %v7744, %v7457
  %v7761 = vsel %vm3503, %v7745, %v7459
  %v7762 = vsel %vm3503, %v7746, %v7461
  %v7763 = vsel %vm3503, %v7747, %v7463
  %v7764 = vsel %vm3503, %v7748, %v7465
  %v7765 = vsel %vm3503, %v7749, %v7467
  %v7766 = vsel %vm3503, %v7750, %v7469
  %v7767 = vsel %vm3503, %v7751, %v7471
  %v7768 = vsel %vm3503, %v7752, %v7473
  %v7769 = vsel %vm3503, %v7753, %v7475
  %v7770 = vsel %vm3503, %v7754, %v7477
  %v7771 = vsel %vm3503, %v7755, %v7479
  %v7772 = vsel %vm3503, %v7756, %v7481
  %v7773 = vsel %vm3503, %v7757, %v7483
  %v7774 = vsel %vm3503, %v7758, %v7485
  %v7775 = vsel %vm3503, %v7759, %v7487
  %v7776 = vsel %vm3568, %v7760, %v7521
  %v7777 = vsel %vm3568, %v7761, %v7523
  %v7778 = vsel %vm3568, %v7762, %v7525
  %v7779 = vsel %vm3568, %v7763, %v7527
  %v7780 = vsel %vm3568, %v7764, %v7529
  %v7781 = vsel %vm3568, %v7765, %v7531
  %v7782 = vsel %vm3568, %v7766, %v7533
  %v7783 = vsel %vm3568, %v7767, %v7535
  %v7784 = vsel %vm3568, %v7768, %v7537
  %v7785 = vsel %vm3568, %v7769, %v7539
  %v7786 = vsel %vm3568, %v7770, %v7541
  %v7787 = vsel %vm3568, %v7771, %v7543
  %v7788 = vsel %vm3568, %v7772, %v7545
  %v7789 = vsel %vm3568, %v7773, %v7547
  %v7790 = vsel %vm3568, %v7774, %v7549
  %v7791 = vsel %vm3568, %v7775, %v7551
  %v7792 = vsel %vm3633, %v7776, %v7585
  %v7793 = vsel %vm3633, %v7777, %v7587
  %v7794 = vsel %vm3633, %v7778, %v7589
  %v7795 = vsel %vm3633, %v7779, %v7591
  %v7796 = vsel %vm3633, %v7780, %v7593
  %v7797 = vsel %vm3633, %v7781, %v7595
  %v7798 = vsel %vm3633, %v7782, %v7597
  %v7799 = vsel %vm3633, %v7783, %v7599
  %v7800 = vsel %vm3633, %v7784, %v7601
  %v7801 = vsel %vm3633, %v7785, %v7603
  %v7802 = vsel %vm3633, %v7786, %v7605
  %v7803 = vsel %vm3633, %v7787, %v7607
  %v7804 = vsel %vm3633, %v7788, %v7609
  %v7805 = vsel %vm3633, %v7789, %v7611
  %v7806 = vsel %vm3633, %v7790, %v7613
  %v7807 = vsel %vm3633, %v7791, %v7615
  %v7808 = vsel %vm3698, %v7792, %v7649
  %v7809 = vsel %vm3698, %v7793, %v7651
  %v7810 = vsel %vm3698, %v7794, %v7653
  %v7811 = vsel %vm3698, %v7795, %v7655
  %v7812 = vsel %vm3698, %v7796, %v7657
  %v7813 = vsel %vm3698, %v7797, %v7659
  %v7814 = vsel %vm3698, %v7798, %v7661
  %v7815 = vsel %vm3698, %v7799, %v7663
  %v7816 = vsel %vm3698, %v7800, %v7665
  %v7817 = vsel %vm3698, %v7801, %v7667
  %v7818 = vsel %vm3698, %v7802, %v7669
  %v7819 = vsel %vm3698, %v7803, %v7671
  %v7820 = vsel %vm3698, %v7804, %v7673
  %v7821 = vsel %vm3698, %v7805, %v7675
  %v7822 = vsel %vm3698, %v7806, %v7677
  %v7823 = vsel %vm3698, %v7807, %v7679
  %v7824 = vpack.c.bf16 %v7809, %v7808
  %v7825 = vpack.c.bf16 %v7811, %v7810
  %v7826 = vpack.c.bf16 %v7813, %v7812
  %v7827 = vpack.c.bf16 %v7815, %v7814
  %v7828 = vpack.c.bf16 %v7817, %v7816
  %v7829 = vpack.c.bf16 %v7819, %v7818
  %v7830 = vpack.c.bf16 %v7821, %v7820
  %v7831 = vpack.c.bf16 %v7823, %v7822
  %v7832 = vld [vmem:[%s13] sm:$0xf]
  %v7833 = vld [vmem:[%s13 + $0x4] sm:$0xf]
  %v7834 = vld [vmem:[%s13 + $0x8] sm:$0xf]
  %v7835 = vld [vmem:[%s13 + $0xc] sm:$0xf]
  %v7836 = vld [vmem:[%s13 + $0x10] sm:$0xf]
  %v7837 = vld [vmem:[%s13 + $0x14] sm:$0xf]
  %v7838 = vld [vmem:[%s13 + $0x18] sm:$0x7]
  %v7846 = vunpack.c.l.b16 %v7832
  %v7847 = vunpack.c.l.b16 %v7833
  %v7848 = vunpack.c.l.b16 %v7834
  %v7849 = vunpack.c.l.b16 %v7835
  %v7850 = vunpack.c.l.b16 %v7836
  %v7851 = vunpack.c.l.b16 %v7837
  %v7852 = vunpack.c.l.b16 %v7838
  %v7853 = vpack.c.b16 %v7847, %v7846
  %v7854 = vpack.c.b16 %v7849, %v7848
  %v7855 = vpack.c.b16 %v7851, %v7850
  %v7856 = vpack.c.b16 %v7852, %v7852
  %v7861 = vsel %vm3823, %v7824, 0
  %v7864 = vsel %vm3823, %v7825, 0
  %v7867 = vsel %vm3823, %v7826, 0
  %v7870 = vsel %vm3823, %v7827, 0
  %v7873 = vsel %vm3823, %v7828, 0
  %v7876 = vsel %vm3823, %v7829, 0
  %v7879 = vsel %vm3823, %v7830, 0
  %v7882 = vsel %vm3823, %v7831, 0
  %v7885 = vsel %vm3920, %v7856, 0
  %7887 = vmatprep.subr.bf16.mxu0 0
  %7888 = vmatpush1.bf16.msra.mxu0 0
  %7889 = vmatprep.subr.bf16.mxu0 0
  %7890 = vmatpush1.bf16.msra.mxu0 0
  %7891 = vmatprep.subr.bf16.mxu0 0
  %7892 = vmatpush1.bf16.msra.mxu0 0
  %7893 = vmatprep.subr.bf16.mxu0 0
  %7894 = vmatpush1.bf16.msra.mxu0 0
  %7895 = vmatprep.subr.bf16.mxu0 0
  %7896 = vmatpush1.bf16.msra.mxu0 %v7885
  %7897 = vmatprep.subr.bf16.mxu0 0
  %7898 = vmatpush1.bf16.msra.mxu0 %v7855
  %7899 = vmatprep.subr.bf16.mxu0 0
  %7900 = vmatpush1.bf16.msra.mxu0 %v7854
  %7901 = vmatprep.subr.bf16.mxu0 0
  %7902 = vmatpush1.bf16.msra.mxu0 %v7853
  %7903 = vmatprep.subr.bf16.mxu0 0
  %7904 = vmatpush2.bf16.msra.mxu0 0
  %7905 = vmatprep.subr.bf16.mxu0 0
  %7906 = vmatpush2.bf16.msra.mxu0 0
  %7907 = vmatprep.subr.bf16.mxu0 0
  %7908 = vmatpush2.bf16.msra.mxu0 0
  %7909 = vmatprep.subr.bf16.mxu0 0
  %7910 = vmatpush2.bf16.msra.mxu0 0
  %7911 = vmatprep.subr.bf16.mxu0 0
  %7912 = vmatpush2.bf16.msra.mxu0 0
  %7913 = vmatprep.subr.bf16.mxu0 0
  %7914 = vmatpush2.bf16.msra.mxu0 0
  %7915 = vmatprep.subr.bf16.mxu0 0
  %7916 = vmatpush2.bf16.msra.mxu0 0
  %7917 = vmatprep.subr.bf16.mxu0 0
  %7918 = vmatpush2.bf16.msra.mxu0 0
  %7919 = vmatprep.mubr.bf16.mxu0 0
  %7920 = vmatmul.mubr.bf16.gmra.mxu0 %v7861
  %v7921 = vpop.f32.mrf.mxu0
  %v7922 = vadd.f32 0.0, %v7921
  %v7923 = vpop.f32.mrf.mxu0
  %v7924 = vpop.f32.mrf.mxu0
  %v7925 = vadd.f32 0.0, %v7924
  %v7926 = vpop.f32.mrf.mxu0
  %7927 = vmatprep.mubr.bf16.mxu0 0
  %7928 = vmatmul.mubr.bf16.gmra.mxu0 %v7864
  %v7929 = vpop.f32.mrf.mxu0
  %v7930 = vadd.f32 0.0, %v7929
  %v7931 = vpop.f32.mrf.mxu0
  %v7932 = vpop.f32.mrf.mxu0
  %v7933 = vadd.f32 0.0, %v7932
  %v7934 = vpop.f32.mrf.mxu0
  %7935 = vmatprep.mubr.bf16.mxu0 0
  %7936 = vmatmul.mubr.bf16.gmra.mxu0 %v7867
  %v7937 = vpop.f32.mrf.mxu0
  %v7938 = vadd.f32 0.0, %v7937
  %v7939 = vpop.f32.mrf.mxu0
  %v7940 = vpop.f32.mrf.mxu0
  %v7941 = vadd.f32 0.0, %v7940
  %v7942 = vpop.f32.mrf.mxu0
  %7943 = vmatprep.mubr.bf16.mxu0 0
  %7944 = vmatmul.mubr.bf16.gmra.mxu0 %v7870
  %v7945 = vpop.f32.mrf.mxu0
  %v7946 = vadd.f32 0.0, %v7945
  %v7947 = vpop.f32.mrf.mxu0
  %v7948 = vpop.f32.mrf.mxu0
  %v7949 = vadd.f32 0.0, %v7948
  %v7950 = vpop.f32.mrf.mxu0
  %7951 = vmatprep.mubr.bf16.mxu0 0
  %7952 = vmatmul.mubr.bf16.gmra.mxu0 %v7873
  %v7953 = vpop.f32.mrf.mxu0
  %v7954 = vadd.f32 0.0, %v7953
  %v7955 = vpop.f32.mrf.mxu0
  %v7956 = vpop.f32.mrf.mxu0
  %v7957 = vadd.f32 0.0, %v7956
  %v7958 = vpop.f32.mrf.mxu0
  %7959 = vmatprep.mubr.bf16.mxu0 0
  %7960 = vmatmul.mubr.bf16.gmra.mxu0 %v7876
  %v7961 = vpop.f32.mrf.mxu0
  %v7962 = vadd.f32 0.0, %v7961
  %v7963 = vpop.f32.mrf.mxu0
  %v7964 = vpop.f32.mrf.mxu0
  %v7965 = vadd.f32 0.0, %v7964
  %v7966 = vpop.f32.mrf.mxu0
  %7967 = vmatprep.mubr.bf16.mxu0 0
  %7968 = vmatmul.mubr.bf16.gmra.mxu0 %v7879
  %v7969 = vpop.f32.mrf.mxu0
  %v7970 = vadd.f32 0.0, %v7969
  %v7971 = vpop.f32.mrf.mxu0
  %v7972 = vpop.f32.mrf.mxu0
  %v7973 = vadd.f32 0.0, %v7972
  %v7974 = vpop.f32.mrf.mxu0
  %7975 = vmatprep.mubr.bf16.mxu0 0
  %7976 = vmatmul.mubr.bf16.gmra.mxu0 %v7882
  %v7977 = vpop.f32.mrf.mxu0
  %v7978 = vadd.f32 0.0, %v7977
  %v7979 = vpop.f32.mrf.mxu0
  %v7980 = vpop.f32.mrf.mxu0
  %v7981 = vadd.f32 0.0, %v7980
  %v7982 = vpop.f32.mrf.mxu0
  %7983 = vdwg.mxu0
  %v7984 = vld [vmem:[%s14] sm:$0x1]
  %v7986 = vlaneseq
  %v7987 = vshrl.u32 %v7986, 7
  %v7988 = vsub.s32 0, %v7987
  %v7989 = vrot.slane %v7984, %v7988
  %v7991 = vmul.f32 %v7922, %v7989
  %v7992 = vmul.f32 %v7925, %v7989
  %v7993 = vmul.f32 %v7930, %v7989
  %v7994 = vmul.f32 %v7933, %v7989
  %v7995 = vmul.f32 %v7938, %v7989
  %v7996 = vmul.f32 %v7941, %v7989
  %v7997 = vmul.f32 %v7946, %v7989
  %v7998 = vmul.f32 %v7949, %v7989
  %v7999 = vmul.f32 %v7954, %v7989
  %v8000 = vmul.f32 %v7957, %v7989
  %v8001 = vmul.f32 %v7962, %v7989
  %v8002 = vmul.f32 %v7965, %v7989
  %v8003 = vmul.f32 %v7970, %v7989
  %v8004 = vmul.f32 %v7973, %v7989
  %v8005 = vmul.f32 %v7978, %v7989
  %v8006 = vmul.f32 %v7981, %v7989
  %v8007 = vld [vmem:[%s15] sm:$0x1]
  %v8009 = vlaneseq
  %v8010 = vshrl.u32 %v8009, 7
  %v8011 = vsub.s32 0, %v8010
  %v8012 = vrot.slane %v8007, %v8011
  %v8014 = vadd.f32 %v7991, %v8012
  %v8015 = vadd.f32 %v7992, %v8012
  %v8016 = vadd.f32 %v7993, %v8012
  %v8017 = vadd.f32 %v7994, %v8012
  %v8018 = vadd.f32 %v7995, %v8012
  %v8019 = vadd.f32 %v7996, %v8012
  %v8020 = vadd.f32 %v7997, %v8012
  %v8021 = vadd.f32 %v7998, %v8012
  %v8022 = vadd.f32 %v7999, %v8012
  %v8023 = vadd.f32 %v8000, %v8012
  %v8024 = vadd.f32 %v8001, %v8012
  %v8025 = vadd.f32 %v8002, %v8012
  %v8026 = vadd.f32 %v8003, %v8012
  %v8027 = vadd.f32 %v8004, %v8012
  %v8028 = vadd.f32 %v8005, %v8012
  %v8029 = vadd.f32 %v8006, %v8012
  %v8030 = vmax.f32 %v8014, 0.0
  %v8031 = vmax.f32 %v8015, 0.0
  %v8032 = vmax.f32 %v8016, 0.0
  %v8033 = vmax.f32 %v8017, 0.0
  %v8034 = vmax.f32 %v8018, 0.0
  %v8035 = vmax.f32 %v8019, 0.0
  %v8036 = vmax.f32 %v8020, 0.0
  %v8037 = vmax.f32 %v8021, 0.0
  %v8038 = vmax.f32 %v8022, 0.0
  %v8039 = vmax.f32 %v8023, 0.0
  %v8040 = vmax.f32 %v8024, 0.0
  %v8041 = vmax.f32 %v8025, 0.0
  %v8042 = vmax.f32 %v8026, 0.0
  %v8043 = vmax.f32 %v8027, 0.0
  %v8044 = vmax.f32 %v8028, 0.0
  %v8045 = vmax.f32 %v8029, 0.0
  %s8046 = scalar_lea.vmem [#allocation7], 16
  %8047 = vst.msk [vmem:[%s8046 + $0x1] sm:$0xff] %vm169, %v8030
  %8048 = vst.msk [vmem:[%s8046 + $0x11] sm:$0xff] %vm169, %v8031
  %8049 = vst.msk [vmem:[%s8046 + $0x21] sm:$0xff] %vm169, %v8032
  %8050 = vst.msk [vmem:[%s8046 + $0x31] sm:$0xff] %vm169, %v8033
  %8051 = vst.msk [vmem:[%s8046 + $0x41] sm:$0xff] %vm169, %v8034
  %8052 = vst.msk [vmem:[%s8046 + $0x51] sm:$0xff] %vm169, %v8035
  %8053 = vst.msk [vmem:[%s8046 + $0x61] sm:$0xff] %vm169, %v8036
  %8054 = vst.msk [vmem:[%s8046 + $0x71] sm:$0xff] %vm169, %v8037
  %8055 = vst.msk [vmem:[%s8046 + $0xa1] sm:$0xff] %vm169, %v8038
  %8056 = vst.msk [vmem:[%s8046 + $0xb1] sm:$0xff] %vm169, %v8039
  %8057 = vst.msk [vmem:[%s8046 + $0xc1] sm:$0xff] %vm169, %v8040
  %8058 = vst.msk [vmem:[%s8046 + $0xd1] sm:$0xff] %vm169, %v8041
  %8059 = vst.msk [vmem:[%s8046 + $0xe1] sm:$0xff] %vm169, %v8042
  %8060 = vst.msk [vmem:[%s8046 + $0xf1] sm:$0xff] %vm169, %v8043
  %8061 = vst.msk [vmem:[%s8046 + $0x101] sm:$0xff] %vm169, %v8044
  %8062 = vst.msk [vmem:[%s8046 + $0x111] sm:$0xff] %vm169, %v8045
  %v8063 = vld [vmem:[#allocation7] ss:$2 sm:$0x1f]
  %s8064 = scalar_lea.vmem [#allocation7], 32
  %v8065 = vld [vmem:[%s8064] ss:$2 sm:$0x1f]
  %s8066 = scalar_lea.vmem [#allocation7], 64
  %v8067 = vld [vmem:[%s8066] ss:$2 sm:$0x1f]
  %s8068 = scalar_lea.vmem [#allocation7], 96
  %v8069 = vld [vmem:[%s8068] ss:$2 sm:$0x1f]
  %s8070 = scalar_lea.vmem [#allocation7], 128
  %v8071 = vld [vmem:[%s8070] ss:$2 sm:$0x1f]
  %s8072 = scalar_lea.vmem [#allocation7], 160
  %v8073 = vld [vmem:[%s8072] ss:$2 sm:$0x1f]
  %s8074 = scalar_lea.vmem [#allocation7], 192
  %v8075 = vld [vmem:[%s8074] ss:$2 sm:$0x1f]
  %s8076 = scalar_lea.vmem [#allocation7], 224
  %v8077 = vld [vmem:[%s8076] ss:$2 sm:$0x1f]
  %s8078 = scalar_lea.vmem [#allocation7], 256
  %v8079 = vld [vmem:[%s8078] ss:$2 sm:$0x1f]
  %s8080 = scalar_lea.vmem [#allocation7], 288
  %v8081 = vld [vmem:[%s8080] ss:$2 sm:$0x1f]
  %s8082 = scalar_lea.vmem [#allocation7], 1
  %v8083 = vld [vmem:[%s8082] ss:$2 sm:$0x1f]
  %s8084 = scalar_lea.vmem [#allocation7], 33
  %v8085 = vld [vmem:[%s8084] ss:$2 sm:$0x1f]
  %s8086 = scalar_lea.vmem [#allocation7], 65
  %v8087 = vld [vmem:[%s8086] ss:$2 sm:$0x1f]
  %s8088 = scalar_lea.vmem [#allocation7], 97
  %v8089 = vld [vmem:[%s8088] ss:$2 sm:$0x1f]
  %s8090 = scalar_lea.vmem [#allocation7], 129
  %v8091 = vld [vmem:[%s8090] ss:$2 sm:$0x1f]
  %s8092 = scalar_lea.vmem [#allocation7], 161
  %v8093 = vld [vmem:[%s8092] ss:$2 sm:$0x1f]
  %s8094 = scalar_lea.vmem [#allocation7], 193
  %v8095 = vld [vmem:[%s8094] ss:$2 sm:$0x1f]
  %s8096 = scalar_lea.vmem [#allocation7], 225
  %v8097 = vld [vmem:[%s8096] ss:$2 sm:$0x1f]
  %s8098 = scalar_lea.vmem [#allocation7], 257
  %v8099 = vld [vmem:[%s8098] ss:$2 sm:$0x1f]
  %s8100 = scalar_lea.vmem [#allocation7], 289
  %v8101 = vld [vmem:[%s8100] ss:$2 sm:$0x1f]
  %v8102 = vld [vmem:[%s8046] ss:$2 sm:$0x1f]
  %s8103 = scalar_lea.vmem %s8046, 32 [#allocation7]
  %v8104 = vld [vmem:[%s8103] ss:$2 sm:$0x1f]
  %s8105 = scalar_lea.vmem %s8046, 64 [#allocation7]
  %v8106 = vld [vmem:[%s8105] ss:$2 sm:$0x1f]
  %s8107 = scalar_lea.vmem %s8046, 96 [#allocation7]
  %v8108 = vld [vmem:[%s8107] ss:$2 sm:$0x1f]
  %s8109 = scalar_lea.vmem %s8046, 160 [#allocation7]
  %v8110 = vld [vmem:[%s8109] ss:$2 sm:$0x1f]
  %s8111 = scalar_lea.vmem %s8046, 192 [#allocation7]
  %v8112 = vld [vmem:[%s8111] ss:$2 sm:$0x1f]
  %s8113 = scalar_lea.vmem %s8046, 224 [#allocation7]
  %v8114 = vld [vmem:[%s8113] ss:$2 sm:$0x1f]
  %s8115 = scalar_lea.vmem %s8046, 256 [#allocation7]
  %v8116 = vld [vmem:[%s8115] ss:$2 sm:$0x1f]
  %s8117 = scalar_lea.vmem %s8046, 1 [#allocation7]
  %v8118 = vld [vmem:[%s8117] ss:$2 sm:$0x1f]
  %s8119 = scalar_lea.vmem %s8046, 33 [#allocation7]
  %v8120 = vld [vmem:[%s8119] ss:$2 sm:$0x1f]
  %s8121 = scalar_lea.vmem %s8046, 65 [#allocation7]
  %v8122 = vld [vmem:[%s8121] ss:$2 sm:$0x1f]
  %s8123 = scalar_lea.vmem %s8046, 97 [#allocation7]
  %v8124 = vld [vmem:[%s8123] ss:$2 sm:$0x1f]
  %s8125 = scalar_lea.vmem %s8046, 161 [#allocation7]
  %v8126 = vld [vmem:[%s8125] ss:$2 sm:$0x1f]
  %s8127 = scalar_lea.vmem %s8046, 193 [#allocation7]
  %v8128 = vld [vmem:[%s8127] ss:$2 sm:$0x1f]
  %s8129 = scalar_lea.vmem %s8046, 225 [#allocation7]
  %v8130 = vld [vmem:[%s8129] ss:$2 sm:$0x1f]
  %s8131 = scalar_lea.vmem %s8046, 257 [#allocation7]
  %v8132 = vld [vmem:[%s8131] ss:$2 sm:$0x1f]
  %v8141 = vcombine.high %v8063, %v8063
  %v8142 = vcombine.high %v8065, %v8065
  %v8143 = vcombine.high %v8067, %v8067
  %v8144 = vcombine.high %v8069, %v8069
  %v8145 = vcombine.high %v8073, %v8073
  %v8146 = vcombine.high %v8075, %v8075
  %v8147 = vcombine.high %v8077, %v8077
  %v8148 = vcombine.high %v8079, %v8079
  %v8149 = vrot.slane %v8063, 5
  %v8150 = vrot.slane %v8149, 4
  %v8151 = vrot.slane %v8141, 5
  %v8152 = vsel %vm5743, %v8150, %v8151
  %v8153 = vrot.slane %v8065, 5
  %v8154 = vrot.slane %v8153, 4
  %v8155 = vrot.slane %v8142, 5
  %v8156 = vsel %vm5743, %v8154, %v8155
  %v8157 = vrot.slane %v8067, 5
  %v8158 = vrot.slane %v8157, 4
  %v8159 = vrot.slane %v8143, 5
  %v8160 = vsel %vm5743, %v8158, %v8159
  %v8161 = vrot.slane %v8069, 5
  %v8162 = vrot.slane %v8161, 4
  %v8163 = vrot.slane %v8144, 5
  %v8164 = vsel %vm5743, %v8162, %v8163
  %v8165 = vrot.slane %v8073, 5
  %v8166 = vrot.slane %v8165, 4
  %v8167 = vrot.slane %v8145, 5
  %v8168 = vsel %vm5743, %v8166, %v8167
  %v8169 = vrot.slane %v8075, 5
  %v8170 = vrot.slane %v8169, 4
  %v8171 = vrot.slane %v8146, 5
  %v8172 = vsel %vm5743, %v8170, %v8171
  %v8173 = vrot.slane %v8077, 5
  %v8174 = vrot.slane %v8173, 4
  %v8175 = vrot.slane %v8147, 5
  %v8176 = vsel %vm5743, %v8174, %v8175
  %v8177 = vrot.slane %v8079, 5
  %v8178 = vrot.slane %v8177, 4
  %v8179 = vrot.slane %v8148, 5
  %v8180 = vsel %vm5743, %v8178, %v8179
  %v8189 = vcombine.high %v8102, %v8102
  %v8190 = vcombine.high %v8104, %v8104
  %v8191 = vcombine.high %v8106, %v8106
  %v8192 = vcombine.high %v8108, %v8108
  %v8193 = vcombine.high %v8110, %v8110
  %v8194 = vcombine.high %v8112, %v8112
  %v8195 = vcombine.high %v8114, %v8114
  %v8196 = vcombine.high %v8116, %v8116
  %v8197 = vrot.slane %v8102, 5
  %v8198 = vrot.slane %v8197, 4
  %v8199 = vrot.slane %v8189, 5
  %v8200 = vsel %vm5743, %v8198, %v8199
  %v8201 = vrot.slane %v8104, 5
  %v8202 = vrot.slane %v8201, 4
  %v8203 = vrot.slane %v8190, 5
  %v8204 = vsel %vm5743, %v8202, %v8203
  %v8205 = vrot.slane %v8106, 5
  %v8206 = vrot.slane %v8205, 4
  %v8207 = vrot.slane %v8191, 5
  %v8208 = vsel %vm5743, %v8206, %v8207
  %v8209 = vrot.slane %v8108, 5
  %v8210 = vrot.slane %v8209, 4
  %v8211 = vrot.slane %v8192, 5
  %v8212 = vsel %vm5743, %v8210, %v8211
  %v8213 = vrot.slane %v8110, 5
  %v8214 = vrot.slane %v8213, 4
  %v8215 = vrot.slane %v8193, 5
  %v8216 = vsel %vm5743, %v8214, %v8215
  %v8217 = vrot.slane %v8112, 5
  %v8218 = vrot.slane %v8217, 4
  %v8219 = vrot.slane %v8194, 5
  %v8220 = vsel %vm5743, %v8218, %v8219
  %v8221 = vrot.slane %v8114, 5
  %v8222 = vrot.slane %v8221, 4
  %v8223 = vrot.slane %v8195, 5
  %v8224 = vsel %vm5743, %v8222, %v8223
  %v8225 = vrot.slane %v8116, 5
  %v8226 = vrot.slane %v8225, 4
  %v8227 = vrot.slane %v8196, 5
  %v8228 = vsel %vm5743, %v8226, %v8227
  %v8231 = vcombine.high %v8071, %v8071
  %v8232 = vcombine.high %v8081, %v8081
  %v8233 = vrot.slane %v8071, 5
  %v8234 = vrot.slane %v8233, 4
  %v8235 = vrot.slane %v8231, 5
  %v8236 = vsel %vm5743, %v8234, %v8235
  %v8237 = vrot.slane %v8081, 5
  %v8238 = vrot.slane %v8237, 4
  %v8239 = vrot.slane %v8232, 5
  %v8240 = vsel %vm5743, %v8238, %v8239
  %v8241 = vcombine.low %v8063, %v8065
  %v8242 = vcombine.low %v8067, %v8069
  %v8243 = vcombine.low %v8073, %v8075
  %v8244 = vcombine.low %v8077, %v8079
  %v8257 = vcombine.low %v8083, %v8085
  %v8258 = vcombine.low %v8087, %v8089
  %v8259 = vcombine.low %v8093, %v8095
  %v8260 = vcombine.low %v8097, %v8099
  %8261 = vrot.lane.b32.xlu0 %v8257, 8
  %v8262 = vpop.permute.xlu0 %8261
  %8263 = vrot.lane.b32.xlu0 %v8258, 8
  %v8264 = vpop.permute.xlu0 %8263
  %8265 = vrot.lane.b32.xlu0 %v8259, 8
  %v8266 = vpop.permute.xlu0 %8265
  %8267 = vrot.lane.b32.xlu0 %v8260, 8
  %v8268 = vpop.permute.xlu0 %8267
  %v8273 = vcombine.low %v8152, %v8156
  %v8274 = vcombine.low %v8160, %v8164
  %v8275 = vcombine.low %v8168, %v8172
  %v8276 = vcombine.low %v8176, %v8180
  %8277 = vrot.lane.b32.xlu0 %v8273, 16
  %v8278 = vpop.permute.xlu0 %8277
  %8279 = vrot.lane.b32.xlu0 %v8274, 16
  %v8280 = vpop.permute.xlu0 %8279
  %8281 = vrot.lane.b32.xlu0 %v8275, 16
  %v8282 = vpop.permute.xlu0 %8281
  %8283 = vrot.lane.b32.xlu0 %v8276, 16
  %v8284 = vpop.permute.xlu0 %8283
  %v8289 = vcombine.low %v8102, %v8104
  %v8290 = vcombine.low %v8106, %v8108
  %v8291 = vcombine.low %v8110, %v8112
  %v8292 = vcombine.low %v8114, %v8116
  %8293 = vrot.lane.b32.xlu0 %v8289, 24
  %v8294 = vpop.permute.xlu0 %8293
  %8295 = vrot.lane.b32.xlu0 %v8290, 24
  %v8296 = vpop.permute.xlu0 %8295
  %8297 = vrot.lane.b32.xlu0 %v8291, 24
  %v8298 = vpop.permute.xlu0 %8297
  %8299 = vrot.lane.b32.xlu0 %v8292, 24
  %v8300 = vpop.permute.xlu0 %8299
  %v8313 = vcombine.low %v8118, %v8120
  %v8314 = vcombine.low %v8122, %v8124
  %v8315 = vcombine.low %v8126, %v8128
  %v8316 = vcombine.low %v8130, %v8132
  %8317 = vrot.lane.b32.xlu0 %v8313, 32
  %v8318 = vpop.permute.xlu0 %8317
  %8319 = vrot.lane.b32.xlu0 %v8314, 32
  %v8320 = vpop.permute.xlu0 %8319
  %8321 = vrot.lane.b32.xlu0 %v8315, 32
  %v8322 = vpop.permute.xlu0 %8321
  %8323 = vrot.lane.b32.xlu0 %v8316, 32
  %v8324 = vpop.permute.xlu0 %8323
  %v8329 = vcombine.low %v8200, %v8204
  %v8330 = vcombine.low %v8208, %v8212
  %v8331 = vcombine.low %v8216, %v8220
  %v8332 = vcombine.low %v8224, %v8228
  %8333 = vrot.lane.b32.xlu0 %v8329, 40
  %v8334 = vpop.permute.xlu0 %8333
  %8335 = vrot.lane.b32.xlu0 %v8330, 40
  %v8336 = vpop.permute.xlu0 %8335
  %8337 = vrot.lane.b32.xlu0 %v8331, 40
  %v8338 = vpop.permute.xlu0 %8337
  %8339 = vrot.lane.b32.xlu0 %v8332, 40
  %v8340 = vpop.permute.xlu0 %8339
  %v8345 = vcombine.low %v8065, %v8067
  %v8346 = vcombine.low %v8069, %v8071
  %v8347 = vcombine.low %v8075, %v8077
  %v8348 = vcombine.low %v8079, %v8081
  %8349 = vrot.lane.b32.xlu0 %v8345, 48
  %v8350 = vpop.permute.xlu0 %8349
  %8351 = vrot.lane.b32.xlu0 %v8346, 48
  %v8352 = vpop.permute.xlu0 %8351
  %8353 = vrot.lane.b32.xlu0 %v8347, 48
  %v8354 = vpop.permute.xlu0 %8353
  %8355 = vrot.lane.b32.xlu0 %v8348, 48
  %v8356 = vpop.permute.xlu0 %8355
  %v8363 = vcombine.low %v8085, %v8087
  %v8364 = vcombine.low %v8089, %v8091
  %v8365 = vcombine.low %v8095, %v8097
  %v8366 = vcombine.low %v8099, %v8101
  %8367 = vrot.lane.b32.xlu0 %v8363, 56
  %v8368 = vpop.permute.xlu0 %8367
  %8369 = vrot.lane.b32.xlu0 %v8364, 56
  %v8370 = vpop.permute.xlu0 %8369
  %8371 = vrot.lane.b32.xlu0 %v8365, 56
  %v8372 = vpop.permute.xlu0 %8371
  %8373 = vrot.lane.b32.xlu0 %v8366, 56
  %v8374 = vpop.permute.xlu0 %8373
  %v8379 = vcombine.low %v8156, %v8160
  %v8380 = vcombine.low %v8164, %v8236
  %v8381 = vcombine.low %v8172, %v8176
  %v8382 = vcombine.low %v8180, %v8240
  %8383 = vrot.lane.b32.xlu0 %v8379, 64
  %v8384 = vpop.permute.xlu0 %8383
  %8385 = vrot.lane.b32.xlu0 %v8380, 64
  %v8386 = vpop.permute.xlu0 %8385
  %8387 = vrot.lane.b32.xlu0 %v8381, 64
  %v8388 = vpop.permute.xlu0 %8387
  %8389 = vrot.lane.b32.xlu0 %v8382, 64
  %v8390 = vpop.permute.xlu0 %8389
  %v8395 = vsel %vm169, %v8241, %v8262
  %v8396 = vsel %vm169, %v8242, %v8264
  %v8397 = vsel %vm169, %v8243, %v8266
  %v8398 = vsel %vm169, %v8244, %v8268
  %v8399 = vsel %vm257, %v8395, %v8278
  %v8400 = vsel %vm257, %v8396, %v8280
  %v8401 = vsel %vm257, %v8397, %v8282
  %v8402 = vsel %vm257, %v8398, %v8284
  %v8403 = vsel %vm3438, %v8399, %v8294
  %v8404 = vsel %vm3438, %v8400, %v8296
  %v8405 = vsel %vm3438, %v8401, %v8298
  %v8406 = vsel %vm3438, %v8402, %v8300
  %v8407 = vsel %vm5323, %v8403, %v8318
  %v8408 = vsel %vm5323, %v8404, %v8320
  %v8409 = vsel %vm5323, %v8405, %v8322
  %v8410 = vsel %vm5323, %v8406, %v8324
  %v8411 = vsel %vm5340, %v8407, %v8334
  %v8412 = vsel %vm5340, %v8408, %v8336
  %v8413 = vsel %vm5340, %v8409, %v8338
  %v8414 = vsel %vm5340, %v8410, %v8340
  %v8415 = vsel %vm3698, %v8411, %v8350
  %v8416 = vsel %vm3698, %v8412, %v8352
  %v8417 = vsel %vm3698, %v8413, %v8354
  %v8418 = vsel %vm3698, %v8414, %v8356
  %v8419 = vsel %vm5373, %v8415, %v8368
  %v8420 = vsel %vm5373, %v8416, %v8370
  %v8421 = vsel %vm5373, %v8417, %v8372
  %v8422 = vsel %vm5373, %v8418, %v8374
  %v8423 = vsel %vm5390, %v8419, %v8384
  %v8424 = vsel %vm5390, %v8420, %v8386
  %v8425 = vsel %vm5390, %v8421, %v8388
  %v8426 = vsel %vm5390, %v8422, %v8390
  %v8427 = vpack.c.bf16 %v8424, %v8423
  %v8428 = vpack.c.bf16 %v8426, %v8425
  %v8429 = vld [vmem:[%s16] sm:$0xf]
  %v8430 = vld [vmem:[%s16 + $0x4] sm:$0xf]
  %v8431 = vld [vmem:[%s16 + $0x8] sm:$0xf]
  %v8432 = vld [vmem:[%s16 + $0xc] sm:$0xf]
  %v8433 = vld [vmem:[%s16 + $0x10] sm:$0xf]
  %v8434 = vld [vmem:[%s16 + $0x14] sm:$0xf]
  %v8435 = vld [vmem:[%s16 + $0x18] sm:$0xf]
  %v8436 = vld [vmem:[%s16 + $0x1c] sm:$0xf]
  %v8437 = vld [vmem:[%s16 + $0x20] sm:$0xf]
  %v8447 = vunpack.c.l.b16 %v8429
  %v8448 = vunpack.c.l.b16 %v8430
  %v8449 = vunpack.c.l.b16 %v8431
  %v8450 = vunpack.c.l.b16 %v8432
  %v8451 = vunpack.c.l.b16 %v8433
  %v8452 = vunpack.c.l.b16 %v8434
  %v8453 = vunpack.c.l.b16 %v8435
  %v8454 = vunpack.c.l.b16 %v8436
  %v8455 = vunpack.c.l.b16 %v8437
  %v8456 = vpack.c.b16 %v8448, %v8447
  %v8457 = vpack.c.b16 %v8450, %v8449
  %v8458 = vpack.c.b16 %v8452, %v8451
  %v8459 = vpack.c.b16 %v8454, %v8453
  %v8460 = vpack.c.b16 %v8455, %v8455
  %v8466 = vsel %vm5451, %v8427, 0
  %v8469 = vsel %vm5451, %v8428, 0
  %v8472 = vsel %vm5476, %v8460, 0
  %8474 = vmatprep.subr.bf16.mxu0 0
  %8475 = vmatpush1.bf16.msra.mxu0 0
  %8476 = vmatprep.subr.bf16.mxu0 0
  %8477 = vmatpush1.bf16.msra.mxu0 0
  %8478 = vmatprep.subr.bf16.mxu0 0
  %8479 = vmatpush1.bf16.msra.mxu0 0
  %8480 = vmatprep.subr.bf16.mxu0 0
  %8481 = vmatpush1.bf16.msra.mxu0 %v8472
  %8482 = vmatprep.subr.bf16.mxu0 0
  %8483 = vmatpush1.bf16.msra.mxu0 %v8459
  %8484 = vmatprep.subr.bf16.mxu0 0
  %8485 = vmatpush1.bf16.msra.mxu0 %v8458
  %8486 = vmatprep.subr.bf16.mxu0 0
  %8487 = vmatpush1.bf16.msra.mxu0 %v8457
  %8488 = vmatprep.subr.bf16.mxu0 0
  %8489 = vmatpush1.bf16.msra.mxu0 %v8456
  %8490 = vmatprep.subr.bf16.mxu0 0
  %8491 = vmatpush2.bf16.msra.mxu0 0
  %8492 = vmatprep.subr.bf16.mxu0 0
  %8493 = vmatpush2.bf16.msra.mxu0 0
  %8494 = vmatprep.subr.bf16.mxu0 0
  %8495 = vmatpush2.bf16.msra.mxu0 0
  %8496 = vmatprep.subr.bf16.mxu0 0
  %8497 = vmatpush2.bf16.msra.mxu0 0
  %8498 = vmatprep.subr.bf16.mxu0 0
  %8499 = vmatpush2.bf16.msra.mxu0 0
  %8500 = vmatprep.subr.bf16.mxu0 0
  %8501 = vmatpush2.bf16.msra.mxu0 0
  %8502 = vmatprep.subr.bf16.mxu0 0
  %8503 = vmatpush2.bf16.msra.mxu0 0
  %8504 = vmatprep.subr.bf16.mxu0 0
  %8505 = vmatpush2.bf16.msra.mxu0 0
  %8506 = vmatprep.mubr.bf16.mxu0 0
  %8507 = vmatmul.mubr.bf16.gmra.mxu0 %v8466
  %v8508 = vpop.f32.mrf.mxu0
  %v8509 = vadd.f32 0.0, %v8508
  %v8510 = vpop.f32.mrf.mxu0
  %v8511 = vpop.f32.mrf.mxu0
  %v8512 = vadd.f32 0.0, %v8511
  %v8513 = vpop.f32.mrf.mxu0
  %8514 = vmatprep.mubr.bf16.mxu0 0
  %8515 = vmatmul.mubr.bf16.gmra.mxu0 %v8469
  %v8516 = vpop.f32.mrf.mxu0
  %v8517 = vadd.f32 0.0, %v8516
  %v8518 = vpop.f32.mrf.mxu0
  %v8519 = vpop.f32.mrf.mxu0
  %v8520 = vadd.f32 0.0, %v8519
  %v8521 = vpop.f32.mrf.mxu0
  %8522 = vdwg.mxu0
  %v8523 = vld [vmem:[%s17] sm:$0x1]
  %v8525 = vlaneseq
  %v8526 = vshrl.u32 %v8525, 7
  %v8527 = vsub.s32 0, %v8526
  %v8528 = vrot.slane %v8523, %v8527
  %v8530 = vmul.f32 %v8509, %v8528
  %v8531 = vmul.f32 %v8512, %v8528
  %v8532 = vmul.f32 %v8517, %v8528
  %v8533 = vmul.f32 %v8520, %v8528
  %v8534 = vld [vmem:[%s18] sm:$0x1]
  %v8536 = vlaneseq
  %v8537 = vshrl.u32 %v8536, 7
  %v8538 = vsub.s32 0, %v8537
  %v8539 = vrot.slane %v8534, %v8538
  %v8541 = vadd.f32 %v8530, %v8539
  %v8542 = vadd.f32 %v8531, %v8539
  %v8543 = vadd.f32 %v8532, %v8539
  %v8544 = vadd.f32 %v8533, %v8539
  %v8545 = vmax.f32 %v8541, 0.0
  %v8546 = vmax.f32 %v8542, 0.0
  %v8547 = vmax.f32 %v8543, 0.0
  %v8548 = vmax.f32 %v8544, 0.0
  %v8553 = vcombine.high %v8545, %v8545
  %v8554 = vcombine.high %v8546, %v8546
  %v8555 = vcombine.high %v8547, %v8547
  %v8556 = vcombine.high %v8548, %v8548
  %s8561 = scalar_lea.vmem [#allocation8], 8
  %vm8562 = vcmask 125952
  %8563 = vst.msk [vmem:[%s8561 + $0x1] sm:$0xf] %vm8562, %v8545
  %8564 = vst.msk [vmem:[%s8561 + $0x9] sm:$0xf] %vm8562, %v8553
  %8565 = vst.msk [vmem:[%s8561 + $0x11] sm:$0xf] %vm8562, %v8546
  %8566 = vst.msk [vmem:[%s8561 + $0x19] sm:$0xf] %vm8562, %v8554
  %8567 = vst.msk [vmem:[%s8561 + $0x31] sm:$0xf] %vm8562, %v8547
  %8568 = vst.msk [vmem:[%s8561 + $0x39] sm:$0xf] %vm8562, %v8555
  %8569 = vst.msk [vmem:[%s8561 + $0x41] sm:$0xf] %vm8562, %v8548
  %8570 = vst.msk [vmem:[%s8561 + $0x49] sm:$0xf] %vm8562, %v8556
  %v8571 = vld [vmem:[#allocation8] ss:$2 sm:$0x7]
  %s8572 = scalar_lea.vmem [#allocation8], 16
  %v8573 = vld [vmem:[%s8572] ss:$2 sm:$0x7]
  %s8574 = scalar_lea.vmem [#allocation8], 32
  %v8575 = vld [vmem:[%s8574] ss:$2 sm:$0x7]
  %s8576 = scalar_lea.vmem [#allocation8], 48
  %v8577 = vld [vmem:[%s8576] ss:$2 sm:$0x7]
  %s8578 = scalar_lea.vmem [#allocation8], 64
  %v8579 = vld [vmem:[%s8578] ss:$2 sm:$0x7]
  %s8580 = scalar_lea.vmem [#allocation8], 80
  %v8581 = vld [vmem:[%s8580] ss:$2 sm:$0x7]
  %s8582 = scalar_lea.vmem [#allocation8], 1
  %v8583 = vld [vmem:[%s8582] ss:$2 sm:$0x7]
  %s8584 = scalar_lea.vmem [#allocation8], 17
  %v8585 = vld [vmem:[%s8584] ss:$2 sm:$0x7]
  %s8586 = scalar_lea.vmem [#allocation8], 33
  %v8587 = vld [vmem:[%s8586] ss:$2 sm:$0x7]
  %s8588 = scalar_lea.vmem [#allocation8], 49
  %v8589 = vld [vmem:[%s8588] ss:$2 sm:$0x7]
  %s8590 = scalar_lea.vmem [#allocation8], 65
  %v8591 = vld [vmem:[%s8590] ss:$2 sm:$0x7]
  %s8592 = scalar_lea.vmem [#allocation8], 81
  %v8593 = vld [vmem:[%s8592] ss:$2 sm:$0x7]
  %v8594 = vld [vmem:[%s8561] ss:$2 sm:$0x7]
  %s8595 = scalar_lea.vmem %s8561, 16 [#allocation8]
  %v8596 = vld [vmem:[%s8595] ss:$2 sm:$0x7]
  %s8597 = scalar_lea.vmem %s8561, 48 [#allocation8]
  %v8598 = vld [vmem:[%s8597] ss:$2 sm:$0x7]
  %s8599 = scalar_lea.vmem %s8561, 64 [#allocation8]
  %v8600 = vld [vmem:[%s8599] ss:$2 sm:$0x7]
  %s8601 = scalar_lea.vmem %s8561, 1 [#allocation8]
  %v8602 = vld [vmem:[%s8601] ss:$2 sm:$0x7]
  %s8603 = scalar_lea.vmem %s8561, 17 [#allocation8]
  %v8604 = vld [vmem:[%s8603] ss:$2 sm:$0x7]
  %s8605 = scalar_lea.vmem %s8561, 49 [#allocation8]
  %v8606 = vld [vmem:[%s8605] ss:$2 sm:$0x7]
  %s8607 = scalar_lea.vmem %s8561, 65 [#allocation8]
  %v8608 = vld [vmem:[%s8607] ss:$2 sm:$0x7]
  %v8614 = vunpack.c.l.s4 1983009808
  %v8615 = vunpack.c.0.s8 %v8614
  %v8616 = vlaneseq
  %v8617 = vshrl.u32 %v8616, 7
  %v8618 = vsub.s32 %v8615, %v8617
  %v8619 = vrot.slane %v8571, %v8618
  %v8620 = vcombine.high %v8619, %v8619
  %v8622 = vunpack.c.l.s4 1983009808
  %v8623 = vunpack.c.0.s8 %v8622
  %v8624 = vlaneseq
  %v8625 = vshrl.u32 %v8624, 7
  %v8626 = vsub.s32 %v8623, %v8625
  %v8627 = vrot.slane %v8573, %v8626
  %v8628 = vcombine.high %v8627, %v8627
  %v8630 = vunpack.c.l.s4 1983009808
  %v8631 = vunpack.c.0.s8 %v8630
  %v8632 = vlaneseq
  %v8633 = vshrl.u32 %v8632, 7
  %v8634 = vsub.s32 %v8631, %v8633
  %v8635 = vrot.slane %v8577, %v8634
  %v8636 = vcombine.high %v8635, %v8635
  %v8638 = vunpack.c.l.s4 1983009808
  %v8639 = vunpack.c.0.s8 %v8638
  %v8640 = vlaneseq
  %v8641 = vshrl.u32 %v8640, 7
  %v8642 = vsub.s32 %v8639, %v8641
  %v8643 = vrot.slane %v8579, %v8642
  %v8644 = vcombine.high %v8643, %v8643
  %v8645 = vrot.slane %v8619, 7
  %v8646 = vrot.slane %v8645, 2
  %v8647 = vrot.slane %v8620, 7
  %v8648 = vsel %vm6271, %v8646, %v8647
  %v8649 = vrot.slane %v8627, 7
  %v8650 = vrot.slane %v8649, 2
  %v8651 = vrot.slane %v8628, 7
  %v8652 = vsel %vm6271, %v8650, %v8651
  %v8653 = vrot.slane %v8635, 7
  %v8654 = vrot.slane %v8653, 2
  %v8655 = vrot.slane %v8636, 7
  %v8656 = vsel %vm6271, %v8654, %v8655
  %v8657 = vrot.slane %v8643, 7
  %v8658 = vrot.slane %v8657, 2
  %v8659 = vrot.slane %v8644, 7
  %v8660 = vsel %vm6271, %v8658, %v8659
  %v8666 = vunpack.c.l.s4 1983009808
  %v8667 = vunpack.c.0.s8 %v8666
  %v8668 = vlaneseq
  %v8669 = vshrl.u32 %v8668, 7
  %v8670 = vsub.s32 %v8667, %v8669
  %v8671 = vrot.slane %v8594, %v8670
  %v8672 = vcombine.high %v8671, %v8671
  %v8674 = vunpack.c.l.s4 1983009808
  %v8675 = vunpack.c.0.s8 %v8674
  %v8676 = vlaneseq
  %v8677 = vshrl.u32 %v8676, 7
  %v8678 = vsub.s32 %v8675, %v8677
  %v8679 = vrot.slane %v8596, %v8678
  %v8680 = vcombine.high %v8679, %v8679
  %v8682 = vunpack.c.l.s4 1983009808
  %v8683 = vunpack.c.0.s8 %v8682
  %v8684 = vlaneseq
  %v8685 = vshrl.u32 %v8684, 7
  %v8686 = vsub.s32 %v8683, %v8685
  %v8687 = vrot.slane %v8598, %v8686
  %v8688 = vcombine.high %v8687, %v8687
  %v8690 = vunpack.c.l.s4 1983009808
  %v8691 = vunpack.c.0.s8 %v8690
  %v8692 = vlaneseq
  %v8693 = vshrl.u32 %v8692, 7
  %v8694 = vsub.s32 %v8691, %v8693
  %v8695 = vrot.slane %v8600, %v8694
  %v8696 = vcombine.high %v8695, %v8695
  %v8697 = vrot.slane %v8671, 7
  %v8698 = vrot.slane %v8697, 2
  %v8699 = vrot.slane %v8672, 7
  %v8700 = vsel %vm6271, %v8698, %v8699
  %v8701 = vrot.slane %v8679, 7
  %v8702 = vrot.slane %v8701, 2
  %v8703 = vrot.slane %v8680, 7
  %v8704 = vsel %vm6271, %v8702, %v8703
  %v8705 = vrot.slane %v8687, 7
  %v8706 = vrot.slane %v8705, 2
  %v8707 = vrot.slane %v8688, 7
  %v8708 = vsel %vm6271, %v8706, %v8707
  %v8709 = vrot.slane %v8695, 7
  %v8710 = vrot.slane %v8709, 2
  %v8711 = vrot.slane %v8696, 7
  %v8712 = vsel %vm6271, %v8710, %v8711
  %v8716 = vunpack.c.l.s4 1983009808
  %v8717 = vunpack.c.0.s8 %v8716
  %v8718 = vlaneseq
  %v8719 = vshrl.u32 %v8718, 7
  %v8720 = vsub.s32 %v8717, %v8719
  %v8721 = vrot.slane %v8575, %v8720
  %v8722 = vcombine.high %v8721, %v8721
  %v8724 = vunpack.c.l.s4 1983009808
  %v8725 = vunpack.c.0.s8 %v8724
  %v8726 = vlaneseq
  %v8727 = vshrl.u32 %v8726, 7
  %v8728 = vsub.s32 %v8725, %v8727
  %v8729 = vrot.slane %v8581, %v8728
  %v8730 = vcombine.high %v8729, %v8729
  %v8731 = vrot.slane %v8721, 7
  %v8732 = vrot.slane %v8731, 2
  %v8733 = vrot.slane %v8722, 7
  %v8734 = vsel %vm6271, %v8732, %v8733
  %v8735 = vrot.slane %v8729, 7
  %v8736 = vrot.slane %v8735, 2
  %v8737 = vrot.slane %v8730, 7
  %v8738 = vsel %vm6271, %v8736, %v8737
  %v8739 = vcombine.low %v8571, %v8573
  %v8740 = vcombine.low %v8577, %v8579
  %v8742 = vunpack.c.l.s4 1983009808
  %v8743 = vunpack.c.0.s8 %v8742
  %v8744 = vlaneseq
  %v8745 = vshrl.u32 %v8744, 7
  %v8746 = vsub.s32 %v8743, %v8745
  %v8747 = vrot.slane %v8739, %v8746
  %v8749 = vunpack.c.l.s4 1983009808
  %v8750 = vunpack.c.0.s8 %v8749
  %v8751 = vlaneseq
  %v8752 = vshrl.u32 %v8751, 7
  %v8753 = vsub.s32 %v8750, %v8752
  %v8754 = vrot.slane %v8740, %v8753
  %v8755 = vcombine.low %v8747, %v8754
  %v8761 = vcombine.low %v8583, %v8585
  %v8762 = vcombine.low %v8589, %v8591
  %v8764 = vunpack.c.l.s4 1983009808
  %v8765 = vunpack.c.0.s8 %v8764
  %v8766 = vlaneseq
  %v8767 = vshrl.u32 %v8766, 7
  %v8768 = vsub.s32 %v8765, %v8767
  %v8769 = vrot.slane %v8761, %v8768
  %v8771 = vunpack.c.l.s4 1983009808
  %v8772 = vunpack.c.0.s8 %v8771
  %v8773 = vlaneseq
  %v8774 = vshrl.u32 %v8773, 7
  %v8775 = vsub.s32 %v8772, %v8774
  %v8776 = vrot.slane %v8762, %v8775
  %v8777 = vcombine.low %v8769, %v8776
  %8778 = vrot.lane.b32.xlu0 %v8777, 16
  %v8779 = vpop.permute.xlu0 %8778
  %v8781 = vcombine.low %v8648, %v8652
  %v8782 = vcombine.low %v8656, %v8660
  %v8784 = vunpack.c.l.s4 1983009808
  %v8785 = vunpack.c.0.s8 %v8784
  %v8786 = vlaneseq
  %v8787 = vshrl.u32 %v8786, 7
  %v8788 = vsub.s32 %v8785, %v8787
  %v8789 = vrot.slane %v8781, %v8788
  %v8791 = vunpack.c.l.s4 1983009808
  %v8792 = vunpack.c.0.s8 %v8791
  %v8793 = vlaneseq
  %v8794 = vshrl.u32 %v8793, 7
  %v8795 = vsub.s32 %v8792, %v8794
  %v8796 = vrot.slane %v8782, %v8795
  %v8797 = vcombine.low %v8789, %v8796
  %8798 = vrot.lane.b32.xlu0 %v8797, 32
  %v8799 = vpop.permute.xlu0 %8798
  %v8801 = vcombine.low %v8594, %v8596
  %v8802 = vcombine.low %v8598, %v8600
  %v8804 = vunpack.c.l.s4 1983009808
  %v8805 = vunpack.c.0.s8 %v8804
  %v8806 = vlaneseq
  %v8807 = vshrl.u32 %v8806, 7
  %v8808 = vsub.s32 %v8805, %v8807
  %v8809 = vrot.slane %v8801, %v8808
  %v8811 = vunpack.c.l.s4 1983009808
  %v8812 = vunpack.c.0.s8 %v8811
  %v8813 = vlaneseq
  %v8814 = vshrl.u32 %v8813, 7
  %v8815 = vsub.s32 %v8812, %v8814
  %v8816 = vrot.slane %v8802, %v8815
  %v8817 = vcombine.low %v8809, %v8816
  %8818 = vrot.lane.b32.xlu0 %v8817, 48
  %v8819 = vpop.permute.xlu0 %8818
  %v8825 = vcombine.low %v8602, %v8604
  %v8826 = vcombine.low %v8606, %v8608
  %v8828 = vunpack.c.l.s4 1983009808
  %v8829 = vunpack.c.0.s8 %v8828
  %v8830 = vlaneseq
  %v8831 = vshrl.u32 %v8830, 7
  %v8832 = vsub.s32 %v8829, %v8831
  %v8833 = vrot.slane %v8825, %v8832
  %v8835 = vunpack.c.l.s4 1983009808
  %v8836 = vunpack.c.0.s8 %v8835
  %v8837 = vlaneseq
  %v8838 = vshrl.u32 %v8837, 7
  %v8839 = vsub.s32 %v8836, %v8838
  %v8840 = vrot.slane %v8826, %v8839
  %v8841 = vcombine.low %v8833, %v8840
  %8842 = vrot.lane.b32.xlu0 %v8841, 64
  %v8843 = vpop.permute.xlu0 %8842
  %v8845 = vcombine.low %v8700, %v8704
  %v8846 = vcombine.low %v8708, %v8712
  %v8848 = vunpack.c.l.s4 1983009808
  %v8849 = vunpack.c.0.s8 %v8848
  %v8850 = vlaneseq
  %v8851 = vshrl.u32 %v8850, 7
  %v8852 = vsub.s32 %v8849, %v8851
  %v8853 = vrot.slane %v8845, %v8852
  %v8855 = vunpack.c.l.s4 1983009808
  %v8856 = vunpack.c.0.s8 %v8855
  %v8857 = vlaneseq
  %v8858 = vshrl.u32 %v8857, 7
  %v8859 = vsub.s32 %v8856, %v8858
  %v8860 = vrot.slane %v8846, %v8859
  %v8861 = vcombine.low %v8853, %v8860
  %8862 = vrot.lane.b32.xlu0 %v8861, 80
  %v8863 = vpop.permute.xlu0 %8862
  %v8865 = vcombine.low %v8573, %v8575
  %v8866 = vcombine.low %v8579, %v8581
  %v8868 = vunpack.c.l.s4 1983009808
  %v8869 = vunpack.c.0.s8 %v8868
  %v8870 = vlaneseq
  %v8871 = vshrl.u32 %v8870, 7
  %v8872 = vsub.s32 %v8869, %v8871
  %v8873 = vrot.slane %v8865, %v8872
  %v8875 = vunpack.c.l.s4 1983009808
  %v8876 = vunpack.c.0.s8 %v8875
  %v8877 = vlaneseq
  %v8878 = vshrl.u32 %v8877, 7
  %v8879 = vsub.s32 %v8876, %v8878
  %v8880 = vrot.slane %v8866, %v8879
  %v8881 = vcombine.low %v8873, %v8880
  %8882 = vrot.lane.b32.xlu0 %v8881, 96
  %v8883 = vpop.permute.xlu0 %8882
  %v8887 = vcombine.low %v8585, %v8587
  %v8888 = vcombine.low %v8591, %v8593
  %v8890 = vunpack.c.l.s4 1983009808
  %v8891 = vunpack.c.0.s8 %v8890
  %v8892 = vlaneseq
  %v8893 = vshrl.u32 %v8892, 7
  %v8894 = vsub.s32 %v8891, %v8893
  %v8895 = vrot.slane %v8887, %v8894
  %v8897 = vunpack.c.l.s4 1983009808
  %v8898 = vunpack.c.0.s8 %v8897
  %v8899 = vlaneseq
  %v8900 = vshrl.u32 %v8899, 7
  %v8901 = vsub.s32 %v8898, %v8900
  %v8902 = vrot.slane %v8888, %v8901
  %v8903 = vcombine.low %v8895, %v8902
  %8904 = vrot.lane.b32.xlu0 %v8903, 112
  %v8905 = vpop.permute.xlu0 %8904
  %v8907 = vcombine.low %v8652, %v8734
  %v8908 = vcombine.low %v8660, %v8738
  %v8910 = vunpack.c.l.s4 1983009808
  %v8911 = vunpack.c.0.s8 %v8910
  %v8912 = vlaneseq
  %v8913 = vshrl.u32 %v8912, 7
  %v8914 = vsub.s32 %v8911, %v8913
  %v8915 = vrot.slane %v8907, %v8914
  %v8917 = vunpack.c.l.s4 1983009808
  %v8918 = vunpack.c.0.s8 %v8917
  %v8919 = vlaneseq
  %v8920 = vshrl.u32 %v8919, 7
  %v8921 = vsub.s32 %v8918, %v8920
  %v8922 = vrot.slane %v8908, %v8921
  %v8923 = vcombine.low %v8915, %v8922
  %v8925 = vsel %vm257, %v8755, %v8779
  %v8926 = vsel %vm5323, %v8925, %v8799
  %v8927 = vsel %vm3698, %v8926, %v8819
  %v8928 = vsel %vm5390, %v8927, %v8843
  %v8929 = vsel %vm5998, %v8928, %v8863
  %v8930 = vsel %vm6003, %v8929, %v8883
  %v8931 = vsel %vm6008, %v8930, %v8905
  %v8932 = vpack.c.bf16 %v8931, %v8931
  %v8933 = vpack.c.bf16 %v8923, %v8923
  %v8934 = vld [vmem:[%s19] sm:$0xf]
  %v8935 = vld [vmem:[%s19 + $0x4] sm:$0xf]
  %v8936 = vld [vmem:[%s19 + $0x8] sm:$0xf]
  %v8937 = vld [vmem:[%s19 + $0xc] sm:$0xf]
  %v8938 = vld [vmem:[%s19 + $0x10] sm:$0xf]
  %v8939 = vld [vmem:[%s19 + $0x14] sm:$0xf]
  %v8940 = vld [vmem:[%s19 + $0x18] sm:$0xf]
  %v8941 = vld [vmem:[%s19 + $0x1c] sm:$0xf]
  %v8942 = vld [vmem:[%s19 + $0x20] sm:$0xf]
  %v8943 = vld [vmem:[%s19 + $0x24] sm:$0xf]
  %v8944 = vld [vmem:[%s19 + $0x28] sm:$0xf]
  %v8945 = vld [vmem:[%s19 + $0x2c] sm:$0xf]
  %v8946 = vld [vmem:[%s19 + $0x30] sm:$0xf]
  %v8947 = vld [vmem:[%s19 + $0x34] sm:$0xf]
  %v8948 = vld [vmem:[%s19 + $0x38] sm:$0xf]
  %v8949 = vld [vmem:[%s19 + $0x3c] sm:$0xf]
  %v8950 = vld [vmem:[%s19 + $0x40] sm:$0xf]
  %v8951 = vld [vmem:[%s19 + $0x44] sm:$0xf]
  %v8970 = vunpack.c.l.b16 %v8934
  %v8971 = vunpack.c.l.b16 %v8935
  %v8972 = vunpack.c.l.b16 %v8936
  %v8973 = vunpack.c.l.b16 %v8937
  %v8974 = vunpack.c.l.b16 %v8938
  %v8975 = vunpack.c.l.b16 %v8939
  %v8976 = vunpack.c.l.b16 %v8940
  %v8977 = vunpack.c.l.b16 %v8941
  %v8978 = vunpack.c.l.b16 %v8942
  %v8979 = vunpack.c.l.b16 %v8943
  %v8980 = vunpack.c.l.b16 %v8944
  %v8981 = vunpack.c.l.b16 %v8945
  %v8982 = vunpack.c.l.b16 %v8946
  %v8983 = vunpack.c.l.b16 %v8947
  %v8984 = vunpack.c.l.b16 %v8948
  %v8985 = vunpack.c.l.b16 %v8949
  %v8986 = vunpack.c.l.b16 %v8950
  %v8987 = vunpack.c.l.b16 %v8951
  %v8988 = vpack.c.b16 %v8971, %v8970
  %v8989 = vpack.c.b16 %v8973, %v8972
  %v8990 = vpack.c.b16 %v8975, %v8974
  %v8991 = vpack.c.b16 %v8977, %v8976
  %v8992 = vpack.c.b16 %v8979, %v8978
  %v8993 = vpack.c.b16 %v8981, %v8980
  %v8994 = vpack.c.b16 %v8983, %v8982
  %v8995 = vpack.c.b16 %v8985, %v8984
  %v8996 = vpack.c.b16 %v8987, %v8986
  %v9007 = vsel %vm257, %v8933, 0
  %9009 = vmatprep.subr.bf16.mxu0 0
  %9010 = vmatpush1.bf16.msra.mxu0 %v8995
  %9011 = vmatprep.subr.bf16.mxu0 0
  %9012 = vmatpush1.bf16.msra.mxu0 %v8994
  %9013 = vmatprep.subr.bf16.mxu0 0
  %9014 = vmatpush1.bf16.msra.mxu0 %v8993
  %9015 = vmatprep.subr.bf16.mxu0 0
  %9016 = vmatpush1.bf16.msra.mxu0 %v8992
  %9017 = vmatprep.subr.bf16.mxu0 0
  %9018 = vmatpush1.bf16.msra.mxu0 %v8991
  %9019 = vmatprep.subr.bf16.mxu0 0
  %9020 = vmatpush1.bf16.msra.mxu0 %v8990
  %9021 = vmatprep.subr.bf16.mxu0 0
  %9022 = vmatpush1.bf16.msra.mxu0 %v8989
  %9023 = vmatprep.subr.bf16.mxu0 0
  %9024 = vmatpush1.bf16.msra.mxu0 %v8988
  %9025 = vmatprep.subr.bf16.mxu0 0
  %9026 = vmatpush2.bf16.msra.mxu0 0
  %9027 = vmatprep.subr.bf16.mxu0 0
  %9028 = vmatpush2.bf16.msra.mxu0 0
  %9029 = vmatprep.subr.bf16.mxu0 0
  %9030 = vmatpush2.bf16.msra.mxu0 0
  %9031 = vmatprep.subr.bf16.mxu0 0
  %9032 = vmatpush2.bf16.msra.mxu0 0
  %9033 = vmatprep.subr.bf16.mxu0 0
  %9034 = vmatpush2.bf16.msra.mxu0 0
  %9035 = vmatprep.subr.bf16.mxu0 0
  %9036 = vmatpush2.bf16.msra.mxu0 0
  %9037 = vmatprep.subr.bf16.mxu0 0
  %9038 = vmatpush2.bf16.msra.mxu0 0
  %9039 = vmatprep.subr.bf16.mxu0 0
  %9040 = vmatpush2.bf16.msra.mxu0 %v8996
  %9041 = vmatprep.mubr.bf16.mxu0 %v9007
  %9042 = vmatmul.mubr.bf16.gmra.mxu0 %v8932
  %v9043 = vpop.f32.mrf.mxu0
  %v9044 = vadd.f32 0.0, %v9043
  %v9045 = vpop.f32.mrf.mxu0
  %v9046 = vpop.f32.mrf.mxu0
  %v9047 = vpop.f32.mrf.mxu0
  %9048 = vdwg.mxu0
  %v9049 = vld [vmem:[%s20] sm:$0x1]
  %v9051 = vlaneseq
  %v9052 = vshrl.u32 %v9051, 7
  %v9053 = vsub.s32 0, %v9052
  %v9054 = vrot.slane %v9049, %v9053
  %v9056 = vmul.f32 %v9044, %v9054
  %v9057 = vld [vmem:[%s21] sm:$0x1]
  %v9059 = vlaneseq
  %v9060 = vshrl.u32 %v9059, 7
  %v9061 = vsub.s32 0, %v9060
  %v9062 = vrot.slane %v9057, %v9061
  %v9064 = vadd.f32 %v9056, %v9062
  %v9065 = vmax.f32 %v9064, 0.0
  %v9067 = vcombine.high %v9065, %v9065
  %v9069 = vunpack.c.l.s4 1983009808
  %v9070 = vunpack.c.0.s8 %v9069
  %v9071 = vlaneseq
  %v9072 = vshrl.u32 %v9071, 7
  %v9073 = vsub.s32 %v9070, %v9072
  %v9074 = vrot.slane %v9065, %v9073
  %v9076 = vunpack.c.l.s4 1983009808
  %v9077 = vunpack.c.0.s8 %v9076
  %v9078 = vlaneseq
  %v9079 = vshrl.u32 %v9078, 7
  %v9080 = vsub.s32 %v9077, %v9079
  %v9081 = vrot.slane %v9067, %v9080
  %v9082 = vcombine.high %v9074, %v9074
  %v9083 = vcombine.high %v9081, %v9081
  %s9088 = scalar_lea.vmem [#allocation9], 4
  %vm9089 = vcmask 254976
  %9090 = vst.msk [vmem:[%s9088 + $0x1] sm:$0x3] %vm9089, %v9074
  %9091 = vst.msk [vmem:[%s9088 + $0x5] sm:$0x3] %vm9089, %v9082
  %9092 = vst.msk [vmem:[%s9088 + $0x11] sm:$0x3] %vm9089, %v9081
  %9093 = vst.msk [vmem:[%s9088 + $0x15] sm:$0x3] %vm9089, %v9083
  %v9094 = vld [vmem:[#allocation9] ss:$2 sm:$0x3]
  %s9095 = scalar_lea.vmem [#allocation9], 8
  %v9096 = vld [vmem:[%s9095] ss:$2 sm:$0x3]
  %s9097 = scalar_lea.vmem [#allocation9], 16
  %v9098 = vld [vmem:[%s9097] ss:$2 sm:$0x3]
  %s9099 = scalar_lea.vmem [#allocation9], 24
  %v9100 = vld [vmem:[%s9099] ss:$2 sm:$0x3]
  %s9101 = scalar_lea.vmem [#allocation9], 1
  %v9102 = vld [vmem:[%s9101] ss:$2 sm:$0x3]
  %s9103 = scalar_lea.vmem [#allocation9], 9
  %v9104 = vld [vmem:[%s9103] ss:$2 sm:$0x3]
  %s9105 = scalar_lea.vmem [#allocation9], 17
  %v9106 = vld [vmem:[%s9105] ss:$2 sm:$0x3]
  %s9107 = scalar_lea.vmem [#allocation9], 25
  %v9108 = vld [vmem:[%s9107] ss:$2 sm:$0x3]
  %v9109 = vld [vmem:[%s9088] ss:$2 sm:$0x3]
  %s9110 = scalar_lea.vmem %s9088, 16 [#allocation9]
  %v9111 = vld [vmem:[%s9110] ss:$2 sm:$0x3]
  %s9112 = scalar_lea.vmem %s9088, 1 [#allocation9]
  %v9113 = vld [vmem:[%s9112] ss:$2 sm:$0x3]
  %s9114 = scalar_lea.vmem %s9088, 17 [#allocation9]
  %v9115 = vld [vmem:[%s9114] ss:$2 sm:$0x3]
  %v9118 = vrot.slane %v9098, 7
  %v9119 = vsel %vm6823, %v9118, %v9094
  %v9123 = vrot.slane %v9106, 7
  %v9124 = vsel %vm6823, %v9123, %v9102
  %9125 = vrot.lane.b32.xlu0 %v9124, 32
  %v9126 = vpop.permute.xlu0 %9125
  %v9128 = vrot.slane %v9094, 1
  %v9129 = vsel %vm6823, %v9098, %v9128
  %9130 = vrot.lane.b32.xlu0 %v9129, 64
  %v9131 = vpop.permute.xlu0 %9130
  %v9135 = vrot.slane %v9111, 7
  %v9136 = vsel %vm6823, %v9135, %v9109
  %9137 = vrot.lane.b32.xlu0 %v9136, 96
  %v9138 = vpop.permute.xlu0 %9137
  %v9142 = vrot.slane %v9115, 7
  %v9143 = vsel %vm6823, %v9142, %v9113
  %v9145 = vrot.slane %v9109, 1
  %v9146 = vsel %vm6823, %v9111, %v9145
  %9147 = vrot.lane.b32.xlu0 %v9146, 32
  %v9148 = vpop.permute.xlu0 %9147
  %v9152 = vrot.slane %v9100, 7
  %v9153 = vsel %vm6823, %v9152, %v9096
  %9154 = vrot.lane.b32.xlu0 %v9153, 64
  %v9155 = vpop.permute.xlu0 %9154
  %v9159 = vrot.slane %v9108, 7
  %v9160 = vsel %vm6823, %v9159, %v9104
  %9161 = vrot.lane.b32.xlu0 %v9160, 96
  %v9162 = vpop.permute.xlu0 %9161
  %v9164 = vrot.slane %v9096, 1
  %v9165 = vsel %vm6823, %v9100, %v9164
  %v9167 = vsel %vm5323, %v9119, %v9126
  %v9168 = vsel %vm5390, %v9167, %v9131
  %v9169 = vsel %vm6003, %v9168, %v9138
  %v9170 = vsel %vm5323, %v9143, %v9148
  %v9171 = vsel %vm5390, %v9170, %v9155
  %v9172 = vsel %vm6003, %v9171, %v9162
  %v9173 = vpack.c.bf16 %v9169, %v9169
  %v9174 = vpack.c.bf16 %v9172, %v9172
  %v9175 = vpack.c.bf16 %v9165, %v9165
  %v9176 = vld [vmem:[%s22] sm:$0xf]
  %v9177 = vld [vmem:[%s22 + $0x4] sm:$0xf]
  %v9178 = vld [vmem:[%s22 + $0x8] sm:$0xf]
  %v9179 = vld [vmem:[%s22 + $0xc] sm:$0xf]
  %v9180 = vld [vmem:[%s22 + $0x10] sm:$0xf]
  %v9181 = vld [vmem:[%s22 + $0x14] sm:$0xf]
  %v9182 = vld [vmem:[%s22 + $0x18] sm:$0xf]
  %v9183 = vld [vmem:[%s22 + $0x1c] sm:$0xf]
  %v9184 = vld [vmem:[%s22 + $0x20] sm:$0xf]
  %v9185 = vld [vmem:[%s22 + $0x24] sm:$0xf]
  %v9186 = vld [vmem:[%s22 + $0x28] sm:$0xf]
  %v9187 = vld [vmem:[%s22 + $0x2c] sm:$0xf]
  %v9188 = vld [vmem:[%s22 + $0x30] sm:$0xf]
  %v9189 = vld [vmem:[%s22 + $0x34] sm:$0xf]
  %v9190 = vld [vmem:[%s22 + $0x38] sm:$0xf]
  %v9191 = vld [vmem:[%s22 + $0x3c] sm:$0xf]
  %v9192 = vld [vmem:[%s22 + $0x40] sm:$0xf]
  %v9193 = vld [vmem:[%s22 + $0x44] sm:$0xf]
  %v9194 = vld [vmem:[%s22 + $0x48] sm:$0xf]
  %v9195 = vld [vmem:[%s22 + $0x4c] sm:$0xf]
  %v9196 = vld [vmem:[%s22 + $0x50] sm:$0xf]
  %v9197 = vld [vmem:[%s22 + $0x54] sm:$0xf]
  %v9198 = vld [vmem:[%s22 + $0x58] sm:$0xf]
  %v9199 = vld [vmem:[%s22 + $0x5c] sm:$0xf]
  %v9200 = vld [vmem:[%s22 + $0x60] sm:$0xf]
  %v9201 = vld [vmem:[%s22 + $0x64] sm:$0xf]
  %v9202 = vld [vmem:[%s22 + $0x68] sm:$0xf]
  %v9203 = vld [vmem:[%s22 + $0x6c] sm:$0xf]
  %v9204 = vld [vmem:[%s22 + $0x70] sm:$0xf]
  %v9205 = vld [vmem:[%s22 + $0x74] sm:$0xf]
  %v9206 = vld [vmem:[%s22 + $0x78] sm:$0xf]
  %v9207 = vld [vmem:[%s22 + $0x7c] sm:$0xf]
  %v9208 = vld [vmem:[%s22 + $0x80] sm:$0xf]
  %v9209 = vld [vmem:[%s22 + $0x84] sm:$0xf]
  %v9210 = vld [vmem:[%s22 + $0x88] sm:$0xf]
  %v9211 = vld [vmem:[%s22 + $0x8c] sm:$0xf]
  %v9248 = vunpack.c.l.b16 %v9176
  %v9249 = vunpack.c.l.b16 %v9177
  %v9250 = vunpack.c.l.b16 %v9178
  %v9251 = vunpack.c.l.b16 %v9179
  %v9252 = vunpack.c.l.b16 %v9180
  %v9253 = vunpack.c.l.b16 %v9181
  %v9254 = vunpack.c.l.b16 %v9182
  %v9255 = vunpack.c.l.b16 %v9183
  %v9256 = vunpack.c.l.b16 %v9184
  %v9257 = vunpack.c.l.b16 %v9185
  %v9258 = vunpack.c.l.b16 %v9186
  %v9259 = vunpack.c.l.b16 %v9187
  %v9260 = vunpack.c.l.b16 %v9188
  %v9261 = vunpack.c.l.b16 %v9189
  %v9262 = vunpack.c.l.b16 %v9190
  %v9263 = vunpack.c.l.b16 %v9191
  %v9264 = vunpack.c.l.b16 %v9192
  %v9265 = vunpack.c.l.b16 %v9193
  %v9266 = vunpack.c.l.b16 %v9194
  %v9267 = vunpack.c.l.b16 %v9195
  %v9268 = vunpack.c.l.b16 %v9196
  %v9269 = vunpack.c.l.b16 %v9197
  %v9270 = vunpack.c.l.b16 %v9198
  %v9271 = vunpack.c.l.b16 %v9199
  %v9272 = vunpack.c.l.b16 %v9200
  %v9273 = vunpack.c.l.b16 %v9201
  %v9274 = vunpack.c.l.b16 %v9202
  %v9275 = vunpack.c.l.b16 %v9203
  %v9276 = vunpack.c.l.b16 %v9204
  %v9277 = vunpack.c.l.b16 %v9205
  %v9278 = vunpack.c.l.b16 %v9206
  %v9279 = vunpack.c.l.b16 %v9207
  %v9280 = vunpack.c.l.b16 %v9208
  %v9281 = vunpack.c.l.b16 %v9209
  %v9282 = vunpack.c.l.b16 %v9210
  %v9283 = vunpack.c.l.b16 %v9211
  %v9284 = vpack.c.b16 %v9249, %v9248
  %v9285 = vpack.c.b16 %v9251, %v9250
  %v9286 = vpack.c.b16 %v9253, %v9252
  %v9287 = vpack.c.b16 %v9255, %v9254
  %v9288 = vpack.c.b16 %v9257, %v9256
  %v9289 = vpack.c.b16 %v9259, %v9258
  %v9290 = vpack.c.b16 %v9261, %v9260
  %v9291 = vpack.c.b16 %v9263, %v9262
  %v9292 = vpack.c.b16 %v9265, %v9264
  %v9293 = vpack.c.b16 %v9267, %v9266
  %v9294 = vpack.c.b16 %v9269, %v9268
  %v9295 = vpack.c.b16 %v9271, %v9270
  %v9296 = vpack.c.b16 %v9273, %v9272
  %v9297 = vpack.c.b16 %v9275, %v9274
  %v9298 = vpack.c.b16 %v9277, %v9276
  %v9299 = vpack.c.b16 %v9279, %v9278
  %v9300 = vpack.c.b16 %v9281, %v9280
  %v9301 = vpack.c.b16 %v9283, %v9282
  %v9321 = vsel %vm5323, %v9175, 0
  %9323 = vmatprep.subr.bf16.mxu0 0
  %9324 = vmatpush1.bf16.msra.mxu0 %v9291
  %9325 = vmatprep.subr.bf16.mxu0 0
  %9326 = vmatpush1.bf16.msra.mxu0 %v9290
  %9327 = vmatprep.subr.bf16.mxu0 0
  %9328 = vmatpush1.bf16.msra.mxu0 %v9289
  %9329 = vmatprep.subr.bf16.mxu0 0
  %9330 = vmatpush1.bf16.msra.mxu0 %v9288
  %9331 = vmatprep.subr.bf16.mxu0 0
  %9332 = vmatpush1.bf16.msra.mxu0 %v9287
  %9333 = vmatprep.subr.bf16.mxu0 0
  %9334 = vmatpush1.bf16.msra.mxu0 %v9286
  %9335 = vmatprep.subr.bf16.mxu0 0
  %9336 = vmatpush1.bf16.msra.mxu0 %v9285
  %9337 = vmatprep.subr.bf16.mxu0 0
  %9338 = vmatpush1.bf16.msra.mxu0 %v9284
  %9339 = vmatprep.subr.bf16.mxu0 0
  %9340 = vmatpush2.bf16.msra.mxu0 %v9299
  %9341 = vmatprep.subr.bf16.mxu0 0
  %9342 = vmatpush2.bf16.msra.mxu0 %v9298
  %9343 = vmatprep.subr.bf16.mxu0 0
  %9344 = vmatpush2.bf16.msra.mxu0 %v9297
  %9345 = vmatprep.subr.bf16.mxu0 0
  %9346 = vmatpush2.bf16.msra.mxu0 %v9296
  %9347 = vmatprep.subr.bf16.mxu0 0
  %9348 = vmatpush2.bf16.msra.mxu0 %v9295
  %9349 = vmatprep.subr.bf16.mxu0 0
  %9350 = vmatpush2.bf16.msra.mxu0 %v9294
  %9351 = vmatprep.subr.bf16.mxu0 0
  %9352 = vmatpush2.bf16.msra.mxu0 %v9293
  %9353 = vmatprep.subr.bf16.mxu0 0
  %9354 = vmatpush2.bf16.msra.mxu0 %v9292
  %9355 = vmatprep.mubr.bf16.mxu0 %v9174
  %9356 = vmatmul.mubr.bf16.gmra.mxu0 %v9173
  %v9357 = vpop.f32.mrf.mxu0
  %v9358 = vadd.f32 0.0, %v9357
  %v9359 = vpop.f32.mrf.mxu0
  %v9360 = vpop.f32.mrf.mxu0
  %v9361 = vpop.f32.mrf.mxu0
  %9362 = vdwg.mxu0
  %9363 = vmatprep.subr.bf16.mxu0 0
  %9364 = vmatpush1.bf16.msra.mxu0 0
  %9365 = vmatprep.subr.bf16.mxu0 0
  %9366 = vmatpush1.bf16.msra.mxu0 0
  %9367 = vmatprep.subr.bf16.mxu0 0
  %9368 = vmatpush1.bf16.msra.mxu0 0
  %9369 = vmatprep.subr.bf16.mxu0 0
  %9370 = vmatpush1.bf16.msra.mxu0 0
  %9371 = vmatprep.subr.bf16.mxu0 0
  %9372 = vmatpush1.bf16.msra.mxu0 0
  %9373 = vmatprep.subr.bf16.mxu0 0
  %9374 = vmatpush1.bf16.msra.mxu0 0
  %9375 = vmatprep.subr.bf16.mxu0 0
  %9376 = vmatpush1.bf16.msra.mxu0 %v9301
  %9377 = vmatprep.subr.bf16.mxu0 0
  %9378 = vmatpush1.bf16.msra.mxu0 %v9300
  %9379 = vmatprep.subr.bf16.mxu0 0
  %9380 = vmatpush2.bf16.msra.mxu0 0
  %9381 = vmatprep.subr.bf16.mxu0 0
  %9382 = vmatpush2.bf16.msra.mxu0 0
  %9383 = vmatprep.subr.bf16.mxu0 0
  %9384 = vmatpush2.bf16.msra.mxu0 0
  %9385 = vmatprep.subr.bf16.mxu0 0
  %9386 = vmatpush2.bf16.msra.mxu0 0
  %9387 = vmatprep.subr.bf16.mxu0 0
  %9388 = vmatpush2.bf16.msra.mxu0 0
  %9389 = vmatprep.subr.bf16.mxu0 0
  %9390 = vmatpush2.bf16.msra.mxu0 0
  %9391 = vmatprep.subr.bf16.mxu0 0
  %9392 = vmatpush2.bf16.msra.mxu0 0
  %9393 = vmatprep.subr.bf16.mxu0 0
  %9394 = vmatpush2.bf16.msra.mxu0 0
  %9395 = vmatprep.mubr.bf16.mxu0 0
  %9396 = vmatmul.mubr.bf16.gmra.mxu0 %v9321
  %v9397 = vpop.f32.mrf.mxu0
  %v9398 = vadd.f32 %v9358, %v9397
  %v9399 = vpop.f32.mrf.mxu0
  %v9400 = vpop.f32.mrf.mxu0
  %v9401 = vpop.f32.mrf.mxu0
  %9402 = vdwg.mxu0
  %v9403 = vld [vmem:[%s23] sm:$0x1]
  %v9405 = vlaneseq
  %v9406 = vshrl.u32 %v9405, 7
  %v9407 = vsub.s32 0, %v9406
  %v9408 = vrot.slane %v9403, %v9407
  %v9410 = vmul.f32 %v9398, %v9408
  %v9411 = vld [vmem:[%s24] sm:$0x1]
  %v9413 = vlaneseq
  %v9414 = vshrl.u32 %v9413, 7
  %v9415 = vsub.s32 0, %v9414
  %v9416 = vrot.slane %v9411, %v9415
  %v9418 = vadd.f32 %v9410, %v9416
  %v9419 = vmax.f32 %v9418, 0.0
  %v9420 = vadd.f32 %v9419, 0.0
  %v9421 = vsel %vm6826, %v9420, 0.0
  %9422 = vadd.xlane.f32.xlu0 %v9421
  %v9423 = vpop.xlane.xlu0 %9422
  %v9424 = vmul.f32 %v9423, 0.015625
  %v9425 = vadd.f32 %v6830, %v9424
  %v9426 = vmul.f32 %v9425, 0.5
  %v9427 = vtanh.pop %v9426
  %v9428 = vadd.f32 %v9427, 1.0
  %v9429 = vmul.f32 %v9428, 0.5
  %vm9430 = vcmask 1024
  %9431 = vst.msk [vmem:[%s25] sm:$0x3] %vm9430, %v9429
  // Predicated region
  $region102: #{tpu_custom_call.1} parent=0 // pred_check
    _
  $region103: #{tpu_custom_call.1} parent=0 // pred_check_branch
    %9433 = sbr.rel (0) target = $region105
  $region104: #{tpu_custom_call.1} parent=0 // pred_region
    _
  $region105: #{tpu_custom_call.1} parent=0 // pred_fallthru
    _
  // Predicated region
  $region106: #{tpu_custom_call.1} parent=0 // pred_check
    _
  $region107: #{tpu_custom_call.1} parent=0 // pred_check_branch
    %9435 = sbr.rel (0) target = $region109
  $region108: #{tpu_custom_call.1} parent=0 // pred_region
    _
  $region109: #{tpu_custom_call.1} parent=0 // pred_fallthru
    _

</llo_original>
